<compile_context>
chip_gen: v5e
topology: v5e:2x2
jax: 0.10.0
libtpu: 0.0.40
codegen_flags: <defaults>
</compile_context>

<pallas_src>
import jax
import jax.numpy as jnp
from jax import lax
from jax.experimental import pallas as pl
from jax.experimental.pallas import tpu as pltpu

BETA = 0.9
THRESH = 1.0
POS = 225          # 15*15 pooled output positions
PPAD = 256         # positions padded to a 128-lane-aligned size
K_IN = 50          # 2*5*5 im2col patch length
K_PAD = 56         # patch length + bias row, padded to a sublane multiple of 8
C_HID = 32         # conv output channels
N_OUT = 10


# ---------------- Fused kernel: Conv(1 matmul, bias folded) + MaxPool + Leaky1 + FC + Leaky2 ----
def snn_fused_kernel(pt_ref, wct_ref, w2_ref, bf_ref, out_ref, mem1_ref, mem2_ref):
    # pt_ref : (TT, K_PAD, 4*B*PPAD) im2col patches (+ constant-1 bias row) for TT steps
    # wct_ref: (32, K_PAD)           conv weight rows; column 50 holds the conv bias
    # w2_ref : (10, 32, PPAD)        FC weight in PyTorch (C,H,W) flatten order, pos zero-padded
    # bf_ref : (1, 10)               FC bias
    # out_ref: (TT, B, 10)           output spikes for this time block
    # mem1_ref: VMEM (32, B*PPAD) f32 ; mem2_ref: VMEM (B, 10) f32  -- persist across grid
    TT, B, n_out = out_ref.shape
    C = mem1_ref.shape[1]            # B * PPAD
    ppad = w2_ref.shape[2]

    @pl.when(pl.program_id(0) == 0)
    def _():
        mem1_ref[...] = jnp.zeros_like(mem1_ref)
        mem2_ref[...] = jnp.zeros_like(mem2_ref)

    wct = wct_ref[...]
    bf = bf_ref[...]

    for tt in range(TT):             # static unroll; TT is small (<= 4)
        patches = pt_ref[tt].astype(jnp.float32)                          # (K_PAD, 4*C)

        # ---- Conv2d(2->32, k=5) + bias + MaxPool2d(2): one MXU matmul + 3 lane-slice maxes ----
        c_all = jnp.dot(wct, patches, preferred_element_type=jnp.float32)  # (32, 4*C)
        cur1 = jnp.maximum(jnp.maximum(c_all[:, 0:C], c_all[:, C:2 * C]),
                           jnp.maximum(c_all[:, 2 * C:3 * C], c_all[:, 3 * C:4 * C]))

        # ---- Leaky 1 (reset computed from the PRE-update membrane; spike on new membrane) ----
        m1 = mem1_ref[...]
        m1 = BETA * m1 + cur1 - (m1 > THRESH).astype(jnp.float32) * THRESH
        mem1_ref[...] = m1
        spk1 = (m1 > THRESH).astype(jnp.float32)                           # (32, C)

        # ---- Linear(7200 -> 10): independent per-(out,batch) multiply + reduce, no scatter ----
        s_list = [spk1[:, b * ppad:(b + 1) * ppad] for b in range(B)]      # lane-aligned views
        parts = [[None] * n_out for _ in range(B)]
        for o in range(n_out):
            w_o = w2_ref[o]                                                # (32, PPAD) VMEM load
            for b in range(B):
                prod = s_list[b] * w_o                                     # exact: spikes are 0/1
                v = jnp.sum(prod, axis=1, keepdims=True)                   # (32, 1) lane reduce
                parts[b][o] = jnp.sum(v, axis=0, keepdims=True)            # (1, 1) sublane reduce
        cur2 = jnp.concatenate(
            [jnp.concatenate(parts[b], axis=1) for b in range(B)], axis=0) + bf   # (B, 10)

        # ---- Leaky 2 ----
        m2 = mem2_ref[...]
        m2 = BETA * m2 + cur2 - (m2 > THRESH).astype(jnp.float32) * THRESH
        mem2_ref[...] = m2
        out_ref[tt] = (m2 > THRESH).astype(out_ref.dtype)


# ---------------- Plain-JAX glue: im2col in the kernel's transposed layout ----------------
def _im2col_transposed(x):
    """x: (T,B,2,34,34) f32 -> (T, 50, 4*B*PPAD).

    Row k = ci*25 + kh*5 + kw (matches Conv2d OIHW weight flatten).
    Column = slot*(B*PPAD) + b*PPAD + (i*15+j), slot = di*2+dj enumerating the
    2x2 max-pool window; positions 225..255 per (slot,batch) are zero padding.
    """
    T, B = x.shape[0], x.shape[1]
    cols = []
    for ci in range(2):
        for kh in range(5):
            for kw in range(5):
                cols.append(x[:, :, ci, kh:kh + 30, kw:kw + 30])           # (T,B,30,30)
    patches = jnp.stack(cols, axis=2)                                      # (T,B,50,30,30)
    groups = []
    for di in range(2):
        for dj in range(2):
            g = patches[:, :, :, di::2, dj::2].reshape(T, B, K_IN, POS)    # (T,B,50,225)
            g = jnp.pad(g, ((0, 0), (0, 0), (0, 0), (0, PPAD - POS)))      # (T,B,50,256)
            groups.append(jnp.transpose(g, (0, 2, 1, 3)))                  # (T,50,B,256)
    pt = jnp.stack(groups, axis=2)                                         # (T,50,4,B,256)
    return pt.reshape(T, K_IN, 4 * B * PPAD)


def snn_forward(x, wc, bc, wfc, bfc, *, time_block=4, patch_dtype=jnp.float32):
    """x: (T,B,2,34,34); wc: (32,2,5,5) OIHW; bc: (32,); wfc: (10,7200); bfc: (10,)."""
    x = x.astype(jnp.float32)
    T, B = x.shape[0], x.shape[1]
    C = B * PPAD
    # Largest divisor of T that is <= time_block: amortizes per-grid-step overhead.
    tt = max(d for d in range(1, min(time_block, T) + 1) if T % d == 0)

    # TODO(synk): in-kernel im2col (DMA raw x blocks, build patches in VMEM) would cut the
    #             ~20x-inflated patch stream once T*B grows; kept host-side for robustness.
    pt = _im2col_transposed(x)                                             # (T,50,4*C)
    pt = jnp.concatenate(
        [pt,
         jnp.ones((T, 1, 4 * C), jnp.float32),                             # constant-1 bias row
         jnp.zeros((T, K_PAD - K_IN - 1, 4 * C), jnp.float32)], axis=1
    ).astype(patch_dtype)                                                  # (T,K_PAD,4*C)

    wct = jnp.concatenate(
        [wc.reshape(C_HID, K_IN).astype(jnp.float32),
         bc.reshape(C_HID, 1).astype(jnp.float32),                         # folded conv bias
         jnp.zeros((C_HID, K_PAD - K_IN - 1), jnp.float32)], axis=1)       # (32,K_PAD)

    # PyTorch nn.Flatten of (B,32,15,15) is (ch,pos)-ordered == this reshape; just pad pos.
    w2 = jnp.pad(wfc.reshape(N_OUT, C_HID, POS).astype(jnp.float32),
                 ((0, 0), (0, 0), (0, PPAD - POS)))                        # (10,32,256)
    bf_row = bfc.reshape(1, N_OUT).astype(jnp.float32)

    return pl.pallas_call(
        snn_fused_kernel,
        out_shape=jax.ShapeDtypeStruct((T, B, N_OUT), jnp.float32),
        grid=(T // tt,),
        in_specs=[
            pl.BlockSpec((tt, K_PAD, 4 * C), lambda g: (g, 0, 0)),         # TT steps of patches
            pl.BlockSpec((C_HID, K_PAD), lambda g: (0, 0)),                # conv weight (+bias)
            pl.BlockSpec((N_OUT, C_HID, PPAD), lambda g: (0, 0, 0)),       # fc weight (lane-dense)
            pl.BlockSpec((1, N_OUT), lambda g: (0, 0)),                    # fc bias
        ],
        out_specs=pl.BlockSpec((tt, B, N_OUT), lambda g: (g, 0, 0)),
        scratch_shapes=[
            pltpu.VMEM((C_HID, C), jnp.float32),                           # mem1
            pltpu.VMEM((B, N_OUT), jnp.float32),                           # mem2
        ],
        compiler_params=pltpu.CompilerParams(
            # Membrane recurrence -> the time axis must stay sequential.  (For large B on
            # v7x, add a leading "parallel" batch-shard axis with per-shard scratch.)
            dimension_semantics=("arbitrary",),
            vmem_limit_bytes=32 * 1024 * 1024,
        ),
    )(pt, wct, w2, bf_row)


# ---------------- Pure-JAX reference (sanity check) ----------------
def reference_forward(x, wc, bc, wfc, bfc):
    T, B = x.shape[0], x.shape[1]
    mem1 = jnp.zeros((B, 32, 15, 15), jnp.float32)
    mem2 = jnp.zeros((B, 10), jnp.float32)
    outs = []
    for t in range(T):
        cur = lax.conv_general_dilated(
            x[t], wc, window_strides=(1, 1), padding="VALID",
            dimension_numbers=("NCHW", "OIHW", "NCHW"),
            precision=lax.Precision.HIGHEST) + bc.reshape(1, 32, 1, 1)
        cur = jnp.max(cur.reshape(B, 32, 15, 2, 15, 2), axis=(3, 5))
        reset = (mem1 > THRESH).astype(jnp.float32)
        mem1 = BETA * mem1 + cur - reset * THRESH
        spk1 = (mem1 > THRESH).astype(jnp.float32)
        cur2 = jnp.dot(spk1.reshape(B, -1), wfc.T, precision=lax.Precision.HIGHEST) + bfc
        reset2 = (mem2 > THRESH).astype(jnp.float32)
        mem2 = BETA * mem2 + cur2 - reset2 * THRESH
        outs.append((mem2 > THRESH).astype(jnp.float32))
    return jnp.stack(outs)


if __name__ == "__main__":
    key = jax.random.PRNGKey(0)
    k1, k2, k3, k4, k5 = jax.random.split(key, 5)

    T, B = 8, 2  # small time/batch; spatial/channel sizes fixed by the module (Linear(32*15*15, 10))
    x = jax.random.normal(k1, (T, B, 2, 34, 34), jnp.float32)

    # Deterministic synthetic parameters (shapes from nn.Conv2d(2,32,5) / nn.Linear(7200,10)).
    wc = jax.random.normal(k2, (32, 2, 5, 5), jnp.float32) * 0.15
    bc = jax.random.normal(k3, (32,), jnp.float32) * 0.10
    wfc = jax.random.normal(k4, (10, 32 * 15 * 15), jnp.float32) * 0.02
    bfc = jax.random.normal(k5, (10,), jnp.float32) * 0.10

    out = jax.jit(snn_forward)(x, wc, bc, wfc, bfc)
    out = jax.block_until_ready(out)

    ref = reference_forward(x, wc, bc, wfc, bfc)
    assert out.shape == (T, B, 10)
    mismatch = float(jnp.mean((out != ref).astype(jnp.float32)))
    # spikes are exact 0/1; tolerance only covers values landing essentially on the threshold
    assert mismatch < 0.05, f"spike mismatch fraction too large: {mismatch}"

    print("KERNEL_OK")
</pallas_src>

<mosaic_0001>
module attributes {stable_mosaic.version = 11 : i64} {
  func.func @snn_fused_kernel(%arg0: i32, %arg1: memref<4x56x2048xf32, #tpu.memory_space<vmem>>, %arg2: memref<32x56xf32, #tpu.memory_space<vmem>>, %arg3: memref<10x32x256xf32, #tpu.memory_space<vmem>>, %arg4: memref<1x10xf32, #tpu.memory_space<vmem>>, %arg5: memref<4x2x10xf32, #tpu.memory_space<vmem>>, %arg6: memref<32x512xf32, #tpu.memory_space<vmem>>, %arg7: memref<2x10xf32, #tpu.memory_space<vmem>>) attributes {dimension_semantics = [#tpu.dimension_semantics<arbitrary>], iteration_bounds = array<i64: 2>, scalar_prefetch = 0 : i64, scratch_operands = 2 : i64, tpu.core_type = #tpu.core_type<tc>, window_params = [{transform_indices = @transform_0, window_bounds = array<i64: 4, 56, 2048>}, {pipeline_mode = #tpu.pipeline_mode<synchronous>, transform_indices = @transform_1, window_bounds = array<i64: 32, 56>}, {pipeline_mode = #tpu.pipeline_mode<synchronous>, transform_indices = @transform_2, window_bounds = array<i64: 10, 32, 256>}, {pipeline_mode = #tpu.pipeline_mode<synchronous>, transform_indices = @transform_3, window_bounds = array<i64: 1, 10>}, {transform_indices = @transform_4, window_bounds = array<i64: 4, 2, 10>}]} {
    %c0_i32 = arith.constant 0 : i32
    %0 = arith.cmpi eq, %arg0, %c0_i32 : i32
    %1 = arith.extui %0 : i1 to i32
    %c0_i32_0 = arith.constant 0 : i32
    %2 = arith.cmpi ne, %1, %c0_i32_0 : i32
    scf.if %2 {
      %cst_366 = arith.constant 0.000000e+00 : f32
      %693 = vector.broadcast %cst_366 : f32 to vector<32x512xf32>
      %c0_367 = arith.constant 0 : index
      %c0_368 = arith.constant 0 : index
      %694 = vector.load %arg6[%c0_367, %c0_368] : memref<32x512xf32, #tpu.memory_space<vmem>>, vector<32x512xf32>
      tpu.vector_store %arg6[%c0_367, %c0_368], %693 {strides = array<i32>} : memref<32x512xf32, #tpu.memory_space<vmem>>, vector<32x512xf32>,
      %cst_369 = arith.constant 0.000000e+00 : f32
      %695 = vector.broadcast %cst_369 : f32 to vector<2x10xf32>
      %c0_370 = arith.constant 0 : index
      %c0_371 = arith.constant 0 : index
      %696 = vector.load %arg7[%c0_370, %c0_371] : memref<2x10xf32, #tpu.memory_space<vmem>>, vector<2x10xf32>
      tpu.vector_store %arg7[%c0_370, %c0_371], %695 {strides = array<i32>} : memref<2x10xf32, #tpu.memory_space<vmem>>, vector<2x10xf32>,
    } else {
    }
    %c0 = arith.constant 0 : index
    %c0_1 = arith.constant 0 : index
    %3 = vector.load %arg2[%c0, %c0_1] : memref<32x56xf32, #tpu.memory_space<vmem>>, vector<32x56xf32>
    %c0_2 = arith.constant 0 : index
    %c0_3 = arith.constant 0 : index
    %4 = vector.load %arg4[%c0_2, %c0_3] : memref<1x10xf32, #tpu.memory_space<vmem>>, vector<1x10xf32>
    %c0_4 = arith.constant 0 : index
    %c0_5 = arith.constant 0 : index
    %c0_6 = arith.constant 0 : index
    %5 = vector.load %arg1[%c0_4, %c0_5, %c0_6] : memref<4x56x2048xf32, #tpu.memory_space<vmem>>, vector<1x56x2048xf32>
    %6 = vector.shape_cast %5 : vector<1x56x2048xf32> to vector<56x2048xf32>
    %cst = arith.constant dense<0.000000e+00> : vector<32x2048xf32>
    %7 = tpu.matmul %3, %6, %cst {dimension_numbers = #tpu.dot_dimension_numbers<[1], [0], [0], [1], [0, 0, 1, 1], [], []>} : vector<32x56xf32>, vector<56x2048xf32>, vector<32x2048xf32> -> vector<32x2048xf32>
    %8 = vector.extract_strided_slice %7 {offsets = [0, 0], sizes = [32, 512], strides = [1, 1]} : vector<32x2048xf32> to vector<32x512xf32>
    %9 = vector.extract_strided_slice %7 {offsets = [0, 512], sizes = [32, 512], strides = [1, 1]} : vector<32x2048xf32> to vector<32x512xf32>
    %10 = arith.maximumf %8, %9 : vector<32x512xf32>
    %11 = vector.extract_strided_slice %7 {offsets = [0, 1024], sizes = [32, 512], strides = [1, 1]} : vector<32x2048xf32> to vector<32x512xf32>
    %12 = vector.extract_strided_slice %7 {offsets = [0, 1536], sizes = [32, 512], strides = [1, 1]} : vector<32x2048xf32> to vector<32x512xf32>
    %13 = arith.maximumf %11, %12 : vector<32x512xf32>
    %14 = arith.maximumf %10, %13 : vector<32x512xf32>
    %c0_7 = arith.constant 0 : index
    %c0_8 = arith.constant 0 : index
    %15 = vector.load %arg6[%c0_7, %c0_8] : memref<32x512xf32, #tpu.memory_space<vmem>>, vector<32x512xf32>
    %cst_9 = arith.constant 0.899999976 : f32
    %16 = vector.broadcast %cst_9 : f32 to vector<32x512xf32>
    %17 = arith.mulf %16, %15 : vector<32x512xf32>
    %18 = arith.addf %17, %14 : vector<32x512xf32>
    %cst_10 = arith.constant 1.000000e+00 : f32
    %19 = vector.broadcast %cst_10 : f32 to vector<32x512xf32>
    %20 = arith.cmpf ogt, %15, %19 : vector<32x512xf32>
    %21 = arith.extui %20 : vector<32x512xi1> to vector<32x512xi32>
    %22 = arith.sitofp %21 : vector<32x512xi32> to vector<32x512xf32>
    %cst_11 = arith.constant 1.000000e+00 : f32
    %23 = vector.broadcast %cst_11 : f32 to vector<32x512xf32>
    %24 = arith.mulf %22, %23 : vector<32x512xf32>
    %25 = arith.subf %18, %24 : vector<32x512xf32>
    %c0_12 = arith.constant 0 : index
    %c0_13 = arith.constant 0 : index
    %26 = vector.load %arg6[%c0_12, %c0_13] : memref<32x512xf32, #tpu.memory_space<vmem>>, vector<32x512xf32>
    tpu.vector_store %arg6[%c0_12, %c0_13], %25 {strides = array<i32>} : memref<32x512xf32, #tpu.memory_space<vmem>>, vector<32x512xf32>,
    %cst_14 = arith.constant 1.000000e+00 : f32
    %27 = vector.broadcast %cst_14 : f32 to vector<32x512xf32>
    %28 = arith.cmpf ogt, %25, %27 : vector<32x512xf32>
    %29 = arith.extui %28 : vector<32x512xi1> to vector<32x512xi32>
    %30 = arith.sitofp %29 : vector<32x512xi32> to vector<32x512xf32>
    %31 = vector.extract_strided_slice %30 {offsets = [0, 0], sizes = [32, 256], strides = [1, 1]} : vector<32x512xf32> to vector<32x256xf32>
    %32 = vector.extract_strided_slice %30 {offsets = [0, 256], sizes = [32, 256], strides = [1, 1]} : vector<32x512xf32> to vector<32x256xf32>
    %c0_15 = arith.constant 0 : index
    %c0_16 = arith.constant 0 : index
    %c0_17 = arith.constant 0 : index
    %33 = vector.load %arg3[%c0_15, %c0_16, %c0_17] : memref<10x32x256xf32, #tpu.memory_space<vmem>>, vector<1x32x256xf32>
    %34 = vector.shape_cast %33 : vector<1x32x256xf32> to vector<32x256xf32>
    %35 = arith.mulf %31, %34 : vector<32x256xf32>
    %cst_18 = arith.constant dense<0.000000e+00> : vector<32xf32>
    %36 = vector.multi_reduction <add>, %35, %cst_18 [1] : vector<32x256xf32> to vector<32xf32>
    %37 = vector.shape_cast %36 : vector<32xf32> to vector<32x1xf32>
    %cst_19 = arith.constant dense<0.000000e+00> : vector<1xf32>
    %38 = vector.multi_reduction <add>, %37, %cst_19 [0] : vector<32x1xf32> to vector<1xf32>
    %39 = vector.shape_cast %38 : vector<1xf32> to vector<1x1xf32>
    %40 = arith.mulf %32, %34 : vector<32x256xf32>
    %cst_20 = arith.constant dense<0.000000e+00> : vector<32xf32>
    %41 = vector.multi_reduction <add>, %40, %cst_20 [1] : vector<32x256xf32> to vector<32xf32>
    %42 = vector.shape_cast %41 : vector<32xf32> to vector<32x1xf32>
    %cst_21 = arith.constant dense<0.000000e+00> : vector<1xf32>
    %43 = vector.multi_reduction <add>, %42, %cst_21 [0] : vector<32x1xf32> to vector<1xf32>
    %44 = vector.shape_cast %43 : vector<1xf32> to vector<1x1xf32>
    %c1 = arith.constant 1 : index
    %c0_22 = arith.constant 0 : index
    %c0_23 = arith.constant 0 : index
    %45 = vector.load %arg3[%c1, %c0_22, %c0_23] : memref<10x32x256xf32, #tpu.memory_space<vmem>>, vector<1x32x256xf32>
    %46 = vector.shape_cast %45 : vector<1x32x256xf32> to vector<32x256xf32>
    %47 = arith.mulf %31, %46 : vector<32x256xf32>
    %cst_24 = arith.constant dense<0.000000e+00> : vector<32xf32>
    %48 = vector.multi_reduction <add>, %47, %cst_24 [1] : vector<32x256xf32> to vector<32xf32>
    %49 = vector.shape_cast %48 : vector<32xf32> to vector<32x1xf32>
    %cst_25 = arith.constant dense<0.000000e+00> : vector<1xf32>
    %50 = vector.multi_reduction <add>, %49, %cst_25 [0] : vector<32x1xf32> to vector<1xf32>
    %51 = vector.shape_cast %50 : vector<1xf32> to vector<1x1xf32>
    %52 = arith.mulf %32, %46 : vector<32x256xf32>
    %cst_26 = arith.constant dense<0.000000e+00> : vector<32xf32>
    %53 = vector.multi_reduction <add>, %52, %cst_26 [1] : vector<32x256xf32> to vector<32xf32>
    %54 = vector.shape_cast %53 : vector<32xf32> to vector<32x1xf32>
    %cst_27 = arith.constant dense<0.000000e+00> : vector<1xf32>
    %55 = vector.multi_reduction <add>, %54, %cst_27 [0] : vector<32x1xf32> to vector<1xf32>
    %56 = vector.shape_cast %55 : vector<1xf32> to vector<1x1xf32>
    %c2 = arith.constant 2 : index
    %c0_28 = arith.constant 0 : index
    %c0_29 = arith.constant 0 : index
    %57 = vector.load %arg3[%c2, %c0_28, %c0_29] : memref<10x32x256xf32, #tpu.memory_space<vmem>>, vector<1x32x256xf32>
    %58 = vector.shape_cast %57 : vector<1x32x256xf32> to vector<32x256xf32>
    %59 = arith.mulf %31, %58 : vector<32x256xf32>
    %cst_30 = arith.constant dense<0.000000e+00> : vector<32xf32>
    %60 = vector.multi_reduction <add>, %59, %cst_30 [1] : vector<32x256xf32> to vector<32xf32>
    %61 = vector.shape_cast %60 : vector<32xf32> to vector<32x1xf32>
    %cst_31 = arith.constant dense<0.000000e+00> : vector<1xf32>
    %62 = vector.multi_reduction <add>, %61, %cst_31 [0] : vector<32x1xf32> to vector<1xf32>
    %63 = vector.shape_cast %62 : vector<1xf32> to vector<1x1xf32>
    %64 = arith.mulf %32, %58 : vector<32x256xf32>
    %cst_32 = arith.constant dense<0.000000e+00> : vector<32xf32>
    %65 = vector.multi_reduction <add>, %64, %cst_32 [1] : vector<32x256xf32> to vector<32xf32>
    %66 = vector.shape_cast %65 : vector<32xf32> to vector<32x1xf32>
    %cst_33 = arith.constant dense<0.000000e+00> : vector<1xf32>
    %67 = vector.multi_reduction <add>, %66, %cst_33 [0] : vector<32x1xf32> to vector<1xf32>
    %68 = vector.shape_cast %67 : vector<1xf32> to vector<1x1xf32>
    %c3 = arith.constant 3 : index
    %c0_34 = arith.constant 0 : index
    %c0_35 = arith.constant 0 : index
    %69 = vector.load %arg3[%c3, %c0_34, %c0_35] : memref<10x32x256xf32, #tpu.memory_space<vmem>>, vector<1x32x256xf32>
    %70 = vector.shape_cast %69 : vector<1x32x256xf32> to vector<32x256xf32>
    %71 = arith.mulf %31, %70 : vector<32x256xf32>
    %cst_36 = arith.constant dense<0.000000e+00> : vector<32xf32>
    %72 = vector.multi_reduction <add>, %71, %cst_36 [1] : vector<32x256xf32> to vector<32xf32>
    %73 = vector.shape_cast %72 : vector<32xf32> to vector<32x1xf32>
    %cst_37 = arith.constant dense<0.000000e+00> : vector<1xf32>
    %74 = vector.multi_reduction <add>, %73, %cst_37 [0] : vector<32x1xf32> to vector<1xf32>
    %75 = vector.shape_cast %74 : vector<1xf32> to vector<1x1xf32>
    %76 = arith.mulf %32, %70 : vector<32x256xf32>
    %cst_38 = arith.constant dense<0.000000e+00> : vector<32xf32>
    %77 = vector.multi_reduction <add>, %76, %cst_38 [1] : vector<32x256xf32> to vector<32xf32>
    %78 = vector.shape_cast %77 : vector<32xf32> to vector<32x1xf32>
    %cst_39 = arith.constant dense<0.000000e+00> : vector<1xf32>
    %79 = vector.multi_reduction <add>, %78, %cst_39 [0] : vector<32x1xf32> to vector<1xf32>
    %80 = vector.shape_cast %79 : vector<1xf32> to vector<1x1xf32>
    %c4 = arith.constant 4 : index
    %c0_40 = arith.constant 0 : index
    %c0_41 = arith.constant 0 : index
    %81 = vector.load %arg3[%c4, %c0_40, %c0_41] : memref<10x32x256xf32, #tpu.memory_space<vmem>>, vector<1x32x256xf32>
    %82 = vector.shape_cast %81 : vector<1x32x256xf32> to vector<32x256xf32>
    %83 = arith.mulf %31, %82 : vector<32x256xf32>
    %cst_42 = arith.constant dense<0.000000e+00> : vector<32xf32>
    %84 = vector.multi_reduction <add>, %83, %cst_42 [1] : vector<32x256xf32> to vector<32xf32>
    %85 = vector.shape_cast %84 : vector<32xf32> to vector<32x1xf32>
    %cst_43 = arith.constant dense<0.000000e+00> : vector<1xf32>
    %86 = vector.multi_reduction <add>, %85, %cst_43 [0] : vector<32x1xf32> to vector<1xf32>
    %87 = vector.shape_cast %86 : vector<1xf32> to vector<1x1xf32>
    %88 = arith.mulf %32, %82 : vector<32x256xf32>
    %cst_44 = arith.constant dense<0.000000e+00> : vector<32xf32>
    %89 = vector.multi_reduction <add>, %88, %cst_44 [1] : vector<32x256xf32> to vector<32xf32>
    %90 = vector.shape_cast %89 : vector<32xf32> to vector<32x1xf32>
    %cst_45 = arith.constant dense<0.000000e+00> : vector<1xf32>
    %91 = vector.multi_reduction <add>, %90, %cst_45 [0] : vector<32x1xf32> to vector<1xf32>
    %92 = vector.shape_cast %91 : vector<1xf32> to vector<1x1xf32>
    %c5 = arith.constant 5 : index
    %c0_46 = arith.constant 0 : index
    %c0_47 = arith.constant 0 : index
    %93 = vector.load %arg3[%c5, %c0_46, %c0_47] : memref<10x32x256xf32, #tpu.memory_space<vmem>>, vector<1x32x256xf32>
    %94 = vector.shape_cast %93 : vector<1x32x256xf32> to vector<32x256xf32>
    %95 = arith.mulf %31, %94 : vector<32x256xf32>
    %cst_48 = arith.constant dense<0.000000e+00> : vector<32xf32>
    %96 = vector.multi_reduction <add>, %95, %cst_48 [1] : vector<32x256xf32> to vector<32xf32>
    %97 = vector.shape_cast %96 : vector<32xf32> to vector<32x1xf32>
    %cst_49 = arith.constant dense<0.000000e+00> : vector<1xf32>
    %98 = vector.multi_reduction <add>, %97, %cst_49 [0] : vector<32x1xf32> to vector<1xf32>
    %99 = vector.shape_cast %98 : vector<1xf32> to vector<1x1xf32>
    %100 = arith.mulf %32, %94 : vector<32x256xf32>
    %cst_50 = arith.constant dense<0.000000e+00> : vector<32xf32>
    %101 = vector.multi_reduction <add>, %100, %cst_50 [1] : vector<32x256xf32> to vector<32xf32>
    %102 = vector.shape_cast %101 : vector<32xf32> to vector<32x1xf32>
    %cst_51 = arith.constant dense<0.000000e+00> : vector<1xf32>
    %103 = vector.multi_reduction <add>, %102, %cst_51 [0] : vector<32x1xf32> to vector<1xf32>
    %104 = vector.shape_cast %103 : vector<1xf32> to vector<1x1xf32>
    %c6 = arith.constant 6 : index
    %c0_52 = arith.constant 0 : index
    %c0_53 = arith.constant 0 : index
    %105 = vector.load %arg3[%c6, %c0_52, %c0_53] : memref<10x32x256xf32, #tpu.memory_space<vmem>>, vector<1x32x256xf32>
    %106 = vector.shape_cast %105 : vector<1x32x256xf32> to vector<32x256xf32>
    %107 = arith.mulf %31, %106 : vector<32x256xf32>
    %cst_54 = arith.constant dense<0.000000e+00> : vector<32xf32>
    %108 = vector.multi_reduction <add>, %107, %cst_54 [1] : vector<32x256xf32> to vector<32xf32>
    %109 = vector.shape_cast %108 : vector<32xf32> to vector<32x1xf32>
    %cst_55 = arith.constant dense<0.000000e+00> : vector<1xf32>
    %110 = vector.multi_reduction <add>, %109, %cst_55 [0] : vector<32x1xf32> to vector<1xf32>
    %111 = vector.shape_cast %110 : vector<1xf32> to vector<1x1xf32>
    %112 = arith.mulf %32, %106 : vector<32x256xf32>
    %cst_56 = arith.constant dense<0.000000e+00> : vector<32xf32>
    %113 = vector.multi_reduction <add>, %112, %cst_56 [1] : vector<32x256xf32> to vector<32xf32>
    %114 = vector.shape_cast %113 : vector<32xf32> to vector<32x1xf32>
    %cst_57 = arith.constant dense<0.000000e+00> : vector<1xf32>
    %115 = vector.multi_reduction <add>, %114, %cst_57 [0] : vector<32x1xf32> to vector<1xf32>
    %116 = vector.shape_cast %115 : vector<1xf32> to vector<1x1xf32>
    %c7 = arith.constant 7 : index
    %c0_58 = arith.constant 0 : index
    %c0_59 = arith.constant 0 : index
    %117 = vector.load %arg3[%c7, %c0_58, %c0_59] : memref<10x32x256xf32, #tpu.memory_space<vmem>>, vector<1x32x256xf32>
    %118 = vector.shape_cast %117 : vector<1x32x256xf32> to vector<32x256xf32>
    %119 = arith.mulf %31, %118 : vector<32x256xf32>
    %cst_60 = arith.constant dense<0.000000e+00> : vector<32xf32>
    %120 = vector.multi_reduction <add>, %119, %cst_60 [1] : vector<32x256xf32> to vector<32xf32>
    %121 = vector.shape_cast %120 : vector<32xf32> to vector<32x1xf32>
    %cst_61 = arith.constant dense<0.000000e+00> : vector<1xf32>
    %122 = vector.multi_reduction <add>, %121, %cst_61 [0] : vector<32x1xf32> to vector<1xf32>
    %123 = vector.shape_cast %122 : vector<1xf32> to vector<1x1xf32>
    %124 = arith.mulf %32, %118 : vector<32x256xf32>
    %cst_62 = arith.constant dense<0.000000e+00> : vector<32xf32>
    %125 = vector.multi_reduction <add>, %124, %cst_62 [1] : vector<32x256xf32> to vector<32xf32>
    %126 = vector.shape_cast %125 : vector<32xf32> to vector<32x1xf32>
    %cst_63 = arith.constant dense<0.000000e+00> : vector<1xf32>
    %127 = vector.multi_reduction <add>, %126, %cst_63 [0] : vector<32x1xf32> to vector<1xf32>
    %128 = vector.shape_cast %127 : vector<1xf32> to vector<1x1xf32>
    %c8 = arith.constant 8 : index
    %c0_64 = arith.constant 0 : index
    %c0_65 = arith.constant 0 : index
    %129 = vector.load %arg3[%c8, %c0_64, %c0_65] : memref<10x32x256xf32, #tpu.memory_space<vmem>>, vector<1x32x256xf32>
    %130 = vector.shape_cast %129 : vector<1x32x256xf32> to vector<32x256xf32>
    %131 = arith.mulf %31, %130 : vector<32x256xf32>
    %cst_66 = arith.constant dense<0.000000e+00> : vector<32xf32>
    %132 = vector.multi_reduction <add>, %131, %cst_66 [1] : vector<32x256xf32> to vector<32xf32>
    %133 = vector.shape_cast %132 : vector<32xf32> to vector<32x1xf32>
    %cst_67 = arith.constant dense<0.000000e+00> : vector<1xf32>
    %134 = vector.multi_reduction <add>, %133, %cst_67 [0] : vector<32x1xf32> to vector<1xf32>
    %135 = vector.shape_cast %134 : vector<1xf32> to vector<1x1xf32>
    %136 = arith.mulf %32, %130 : vector<32x256xf32>
    %cst_68 = arith.constant dense<0.000000e+00> : vector<32xf32>
    %137 = vector.multi_reduction <add>, %136, %cst_68 [1] : vector<32x256xf32> to vector<32xf32>
    %138 = vector.shape_cast %137 : vector<32xf32> to vector<32x1xf32>
    %cst_69 = arith.constant dense<0.000000e+00> : vector<1xf32>
    %139 = vector.multi_reduction <add>, %138, %cst_69 [0] : vector<32x1xf32> to vector<1xf32>
    %140 = vector.shape_cast %139 : vector<1xf32> to vector<1x1xf32>
    %c9 = arith.constant 9 : index
    %c0_70 = arith.constant 0 : index
    %c0_71 = arith.constant 0 : index
    %141 = vector.load %arg3[%c9, %c0_70, %c0_71] : memref<10x32x256xf32, #tpu.memory_space<vmem>>, vector<1x32x256xf32>
    %142 = vector.shape_cast %141 : vector<1x32x256xf32> to vector<32x256xf32>
    %143 = arith.mulf %31, %142 : vector<32x256xf32>
    %cst_72 = arith.constant dense<0.000000e+00> : vector<32xf32>
    %144 = vector.multi_reduction <add>, %143, %cst_72 [1] : vector<32x256xf32> to vector<32xf32>
    %145 = vector.shape_cast %144 : vector<32xf32> to vector<32x1xf32>
    %cst_73 = arith.constant dense<0.000000e+00> : vector<1xf32>
    %146 = vector.multi_reduction <add>, %145, %cst_73 [0] : vector<32x1xf32> to vector<1xf32>
    %147 = vector.shape_cast %146 : vector<1xf32> to vector<1x1xf32>
    %148 = arith.mulf %32, %142 : vector<32x256xf32>
    %cst_74 = arith.constant dense<0.000000e+00> : vector<32xf32>
    %149 = vector.multi_reduction <add>, %148, %cst_74 [1] : vector<32x256xf32> to vector<32xf32>
    %150 = vector.shape_cast %149 : vector<32xf32> to vector<32x1xf32>
    %cst_75 = arith.constant dense<0.000000e+00> : vector<1xf32>
    %151 = vector.multi_reduction <add>, %150, %cst_75 [0] : vector<32x1xf32> to vector<1xf32>
    %152 = vector.shape_cast %151 : vector<1xf32> to vector<1x1xf32>
    %153 = tpu.concatenate %39, %51, %63, %75, %87, %99, %111, %123, %135, %147 in 1 : vector<1x1xf32>, vector<1x1xf32>, vector<1x1xf32>, vector<1x1xf32>, vector<1x1xf32>, vector<1x1xf32>, vector<1x1xf32>, vector<1x1xf32>, vector<1x1xf32>, vector<1x1xf32> -> vector<1x10xf32>
    %154 = tpu.concatenate %44, %56, %68, %80, %92, %104, %116, %128, %140, %152 in 1 : vector<1x1xf32>, vector<1x1xf32>, vector<1x1xf32>, vector<1x1xf32>, vector<1x1xf32>, vector<1x1xf32>, vector<1x1xf32>, vector<1x1xf32>, vector<1x1xf32>, vector<1x1xf32> -> vector<1x10xf32>
    %155 = tpu.concatenate %153, %154 in 0 : vector<1x10xf32>, vector<1x10xf32> -> vector<2x10xf32>
    %156 = vector.broadcast %4 : vector<1x10xf32> to vector<2x10xf32>
    %157 = arith.addf %155, %156 : vector<2x10xf32>
    %c0_76 = arith.constant 0 : index
    %c0_77 = arith.constant 0 : index
    %158 = vector.load %arg7[%c0_76, %c0_77] : memref<2x10xf32, #tpu.memory_space<vmem>>, vector<2x10xf32>
    %cst_78 = arith.constant 0.899999976 : f32
    %159 = vector.broadcast %cst_78 : f32 to vector<2x10xf32>
    %160 = arith.mulf %159, %158 : vector<2x10xf32>
    %161 = arith.addf %160, %157 : vector<2x10xf32>
    %cst_79 = arith.constant 1.000000e+00 : f32
    %162 = vector.broadcast %cst_79 : f32 to vector<2x10xf32>
    %163 = arith.cmpf ogt, %158, %162 : vector<2x10xf32>
    %164 = arith.extui %163 : vector<2x10xi1> to vector<2x10xi32>
    %165 = arith.sitofp %164 : vector<2x10xi32> to vector<2x10xf32>
    %cst_80 = arith.constant 1.000000e+00 : f32
    %166 = vector.broadcast %cst_80 : f32 to vector<2x10xf32>
    %167 = arith.mulf %165, %166 : vector<2x10xf32>
    %168 = arith.subf %161, %167 : vector<2x10xf32>
    %c0_81 = arith.constant 0 : index
    %c0_82 = arith.constant 0 : index
    %169 = vector.load %arg7[%c0_81, %c0_82] : memref<2x10xf32, #tpu.memory_space<vmem>>, vector<2x10xf32>
    tpu.vector_store %arg7[%c0_81, %c0_82], %168 {strides = array<i32>} : memref<2x10xf32, #tpu.memory_space<vmem>>, vector<2x10xf32>,
    %cst_83 = arith.constant 1.000000e+00 : f32
    %170 = vector.broadcast %cst_83 : f32 to vector<2x10xf32>
    %171 = arith.cmpf ogt, %168, %170 : vector<2x10xf32>
    %172 = arith.extui %171 : vector<2x10xi1> to vector<2x10xi32>
    %173 = arith.sitofp %172 : vector<2x10xi32> to vector<2x10xf32>
    %c0_84 = arith.constant 0 : index
    %c0_85 = arith.constant 0 : index
    %c0_86 = arith.constant 0 : index
    %174 = vector.load %arg5[%c0_84, %c0_85, %c0_86] : memref<4x2x10xf32, #tpu.memory_space<vmem>>, vector<1x2x10xf32>
    %175 = vector.shape_cast %174 : vector<1x2x10xf32> to vector<2x10xf32>
    %176 = vector.shape_cast %173 : vector<2x10xf32> to vector<1x2x10xf32>
    tpu.vector_store %arg5[%c0_84, %c0_85, %c0_86], %176 {strides = array<i32>} : memref<4x2x10xf32, #tpu.memory_space<vmem>>, vector<1x2x10xf32>,
    %c1_87 = arith.constant 1 : index
    %c0_88 = arith.constant 0 : index
    %c0_89 = arith.constant 0 : index
    %177 = vector.load %arg1[%c1_87, %c0_88, %c0_89] : memref<4x56x2048xf32, #tpu.memory_space<vmem>>, vector<1x56x2048xf32>
    %178 = vector.shape_cast %177 : vector<1x56x2048xf32> to vector<56x2048xf32>
    %cst_90 = arith.constant dense<0.000000e+00> : vector<32x2048xf32>
    %179 = tpu.matmul %3, %178, %cst_90 {dimension_numbers = #tpu.dot_dimension_numbers<[1], [0], [0], [1], [0, 0, 1, 1], [], []>} : vector<32x56xf32>, vector<56x2048xf32>, vector<32x2048xf32> -> vector<32x2048xf32>
    %180 = vector.extract_strided_slice %179 {offsets = [0, 0], sizes = [32, 512], strides = [1, 1]} : vector<32x2048xf32> to vector<32x512xf32>
    %181 = vector.extract_strided_slice %179 {offsets = [0, 512], sizes = [32, 512], strides = [1, 1]} : vector<32x2048xf32> to vector<32x512xf32>
    %182 = arith.maximumf %180, %181 : vector<32x512xf32>
    %183 = vector.extract_strided_slice %179 {offsets = [0, 1024], sizes = [32, 512], strides = [1, 1]} : vector<32x2048xf32> to vector<32x512xf32>
    %184 = vector.extract_strided_slice %179 {offsets = [0, 1536], sizes = [32, 512], strides = [1, 1]} : vector<32x2048xf32> to vector<32x512xf32>
    %185 = arith.maximumf %183, %184 : vector<32x512xf32>
    %186 = arith.maximumf %182, %185 : vector<32x512xf32>
    %c0_91 = arith.constant 0 : index
    %c0_92 = arith.constant 0 : index
    %187 = vector.load %arg6[%c0_91, %c0_92] : memref<32x512xf32, #tpu.memory_space<vmem>>, vector<32x512xf32>
    %cst_93 = arith.constant 0.899999976 : f32
    %188 = vector.broadcast %cst_93 : f32 to vector<32x512xf32>
    %189 = arith.mulf %188, %187 : vector<32x512xf32>
    %190 = arith.addf %189, %186 : vector<32x512xf32>
    %cst_94 = arith.constant 1.000000e+00 : f32
    %191 = vector.broadcast %cst_94 : f32 to vector<32x512xf32>
    %192 = arith.cmpf ogt, %187, %191 : vector<32x512xf32>
    %193 = arith.extui %192 : vector<32x512xi1> to vector<32x512xi32>
    %194 = arith.sitofp %193 : vector<32x512xi32> to vector<32x512xf32>
    %cst_95 = arith.constant 1.000000e+00 : f32
    %195 = vector.broadcast %cst_95 : f32 to vector<32x512xf32>
    %196 = arith.mulf %194, %195 : vector<32x512xf32>
    %197 = arith.subf %190, %196 : vector<32x512xf32>
    %c0_96 = arith.constant 0 : index
    %c0_97 = arith.constant 0 : index
    %198 = vector.load %arg6[%c0_96, %c0_97] : memref<32x512xf32, #tpu.memory_space<vmem>>, vector<32x512xf32>
    tpu.vector_store %arg6[%c0_96, %c0_97], %197 {strides = array<i32>} : memref<32x512xf32, #tpu.memory_space<vmem>>, vector<32x512xf32>,
    %cst_98 = arith.constant 1.000000e+00 : f32
    %199 = vector.broadcast %cst_98 : f32 to vector<32x512xf32>
    %200 = arith.cmpf ogt, %197, %199 : vector<32x512xf32>
    %201 = arith.extui %200 : vector<32x512xi1> to vector<32x512xi32>
    %202 = arith.sitofp %201 : vector<32x512xi32> to vector<32x512xf32>
    %203 = vector.extract_strided_slice %202 {offsets = [0, 0], sizes = [32, 256], strides = [1, 1]} : vector<32x512xf32> to vector<32x256xf32>
    %204 = vector.extract_strided_slice %202 {offsets = [0, 256], sizes = [32, 256], strides = [1, 1]} : vector<32x512xf32> to vector<32x256xf32>
    %c0_99 = arith.constant 0 : index
    %c0_100 = arith.constant 0 : index
    %c0_101 = arith.constant 0 : index
    %205 = vector.load %arg3[%c0_99, %c0_100, %c0_101] : memref<10x32x256xf32, #tpu.memory_space<vmem>>, vector<1x32x256xf32>
    %206 = vector.shape_cast %205 : vector<1x32x256xf32> to vector<32x256xf32>
    %207 = arith.mulf %203, %206 : vector<32x256xf32>
    %cst_102 = arith.constant dense<0.000000e+00> : vector<32xf32>
    %208 = vector.multi_reduction <add>, %207, %cst_102 [1] : vector<32x256xf32> to vector<32xf32>
    %209 = vector.shape_cast %208 : vector<32xf32> to vector<32x1xf32>
    %cst_103 = arith.constant dense<0.000000e+00> : vector<1xf32>
    %210 = vector.multi_reduction <add>, %209, %cst_103 [0] : vector<32x1xf32> to vector<1xf32>
    %211 = vector.shape_cast %210 : vector<1xf32> to vector<1x1xf32>
    %212 = arith.mulf %204, %206 : vector<32x256xf32>
    %cst_104 = arith.constant dense<0.000000e+00> : vector<32xf32>
    %213 = vector.multi_reduction <add>, %212, %cst_104 [1] : vector<32x256xf32> to vector<32xf32>
    %214 = vector.shape_cast %213 : vector<32xf32> to vector<32x1xf32>
    %cst_105 = arith.constant dense<0.000000e+00> : vector<1xf32>
    %215 = vector.multi_reduction <add>, %214, %cst_105 [0] : vector<32x1xf32> to vector<1xf32>
    %216 = vector.shape_cast %215 : vector<1xf32> to vector<1x1xf32>
    %c1_106 = arith.constant 1 : index
    %c0_107 = arith.constant 0 : index
    %c0_108 = arith.constant 0 : index
    %217 = vector.load %arg3[%c1_106, %c0_107, %c0_108] : memref<10x32x256xf32, #tpu.memory_space<vmem>>, vector<1x32x256xf32>
    %218 = vector.shape_cast %217 : vector<1x32x256xf32> to vector<32x256xf32>
    %219 = arith.mulf %203, %218 : vector<32x256xf32>
    %cst_109 = arith.constant dense<0.000000e+00> : vector<32xf32>
    %220 = vector.multi_reduction <add>, %219, %cst_109 [1] : vector<32x256xf32> to vector<32xf32>
    %221 = vector.shape_cast %220 : vector<32xf32> to vector<32x1xf32>
    %cst_110 = arith.constant dense<0.000000e+00> : vector<1xf32>
    %222 = vector.multi_reduction <add>, %221, %cst_110 [0] : vector<32x1xf32> to vector<1xf32>
    %223 = vector.shape_cast %222 : vector<1xf32> to vector<1x1xf32>
    %224 = arith.mulf %204, %218 : vector<32x256xf32>
    %cst_111 = arith.constant dense<0.000000e+00> : vector<32xf32>
    %225 = vector.multi_reduction <add>, %224, %cst_111 [1] : vector<32x256xf32> to vector<32xf32>
    %226 = vector.shape_cast %225 : vector<32xf32> to vector<32x1xf32>
    %cst_112 = arith.constant dense<0.000000e+00> : vector<1xf32>
    %227 = vector.multi_reduction <add>, %226, %cst_112 [0] : vector<32x1xf32> to vector<1xf32>
    %228 = vector.shape_cast %227 : vector<1xf32> to vector<1x1xf32>
    %c2_113 = arith.constant 2 : index
    %c0_114 = arith.constant 0 : index
    %c0_115 = arith.constant 0 : index
    %229 = vector.load %arg3[%c2_113, %c0_114, %c0_115] : memref<10x32x256xf32, #tpu.memory_space<vmem>>, vector<1x32x256xf32>
    %230 = vector.shape_cast %229 : vector<1x32x256xf32> to vector<32x256xf32>
    %231 = arith.mulf %203, %230 : vector<32x256xf32>
    %cst_116 = arith.constant dense<0.000000e+00> : vector<32xf32>
    %232 = vector.multi_reduction <add>, %231, %cst_116 [1] : vector<32x256xf32> to vector<32xf32>
    %233 = vector.shape_cast %232 : vector<32xf32> to vector<32x1xf32>
    %cst_117 = arith.constant dense<0.000000e+00> : vector<1xf32>
    %234 = vector.multi_reduction <add>, %233, %cst_117 [0] : vector<32x1xf32> to vector<1xf32>
    %235 = vector.shape_cast %234 : vector<1xf32> to vector<1x1xf32>
    %236 = arith.mulf %204, %230 : vector<32x256xf32>
    %cst_118 = arith.constant dense<0.000000e+00> : vector<32xf32>
    %237 = vector.multi_reduction <add>, %236, %cst_118 [1] : vector<32x256xf32> to vector<32xf32>
    %238 = vector.shape_cast %237 : vector<32xf32> to vector<32x1xf32>
    %cst_119 = arith.constant dense<0.000000e+00> : vector<1xf32>
    %239 = vector.multi_reduction <add>, %238, %cst_119 [0] : vector<32x1xf32> to vector<1xf32>
    %240 = vector.shape_cast %239 : vector<1xf32> to vector<1x1xf32>
    %c3_120 = arith.constant 3 : index
    %c0_121 = arith.constant 0 : index
    %c0_122 = arith.constant 0 : index
    %241 = vector.load %arg3[%c3_120, %c0_121, %c0_122] : memref<10x32x256xf32, #tpu.memory_space<vmem>>, vector<1x32x256xf32>
    %242 = vector.shape_cast %241 : vector<1x32x256xf32> to vector<32x256xf32>
    %243 = arith.mulf %203, %242 : vector<32x256xf32>
    %cst_123 = arith.constant dense<0.000000e+00> : vector<32xf32>
    %244 = vector.multi_reduction <add>, %243, %cst_123 [1] : vector<32x256xf32> to vector<32xf32>
    %245 = vector.shape_cast %244 : vector<32xf32> to vector<32x1xf32>
    %cst_124 = arith.constant dense<0.000000e+00> : vector<1xf32>
    %246 = vector.multi_reduction <add>, %245, %cst_124 [0] : vector<32x1xf32> to vector<1xf32>
    %247 = vector.shape_cast %246 : vector<1xf32> to vector<1x1xf32>
    %248 = arith.mulf %204, %242 : vector<32x256xf32>
    %cst_125 = arith.constant dense<0.000000e+00> : vector<32xf32>
    %249 = vector.multi_reduction <add>, %248, %cst_125 [1] : vector<32x256xf32> to vector<32xf32>
    %250 = vector.shape_cast %249 : vector<32xf32> to vector<32x1xf32>
    %cst_126 = arith.constant dense<0.000000e+00> : vector<1xf32>
    %251 = vector.multi_reduction <add>, %250, %cst_126 [0] : vector<32x1xf32> to vector<1xf32>
    %252 = vector.shape_cast %251 : vector<1xf32> to vector<1x1xf32>
    %c4_127 = arith.constant 4 : index
    %c0_128 = arith.constant 0 : index
    %c0_129 = arith.constant 0 : index
    %253 = vector.load %arg3[%c4_127, %c0_128, %c0_129] : memref<10x32x256xf32, #tpu.memory_space<vmem>>, vector<1x32x256xf32>
    %254 = vector.shape_cast %253 : vector<1x32x256xf32> to vector<32x256xf32>
    %255 = arith.mulf %203, %254 : vector<32x256xf32>
    %cst_130 = arith.constant dense<0.000000e+00> : vector<32xf32>
    %256 = vector.multi_reduction <add>, %255, %cst_130 [1] : vector<32x256xf32> to vector<32xf32>
    %257 = vector.shape_cast %256 : vector<32xf32> to vector<32x1xf32>
    %cst_131 = arith.constant dense<0.000000e+00> : vector<1xf32>
    %258 = vector.multi_reduction <add>, %257, %cst_131 [0] : vector<32x1xf32> to vector<1xf32>
    %259 = vector.shape_cast %258 : vector<1xf32> to vector<1x1xf32>
    %260 = arith.mulf %204, %254 : vector<32x256xf32>
    %cst_132 = arith.constant dense<0.000000e+00> : vector<32xf32>
    %261 = vector.multi_reduction <add>, %260, %cst_132 [1] : vector<32x256xf32> to vector<32xf32>
    %262 = vector.shape_cast %261 : vector<32xf32> to vector<32x1xf32>
    %cst_133 = arith.constant dense<0.000000e+00> : vector<1xf32>
    %263 = vector.multi_reduction <add>, %262, %cst_133 [0] : vector<32x1xf32> to vector<1xf32>
    %264 = vector.shape_cast %263 : vector<1xf32> to vector<1x1xf32>
    %c5_134 = arith.constant 5 : index
    %c0_135 = arith.constant 0 : index
    %c0_136 = arith.constant 0 : index
    %265 = vector.load %arg3[%c5_134, %c0_135, %c0_136] : memref<10x32x256xf32, #tpu.memory_space<vmem>>, vector<1x32x256xf32>
    %266 = vector.shape_cast %265 : vector<1x32x256xf32> to vector<32x256xf32>
    %267 = arith.mulf %203, %266 : vector<32x256xf32>
    %cst_137 = arith.constant dense<0.000000e+00> : vector<32xf32>
    %268 = vector.multi_reduction <add>, %267, %cst_137 [1] : vector<32x256xf32> to vector<32xf32>
    %269 = vector.shape_cast %268 : vector<32xf32> to vector<32x1xf32>
    %cst_138 = arith.constant dense<0.000000e+00> : vector<1xf32>
    %270 = vector.multi_reduction <add>, %269, %cst_138 [0] : vector<32x1xf32> to vector<1xf32>
    %271 = vector.shape_cast %270 : vector<1xf32> to vector<1x1xf32>
    %272 = arith.mulf %204, %266 : vector<32x256xf32>
    %cst_139 = arith.constant dense<0.000000e+00> : vector<32xf32>
    %273 = vector.multi_reduction <add>, %272, %cst_139 [1] : vector<32x256xf32> to vector<32xf32>
    %274 = vector.shape_cast %273 : vector<32xf32> to vector<32x1xf32>
    %cst_140 = arith.constant dense<0.000000e+00> : vector<1xf32>
    %275 = vector.multi_reduction <add>, %274, %cst_140 [0] : vector<32x1xf32> to vector<1xf32>
    %276 = vector.shape_cast %275 : vector<1xf32> to vector<1x1xf32>
    %c6_141 = arith.constant 6 : index
    %c0_142 = arith.constant 0 : index
    %c0_143 = arith.constant 0 : index
    %277 = vector.load %arg3[%c6_141, %c0_142, %c0_143] : memref<10x32x256xf32, #tpu.memory_space<vmem>>, vector<1x32x256xf32>
    %278 = vector.shape_cast %277 : vector<1x32x256xf32> to vector<32x256xf32>
    %279 = arith.mulf %203, %278 : vector<32x256xf32>
    %cst_144 = arith.constant dense<0.000000e+00> : vector<32xf32>
    %280 = vector.multi_reduction <add>, %279, %cst_144 [1] : vector<32x256xf32> to vector<32xf32>
    %281 = vector.shape_cast %280 : vector<32xf32> to vector<32x1xf32>
    %cst_145 = arith.constant dense<0.000000e+00> : vector<1xf32>
    %282 = vector.multi_reduction <add>, %281, %cst_145 [0] : vector<32x1xf32> to vector<1xf32>
    %283 = vector.shape_cast %282 : vector<1xf32> to vector<1x1xf32>
    %284 = arith.mulf %204, %278 : vector<32x256xf32>
    %cst_146 = arith.constant dense<0.000000e+00> : vector<32xf32>
    %285 = vector.multi_reduction <add>, %284, %cst_146 [1] : vector<32x256xf32> to vector<32xf32>
    %286 = vector.shape_cast %285 : vector<32xf32> to vector<32x1xf32>
    %cst_147 = arith.constant dense<0.000000e+00> : vector<1xf32>
    %287 = vector.multi_reduction <add>, %286, %cst_147 [0] : vector<32x1xf32> to vector<1xf32>
    %288 = vector.shape_cast %287 : vector<1xf32> to vector<1x1xf32>
    %c7_148 = arith.constant 7 : index
    %c0_149 = arith.constant 0 : index
    %c0_150 = arith.constant 0 : index
    %289 = vector.load %arg3[%c7_148, %c0_149, %c0_150] : memref<10x32x256xf32, #tpu.memory_space<vmem>>, vector<1x32x256xf32>
    %290 = vector.shape_cast %289 : vector<1x32x256xf32> to vector<32x256xf32>
    %291 = arith.mulf %203, %290 : vector<32x256xf32>
    %cst_151 = arith.constant dense<0.000000e+00> : vector<32xf32>
    %292 = vector.multi_reduction <add>, %291, %cst_151 [1] : vector<32x256xf32> to vector<32xf32>
    %293 = vector.shape_cast %292 : vector<32xf32> to vector<32x1xf32>
    %cst_152 = arith.constant dense<0.000000e+00> : vector<1xf32>
    %294 = vector.multi_reduction <add>, %293, %cst_152 [0] : vector<32x1xf32> to vector<1xf32>
    %295 = vector.shape_cast %294 : vector<1xf32> to vector<1x1xf32>
    %296 = arith.mulf %204, %290 : vector<32x256xf32>
    %cst_153 = arith.constant dense<0.000000e+00> : vector<32xf32>
    %297 = vector.multi_reduction <add>, %296, %cst_153 [1] : vector<32x256xf32> to vector<32xf32>
    %298 = vector.shape_cast %297 : vector<32xf32> to vector<32x1xf32>
    %cst_154 = arith.constant dense<0.000000e+00> : vector<1xf32>
    %299 = vector.multi_reduction <add>, %298, %cst_154 [0] : vector<32x1xf32> to vector<1xf32>
    %300 = vector.shape_cast %299 : vector<1xf32> to vector<1x1xf32>
    %c8_155 = arith.constant 8 : index
    %c0_156 = arith.constant 0 : index
    %c0_157 = arith.constant 0 : index
    %301 = vector.load %arg3[%c8_155, %c0_156, %c0_157] : memref<10x32x256xf32, #tpu.memory_space<vmem>>, vector<1x32x256xf32>
    %302 = vector.shape_cast %301 : vector<1x32x256xf32> to vector<32x256xf32>
    %303 = arith.mulf %203, %302 : vector<32x256xf32>
    %cst_158 = arith.constant dense<0.000000e+00> : vector<32xf32>
    %304 = vector.multi_reduction <add>, %303, %cst_158 [1] : vector<32x256xf32> to vector<32xf32>
    %305 = vector.shape_cast %304 : vector<32xf32> to vector<32x1xf32>
    %cst_159 = arith.constant dense<0.000000e+00> : vector<1xf32>
    %306 = vector.multi_reduction <add>, %305, %cst_159 [0] : vector<32x1xf32> to vector<1xf32>
    %307 = vector.shape_cast %306 : vector<1xf32> to vector<1x1xf32>
    %308 = arith.mulf %204, %302 : vector<32x256xf32>
    %cst_160 = arith.constant dense<0.000000e+00> : vector<32xf32>
    %309 = vector.multi_reduction <add>, %308, %cst_160 [1] : vector<32x256xf32> to vector<32xf32>
    %310 = vector.shape_cast %309 : vector<32xf32> to vector<32x1xf32>
    %cst_161 = arith.constant dense<0.000000e+00> : vector<1xf32>
    %311 = vector.multi_reduction <add>, %310, %cst_161 [0] : vector<32x1xf32> to vector<1xf32>
    %312 = vector.shape_cast %311 : vector<1xf32> to vector<1x1xf32>
    %c9_162 = arith.constant 9 : index
    %c0_163 = arith.constant 0 : index
    %c0_164 = arith.constant 0 : index
    %313 = vector.load %arg3[%c9_162, %c0_163, %c0_164] : memref<10x32x256xf32, #tpu.memory_space<vmem>>, vector<1x32x256xf32>
    %314 = vector.shape_cast %313 : vector<1x32x256xf32> to vector<32x256xf32>
    %315 = arith.mulf %203, %314 : vector<32x256xf32>
    %cst_165 = arith.constant dense<0.000000e+00> : vector<32xf32>
    %316 = vector.multi_reduction <add>, %315, %cst_165 [1] : vector<32x256xf32> to vector<32xf32>
    %317 = vector.shape_cast %316 : vector<32xf32> to vector<32x1xf32>
    %cst_166 = arith.constant dense<0.000000e+00> : vector<1xf32>
    %318 = vector.multi_reduction <add>, %317, %cst_166 [0] : vector<32x1xf32> to vector<1xf32>
    %319 = vector.shape_cast %318 : vector<1xf32> to vector<1x1xf32>
    %320 = arith.mulf %204, %314 : vector<32x256xf32>
    %cst_167 = arith.constant dense<0.000000e+00> : vector<32xf32>
    %321 = vector.multi_reduction <add>, %320, %cst_167 [1] : vector<32x256xf32> to vector<32xf32>
    %322 = vector.shape_cast %321 : vector<32xf32> to vector<32x1xf32>
    %cst_168 = arith.constant dense<0.000000e+00> : vector<1xf32>
    %323 = vector.multi_reduction <add>, %322, %cst_168 [0] : vector<32x1xf32> to vector<1xf32>
    %324 = vector.shape_cast %323 : vector<1xf32> to vector<1x1xf32>
    %325 = tpu.concatenate %211, %223, %235, %247, %259, %271, %283, %295, %307, %319 in 1 : vector<1x1xf32>, vector<1x1xf32>, vector<1x1xf32>, vector<1x1xf32>, vector<1x1xf32>, vector<1x1xf32>, vector<1x1xf32>, vector<1x1xf32>, vector<1x1xf32>, vector<1x1xf32> -> vector<1x10xf32>
    %326 = tpu.concatenate %216, %228, %240, %252, %264, %276, %288, %300, %312, %324 in 1 : vector<1x1xf32>, vector<1x1xf32>, vector<1x1xf32>, vector<1x1xf32>, vector<1x1xf32>, vector<1x1xf32>, vector<1x1xf32>, vector<1x1xf32>, vector<1x1xf32>, vector<1x1xf32> -> vector<1x10xf32>
    %327 = tpu.concatenate %325, %326 in 0 : vector<1x10xf32>, vector<1x10xf32> -> vector<2x10xf32>
    %328 = vector.broadcast %4 : vector<1x10xf32> to vector<2x10xf32>
    %329 = arith.addf %327, %328 : vector<2x10xf32>
    %c0_169 = arith.constant 0 : index
    %c0_170 = arith.constant 0 : index
    %330 = vector.load %arg7[%c0_169, %c0_170] : memref<2x10xf32, #tpu.memory_space<vmem>>, vector<2x10xf32>
    %cst_171 = arith.constant 0.899999976 : f32
    %331 = vector.broadcast %cst_171 : f32 to vector<2x10xf32>
    %332 = arith.mulf %331, %330 : vector<2x10xf32>
    %333 = arith.addf %332, %329 : vector<2x10xf32>
    %cst_172 = arith.constant 1.000000e+00 : f32
    %334 = vector.broadcast %cst_172 : f32 to vector<2x10xf32>
    %335 = arith.cmpf ogt, %330, %334 : vector<2x10xf32>
    %336 = arith.extui %335 : vector<2x10xi1> to vector<2x10xi32>
    %337 = arith.sitofp %336 : vector<2x10xi32> to vector<2x10xf32>
    %cst_173 = arith.constant 1.000000e+00 : f32
    %338 = vector.broadcast %cst_173 : f32 to vector<2x10xf32>
    %339 = arith.mulf %337, %338 : vector<2x10xf32>
    %340 = arith.subf %333, %339 : vector<2x10xf32>
    %c0_174 = arith.constant 0 : index
    %c0_175 = arith.constant 0 : index
    %341 = vector.load %arg7[%c0_174, %c0_175] : memref<2x10xf32, #tpu.memory_space<vmem>>, vector<2x10xf32>
    tpu.vector_store %arg7[%c0_174, %c0_175], %340 {strides = array<i32>} : memref<2x10xf32, #tpu.memory_space<vmem>>, vector<2x10xf32>,
    %cst_176 = arith.constant 1.000000e+00 : f32
    %342 = vector.broadcast %cst_176 : f32 to vector<2x10xf32>
    %343 = arith.cmpf ogt, %340, %342 : vector<2x10xf32>
    %344 = arith.extui %343 : vector<2x10xi1> to vector<2x10xi32>
    %345 = arith.sitofp %344 : vector<2x10xi32> to vector<2x10xf32>
    %c1_177 = arith.constant 1 : index
    %c0_178 = arith.constant 0 : index
    %c0_179 = arith.constant 0 : index
    %346 = vector.load %arg5[%c1_177, %c0_178, %c0_179] : memref<4x2x10xf32, #tpu.memory_space<vmem>>, vector<1x2x10xf32>
    %347 = vector.shape_cast %346 : vector<1x2x10xf32> to vector<2x10xf32>
    %348 = vector.shape_cast %345 : vector<2x10xf32> to vector<1x2x10xf32>
    tpu.vector_store %arg5[%c1_177, %c0_178, %c0_179], %348 {strides = array<i32>} : memref<4x2x10xf32, #tpu.memory_space<vmem>>, vector<1x2x10xf32>,
    %c2_180 = arith.constant 2 : index
    %c0_181 = arith.constant 0 : index
    %c0_182 = arith.constant 0 : index
    %349 = vector.load %arg1[%c2_180, %c0_181, %c0_182] : memref<4x56x2048xf32, #tpu.memory_space<vmem>>, vector<1x56x2048xf32>
    %350 = vector.shape_cast %349 : vector<1x56x2048xf32> to vector<56x2048xf32>
    %cst_183 = arith.constant dense<0.000000e+00> : vector<32x2048xf32>
    %351 = tpu.matmul %3, %350, %cst_183 {dimension_numbers = #tpu.dot_dimension_numbers<[1], [0], [0], [1], [0, 0, 1, 1], [], []>} : vector<32x56xf32>, vector<56x2048xf32>, vector<32x2048xf32> -> vector<32x2048xf32>
    %352 = vector.extract_strided_slice %351 {offsets = [0, 0], sizes = [32, 512], strides = [1, 1]} : vector<32x2048xf32> to vector<32x512xf32>
    %353 = vector.extract_strided_slice %351 {offsets = [0, 512], sizes = [32, 512], strides = [1, 1]} : vector<32x2048xf32> to vector<32x512xf32>
    %354 = arith.maximumf %352, %353 : vector<32x512xf32>
    %355 = vector.extract_strided_slice %351 {offsets = [0, 1024], sizes = [32, 512], strides = [1, 1]} : vector<32x2048xf32> to vector<32x512xf32>
    %356 = vector.extract_strided_slice %351 {offsets = [0, 1536], sizes = [32, 512], strides = [1, 1]} : vector<32x2048xf32> to vector<32x512xf32>
    %357 = arith.maximumf %355, %356 : vector<32x512xf32>
    %358 = arith.maximumf %354, %357 : vector<32x512xf32>
    %c0_184 = arith.constant 0 : index
    %c0_185 = arith.constant 0 : index
    %359 = vector.load %arg6[%c0_184, %c0_185] : memref<32x512xf32, #tpu.memory_space<vmem>>, vector<32x512xf32>
    %cst_186 = arith.constant 0.899999976 : f32
    %360 = vector.broadcast %cst_186 : f32 to vector<32x512xf32>
    %361 = arith.mulf %360, %359 : vector<32x512xf32>
    %362 = arith.addf %361, %358 : vector<32x512xf32>
    %cst_187 = arith.constant 1.000000e+00 : f32
    %363 = vector.broadcast %cst_187 : f32 to vector<32x512xf32>
    %364 = arith.cmpf ogt, %359, %363 : vector<32x512xf32>
    %365 = arith.extui %364 : vector<32x512xi1> to vector<32x512xi32>
    %366 = arith.sitofp %365 : vector<32x512xi32> to vector<32x512xf32>
    %cst_188 = arith.constant 1.000000e+00 : f32
    %367 = vector.broadcast %cst_188 : f32 to vector<32x512xf32>
    %368 = arith.mulf %366, %367 : vector<32x512xf32>
    %369 = arith.subf %362, %368 : vector<32x512xf32>
    %c0_189 = arith.constant 0 : index
    %c0_190 = arith.constant 0 : index
    %370 = vector.load %arg6[%c0_189, %c0_190] : memref<32x512xf32, #tpu.memory_space<vmem>>, vector<32x512xf32>
    tpu.vector_store %arg6[%c0_189, %c0_190], %369 {strides = array<i32>} : memref<32x512xf32, #tpu.memory_space<vmem>>, vector<32x512xf32>,
    %cst_191 = arith.constant 1.000000e+00 : f32
    %371 = vector.broadcast %cst_191 : f32 to vector<32x512xf32>
    %372 = arith.cmpf ogt, %369, %371 : vector<32x512xf32>
    %373 = arith.extui %372 : vector<32x512xi1> to vector<32x512xi32>
    %374 = arith.sitofp %373 : vector<32x512xi32> to vector<32x512xf32>
    %375 = vector.extract_strided_slice %374 {offsets = [0, 0], sizes = [32, 256], strides = [1, 1]} : vector<32x512xf32> to vector<32x256xf32>
    %376 = vector.extract_strided_slice %374 {offsets = [0, 256], sizes = [32, 256], strides = [1, 1]} : vector<32x512xf32> to vector<32x256xf32>
    %c0_192 = arith.constant 0 : index
    %c0_193 = arith.constant 0 : index
    %c0_194 = arith.constant 0 : index
    %377 = vector.load %arg3[%c0_192, %c0_193, %c0_194] : memref<10x32x256xf32, #tpu.memory_space<vmem>>, vector<1x32x256xf32>
    %378 = vector.shape_cast %377 : vector<1x32x256xf32> to vector<32x256xf32>
    %379 = arith.mulf %375, %378 : vector<32x256xf32>
    %cst_195 = arith.constant dense<0.000000e+00> : vector<32xf32>
    %380 = vector.multi_reduction <add>, %379, %cst_195 [1] : vector<32x256xf32> to vector<32xf32>
    %381 = vector.shape_cast %380 : vector<32xf32> to vector<32x1xf32>
    %cst_196 = arith.constant dense<0.000000e+00> : vector<1xf32>
    %382 = vector.multi_reduction <add>, %381, %cst_196 [0] : vector<32x1xf32> to vector<1xf32>
    %383 = vector.shape_cast %382 : vector<1xf32> to vector<1x1xf32>
    %384 = arith.mulf %376, %378 : vector<32x256xf32>
    %cst_197 = arith.constant dense<0.000000e+00> : vector<32xf32>
    %385 = vector.multi_reduction <add>, %384, %cst_197 [1] : vector<32x256xf32> to vector<32xf32>
    %386 = vector.shape_cast %385 : vector<32xf32> to vector<32x1xf32>
    %cst_198 = arith.constant dense<0.000000e+00> : vector<1xf32>
    %387 = vector.multi_reduction <add>, %386, %cst_198 [0] : vector<32x1xf32> to vector<1xf32>
    %388 = vector.shape_cast %387 : vector<1xf32> to vector<1x1xf32>
    %c1_199 = arith.constant 1 : index
    %c0_200 = arith.constant 0 : index
    %c0_201 = arith.constant 0 : index
    %389 = vector.load %arg3[%c1_199, %c0_200, %c0_201] : memref<10x32x256xf32, #tpu.memory_space<vmem>>, vector<1x32x256xf32>
    %390 = vector.shape_cast %389 : vector<1x32x256xf32> to vector<32x256xf32>
    %391 = arith.mulf %375, %390 : vector<32x256xf32>
    %cst_202 = arith.constant dense<0.000000e+00> : vector<32xf32>
    %392 = vector.multi_reduction <add>, %391, %cst_202 [1] : vector<32x256xf32> to vector<32xf32>
    %393 = vector.shape_cast %392 : vector<32xf32> to vector<32x1xf32>
    %cst_203 = arith.constant dense<0.000000e+00> : vector<1xf32>
    %394 = vector.multi_reduction <add>, %393, %cst_203 [0] : vector<32x1xf32> to vector<1xf32>
    %395 = vector.shape_cast %394 : vector<1xf32> to vector<1x1xf32>
    %396 = arith.mulf %376, %390 : vector<32x256xf32>
    %cst_204 = arith.constant dense<0.000000e+00> : vector<32xf32>
    %397 = vector.multi_reduction <add>, %396, %cst_204 [1] : vector<32x256xf32> to vector<32xf32>
    %398 = vector.shape_cast %397 : vector<32xf32> to vector<32x1xf32>
    %cst_205 = arith.constant dense<0.000000e+00> : vector<1xf32>
    %399 = vector.multi_reduction <add>, %398, %cst_205 [0] : vector<32x1xf32> to vector<1xf32>
    %400 = vector.shape_cast %399 : vector<1xf32> to vector<1x1xf32>
    %c2_206 = arith.constant 2 : index
    %c0_207 = arith.constant 0 : index
    %c0_208 = arith.constant 0 : index
    %401 = vector.load %arg3[%c2_206, %c0_207, %c0_208] : memref<10x32x256xf32, #tpu.memory_space<vmem>>, vector<1x32x256xf32>
    %402 = vector.shape_cast %401 : vector<1x32x256xf32> to vector<32x256xf32>
    %403 = arith.mulf %375, %402 : vector<32x256xf32>
    %cst_209 = arith.constant dense<0.000000e+00> : vector<32xf32>
    %404 = vector.multi_reduction <add>, %403, %cst_209 [1] : vector<32x256xf32> to vector<32xf32>
    %405 = vector.shape_cast %404 : vector<32xf32> to vector<32x1xf32>
    %cst_210 = arith.constant dense<0.000000e+00> : vector<1xf32>
    %406 = vector.multi_reduction <add>, %405, %cst_210 [0] : vector<32x1xf32> to vector<1xf32>
    %407 = vector.shape_cast %406 : vector<1xf32> to vector<1x1xf32>
    %408 = arith.mulf %376, %402 : vector<32x256xf32>
    %cst_211 = arith.constant dense<0.000000e+00> : vector<32xf32>
    %409 = vector.multi_reduction <add>, %408, %cst_211 [1] : vector<32x256xf32> to vector<32xf32>
    %410 = vector.shape_cast %409 : vector<32xf32> to vector<32x1xf32>
    %cst_212 = arith.constant dense<0.000000e+00> : vector<1xf32>
    %411 = vector.multi_reduction <add>, %410, %cst_212 [0] : vector<32x1xf32> to vector<1xf32>
    %412 = vector.shape_cast %411 : vector<1xf32> to vector<1x1xf32>
    %c3_213 = arith.constant 3 : index
    %c0_214 = arith.constant 0 : index
    %c0_215 = arith.constant 0 : index
    %413 = vector.load %arg3[%c3_213, %c0_214, %c0_215] : memref<10x32x256xf32, #tpu.memory_space<vmem>>, vector<1x32x256xf32>
    %414 = vector.shape_cast %413 : vector<1x32x256xf32> to vector<32x256xf32>
    %415 = arith.mulf %375, %414 : vector<32x256xf32>
    %cst_216 = arith.constant dense<0.000000e+00> : vector<32xf32>
    %416 = vector.multi_reduction <add>, %415, %cst_216 [1] : vector<32x256xf32> to vector<32xf32>
    %417 = vector.shape_cast %416 : vector<32xf32> to vector<32x1xf32>
    %cst_217 = arith.constant dense<0.000000e+00> : vector<1xf32>
    %418 = vector.multi_reduction <add>, %417, %cst_217 [0] : vector<32x1xf32> to vector<1xf32>
    %419 = vector.shape_cast %418 : vector<1xf32> to vector<1x1xf32>
    %420 = arith.mulf %376, %414 : vector<32x256xf32>
    %cst_218 = arith.constant dense<0.000000e+00> : vector<32xf32>
    %421 = vector.multi_reduction <add>, %420, %cst_218 [1] : vector<32x256xf32> to vector<32xf32>
    %422 = vector.shape_cast %421 : vector<32xf32> to vector<32x1xf32>
    %cst_219 = arith.constant dense<0.000000e+00> : vector<1xf32>
    %423 = vector.multi_reduction <add>, %422, %cst_219 [0] : vector<32x1xf32> to vector<1xf32>
    %424 = vector.shape_cast %423 : vector<1xf32> to vector<1x1xf32>
    %c4_220 = arith.constant 4 : index
    %c0_221 = arith.constant 0 : index
    %c0_222 = arith.constant 0 : index
    %425 = vector.load %arg3[%c4_220, %c0_221, %c0_222] : memref<10x32x256xf32, #tpu.memory_space<vmem>>, vector<1x32x256xf32>
    %426 = vector.shape_cast %425 : vector<1x32x256xf32> to vector<32x256xf32>
    %427 = arith.mulf %375, %426 : vector<32x256xf32>
    %cst_223 = arith.constant dense<0.000000e+00> : vector<32xf32>
    %428 = vector.multi_reduction <add>, %427, %cst_223 [1] : vector<32x256xf32> to vector<32xf32>
    %429 = vector.shape_cast %428 : vector<32xf32> to vector<32x1xf32>
    %cst_224 = arith.constant dense<0.000000e+00> : vector<1xf32>
    %430 = vector.multi_reduction <add>, %429, %cst_224 [0] : vector<32x1xf32> to vector<1xf32>
    %431 = vector.shape_cast %430 : vector<1xf32> to vector<1x1xf32>
    %432 = arith.mulf %376, %426 : vector<32x256xf32>
    %cst_225 = arith.constant dense<0.000000e+00> : vector<32xf32>
    %433 = vector.multi_reduction <add>, %432, %cst_225 [1] : vector<32x256xf32> to vector<32xf32>
    %434 = vector.shape_cast %433 : vector<32xf32> to vector<32x1xf32>
    %cst_226 = arith.constant dense<0.000000e+00> : vector<1xf32>
    %435 = vector.multi_reduction <add>, %434, %cst_226 [0] : vector<32x1xf32> to vector<1xf32>
    %436 = vector.shape_cast %435 : vector<1xf32> to vector<1x1xf32>
    %c5_227 = arith.constant 5 : index
    %c0_228 = arith.constant 0 : index
    %c0_229 = arith.constant 0 : index
    %437 = vector.load %arg3[%c5_227, %c0_228, %c0_229] : memref<10x32x256xf32, #tpu.memory_space<vmem>>, vector<1x32x256xf32>
    %438 = vector.shape_cast %437 : vector<1x32x256xf32> to vector<32x256xf32>
    %439 = arith.mulf %375, %438 : vector<32x256xf32>
    %cst_230 = arith.constant dense<0.000000e+00> : vector<32xf32>
    %440 = vector.multi_reduction <add>, %439, %cst_230 [1] : vector<32x256xf32> to vector<32xf32>
    %441 = vector.shape_cast %440 : vector<32xf32> to vector<32x1xf32>
    %cst_231 = arith.constant dense<0.000000e+00> : vector<1xf32>
    %442 = vector.multi_reduction <add>, %441, %cst_231 [0] : vector<32x1xf32> to vector<1xf32>
    %443 = vector.shape_cast %442 : vector<1xf32> to vector<1x1xf32>
    %444 = arith.mulf %376, %438 : vector<32x256xf32>
    %cst_232 = arith.constant dense<0.000000e+00> : vector<32xf32>
    %445 = vector.multi_reduction <add>, %444, %cst_232 [1] : vector<32x256xf32> to vector<32xf32>
    %446 = vector.shape_cast %445 : vector<32xf32> to vector<32x1xf32>
    %cst_233 = arith.constant dense<0.000000e+00> : vector<1xf32>
    %447 = vector.multi_reduction <add>, %446, %cst_233 [0] : vector<32x1xf32> to vector<1xf32>
    %448 = vector.shape_cast %447 : vector<1xf32> to vector<1x1xf32>
    %c6_234 = arith.constant 6 : index
    %c0_235 = arith.constant 0 : index
    %c0_236 = arith.constant 0 : index
    %449 = vector.load %arg3[%c6_234, %c0_235, %c0_236] : memref<10x32x256xf32, #tpu.memory_space<vmem>>, vector<1x32x256xf32>
    %450 = vector.shape_cast %449 : vector<1x32x256xf32> to vector<32x256xf32>
    %451 = arith.mulf %375, %450 : vector<32x256xf32>
    %cst_237 = arith.constant dense<0.000000e+00> : vector<32xf32>
    %452 = vector.multi_reduction <add>, %451, %cst_237 [1] : vector<32x256xf32> to vector<32xf32>
    %453 = vector.shape_cast %452 : vector<32xf32> to vector<32x1xf32>
    %cst_238 = arith.constant dense<0.000000e+00> : vector<1xf32>
    %454 = vector.multi_reduction <add>, %453, %cst_238 [0] : vector<32x1xf32> to vector<1xf32>
    %455 = vector.shape_cast %454 : vector<1xf32> to vector<1x1xf32>
    %456 = arith.mulf %376, %450 : vector<32x256xf32>
    %cst_239 = arith.constant dense<0.000000e+00> : vector<32xf32>
    %457 = vector.multi_reduction <add>, %456, %cst_239 [1] : vector<32x256xf32> to vector<32xf32>
    %458 = vector.shape_cast %457 : vector<32xf32> to vector<32x1xf32>
    %cst_240 = arith.constant dense<0.000000e+00> : vector<1xf32>
    %459 = vector.multi_reduction <add>, %458, %cst_240 [0] : vector<32x1xf32> to vector<1xf32>
    %460 = vector.shape_cast %459 : vector<1xf32> to vector<1x1xf32>
    %c7_241 = arith.constant 7 : index
    %c0_242 = arith.constant 0 : index
    %c0_243 = arith.constant 0 : index
    %461 = vector.load %arg3[%c7_241, %c0_242, %c0_243] : memref<10x32x256xf32, #tpu.memory_space<vmem>>, vector<1x32x256xf32>
    %462 = vector.shape_cast %461 : vector<1x32x256xf32> to vector<32x256xf32>
    %463 = arith.mulf %375, %462 : vector<32x256xf32>
    %cst_244 = arith.constant dense<0.000000e+00> : vector<32xf32>
    %464 = vector.multi_reduction <add>, %463, %cst_244 [1] : vector<32x256xf32> to vector<32xf32>
    %465 = vector.shape_cast %464 : vector<32xf32> to vector<32x1xf32>
    %cst_245 = arith.constant dense<0.000000e+00> : vector<1xf32>
    %466 = vector.multi_reduction <add>, %465, %cst_245 [0] : vector<32x1xf32> to vector<1xf32>
    %467 = vector.shape_cast %466 : vector<1xf32> to vector<1x1xf32>
    %468 = arith.mulf %376, %462 : vector<32x256xf32>
    %cst_246 = arith.constant dense<0.000000e+00> : vector<32xf32>
    %469 = vector.multi_reduction <add>, %468, %cst_246 [1] : vector<32x256xf32> to vector<32xf32>
    %470 = vector.shape_cast %469 : vector<32xf32> to vector<32x1xf32>
    %cst_247 = arith.constant dense<0.000000e+00> : vector<1xf32>
    %471 = vector.multi_reduction <add>, %470, %cst_247 [0] : vector<32x1xf32> to vector<1xf32>
    %472 = vector.shape_cast %471 : vector<1xf32> to vector<1x1xf32>
    %c8_248 = arith.constant 8 : index
    %c0_249 = arith.constant 0 : index
    %c0_250 = arith.constant 0 : index
    %473 = vector.load %arg3[%c8_248, %c0_249, %c0_250] : memref<10x32x256xf32, #tpu.memory_space<vmem>>, vector<1x32x256xf32>
    %474 = vector.shape_cast %473 : vector<1x32x256xf32> to vector<32x256xf32>
    %475 = arith.mulf %375, %474 : vector<32x256xf32>
    %cst_251 = arith.constant dense<0.000000e+00> : vector<32xf32>
    %476 = vector.multi_reduction <add>, %475, %cst_251 [1] : vector<32x256xf32> to vector<32xf32>
    %477 = vector.shape_cast %476 : vector<32xf32> to vector<32x1xf32>
    %cst_252 = arith.constant dense<0.000000e+00> : vector<1xf32>
    %478 = vector.multi_reduction <add>, %477, %cst_252 [0] : vector<32x1xf32> to vector<1xf32>
    %479 = vector.shape_cast %478 : vector<1xf32> to vector<1x1xf32>
    %480 = arith.mulf %376, %474 : vector<32x256xf32>
    %cst_253 = arith.constant dense<0.000000e+00> : vector<32xf32>
    %481 = vector.multi_reduction <add>, %480, %cst_253 [1] : vector<32x256xf32> to vector<32xf32>
    %482 = vector.shape_cast %481 : vector<32xf32> to vector<32x1xf32>
    %cst_254 = arith.constant dense<0.000000e+00> : vector<1xf32>
    %483 = vector.multi_reduction <add>, %482, %cst_254 [0] : vector<32x1xf32> to vector<1xf32>
    %484 = vector.shape_cast %483 : vector<1xf32> to vector<1x1xf32>
    %c9_255 = arith.constant 9 : index
    %c0_256 = arith.constant 0 : index
    %c0_257 = arith.constant 0 : index
    %485 = vector.load %arg3[%c9_255, %c0_256, %c0_257] : memref<10x32x256xf32, #tpu.memory_space<vmem>>, vector<1x32x256xf32>
    %486 = vector.shape_cast %485 : vector<1x32x256xf32> to vector<32x256xf32>
    %487 = arith.mulf %375, %486 : vector<32x256xf32>
    %cst_258 = arith.constant dense<0.000000e+00> : vector<32xf32>
    %488 = vector.multi_reduction <add>, %487, %cst_258 [1] : vector<32x256xf32> to vector<32xf32>
    %489 = vector.shape_cast %488 : vector<32xf32> to vector<32x1xf32>
    %cst_259 = arith.constant dense<0.000000e+00> : vector<1xf32>
    %490 = vector.multi_reduction <add>, %489, %cst_259 [0] : vector<32x1xf32> to vector<1xf32>
    %491 = vector.shape_cast %490 : vector<1xf32> to vector<1x1xf32>
    %492 = arith.mulf %376, %486 : vector<32x256xf32>
    %cst_260 = arith.constant dense<0.000000e+00> : vector<32xf32>
    %493 = vector.multi_reduction <add>, %492, %cst_260 [1] : vector<32x256xf32> to vector<32xf32>
    %494 = vector.shape_cast %493 : vector<32xf32> to vector<32x1xf32>
    %cst_261 = arith.constant dense<0.000000e+00> : vector<1xf32>
    %495 = vector.multi_reduction <add>, %494, %cst_261 [0] : vector<32x1xf32> to vector<1xf32>
    %496 = vector.shape_cast %495 : vector<1xf32> to vector<1x1xf32>
    %497 = tpu.concatenate %383, %395, %407, %419, %431, %443, %455, %467, %479, %491 in 1 : vector<1x1xf32>, vector<1x1xf32>, vector<1x1xf32>, vector<1x1xf32>, vector<1x1xf32>, vector<1x1xf32>, vector<1x1xf32>, vector<1x1xf32>, vector<1x1xf32>, vector<1x1xf32> -> vector<1x10xf32>
    %498 = tpu.concatenate %388, %400, %412, %424, %436, %448, %460, %472, %484, %496 in 1 : vector<1x1xf32>, vector<1x1xf32>, vector<1x1xf32>, vector<1x1xf32>, vector<1x1xf32>, vector<1x1xf32>, vector<1x1xf32>, vector<1x1xf32>, vector<1x1xf32>, vector<1x1xf32> -> vector<1x10xf32>
    %499 = tpu.concatenate %497, %498 in 0 : vector<1x10xf32>, vector<1x10xf32> -> vector<2x10xf32>
    %500 = vector.broadcast %4 : vector<1x10xf32> to vector<2x10xf32>
    %501 = arith.addf %499, %500 : vector<2x10xf32>
    %c0_262 = arith.constant 0 : index
    %c0_263 = arith.constant 0 : index
    %502 = vector.load %arg7[%c0_262, %c0_263] : memref<2x10xf32, #tpu.memory_space<vmem>>, vector<2x10xf32>
    %cst_264 = arith.constant 0.899999976 : f32
    %503 = vector.broadcast %cst_264 : f32 to vector<2x10xf32>
    %504 = arith.mulf %503, %502 : vector<2x10xf32>
    %505 = arith.addf %504, %501 : vector<2x10xf32>
    %cst_265 = arith.constant 1.000000e+00 : f32
    %506 = vector.broadcast %cst_265 : f32 to vector<2x10xf32>
    %507 = arith.cmpf ogt, %502, %506 : vector<2x10xf32>
    %508 = arith.extui %507 : vector<2x10xi1> to vector<2x10xi32>
    %509 = arith.sitofp %508 : vector<2x10xi32> to vector<2x10xf32>
    %cst_266 = arith.constant 1.000000e+00 : f32
    %510 = vector.broadcast %cst_266 : f32 to vector<2x10xf32>
    %511 = arith.mulf %509, %510 : vector<2x10xf32>
    %512 = arith.subf %505, %511 : vector<2x10xf32>
    %c0_267 = arith.constant 0 : index
    %c0_268 = arith.constant 0 : index
    %513 = vector.load %arg7[%c0_267, %c0_268] : memref<2x10xf32, #tpu.memory_space<vmem>>, vector<2x10xf32>
    tpu.vector_store %arg7[%c0_267, %c0_268], %512 {strides = array<i32>} : memref<2x10xf32, #tpu.memory_space<vmem>>, vector<2x10xf32>,
    %cst_269 = arith.constant 1.000000e+00 : f32
    %514 = vector.broadcast %cst_269 : f32 to vector<2x10xf32>
    %515 = arith.cmpf ogt, %512, %514 : vector<2x10xf32>
    %516 = arith.extui %515 : vector<2x10xi1> to vector<2x10xi32>
    %517 = arith.sitofp %516 : vector<2x10xi32> to vector<2x10xf32>
    %c2_270 = arith.constant 2 : index
    %c0_271 = arith.constant 0 : index
    %c0_272 = arith.constant 0 : index
    %518 = vector.load %arg5[%c2_270, %c0_271, %c0_272] : memref<4x2x10xf32, #tpu.memory_space<vmem>>, vector<1x2x10xf32>
    %519 = vector.shape_cast %518 : vector<1x2x10xf32> to vector<2x10xf32>
    %520 = vector.shape_cast %517 : vector<2x10xf32> to vector<1x2x10xf32>
    tpu.vector_store %arg5[%c2_270, %c0_271, %c0_272], %520 {strides = array<i32>} : memref<4x2x10xf32, #tpu.memory_space<vmem>>, vector<1x2x10xf32>,
    %c3_273 = arith.constant 3 : index
    %c0_274 = arith.constant 0 : index
    %c0_275 = arith.constant 0 : index
    %521 = vector.load %arg1[%c3_273, %c0_274, %c0_275] : memref<4x56x2048xf32, #tpu.memory_space<vmem>>, vector<1x56x2048xf32>
    %522 = vector.shape_cast %521 : vector<1x56x2048xf32> to vector<56x2048xf32>
    %cst_276 = arith.constant dense<0.000000e+00> : vector<32x2048xf32>
    %523 = tpu.matmul %3, %522, %cst_276 {dimension_numbers = #tpu.dot_dimension_numbers<[1], [0], [0], [1], [0, 0, 1, 1], [], []>} : vector<32x56xf32>, vector<56x2048xf32>, vector<32x2048xf32> -> vector<32x2048xf32>
    %524 = vector.extract_strided_slice %523 {offsets = [0, 0], sizes = [32, 512], strides = [1, 1]} : vector<32x2048xf32> to vector<32x512xf32>
    %525 = vector.extract_strided_slice %523 {offsets = [0, 512], sizes = [32, 512], strides = [1, 1]} : vector<32x2048xf32> to vector<32x512xf32>
    %526 = arith.maximumf %524, %525 : vector<32x512xf32>
    %527 = vector.extract_strided_slice %523 {offsets = [0, 1024], sizes = [32, 512], strides = [1, 1]} : vector<32x2048xf32> to vector<32x512xf32>
    %528 = vector.extract_strided_slice %523 {offsets = [0, 1536], sizes = [32, 512], strides = [1, 1]} : vector<32x2048xf32> to vector<32x512xf32>
    %529 = arith.maximumf %527, %528 : vector<32x512xf32>
    %530 = arith.maximumf %526, %529 : vector<32x512xf32>
    %c0_277 = arith.constant 0 : index
    %c0_278 = arith.constant 0 : index
    %531 = vector.load %arg6[%c0_277, %c0_278] : memref<32x512xf32, #tpu.memory_space<vmem>>, vector<32x512xf32>
    %cst_279 = arith.constant 0.899999976 : f32
    %532 = vector.broadcast %cst_279 : f32 to vector<32x512xf32>
    %533 = arith.mulf %532, %531 : vector<32x512xf32>
    %534 = arith.addf %533, %530 : vector<32x512xf32>
    %cst_280 = arith.constant 1.000000e+00 : f32
    %535 = vector.broadcast %cst_280 : f32 to vector<32x512xf32>
    %536 = arith.cmpf ogt, %531, %535 : vector<32x512xf32>
    %537 = arith.extui %536 : vector<32x512xi1> to vector<32x512xi32>
    %538 = arith.sitofp %537 : vector<32x512xi32> to vector<32x512xf32>
    %cst_281 = arith.constant 1.000000e+00 : f32
    %539 = vector.broadcast %cst_281 : f32 to vector<32x512xf32>
    %540 = arith.mulf %538, %539 : vector<32x512xf32>
    %541 = arith.subf %534, %540 : vector<32x512xf32>
    %c0_282 = arith.constant 0 : index
    %c0_283 = arith.constant 0 : index
    %542 = vector.load %arg6[%c0_282, %c0_283] : memref<32x512xf32, #tpu.memory_space<vmem>>, vector<32x512xf32>
    tpu.vector_store %arg6[%c0_282, %c0_283], %541 {strides = array<i32>} : memref<32x512xf32, #tpu.memory_space<vmem>>, vector<32x512xf32>,
    %cst_284 = arith.constant 1.000000e+00 : f32
    %543 = vector.broadcast %cst_284 : f32 to vector<32x512xf32>
    %544 = arith.cmpf ogt, %541, %543 : vector<32x512xf32>
    %545 = arith.extui %544 : vector<32x512xi1> to vector<32x512xi32>
    %546 = arith.sitofp %545 : vector<32x512xi32> to vector<32x512xf32>
    %547 = vector.extract_strided_slice %546 {offsets = [0, 0], sizes = [32, 256], strides = [1, 1]} : vector<32x512xf32> to vector<32x256xf32>
    %548 = vector.extract_strided_slice %546 {offsets = [0, 256], sizes = [32, 256], strides = [1, 1]} : vector<32x512xf32> to vector<32x256xf32>
    %c0_285 = arith.constant 0 : index
    %c0_286 = arith.constant 0 : index
    %c0_287 = arith.constant 0 : index
    %549 = vector.load %arg3[%c0_285, %c0_286, %c0_287] : memref<10x32x256xf32, #tpu.memory_space<vmem>>, vector<1x32x256xf32>
    %550 = vector.shape_cast %549 : vector<1x32x256xf32> to vector<32x256xf32>
    %551 = arith.mulf %547, %550 : vector<32x256xf32>
    %cst_288 = arith.constant dense<0.000000e+00> : vector<32xf32>
    %552 = vector.multi_reduction <add>, %551, %cst_288 [1] : vector<32x256xf32> to vector<32xf32>
    %553 = vector.shape_cast %552 : vector<32xf32> to vector<32x1xf32>
    %cst_289 = arith.constant dense<0.000000e+00> : vector<1xf32>
    %554 = vector.multi_reduction <add>, %553, %cst_289 [0] : vector<32x1xf32> to vector<1xf32>
    %555 = vector.shape_cast %554 : vector<1xf32> to vector<1x1xf32>
    %556 = arith.mulf %548, %550 : vector<32x256xf32>
    %cst_290 = arith.constant dense<0.000000e+00> : vector<32xf32>
    %557 = vector.multi_reduction <add>, %556, %cst_290 [1] : vector<32x256xf32> to vector<32xf32>
    %558 = vector.shape_cast %557 : vector<32xf32> to vector<32x1xf32>
    %cst_291 = arith.constant dense<0.000000e+00> : vector<1xf32>
    %559 = vector.multi_reduction <add>, %558, %cst_291 [0] : vector<32x1xf32> to vector<1xf32>
    %560 = vector.shape_cast %559 : vector<1xf32> to vector<1x1xf32>
    %c1_292 = arith.constant 1 : index
    %c0_293 = arith.constant 0 : index
    %c0_294 = arith.constant 0 : index
    %561 = vector.load %arg3[%c1_292, %c0_293, %c0_294] : memref<10x32x256xf32, #tpu.memory_space<vmem>>, vector<1x32x256xf32>
    %562 = vector.shape_cast %561 : vector<1x32x256xf32> to vector<32x256xf32>
    %563 = arith.mulf %547, %562 : vector<32x256xf32>
    %cst_295 = arith.constant dense<0.000000e+00> : vector<32xf32>
    %564 = vector.multi_reduction <add>, %563, %cst_295 [1] : vector<32x256xf32> to vector<32xf32>
    %565 = vector.shape_cast %564 : vector<32xf32> to vector<32x1xf32>
    %cst_296 = arith.constant dense<0.000000e+00> : vector<1xf32>
    %566 = vector.multi_reduction <add>, %565, %cst_296 [0] : vector<32x1xf32> to vector<1xf32>
    %567 = vector.shape_cast %566 : vector<1xf32> to vector<1x1xf32>
    %568 = arith.mulf %548, %562 : vector<32x256xf32>
    %cst_297 = arith.constant dense<0.000000e+00> : vector<32xf32>
    %569 = vector.multi_reduction <add>, %568, %cst_297 [1] : vector<32x256xf32> to vector<32xf32>
    %570 = vector.shape_cast %569 : vector<32xf32> to vector<32x1xf32>
    %cst_298 = arith.constant dense<0.000000e+00> : vector<1xf32>
    %571 = vector.multi_reduction <add>, %570, %cst_298 [0] : vector<32x1xf32> to vector<1xf32>
    %572 = vector.shape_cast %571 : vector<1xf32> to vector<1x1xf32>
    %c2_299 = arith.constant 2 : index
    %c0_300 = arith.constant 0 : index
    %c0_301 = arith.constant 0 : index
    %573 = vector.load %arg3[%c2_299, %c0_300, %c0_301] : memref<10x32x256xf32, #tpu.memory_space<vmem>>, vector<1x32x256xf32>
    %574 = vector.shape_cast %573 : vector<1x32x256xf32> to vector<32x256xf32>
    %575 = arith.mulf %547, %574 : vector<32x256xf32>
    %cst_302 = arith.constant dense<0.000000e+00> : vector<32xf32>
    %576 = vector.multi_reduction <add>, %575, %cst_302 [1] : vector<32x256xf32> to vector<32xf32>
    %577 = vector.shape_cast %576 : vector<32xf32> to vector<32x1xf32>
    %cst_303 = arith.constant dense<0.000000e+00> : vector<1xf32>
    %578 = vector.multi_reduction <add>, %577, %cst_303 [0] : vector<32x1xf32> to vector<1xf32>
    %579 = vector.shape_cast %578 : vector<1xf32> to vector<1x1xf32>
    %580 = arith.mulf %548, %574 : vector<32x256xf32>
    %cst_304 = arith.constant dense<0.000000e+00> : vector<32xf32>
    %581 = vector.multi_reduction <add>, %580, %cst_304 [1] : vector<32x256xf32> to vector<32xf32>
    %582 = vector.shape_cast %581 : vector<32xf32> to vector<32x1xf32>
    %cst_305 = arith.constant dense<0.000000e+00> : vector<1xf32>
    %583 = vector.multi_reduction <add>, %582, %cst_305 [0] : vector<32x1xf32> to vector<1xf32>
    %584 = vector.shape_cast %583 : vector<1xf32> to vector<1x1xf32>
    %c3_306 = arith.constant 3 : index
    %c0_307 = arith.constant 0 : index
    %c0_308 = arith.constant 0 : index
    %585 = vector.load %arg3[%c3_306, %c0_307, %c0_308] : memref<10x32x256xf32, #tpu.memory_space<vmem>>, vector<1x32x256xf32>
    %586 = vector.shape_cast %585 : vector<1x32x256xf32> to vector<32x256xf32>
    %587 = arith.mulf %547, %586 : vector<32x256xf32>
    %cst_309 = arith.constant dense<0.000000e+00> : vector<32xf32>
    %588 = vector.multi_reduction <add>, %587, %cst_309 [1] : vector<32x256xf32> to vector<32xf32>
    %589 = vector.shape_cast %588 : vector<32xf32> to vector<32x1xf32>
    %cst_310 = arith.constant dense<0.000000e+00> : vector<1xf32>
    %590 = vector.multi_reduction <add>, %589, %cst_310 [0] : vector<32x1xf32> to vector<1xf32>
    %591 = vector.shape_cast %590 : vector<1xf32> to vector<1x1xf32>
    %592 = arith.mulf %548, %586 : vector<32x256xf32>
    %cst_311 = arith.constant dense<0.000000e+00> : vector<32xf32>
    %593 = vector.multi_reduction <add>, %592, %cst_311 [1] : vector<32x256xf32> to vector<32xf32>
    %594 = vector.shape_cast %593 : vector<32xf32> to vector<32x1xf32>
    %cst_312 = arith.constant dense<0.000000e+00> : vector<1xf32>
    %595 = vector.multi_reduction <add>, %594, %cst_312 [0] : vector<32x1xf32> to vector<1xf32>
    %596 = vector.shape_cast %595 : vector<1xf32> to vector<1x1xf32>
    %c4_313 = arith.constant 4 : index
    %c0_314 = arith.constant 0 : index
    %c0_315 = arith.constant 0 : index
    %597 = vector.load %arg3[%c4_313, %c0_314, %c0_315] : memref<10x32x256xf32, #tpu.memory_space<vmem>>, vector<1x32x256xf32>
    %598 = vector.shape_cast %597 : vector<1x32x256xf32> to vector<32x256xf32>
    %599 = arith.mulf %547, %598 : vector<32x256xf32>
    %cst_316 = arith.constant dense<0.000000e+00> : vector<32xf32>
    %600 = vector.multi_reduction <add>, %599, %cst_316 [1] : vector<32x256xf32> to vector<32xf32>
    %601 = vector.shape_cast %600 : vector<32xf32> to vector<32x1xf32>
    %cst_317 = arith.constant dense<0.000000e+00> : vector<1xf32>
    %602 = vector.multi_reduction <add>, %601, %cst_317 [0] : vector<32x1xf32> to vector<1xf32>
    %603 = vector.shape_cast %602 : vector<1xf32> to vector<1x1xf32>
    %604 = arith.mulf %548, %598 : vector<32x256xf32>
    %cst_318 = arith.constant dense<0.000000e+00> : vector<32xf32>
    %605 = vector.multi_reduction <add>, %604, %cst_318 [1] : vector<32x256xf32> to vector<32xf32>
    %606 = vector.shape_cast %605 : vector<32xf32> to vector<32x1xf32>
    %cst_319 = arith.constant dense<0.000000e+00> : vector<1xf32>
    %607 = vector.multi_reduction <add>, %606, %cst_319 [0] : vector<32x1xf32> to vector<1xf32>
    %608 = vector.shape_cast %607 : vector<1xf32> to vector<1x1xf32>
    %c5_320 = arith.constant 5 : index
    %c0_321 = arith.constant 0 : index
    %c0_322 = arith.constant 0 : index
    %609 = vector.load %arg3[%c5_320, %c0_321, %c0_322] : memref<10x32x256xf32, #tpu.memory_space<vmem>>, vector<1x32x256xf32>
    %610 = vector.shape_cast %609 : vector<1x32x256xf32> to vector<32x256xf32>
    %611 = arith.mulf %547, %610 : vector<32x256xf32>
    %cst_323 = arith.constant dense<0.000000e+00> : vector<32xf32>
    %612 = vector.multi_reduction <add>, %611, %cst_323 [1] : vector<32x256xf32> to vector<32xf32>
    %613 = vector.shape_cast %612 : vector<32xf32> to vector<32x1xf32>
    %cst_324 = arith.constant dense<0.000000e+00> : vector<1xf32>
    %614 = vector.multi_reduction <add>, %613, %cst_324 [0] : vector<32x1xf32> to vector<1xf32>
    %615 = vector.shape_cast %614 : vector<1xf32> to vector<1x1xf32>
    %616 = arith.mulf %548, %610 : vector<32x256xf32>
    %cst_325 = arith.constant dense<0.000000e+00> : vector<32xf32>
    %617 = vector.multi_reduction <add>, %616, %cst_325 [1] : vector<32x256xf32> to vector<32xf32>
    %618 = vector.shape_cast %617 : vector<32xf32> to vector<32x1xf32>
    %cst_326 = arith.constant dense<0.000000e+00> : vector<1xf32>
    %619 = vector.multi_reduction <add>, %618, %cst_326 [0] : vector<32x1xf32> to vector<1xf32>
    %620 = vector.shape_cast %619 : vector<1xf32> to vector<1x1xf32>
    %c6_327 = arith.constant 6 : index
    %c0_328 = arith.constant 0 : index
    %c0_329 = arith.constant 0 : index
    %621 = vector.load %arg3[%c6_327, %c0_328, %c0_329] : memref<10x32x256xf32, #tpu.memory_space<vmem>>, vector<1x32x256xf32>
    %622 = vector.shape_cast %621 : vector<1x32x256xf32> to vector<32x256xf32>
    %623 = arith.mulf %547, %622 : vector<32x256xf32>
    %cst_330 = arith.constant dense<0.000000e+00> : vector<32xf32>
    %624 = vector.multi_reduction <add>, %623, %cst_330 [1] : vector<32x256xf32> to vector<32xf32>
    %625 = vector.shape_cast %624 : vector<32xf32> to vector<32x1xf32>
    %cst_331 = arith.constant dense<0.000000e+00> : vector<1xf32>
    %626 = vector.multi_reduction <add>, %625, %cst_331 [0] : vector<32x1xf32> to vector<1xf32>
    %627 = vector.shape_cast %626 : vector<1xf32> to vector<1x1xf32>
    %628 = arith.mulf %548, %622 : vector<32x256xf32>
    %cst_332 = arith.constant dense<0.000000e+00> : vector<32xf32>
    %629 = vector.multi_reduction <add>, %628, %cst_332 [1] : vector<32x256xf32> to vector<32xf32>
    %630 = vector.shape_cast %629 : vector<32xf32> to vector<32x1xf32>
    %cst_333 = arith.constant dense<0.000000e+00> : vector<1xf32>
    %631 = vector.multi_reduction <add>, %630, %cst_333 [0] : vector<32x1xf32> to vector<1xf32>
    %632 = vector.shape_cast %631 : vector<1xf32> to vector<1x1xf32>
    %c7_334 = arith.constant 7 : index
    %c0_335 = arith.constant 0 : index
    %c0_336 = arith.constant 0 : index
    %633 = vector.load %arg3[%c7_334, %c0_335, %c0_336] : memref<10x32x256xf32, #tpu.memory_space<vmem>>, vector<1x32x256xf32>
    %634 = vector.shape_cast %633 : vector<1x32x256xf32> to vector<32x256xf32>
    %635 = arith.mulf %547, %634 : vector<32x256xf32>
    %cst_337 = arith.constant dense<0.000000e+00> : vector<32xf32>
    %636 = vector.multi_reduction <add>, %635, %cst_337 [1] : vector<32x256xf32> to vector<32xf32>
    %637 = vector.shape_cast %636 : vector<32xf32> to vector<32x1xf32>
    %cst_338 = arith.constant dense<0.000000e+00> : vector<1xf32>
    %638 = vector.multi_reduction <add>, %637, %cst_338 [0] : vector<32x1xf32> to vector<1xf32>
    %639 = vector.shape_cast %638 : vector<1xf32> to vector<1x1xf32>
    %640 = arith.mulf %548, %634 : vector<32x256xf32>
    %cst_339 = arith.constant dense<0.000000e+00> : vector<32xf32>
    %641 = vector.multi_reduction <add>, %640, %cst_339 [1] : vector<32x256xf32> to vector<32xf32>
    %642 = vector.shape_cast %641 : vector<32xf32> to vector<32x1xf32>
    %cst_340 = arith.constant dense<0.000000e+00> : vector<1xf32>
    %643 = vector.multi_reduction <add>, %642, %cst_340 [0] : vector<32x1xf32> to vector<1xf32>
    %644 = vector.shape_cast %643 : vector<1xf32> to vector<1x1xf32>
    %c8_341 = arith.constant 8 : index
    %c0_342 = arith.constant 0 : index
    %c0_343 = arith.constant 0 : index
    %645 = vector.load %arg3[%c8_341, %c0_342, %c0_343] : memref<10x32x256xf32, #tpu.memory_space<vmem>>, vector<1x32x256xf32>
    %646 = vector.shape_cast %645 : vector<1x32x256xf32> to vector<32x256xf32>
    %647 = arith.mulf %547, %646 : vector<32x256xf32>
    %cst_344 = arith.constant dense<0.000000e+00> : vector<32xf32>
    %648 = vector.multi_reduction <add>, %647, %cst_344 [1] : vector<32x256xf32> to vector<32xf32>
    %649 = vector.shape_cast %648 : vector<32xf32> to vector<32x1xf32>
    %cst_345 = arith.constant dense<0.000000e+00> : vector<1xf32>
    %650 = vector.multi_reduction <add>, %649, %cst_345 [0] : vector<32x1xf32> to vector<1xf32>
    %651 = vector.shape_cast %650 : vector<1xf32> to vector<1x1xf32>
    %652 = arith.mulf %548, %646 : vector<32x256xf32>
    %cst_346 = arith.constant dense<0.000000e+00> : vector<32xf32>
    %653 = vector.multi_reduction <add>, %652, %cst_346 [1] : vector<32x256xf32> to vector<32xf32>
    %654 = vector.shape_cast %653 : vector<32xf32> to vector<32x1xf32>
    %cst_347 = arith.constant dense<0.000000e+00> : vector<1xf32>
    %655 = vector.multi_reduction <add>, %654, %cst_347 [0] : vector<32x1xf32> to vector<1xf32>
    %656 = vector.shape_cast %655 : vector<1xf32> to vector<1x1xf32>
    %c9_348 = arith.constant 9 : index
    %c0_349 = arith.constant 0 : index
    %c0_350 = arith.constant 0 : index
    %657 = vector.load %arg3[%c9_348, %c0_349, %c0_350] : memref<10x32x256xf32, #tpu.memory_space<vmem>>, vector<1x32x256xf32>
    %658 = vector.shape_cast %657 : vector<1x32x256xf32> to vector<32x256xf32>
    %659 = arith.mulf %547, %658 : vector<32x256xf32>
    %cst_351 = arith.constant dense<0.000000e+00> : vector<32xf32>
    %660 = vector.multi_reduction <add>, %659, %cst_351 [1] : vector<32x256xf32> to vector<32xf32>
    %661 = vector.shape_cast %660 : vector<32xf32> to vector<32x1xf32>
    %cst_352 = arith.constant dense<0.000000e+00> : vector<1xf32>
    %662 = vector.multi_reduction <add>, %661, %cst_352 [0] : vector<32x1xf32> to vector<1xf32>
    %663 = vector.shape_cast %662 : vector<1xf32> to vector<1x1xf32>
    %664 = arith.mulf %548, %658 : vector<32x256xf32>
    %cst_353 = arith.constant dense<0.000000e+00> : vector<32xf32>
    %665 = vector.multi_reduction <add>, %664, %cst_353 [1] : vector<32x256xf32> to vector<32xf32>
    %666 = vector.shape_cast %665 : vector<32xf32> to vector<32x1xf32>
    %cst_354 = arith.constant dense<0.000000e+00> : vector<1xf32>
    %667 = vector.multi_reduction <add>, %666, %cst_354 [0] : vector<32x1xf32> to vector<1xf32>
    %668 = vector.shape_cast %667 : vector<1xf32> to vector<1x1xf32>
    %669 = tpu.concatenate %555, %567, %579, %591, %603, %615, %627, %639, %651, %663 in 1 : vector<1x1xf32>, vector<1x1xf32>, vector<1x1xf32>, vector<1x1xf32>, vector<1x1xf32>, vector<1x1xf32>, vector<1x1xf32>, vector<1x1xf32>, vector<1x1xf32>, vector<1x1xf32> -> vector<1x10xf32>
    %670 = tpu.concatenate %560, %572, %584, %596, %608, %620, %632, %644, %656, %668 in 1 : vector<1x1xf32>, vector<1x1xf32>, vector<1x1xf32>, vector<1x1xf32>, vector<1x1xf32>, vector<1x1xf32>, vector<1x1xf32>, vector<1x1xf32>, vector<1x1xf32>, vector<1x1xf32> -> vector<1x10xf32>
    %671 = tpu.concatenate %669, %670 in 0 : vector<1x10xf32>, vector<1x10xf32> -> vector<2x10xf32>
    %672 = vector.broadcast %4 : vector<1x10xf32> to vector<2x10xf32>
    %673 = arith.addf %671, %672 : vector<2x10xf32>
    %c0_355 = arith.constant 0 : index
    %c0_356 = arith.constant 0 : index
    %674 = vector.load %arg7[%c0_355, %c0_356] : memref<2x10xf32, #tpu.memory_space<vmem>>, vector<2x10xf32>
    %cst_357 = arith.constant 0.899999976 : f32
    %675 = vector.broadcast %cst_357 : f32 to vector<2x10xf32>
    %676 = arith.mulf %675, %674 : vector<2x10xf32>
    %677 = arith.addf %676, %673 : vector<2x10xf32>
    %cst_358 = arith.constant 1.000000e+00 : f32
    %678 = vector.broadcast %cst_358 : f32 to vector<2x10xf32>
    %679 = arith.cmpf ogt, %674, %678 : vector<2x10xf32>
    %680 = arith.extui %679 : vector<2x10xi1> to vector<2x10xi32>
    %681 = arith.sitofp %680 : vector<2x10xi32> to vector<2x10xf32>
    %cst_359 = arith.constant 1.000000e+00 : f32
    %682 = vector.broadcast %cst_359 : f32 to vector<2x10xf32>
    %683 = arith.mulf %681, %682 : vector<2x10xf32>
    %684 = arith.subf %677, %683 : vector<2x10xf32>
    %c0_360 = arith.constant 0 : index
    %c0_361 = arith.constant 0 : index
    %685 = vector.load %arg7[%c0_360, %c0_361] : memref<2x10xf32, #tpu.memory_space<vmem>>, vector<2x10xf32>
    tpu.vector_store %arg7[%c0_360, %c0_361], %684 {strides = array<i32>} : memref<2x10xf32, #tpu.memory_space<vmem>>, vector<2x10xf32>,
    %cst_362 = arith.constant 1.000000e+00 : f32
    %686 = vector.broadcast %cst_362 : f32 to vector<2x10xf32>
    %687 = arith.cmpf ogt, %684, %686 : vector<2x10xf32>
    %688 = arith.extui %687 : vector<2x10xi1> to vector<2x10xi32>
    %689 = arith.sitofp %688 : vector<2x10xi32> to vector<2x10xf32>
    %c3_363 = arith.constant 3 : index
    %c0_364 = arith.constant 0 : index
    %c0_365 = arith.constant 0 : index
    %690 = vector.load %arg5[%c3_363, %c0_364, %c0_365] : memref<4x2x10xf32, #tpu.memory_space<vmem>>, vector<1x2x10xf32>
    %691 = vector.shape_cast %690 : vector<1x2x10xf32> to vector<2x10xf32>
    %692 = vector.shape_cast %689 : vector<2x10xf32> to vector<1x2x10xf32>
    tpu.vector_store %arg5[%c3_363, %c0_364, %c0_365], %692 {strides = array<i32>} : memref<4x2x10xf32, #tpu.memory_space<vmem>>, vector<1x2x10xf32>,
    return
  }
  func.func @transform_0(%arg0: i32) -> (i32, i32, i32) {
    %c0_i32 = arith.constant 0 : i32
    %c0_i32_0 = arith.constant 0 : i32
    %c0_i32_1 = arith.constant 0 : i32
    return %arg0, %c0_i32, %c0_i32_0 : i32, i32, i32
  }
  func.func @transform_1(%arg0: i32) -> (i32, i32) {
    %c0_i32 = arith.constant 0 : i32
    %c0_i32_0 = arith.constant 0 : i32
    %c0_i32_1 = arith.constant 0 : i32
    return %c0_i32, %c0_i32_0 : i32, i32
  }
  func.func @transform_2(%arg0: i32) -> (i32, i32, i32) {
    %c0_i32 = arith.constant 0 : i32
    %c0_i32_0 = arith.constant 0 : i32
    %c0_i32_1 = arith.constant 0 : i32
    %c0_i32_2 = arith.constant 0 : i32
    return %c0_i32, %c0_i32_0, %c0_i32_1 : i32, i32, i32
  }
  func.func @transform_3(%arg0: i32) -> (i32, i32) {
    %c0_i32 = arith.constant 0 : i32
    %c0_i32_0 = arith.constant 0 : i32
    %c0_i32_1 = arith.constant 0 : i32
    return %c0_i32, %c0_i32_0 : i32, i32
  }
  func.func @transform_4(%arg0: i32) -> (i32, i32, i32) {
    %c0_i32 = arith.constant 0 : i32
    %c0_i32_0 = arith.constant 0 : i32
    %c0_i32_1 = arith.constant 0 : i32
    return %arg0, %c0_i32, %c0_i32_0 : i32, i32, i32
  }
}

</mosaic_0001>

<llo_original>
// kernel: snn_forward.1
$region0: #{snn_forward.1}
  #allocation0 [shape = 'u32[]', space=smem, size = 0x4, offset = 0x4, fixed_abs, tag = 'smem constant byte address 0x4 - core index']
  #allocation1 [shape = 'u32[72,128]{1,0:T(1,128)}', space=vmem, size = 0x9000, scoped, tag = 'internal scratch']
  #allocation2 [shape = 'f32[32,512]{1,0:T(8,128)}', space=vmem, size = 0x10000, scoped, tag = 'scratch operand']
  #allocation3 [shape = 'f32[2,10]{1,0:T(2,128)}', space=vmem, size = 0x400, scoped, tag = 'scratch operand']
  %s0 = inlined_call_operand.vmem [shape: f32[8,56,2048], index: 0, kind: input, shape index: {}]
  %s1 = inlined_call_operand.vmem [shape: f32[32,56], index: 1, kind: input, shape index: {}]
  %s2 = inlined_call_operand.vmem [shape: f32[10,32,256], index: 2, kind: input, shape index: {}]
  %s3 = inlined_call_operand.vmem [shape: f32[1,10], index: 3, kind: input, shape index: {}]
  %s4 = inlined_call_operand.hbm [shape: f32[8,2,10], index: 4, kind: output, shape index: {}]
  %s5 = sld [smem:[#allocation0]]
  $region53: #{snn_forward.1} parent=0
    _
  %s7 = ssub.s32 1, %s5
  %s8 = scalar_select 0, %s7, %s5
  $region1: #{snn_forward.1} parent=0
    #allocation4 [shape = 'u8[8192]{0}', space=vmem, size = 0x2000, scoped, tag = 'output window, operand 0']
    #allocation5 [shape = 's32[2]{0}', space=sflag, size = 0x8, scoped, tag = 'scoped memory for snn_forward.1']
    %9 = vsyncpa [#allocation5], 0
    %s10 = scalar_lea.sflag [#allocation5], 1
    %11 = vsyncpa %s10, 0
    loop: start=0, step=1, limit=4
    $region2: #{snn_forward.1} parent=1 // loop_pre_header
      _
    $region3: #{snn_forward.1} parent=1 // loop_header
      %s13 = sphi 0, %s17
      %p14 = scmp.ge.s32.totalorder %s13, 4
      %s23 = sphi 0, %s25
      %s26 = sphi 0, %s23
      %s27 = sphi 0, %s26
      %s43 = sphi 0, %s27
      %s47 = sphi 0, %s47
      %s49 = sphi 0, %s47
      %s50 = sphi 0, %s49
      %s64 = sphi 0, %s50
      %s68 = sphi 0, %s68
      %s70 = sphi 0, %s68
      %s71 = sphi 0, %s70
      %s85 = sphi 0, %s71
      %s89 = sphi 0, %s89
      %s91 = sphi 0, %s89
      %s92 = sphi 0, %s91
      %s106 = sphi 0, %s92
      %s112 = sphi 0, %s114
      %s115 = sphi 0, %s112
      %s116 = sphi 0, %s115
      %s132 = sphi 0, %s116
    $region4: #{snn_forward.1} parent=1 // loop_header_branch
      %16 = sbr.rel (%p14) target = $region8
    $region5: #{snn_forward.1} parent=1 // loop_body
      %s18 = ssub.s32 %s13, 1
      %s19 = ssub.s32 %s13, 2
      %s20 = sadd.s32 %s13, 1
      %s21 = ssub.s32 %s13, %s20
      %p22 = scmp.eq.s32.totalorder %s21, 0
      %s24 = sadd.s32 %s23, 1
      %s25 = scalar_select %p22, %s23, %s24
      %p28 = pneg %p22
      %p29 = scmp.eq.s32.totalorder %s13, 1
      %p30 = por %p28, %p29
      %p31 = scmp.ne.s32.totalorder %s23, %s26
      %p32 = scmp.eq.s32.totalorder %s13, 0
      %p33 = por %p31, %p32
      %p34 = scmp.ne.s32.totalorder %s23, %s26
      %p35 = scmp.eq.s32.totalorder %s18, 1
      %p36 = por %p34, %p35
      %p37 = scmp.ne.s32.totalorder %s26, %s27
      %p38 = scmp.eq.s32.totalorder %s18, 0
      %p39 = por %p37, %p38
      %p40 = scmp.ne.s32.totalorder %s26, %s27
      %p41 = scmp.eq.s32.totalorder %s19, 1
      %p42 = por %p40, %p41
      %p44 = scmp.ne.s32.totalorder %s27, %s43
      %p45 = scmp.eq.s32.totalorder %s19, 0
      %p46 = por %p44, %p45
      %s48 = sadd.s32 %s47, 1
      %p51 = scmp.eq.s32.totalorder %s13, 1
      %p52 = scmp.ne.s32.totalorder %s47, %s49
      %p53 = scmp.eq.s32.totalorder %s13, 0
      %p54 = por %p52, %p53
      %p55 = scmp.ne.s32.totalorder %s47, %s49
      %p56 = scmp.eq.s32.totalorder %s18, 1
      %p57 = por %p55, %p56
      %p58 = scmp.ne.s32.totalorder %s49, %s50
      %p59 = scmp.eq.s32.totalorder %s18, 0
      %p60 = por %p58, %p59
      %p61 = scmp.ne.s32.totalorder %s49, %s50
      %p62 = scmp.eq.s32.totalorder %s19, 1
      %p63 = por %p61, %p62
      %p65 = scmp.ne.s32.totalorder %s50, %s64
      %p66 = scmp.eq.s32.totalorder %s19, 0
      %p67 = por %p65, %p66
      %s69 = sadd.s32 %s68, 1
      %p72 = scmp.eq.s32.totalorder %s13, 1
      %p73 = scmp.ne.s32.totalorder %s68, %s70
      %p74 = scmp.eq.s32.totalorder %s13, 0
      %p75 = por %p73, %p74
      %p76 = scmp.ne.s32.totalorder %s68, %s70
      %p77 = scmp.eq.s32.totalorder %s18, 1
      %p78 = por %p76, %p77
      %p79 = scmp.ne.s32.totalorder %s70, %s71
      %p80 = scmp.eq.s32.totalorder %s18, 0
      %p81 = por %p79, %p80
      %p82 = scmp.ne.s32.totalorder %s70, %s71
      %p83 = scmp.eq.s32.totalorder %s19, 1
      %p84 = por %p82, %p83
      %p86 = scmp.ne.s32.totalorder %s71, %s85
      %p87 = scmp.eq.s32.totalorder %s19, 0
      %p88 = por %p86, %p87
      %s90 = sadd.s32 %s89, 1
      %p93 = scmp.eq.s32.totalorder %s13, 1
      %p94 = scmp.ne.s32.totalorder %s89, %s91
      %p95 = scmp.eq.s32.totalorder %s13, 0
      %p96 = por %p94, %p95
      %p97 = scmp.ne.s32.totalorder %s89, %s91
      %p98 = scmp.eq.s32.totalorder %s18, 1
      %p99 = por %p97, %p98
      %p100 = scmp.ne.s32.totalorder %s91, %s92
      %p101 = scmp.eq.s32.totalorder %s18, 0
      %p102 = por %p100, %p101
      %p103 = scmp.ne.s32.totalorder %s91, %s92
      %p104 = scmp.eq.s32.totalorder %s19, 1
      %p105 = por %p103, %p104
      %p107 = scmp.ne.s32.totalorder %s92, %s106
      %p108 = scmp.eq.s32.totalorder %s19, 0
      %p109 = por %p107, %p108
      %s110 = ssub.s32 %s13, %s20
      %p111 = scmp.eq.s32.totalorder %s110, 0
      %s113 = sadd.s32 %s112, 1
      %s114 = scalar_select %p111, %s112, %s113
      %p117 = pneg %p111
      %p118 = scmp.eq.s32.totalorder %s13, 1
      %p119 = por %p117, %p118
      %p120 = scmp.ne.s32.totalorder %s112, %s115
      %p121 = scmp.eq.s32.totalorder %s13, 0
      %p122 = por %p120, %p121
      %p123 = scmp.ne.s32.totalorder %s112, %s115
      %p124 = scmp.eq.s32.totalorder %s18, 1
      %p125 = por %p123, %p124
      %p126 = scmp.ne.s32.totalorder %s115, %s116
      %p127 = scmp.eq.s32.totalorder %s18, 0
      %p128 = por %p126, %p127
      %p129 = scmp.ne.s32.totalorder %s115, %s116
      %p130 = scmp.eq.s32.totalorder %s19, 1
      %p131 = por %p129, %p130
      %p133 = scmp.ne.s32.totalorder %s116, %s132
      %p134 = scmp.eq.s32.totalorder %s19, 0
      %p135 = por %p133, %p134
      %p136 = scmp.le.s32.totalorder 1, %s13
      %p137 = scmp.lt.s32.totalorder %s13, 3
      %p138 = pnand %p136, %p137
      %p139 = pneg %p138
      // Predicated region
      $region9: #{snn_forward.1} parent=5 // pred_check
        _
      $region10: #{snn_forward.1} parent=5 // pred_check_branch
        %141 = sbr.rel (%p138) target = $region12
      $region11: #{snn_forward.1} parent=5 // pred_region
        %s142 = ssub.s32 %s13, 1
        // Predicated region
        $region13: #{snn_forward.1} parent=11 // pred_check
          %p143 = pneg %p60
        $region14: #{snn_forward.1} parent=11 // pred_check_branch
          %145 = sbr.rel (%p143) target = $region16
        $region15: #{snn_forward.1} parent=11 // pred_region
          _
        $region16: #{snn_forward.1} parent=11 // pred_fallthru
          _
        // Predicated region
        $region17: #{snn_forward.1} parent=11 // pred_check
          %p146 = pneg %p81
        $region18: #{snn_forward.1} parent=11 // pred_check_branch
          %148 = sbr.rel (%p146) target = $region20
        $region19: #{snn_forward.1} parent=11 // pred_region
          _
        $region20: #{snn_forward.1} parent=11 // pred_fallthru
          _
        // Predicated region
        $region21: #{snn_forward.1} parent=11 // pred_check
          %p149 = pneg %p102
        $region22: #{snn_forward.1} parent=11 // pred_check_branch
          %151 = sbr.rel (%p149) target = $region24
        $region23: #{snn_forward.1} parent=11 // pred_region
          _
        $region24: #{snn_forward.1} parent=11 // pred_fallthru
          _
      $region12: #{snn_forward.1} parent=5 // pred_fallthru
        _
      %p152 = scmp.lt.s32.totalorder %s13, 2
      // Predicated region
      $region25: #{snn_forward.1} parent=5 // pred_check
        %p153 = pneg %p152
      $region26: #{snn_forward.1} parent=5 // pred_check_branch
        %155 = sbr.rel (%p153) target = $region28
      $region27: #{snn_forward.1} parent=5 // pred_region
        // Predicated region
        $region29: #{snn_forward.1} parent=27 // pred_check
          %p156 = pneg %p33
        $region30: #{snn_forward.1} parent=27 // pred_check_branch
          %158 = sbr.rel (%p156) target = $region32
        $region31: #{snn_forward.1} parent=27 // pred_region
          %s159 = smul.u32 4, %s13
          %p160 = scmp.lt.s32.totalorder %s159, 7
          %s161 = scalar_select %p160, %s159, 7
          %s162 = smul.addr %s161, 112
          %s163 = smul.addr %s162, 8
          %s164 = scalar_lea.vmem %s0, %s163
          %s165 = smul.u32 4, %s13
        $region32: #{snn_forward.1} parent=27 // pred_fallthru
          _
      $region28: #{snn_forward.1} parent=5 // pred_fallthru
        _
      %p166 = scmp.le.s32.totalorder 1, %s13
      %p167 = scmp.lt.s32.totalorder %s13, 3
      %p168 = pnand %p166, %p167
      %p169 = pneg %p168
      // Predicated region
      $region33: #{snn_forward.1} parent=5 // pred_check
        _
      $region34: #{snn_forward.1} parent=5 // pred_check_branch
        %171 = sbr.rel (%p168) target = $region36
      $region35: #{snn_forward.1} parent=5 // pred_region
        %s172 = ssub.s32 %s13, 1
        %s173 = smul.u32 4, %s18
        %p174 = scmp.lt.s32.totalorder %s173, 7
        %s175 = scalar_select %p174, %s173, 7
        %s176 = smul.addr %s175, 112
        %s177 = smul.addr %s176, 8
        %s178 = scalar_lea.vmem %s0, %s177
        %p179 = pneg %p39
        %p180 = pneg %p36
        %p181 = pneg %p60
        %p182 = pneg %p57
        %p183 = pneg %p81
        %p184 = pneg %p78
        %p185 = pneg %p102
        %p186 = pneg %p99
        %p187 = pneg %p128
        %p188 = pneg %p125
        %s189 = sand.u32 %s115, 1
        %s190 = scalar_lea.sflag [#allocation5], %s189
        %s191 = sand.u32 %s115, 1
        %s192 = smul.addr %s191, 8
        %s193 = scalar_lea.vmem [#allocation4], %s192
        %s194 = smul.u32 4, %s18
        %p195 = scmp.lt.s32.totalorder %s194, 7
        %s196 = scalar_select %p195, %s194, 7
        %s197 = smul.addr %s196, 112
        %s198 = smul.addr %s197, 8
        %s199 = scalar_lea.vmem %s0, %s198
        %s200 = smul.u32 4, %s18
        %s201 = smul.u32 4, %s18
        %p202 = scmp.eq.s32.totalorder %s18, 0
        // Predicated region
        $region37: #{snn_forward.1} parent=35 // pred_check
          %p203 = pneg %p202
        $region38: #{snn_forward.1} parent=35 // pred_check_branch
          %205 = sbr.rel (%p203) target = $region40
        $region39: #{snn_forward.1} parent=35 // pred_region
          %206 = vst [vmem:[#allocation2] sm:$0xff] 0.0
          %207 = vst [vmem:[#allocation2 + $0x8] sm:$0xff] 0.0
          %208 = vst [vmem:[#allocation2 + $0x10] sm:$0xff] 0.0
          %209 = vst [vmem:[#allocation2 + $0x18] sm:$0xff] 0.0
          %210 = vst [vmem:[#allocation2 + $0x20] sm:$0xff] 0.0
          %211 = vst [vmem:[#allocation2 + $0x28] sm:$0xff] 0.0
          %212 = vst [vmem:[#allocation2 + $0x30] sm:$0xff] 0.0
          %213 = vst [vmem:[#allocation2 + $0x38] sm:$0xff] 0.0
          %214 = vst [vmem:[#allocation2 + $0x40] sm:$0xff] 0.0
          %215 = vst [vmem:[#allocation2 + $0x48] sm:$0xff] 0.0
          %216 = vst [vmem:[#allocation2 + $0x50] sm:$0xff] 0.0
          %217 = vst [vmem:[#allocation2 + $0x58] sm:$0xff] 0.0
          %218 = vst [vmem:[#allocation2 + $0x60] sm:$0xff] 0.0
          %219 = vst [vmem:[#allocation2 + $0x68] sm:$0xff] 0.0
          %220 = vst [vmem:[#allocation2 + $0x70] sm:$0xff] 0.0
          %221 = vst [vmem:[#allocation2 + $0x78] sm:$0xff] 0.0
          %vm222 = vcmask 74752
          %223 = vst.msk [vmem:[#allocation3] sm:$0x3] %vm222, 0.0
        $region40: #{snn_forward.1} parent=35 // pred_fallthru
          _
        %v224 = vld [vmem:[%s1] sm:$0xff]
        %v225 = vld [vmem:[%s1 + $0x8] sm:$0xff]
        %v226 = vld [vmem:[%s1 + $0x10] sm:$0xff]
        %v227 = vld [vmem:[%s1 + $0x18] sm:$0xff]
        %v228 = vld [vmem:[%s3] sm:$0x1]
        %v229 = vld [vmem:[%s199] sm:$0xff]
        %v230 = vld [vmem:[%s199 + $0x8] sm:$0xff]
        %v231 = vld [vmem:[%s199 + $0x10] sm:$0xff]
        %v232 = vld [vmem:[%s199 + $0x18] sm:$0xff]
        %v233 = vld [vmem:[%s199 + $0x20] sm:$0xff]
        %v234 = vld [vmem:[%s199 + $0x28] sm:$0xff]
        %v235 = vld [vmem:[%s199 + $0x30] sm:$0xff]
        %v236 = vld [vmem:[%s199 + $0x38] sm:$0xff]
        %v237 = vld [vmem:[%s199 + $0x40] sm:$0xff]
        %v238 = vld [vmem:[%s199 + $0x48] sm:$0xff]
        %v239 = vld [vmem:[%s199 + $0x50] sm:$0xff]
        %v240 = vld [vmem:[%s199 + $0x58] sm:$0xff]
        %v241 = vld [vmem:[%s199 + $0x60] sm:$0xff]
        %v242 = vld [vmem:[%s199 + $0x68] sm:$0xff]
        %v243 = vld [vmem:[%s199 + $0x70] sm:$0xff]
        %v244 = vld [vmem:[%s199 + $0x78] sm:$0xff]
        %v245 = vld [vmem:[%s199 + $0x80] sm:$0xff]
        %v246 = vld [vmem:[%s199 + $0x88] sm:$0xff]
        %v247 = vld [vmem:[%s199 + $0x90] sm:$0xff]
        %v248 = vld [vmem:[%s199 + $0x98] sm:$0xff]
        %v249 = vld [vmem:[%s199 + $0xa0] sm:$0xff]
        %v250 = vld [vmem:[%s199 + $0xa8] sm:$0xff]
        %v251 = vld [vmem:[%s199 + $0xb0] sm:$0xff]
        %v252 = vld [vmem:[%s199 + $0xb8] sm:$0xff]
        %v253 = vld [vmem:[%s199 + $0xc0] sm:$0xff]
        %v254 = vld [vmem:[%s199 + $0xc8] sm:$0xff]
        %v255 = vld [vmem:[%s199 + $0xd0] sm:$0xff]
        %v256 = vld [vmem:[%s199 + $0xd8] sm:$0xff]
        %v257 = vld [vmem:[%s199 + $0xe0] sm:$0xff]
        %v258 = vld [vmem:[%s199 + $0xe8] sm:$0xff]
        %v259 = vld [vmem:[%s199 + $0xf0] sm:$0xff]
        %v260 = vld [vmem:[%s199 + $0xf8] sm:$0xff]
        %v261 = vld [vmem:[%s199 + $0x100] sm:$0xff]
        %v262 = vld [vmem:[%s199 + $0x108] sm:$0xff]
        %v263 = vld [vmem:[%s199 + $0x110] sm:$0xff]
        %v264 = vld [vmem:[%s199 + $0x118] sm:$0xff]
        %v265 = vld [vmem:[%s199 + $0x120] sm:$0xff]
        %v266 = vld [vmem:[%s199 + $0x128] sm:$0xff]
        %v267 = vld [vmem:[%s199 + $0x130] sm:$0xff]
        %v268 = vld [vmem:[%s199 + $0x138] sm:$0xff]
        %v269 = vld [vmem:[%s199 + $0x140] sm:$0xff]
        %v270 = vld [vmem:[%s199 + $0x148] sm:$0xff]
        %v271 = vld [vmem:[%s199 + $0x150] sm:$0xff]
        %v272 = vld [vmem:[%s199 + $0x158] sm:$0xff]
        %v273 = vld [vmem:[%s199 + $0x160] sm:$0xff]
        %v274 = vld [vmem:[%s199 + $0x168] sm:$0xff]
        %v275 = vld [vmem:[%s199 + $0x170] sm:$0xff]
        %v276 = vld [vmem:[%s199 + $0x178] sm:$0xff]
        %v277 = vld [vmem:[%s199 + $0x180] sm:$0xff]
        %v278 = vld [vmem:[%s199 + $0x188] sm:$0xff]
        %v279 = vld [vmem:[%s199 + $0x190] sm:$0xff]
        %v280 = vld [vmem:[%s199 + $0x198] sm:$0xff]
        %v281 = vld [vmem:[%s199 + $0x1a0] sm:$0xff]
        %v282 = vld [vmem:[%s199 + $0x1a8] sm:$0xff]
        %v283 = vld [vmem:[%s199 + $0x1b0] sm:$0xff]
        %v284 = vld [vmem:[%s199 + $0x1b8] sm:$0xff]
        %v285 = vld [vmem:[%s199 + $0x1c0] sm:$0xff]
        %v286 = vld [vmem:[%s199 + $0x1c8] sm:$0xff]
        %v287 = vld [vmem:[%s199 + $0x1d0] sm:$0xff]
        %v288 = vld [vmem:[%s199 + $0x1d8] sm:$0xff]
        %v289 = vld [vmem:[%s199 + $0x1e0] sm:$0xff]
        %v290 = vld [vmem:[%s199 + $0x1e8] sm:$0xff]
        %v291 = vld [vmem:[%s199 + $0x1f0] sm:$0xff]
        %v292 = vld [vmem:[%s199 + $0x1f8] sm:$0xff]
        %v293 = vld [vmem:[%s199 + $0x200] sm:$0xff]
        %v294 = vld [vmem:[%s199 + $0x208] sm:$0xff]
        %v295 = vld [vmem:[%s199 + $0x210] sm:$0xff]
        %v296 = vld [vmem:[%s199 + $0x218] sm:$0xff]
        %v297 = vld [vmem:[%s199 + $0x220] sm:$0xff]
        %v298 = vld [vmem:[%s199 + $0x228] sm:$0xff]
        %v299 = vld [vmem:[%s199 + $0x230] sm:$0xff]
        %v300 = vld [vmem:[%s199 + $0x238] sm:$0xff]
        %v301 = vld [vmem:[%s199 + $0x240] sm:$0xff]
        %v302 = vld [vmem:[%s199 + $0x248] sm:$0xff]
        %v303 = vld [vmem:[%s199 + $0x250] sm:$0xff]
        %v304 = vld [vmem:[%s199 + $0x258] sm:$0xff]
        %v305 = vld [vmem:[%s199 + $0x260] sm:$0xff]
        %v306 = vld [vmem:[%s199 + $0x268] sm:$0xff]
        %v307 = vld [vmem:[%s199 + $0x270] sm:$0xff]
        %v308 = vld [vmem:[%s199 + $0x278] sm:$0xff]
        %v309 = vld [vmem:[%s199 + $0x280] sm:$0xff]
        %v310 = vld [vmem:[%s199 + $0x288] sm:$0xff]
        %v311 = vld [vmem:[%s199 + $0x290] sm:$0xff]
        %v312 = vld [vmem:[%s199 + $0x298] sm:$0xff]
        %v313 = vld [vmem:[%s199 + $0x2a0] sm:$0xff]
        %v314 = vld [vmem:[%s199 + $0x2a8] sm:$0xff]
        %v315 = vld [vmem:[%s199 + $0x2b0] sm:$0xff]
        %v316 = vld [vmem:[%s199 + $0x2b8] sm:$0xff]
        %v317 = vld [vmem:[%s199 + $0x2c0] sm:$0xff]
        %v318 = vld [vmem:[%s199 + $0x2c8] sm:$0xff]
        %v319 = vld [vmem:[%s199 + $0x2d0] sm:$0xff]
        %v320 = vld [vmem:[%s199 + $0x2d8] sm:$0xff]
        %v321 = vld [vmem:[%s199 + $0x2e0] sm:$0xff]
        %v322 = vld [vmem:[%s199 + $0x2e8] sm:$0xff]
        %v323 = vld [vmem:[%s199 + $0x2f0] sm:$0xff]
        %v324 = vld [vmem:[%s199 + $0x2f8] sm:$0xff]
        %v325 = vld [vmem:[%s199 + $0x300] sm:$0xff]
        %v326 = vld [vmem:[%s199 + $0x308] sm:$0xff]
        %v327 = vld [vmem:[%s199 + $0x310] sm:$0xff]
        %v328 = vld [vmem:[%s199 + $0x318] sm:$0xff]
        %v329 = vld [vmem:[%s199 + $0x320] sm:$0xff]
        %v330 = vld [vmem:[%s199 + $0x328] sm:$0xff]
        %v331 = vld [vmem:[%s199 + $0x330] sm:$0xff]
        %v332 = vld [vmem:[%s199 + $0x338] sm:$0xff]
        %v333 = vld [vmem:[%s199 + $0x340] sm:$0xff]
        %v334 = vld [vmem:[%s199 + $0x348] sm:$0xff]
        %v335 = vld [vmem:[%s199 + $0x350] sm:$0xff]
        %v336 = vld [vmem:[%s199 + $0x358] sm:$0xff]
        %v337 = vld [vmem:[%s199 + $0x360] sm:$0xff]
        %v338 = vld [vmem:[%s199 + $0x368] sm:$0xff]
        %v339 = vld [vmem:[%s199 + $0x370] sm:$0xff]
        %v340 = vld [vmem:[%s199 + $0x378] sm:$0xff]
        %vm341 = vcmask 457728
        %v343 = vsel %vm341, %v224, 0
        %v346 = vsel %vm341, %v225, 0
        %v349 = vsel %vm341, %v226, 0
        %v352 = vsel %vm341, %v227, 0
        %354 = vmatpush.msra.mxu0 0.0
        %355 = vmatpush.msra.mxu0 0.0
        %356 = vmatpush.msra.mxu0 0.0
        %357 = vmatpush.msra.mxu0 0.0
        %358 = vmatpush.msra.mxu0 0.0
        %359 = vmatpush.msra.mxu0 0.0
        %360 = vmatpush.msra.mxu0 0.0
        %361 = vmatpush.msra.mxu0 0.0
        %362 = vmatpush.msra.mxu0 0.0
        %363 = vmatpush.msra.mxu0 %v325
        %364 = vmatpush.msra.mxu0 %v309
        %365 = vmatpush.msra.mxu0 %v293
        %366 = vmatpush.msra.mxu0 %v277
        %367 = vmatpush.msra.mxu0 %v261
        %368 = vmatpush.msra.mxu0 %v245
        %369 = vmatpush.msra.mxu0 %v229
        %370 = vmatmul.f32.gmra.mxu0 %v343
        %v371 = vpop.f32.mrf.mxu0
        %v372 = vadd.f32 0.0, %v371
        %373 = vmatmul.f32.gmra.mxu0 %v346
        %v374 = vpop.f32.mrf.mxu0
        %v375 = vadd.f32 0.0, %v374
        %376 = vmatmul.f32.gmra.mxu0 %v349
        %v377 = vpop.f32.mrf.mxu0
        %v378 = vadd.f32 0.0, %v377
        %379 = vmatmul.f32.gmra.mxu0 %v352
        %v380 = vpop.f32.mrf.mxu0
        %v381 = vadd.f32 0.0, %v380
        %382 = vdwg.mxu0
        %383 = vmatpush.msra.mxu0 0.0
        %384 = vmatpush.msra.mxu0 0.0
        %385 = vmatpush.msra.mxu0 0.0
        %386 = vmatpush.msra.mxu0 0.0
        %387 = vmatpush.msra.mxu0 0.0
        %388 = vmatpush.msra.mxu0 0.0
        %389 = vmatpush.msra.mxu0 0.0
        %390 = vmatpush.msra.mxu0 0.0
        %391 = vmatpush.msra.mxu0 0.0
        %392 = vmatpush.msra.mxu0 %v326
        %393 = vmatpush.msra.mxu0 %v310
        %394 = vmatpush.msra.mxu0 %v294
        %395 = vmatpush.msra.mxu0 %v278
        %396 = vmatpush.msra.mxu0 %v262
        %397 = vmatpush.msra.mxu0 %v246
        %398 = vmatpush.msra.mxu0 %v230
        %399 = vmatmul.f32.gmra.mxu0 %v343
        %v400 = vpop.f32.mrf.mxu0
        %v401 = vadd.f32 0.0, %v400
        %402 = vmatmul.f32.gmra.mxu0 %v346
        %v403 = vpop.f32.mrf.mxu0
        %v404 = vadd.f32 0.0, %v403
        %405 = vmatmul.f32.gmra.mxu0 %v349
        %v406 = vpop.f32.mrf.mxu0
        %v407 = vadd.f32 0.0, %v406
        %408 = vmatmul.f32.gmra.mxu0 %v352
        %v409 = vpop.f32.mrf.mxu0
        %v410 = vadd.f32 0.0, %v409
        %411 = vdwg.mxu0
        %412 = vmatpush.msra.mxu0 0.0
        %413 = vmatpush.msra.mxu0 0.0
        %414 = vmatpush.msra.mxu0 0.0
        %415 = vmatpush.msra.mxu0 0.0
        %416 = vmatpush.msra.mxu0 0.0
        %417 = vmatpush.msra.mxu0 0.0
        %418 = vmatpush.msra.mxu0 0.0
        %419 = vmatpush.msra.mxu0 0.0
        %420 = vmatpush.msra.mxu0 0.0
        %421 = vmatpush.msra.mxu0 %v327
        %422 = vmatpush.msra.mxu0 %v311
        %423 = vmatpush.msra.mxu0 %v295
        %424 = vmatpush.msra.mxu0 %v279
        %425 = vmatpush.msra.mxu0 %v263
        %426 = vmatpush.msra.mxu0 %v247
        %427 = vmatpush.msra.mxu0 %v231
        %428 = vmatmul.f32.gmra.mxu0 %v343
        %v429 = vpop.f32.mrf.mxu0
        %v430 = vadd.f32 0.0, %v429
        %431 = vmatmul.f32.gmra.mxu0 %v346
        %v432 = vpop.f32.mrf.mxu0
        %v433 = vadd.f32 0.0, %v432
        %434 = vmatmul.f32.gmra.mxu0 %v349
        %v435 = vpop.f32.mrf.mxu0
        %v436 = vadd.f32 0.0, %v435
        %437 = vmatmul.f32.gmra.mxu0 %v352
        %v438 = vpop.f32.mrf.mxu0
        %v439 = vadd.f32 0.0, %v438
        %440 = vdwg.mxu0
        %441 = vmatpush.msra.mxu0 0.0
        %442 = vmatpush.msra.mxu0 0.0
        %443 = vmatpush.msra.mxu0 0.0
        %444 = vmatpush.msra.mxu0 0.0
        %445 = vmatpush.msra.mxu0 0.0
        %446 = vmatpush.msra.mxu0 0.0
        %447 = vmatpush.msra.mxu0 0.0
        %448 = vmatpush.msra.mxu0 0.0
        %449 = vmatpush.msra.mxu0 0.0
        %450 = vmatpush.msra.mxu0 %v328
        %451 = vmatpush.msra.mxu0 %v312
        %452 = vmatpush.msra.mxu0 %v296
        %453 = vmatpush.msra.mxu0 %v280
        %454 = vmatpush.msra.mxu0 %v264
        %455 = vmatpush.msra.mxu0 %v248
        %456 = vmatpush.msra.mxu0 %v232
        %457 = vmatmul.f32.gmra.mxu0 %v343
        %v458 = vpop.f32.mrf.mxu0
        %v459 = vadd.f32 0.0, %v458
        %460 = vmatmul.f32.gmra.mxu0 %v346
        %v461 = vpop.f32.mrf.mxu0
        %v462 = vadd.f32 0.0, %v461
        %463 = vmatmul.f32.gmra.mxu0 %v349
        %v464 = vpop.f32.mrf.mxu0
        %v465 = vadd.f32 0.0, %v464
        %466 = vmatmul.f32.gmra.mxu0 %v352
        %v467 = vpop.f32.mrf.mxu0
        %v468 = vadd.f32 0.0, %v467
        %469 = vdwg.mxu0
        %470 = vmatpush.msra.mxu0 0.0
        %471 = vmatpush.msra.mxu0 0.0
        %472 = vmatpush.msra.mxu0 0.0
        %473 = vmatpush.msra.mxu0 0.0
        %474 = vmatpush.msra.mxu0 0.0
        %475 = vmatpush.msra.mxu0 0.0
        %476 = vmatpush.msra.mxu0 0.0
        %477 = vmatpush.msra.mxu0 0.0
        %478 = vmatpush.msra.mxu0 0.0
        %479 = vmatpush.msra.mxu0 %v329
        %480 = vmatpush.msra.mxu0 %v313
        %481 = vmatpush.msra.mxu0 %v297
        %482 = vmatpush.msra.mxu0 %v281
        %483 = vmatpush.msra.mxu0 %v265
        %484 = vmatpush.msra.mxu0 %v249
        %485 = vmatpush.msra.mxu0 %v233
        %486 = vmatmul.f32.gmra.mxu0 %v343
        %v487 = vpop.f32.mrf.mxu0
        %v488 = vadd.f32 0.0, %v487
        %489 = vmatmul.f32.gmra.mxu0 %v346
        %v490 = vpop.f32.mrf.mxu0
        %v491 = vadd.f32 0.0, %v490
        %492 = vmatmul.f32.gmra.mxu0 %v349
        %v493 = vpop.f32.mrf.mxu0
        %v494 = vadd.f32 0.0, %v493
        %495 = vmatmul.f32.gmra.mxu0 %v352
        %v496 = vpop.f32.mrf.mxu0
        %v497 = vadd.f32 0.0, %v496
        %498 = vdwg.mxu0
        %499 = vmatpush.msra.mxu0 0.0
        %500 = vmatpush.msra.mxu0 0.0
        %501 = vmatpush.msra.mxu0 0.0
        %502 = vmatpush.msra.mxu0 0.0
        %503 = vmatpush.msra.mxu0 0.0
        %504 = vmatpush.msra.mxu0 0.0
        %505 = vmatpush.msra.mxu0 0.0
        %506 = vmatpush.msra.mxu0 0.0
        %507 = vmatpush.msra.mxu0 0.0
        %508 = vmatpush.msra.mxu0 %v330
        %509 = vmatpush.msra.mxu0 %v314
        %510 = vmatpush.msra.mxu0 %v298
        %511 = vmatpush.msra.mxu0 %v282
        %512 = vmatpush.msra.mxu0 %v266
        %513 = vmatpush.msra.mxu0 %v250
        %514 = vmatpush.msra.mxu0 %v234
        %515 = vmatmul.f32.gmra.mxu0 %v343
        %v516 = vpop.f32.mrf.mxu0
        %v517 = vadd.f32 0.0, %v516
        %518 = vmatmul.f32.gmra.mxu0 %v346
        %v519 = vpop.f32.mrf.mxu0
        %v520 = vadd.f32 0.0, %v519
        %521 = vmatmul.f32.gmra.mxu0 %v349
        %v522 = vpop.f32.mrf.mxu0
        %v523 = vadd.f32 0.0, %v522
        %524 = vmatmul.f32.gmra.mxu0 %v352
        %v525 = vpop.f32.mrf.mxu0
        %v526 = vadd.f32 0.0, %v525
        %527 = vdwg.mxu0
        %528 = vmatpush.msra.mxu0 0.0
        %529 = vmatpush.msra.mxu0 0.0
        %530 = vmatpush.msra.mxu0 0.0
        %531 = vmatpush.msra.mxu0 0.0
        %532 = vmatpush.msra.mxu0 0.0
        %533 = vmatpush.msra.mxu0 0.0
        %534 = vmatpush.msra.mxu0 0.0
        %535 = vmatpush.msra.mxu0 0.0
        %536 = vmatpush.msra.mxu0 0.0
        %537 = vmatpush.msra.mxu0 %v331
        %538 = vmatpush.msra.mxu0 %v315
        %539 = vmatpush.msra.mxu0 %v299
        %540 = vmatpush.msra.mxu0 %v283
        %541 = vmatpush.msra.mxu0 %v267
        %542 = vmatpush.msra.mxu0 %v251
        %543 = vmatpush.msra.mxu0 %v235
        %544 = vmatmul.f32.gmra.mxu0 %v343
        %v545 = vpop.f32.mrf.mxu0
        %v546 = vadd.f32 0.0, %v545
        %547 = vmatmul.f32.gmra.mxu0 %v346
        %v548 = vpop.f32.mrf.mxu0
        %v549 = vadd.f32 0.0, %v548
        %550 = vmatmul.f32.gmra.mxu0 %v349
        %v551 = vpop.f32.mrf.mxu0
        %v552 = vadd.f32 0.0, %v551
        %553 = vmatmul.f32.gmra.mxu0 %v352
        %v554 = vpop.f32.mrf.mxu0
        %v555 = vadd.f32 0.0, %v554
        %556 = vdwg.mxu0
        %557 = vmatpush.msra.mxu0 0.0
        %558 = vmatpush.msra.mxu0 0.0
        %559 = vmatpush.msra.mxu0 0.0
        %560 = vmatpush.msra.mxu0 0.0
        %561 = vmatpush.msra.mxu0 0.0
        %562 = vmatpush.msra.mxu0 0.0
        %563 = vmatpush.msra.mxu0 0.0
        %564 = vmatpush.msra.mxu0 0.0
        %565 = vmatpush.msra.mxu0 0.0
        %566 = vmatpush.msra.mxu0 %v332
        %567 = vmatpush.msra.mxu0 %v316
        %568 = vmatpush.msra.mxu0 %v300
        %569 = vmatpush.msra.mxu0 %v284
        %570 = vmatpush.msra.mxu0 %v268
        %571 = vmatpush.msra.mxu0 %v252
        %572 = vmatpush.msra.mxu0 %v236
        %573 = vmatmul.f32.gmra.mxu0 %v343
        %v574 = vpop.f32.mrf.mxu0
        %v575 = vadd.f32 0.0, %v574
        %576 = vmatmul.f32.gmra.mxu0 %v346
        %v577 = vpop.f32.mrf.mxu0
        %v578 = vadd.f32 0.0, %v577
        %579 = vmatmul.f32.gmra.mxu0 %v349
        %v580 = vpop.f32.mrf.mxu0
        %v581 = vadd.f32 0.0, %v580
        %582 = vmatmul.f32.gmra.mxu0 %v352
        %v583 = vpop.f32.mrf.mxu0
        %v584 = vadd.f32 0.0, %v583
        %585 = vdwg.mxu0
        %586 = vmatpush.msra.mxu0 0.0
        %587 = vmatpush.msra.mxu0 0.0
        %588 = vmatpush.msra.mxu0 0.0
        %589 = vmatpush.msra.mxu0 0.0
        %590 = vmatpush.msra.mxu0 0.0
        %591 = vmatpush.msra.mxu0 0.0
        %592 = vmatpush.msra.mxu0 0.0
        %593 = vmatpush.msra.mxu0 0.0
        %594 = vmatpush.msra.mxu0 0.0
        %595 = vmatpush.msra.mxu0 %v333
        %596 = vmatpush.msra.mxu0 %v317
        %597 = vmatpush.msra.mxu0 %v301
        %598 = vmatpush.msra.mxu0 %v285
        %599 = vmatpush.msra.mxu0 %v269
        %600 = vmatpush.msra.mxu0 %v253
        %601 = vmatpush.msra.mxu0 %v237
        %602 = vmatmul.f32.gmra.mxu0 %v343
        %v603 = vpop.f32.mrf.mxu0
        %v604 = vadd.f32 0.0, %v603
        %605 = vmatmul.f32.gmra.mxu0 %v346
        %v606 = vpop.f32.mrf.mxu0
        %v607 = vadd.f32 0.0, %v606
        %608 = vmatmul.f32.gmra.mxu0 %v349
        %v609 = vpop.f32.mrf.mxu0
        %v610 = vadd.f32 0.0, %v609
        %611 = vmatmul.f32.gmra.mxu0 %v352
        %v612 = vpop.f32.mrf.mxu0
        %v613 = vadd.f32 0.0, %v612
        %614 = vdwg.mxu0
        %615 = vmatpush.msra.mxu0 0.0
        %616 = vmatpush.msra.mxu0 0.0
        %617 = vmatpush.msra.mxu0 0.0
        %618 = vmatpush.msra.mxu0 0.0
        %619 = vmatpush.msra.mxu0 0.0
        %620 = vmatpush.msra.mxu0 0.0
        %621 = vmatpush.msra.mxu0 0.0
        %622 = vmatpush.msra.mxu0 0.0
        %623 = vmatpush.msra.mxu0 0.0
        %624 = vmatpush.msra.mxu0 %v334
        %625 = vmatpush.msra.mxu0 %v318
        %626 = vmatpush.msra.mxu0 %v302
        %627 = vmatpush.msra.mxu0 %v286
        %628 = vmatpush.msra.mxu0 %v270
        %629 = vmatpush.msra.mxu0 %v254
        %630 = vmatpush.msra.mxu0 %v238
        %631 = vmatmul.f32.gmra.mxu0 %v343
        %v632 = vpop.f32.mrf.mxu0
        %v633 = vadd.f32 0.0, %v632
        %634 = vmatmul.f32.gmra.mxu0 %v346
        %v635 = vpop.f32.mrf.mxu0
        %v636 = vadd.f32 0.0, %v635
        %637 = vmatmul.f32.gmra.mxu0 %v349
        %v638 = vpop.f32.mrf.mxu0
        %v639 = vadd.f32 0.0, %v638
        %640 = vmatmul.f32.gmra.mxu0 %v352
        %v641 = vpop.f32.mrf.mxu0
        %v642 = vadd.f32 0.0, %v641
        %643 = vdwg.mxu0
        %644 = vmatpush.msra.mxu0 0.0
        %645 = vmatpush.msra.mxu0 0.0
        %646 = vmatpush.msra.mxu0 0.0
        %647 = vmatpush.msra.mxu0 0.0
        %648 = vmatpush.msra.mxu0 0.0
        %649 = vmatpush.msra.mxu0 0.0
        %650 = vmatpush.msra.mxu0 0.0
        %651 = vmatpush.msra.mxu0 0.0
        %652 = vmatpush.msra.mxu0 0.0
        %653 = vmatpush.msra.mxu0 %v335
        %654 = vmatpush.msra.mxu0 %v319
        %655 = vmatpush.msra.mxu0 %v303
        %656 = vmatpush.msra.mxu0 %v287
        %657 = vmatpush.msra.mxu0 %v271
        %658 = vmatpush.msra.mxu0 %v255
        %659 = vmatpush.msra.mxu0 %v239
        %660 = vmatmul.f32.gmra.mxu0 %v343
        %v661 = vpop.f32.mrf.mxu0
        %v662 = vadd.f32 0.0, %v661
        %663 = vmatmul.f32.gmra.mxu0 %v346
        %v664 = vpop.f32.mrf.mxu0
        %v665 = vadd.f32 0.0, %v664
        %666 = vmatmul.f32.gmra.mxu0 %v349
        %v667 = vpop.f32.mrf.mxu0
        %v668 = vadd.f32 0.0, %v667
        %669 = vmatmul.f32.gmra.mxu0 %v352
        %v670 = vpop.f32.mrf.mxu0
        %v671 = vadd.f32 0.0, %v670
        %672 = vdwg.mxu0
        %673 = vmatpush.msra.mxu0 0.0
        %674 = vmatpush.msra.mxu0 0.0
        %675 = vmatpush.msra.mxu0 0.0
        %676 = vmatpush.msra.mxu0 0.0
        %677 = vmatpush.msra.mxu0 0.0
        %678 = vmatpush.msra.mxu0 0.0
        %679 = vmatpush.msra.mxu0 0.0
        %680 = vmatpush.msra.mxu0 0.0
        %681 = vmatpush.msra.mxu0 0.0
        %682 = vmatpush.msra.mxu0 %v336
        %683 = vmatpush.msra.mxu0 %v320
        %684 = vmatpush.msra.mxu0 %v304
        %685 = vmatpush.msra.mxu0 %v288
        %686 = vmatpush.msra.mxu0 %v272
        %687 = vmatpush.msra.mxu0 %v256
        %688 = vmatpush.msra.mxu0 %v240
        %689 = vmatmul.f32.gmra.mxu0 %v343
        %v690 = vpop.f32.mrf.mxu0
        %v691 = vadd.f32 0.0, %v690
        %692 = vmatmul.f32.gmra.mxu0 %v346
        %v693 = vpop.f32.mrf.mxu0
        %v694 = vadd.f32 0.0, %v693
        %695 = vmatmul.f32.gmra.mxu0 %v349
        %v696 = vpop.f32.mrf.mxu0
        %v697 = vadd.f32 0.0, %v696
        %698 = vmatmul.f32.gmra.mxu0 %v352
        %v699 = vpop.f32.mrf.mxu0
        %v700 = vadd.f32 0.0, %v699
        %701 = vdwg.mxu0
        %702 = vmatpush.msra.mxu0 0.0
        %703 = vmatpush.msra.mxu0 0.0
        %704 = vmatpush.msra.mxu0 0.0
        %705 = vmatpush.msra.mxu0 0.0
        %706 = vmatpush.msra.mxu0 0.0
        %707 = vmatpush.msra.mxu0 0.0
        %708 = vmatpush.msra.mxu0 0.0
        %709 = vmatpush.msra.mxu0 0.0
        %710 = vmatpush.msra.mxu0 0.0
        %711 = vmatpush.msra.mxu0 %v337
        %712 = vmatpush.msra.mxu0 %v321
        %713 = vmatpush.msra.mxu0 %v305
        %714 = vmatpush.msra.mxu0 %v289
        %715 = vmatpush.msra.mxu0 %v273
        %716 = vmatpush.msra.mxu0 %v257
        %717 = vmatpush.msra.mxu0 %v241
        %718 = vmatmul.f32.gmra.mxu0 %v343
        %v719 = vpop.f32.mrf.mxu0
        %v720 = vadd.f32 0.0, %v719
        %721 = vmatmul.f32.gmra.mxu0 %v346
        %v722 = vpop.f32.mrf.mxu0
        %v723 = vadd.f32 0.0, %v722
        %724 = vmatmul.f32.gmra.mxu0 %v349
        %v725 = vpop.f32.mrf.mxu0
        %v726 = vadd.f32 0.0, %v725
        %727 = vmatmul.f32.gmra.mxu0 %v352
        %v728 = vpop.f32.mrf.mxu0
        %v729 = vadd.f32 0.0, %v728
        %730 = vdwg.mxu0
        %731 = vmatpush.msra.mxu0 0.0
        %732 = vmatpush.msra.mxu0 0.0
        %733 = vmatpush.msra.mxu0 0.0
        %734 = vmatpush.msra.mxu0 0.0
        %735 = vmatpush.msra.mxu0 0.0
        %736 = vmatpush.msra.mxu0 0.0
        %737 = vmatpush.msra.mxu0 0.0
        %738 = vmatpush.msra.mxu0 0.0
        %739 = vmatpush.msra.mxu0 0.0
        %740 = vmatpush.msra.mxu0 %v338
        %741 = vmatpush.msra.mxu0 %v322
        %742 = vmatpush.msra.mxu0 %v306
        %743 = vmatpush.msra.mxu0 %v290
        %744 = vmatpush.msra.mxu0 %v274
        %745 = vmatpush.msra.mxu0 %v258
        %746 = vmatpush.msra.mxu0 %v242
        %747 = vmatmul.f32.gmra.mxu0 %v343
        %v748 = vpop.f32.mrf.mxu0
        %v749 = vadd.f32 0.0, %v748
        %750 = vmatmul.f32.gmra.mxu0 %v346
        %v751 = vpop.f32.mrf.mxu0
        %v752 = vadd.f32 0.0, %v751
        %753 = vmatmul.f32.gmra.mxu0 %v349
        %v754 = vpop.f32.mrf.mxu0
        %v755 = vadd.f32 0.0, %v754
        %756 = vmatmul.f32.gmra.mxu0 %v352
        %v757 = vpop.f32.mrf.mxu0
        %v758 = vadd.f32 0.0, %v757
        %759 = vdwg.mxu0
        %760 = vmatpush.msra.mxu0 0.0
        %761 = vmatpush.msra.mxu0 0.0
        %762 = vmatpush.msra.mxu0 0.0
        %763 = vmatpush.msra.mxu0 0.0
        %764 = vmatpush.msra.mxu0 0.0
        %765 = vmatpush.msra.mxu0 0.0
        %766 = vmatpush.msra.mxu0 0.0
        %767 = vmatpush.msra.mxu0 0.0
        %768 = vmatpush.msra.mxu0 0.0
        %769 = vmatpush.msra.mxu0 %v339
        %770 = vmatpush.msra.mxu0 %v323
        %771 = vmatpush.msra.mxu0 %v307
        %772 = vmatpush.msra.mxu0 %v291
        %773 = vmatpush.msra.mxu0 %v275
        %774 = vmatpush.msra.mxu0 %v259
        %775 = vmatpush.msra.mxu0 %v243
        %776 = vmatmul.f32.gmra.mxu0 %v343
        %v777 = vpop.f32.mrf.mxu0
        %v778 = vadd.f32 0.0, %v777
        %779 = vmatmul.f32.gmra.mxu0 %v346
        %v780 = vpop.f32.mrf.mxu0
        %v781 = vadd.f32 0.0, %v780
        %782 = vmatmul.f32.gmra.mxu0 %v349
        %v783 = vpop.f32.mrf.mxu0
        %v784 = vadd.f32 0.0, %v783
        %785 = vmatmul.f32.gmra.mxu0 %v352
        %v786 = vpop.f32.mrf.mxu0
        %v787 = vadd.f32 0.0, %v786
        %788 = vdwg.mxu0
        %789 = vmatpush.msra.mxu0 0.0
        %790 = vmatpush.msra.mxu0 0.0
        %791 = vmatpush.msra.mxu0 0.0
        %792 = vmatpush.msra.mxu0 0.0
        %793 = vmatpush.msra.mxu0 0.0
        %794 = vmatpush.msra.mxu0 0.0
        %795 = vmatpush.msra.mxu0 0.0
        %796 = vmatpush.msra.mxu0 0.0
        %797 = vmatpush.msra.mxu0 0.0
        %798 = vmatpush.msra.mxu0 %v340
        %799 = vmatpush.msra.mxu0 %v324
        %800 = vmatpush.msra.mxu0 %v308
        %801 = vmatpush.msra.mxu0 %v292
        %802 = vmatpush.msra.mxu0 %v276
        %803 = vmatpush.msra.mxu0 %v260
        %804 = vmatpush.msra.mxu0 %v244
        %805 = vmatmul.f32.gmra.mxu0 %v343
        %v806 = vpop.f32.mrf.mxu0
        %v807 = vadd.f32 0.0, %v806
        %808 = vmatmul.f32.gmra.mxu0 %v346
        %v809 = vpop.f32.mrf.mxu0
        %v810 = vadd.f32 0.0, %v809
        %811 = vmatmul.f32.gmra.mxu0 %v349
        %v812 = vpop.f32.mrf.mxu0
        %v813 = vadd.f32 0.0, %v812
        %814 = vmatmul.f32.gmra.mxu0 %v352
        %v815 = vpop.f32.mrf.mxu0
        %v816 = vadd.f32 0.0, %v815
        %817 = vdwg.mxu0
        %v818 = vmax.f32 %v372, %v488
        %v819 = vmax.f32 %v401, %v517
        %v820 = vmax.f32 %v430, %v546
        %v821 = vmax.f32 %v459, %v575
        %v822 = vmax.f32 %v375, %v491
        %v823 = vmax.f32 %v404, %v520
        %v824 = vmax.f32 %v433, %v549
        %v825 = vmax.f32 %v462, %v578
        %v826 = vmax.f32 %v378, %v494
        %v827 = vmax.f32 %v407, %v523
        %v828 = vmax.f32 %v436, %v552
        %v829 = vmax.f32 %v465, %v581
        %v830 = vmax.f32 %v381, %v497
        %v831 = vmax.f32 %v410, %v526
        %v832 = vmax.f32 %v439, %v555
        %v833 = vmax.f32 %v468, %v584
        %v834 = vmax.f32 %v604, %v720
        %v835 = vmax.f32 %v633, %v749
        %v836 = vmax.f32 %v662, %v778
        %v837 = vmax.f32 %v691, %v807
        %v838 = vmax.f32 %v607, %v723
        %v839 = vmax.f32 %v636, %v752
        %v840 = vmax.f32 %v665, %v781
        %v841 = vmax.f32 %v694, %v810
        %v842 = vmax.f32 %v610, %v726
        %v843 = vmax.f32 %v639, %v755
        %v844 = vmax.f32 %v668, %v784
        %v845 = vmax.f32 %v697, %v813
        %v846 = vmax.f32 %v613, %v729
        %v847 = vmax.f32 %v642, %v758
        %v848 = vmax.f32 %v671, %v787
        %v849 = vmax.f32 %v700, %v816
        %v850 = vmax.f32 %v818, %v834
        %v851 = vmax.f32 %v819, %v835
        %v852 = vmax.f32 %v820, %v836
        %v853 = vmax.f32 %v821, %v837
        %v854 = vmax.f32 %v822, %v838
        %v855 = vmax.f32 %v823, %v839
        %v856 = vmax.f32 %v824, %v840
        %v857 = vmax.f32 %v825, %v841
        %v858 = vmax.f32 %v826, %v842
        %v859 = vmax.f32 %v827, %v843
        %v860 = vmax.f32 %v828, %v844
        %v861 = vmax.f32 %v829, %v845
        %v862 = vmax.f32 %v830, %v846
        %v863 = vmax.f32 %v831, %v847
        %v864 = vmax.f32 %v832, %v848
        %v865 = vmax.f32 %v833, %v849
        %v866 = vld [vmem:[#allocation2] sm:$0xff]
        %v867 = vld [vmem:[#allocation2 + $0x8] sm:$0xff]
        %v868 = vld [vmem:[#allocation2 + $0x10] sm:$0xff]
        %v869 = vld [vmem:[#allocation2 + $0x18] sm:$0xff]
        %v870 = vld [vmem:[#allocation2 + $0x20] sm:$0xff]
        %v871 = vld [vmem:[#allocation2 + $0x28] sm:$0xff]
        %v872 = vld [vmem:[#allocation2 + $0x30] sm:$0xff]
        %v873 = vld [vmem:[#allocation2 + $0x38] sm:$0xff]
        %v874 = vld [vmem:[#allocation2 + $0x40] sm:$0xff]
        %v875 = vld [vmem:[#allocation2 + $0x48] sm:$0xff]
        %v876 = vld [vmem:[#allocation2 + $0x50] sm:$0xff]
        %v877 = vld [vmem:[#allocation2 + $0x58] sm:$0xff]
        %v878 = vld [vmem:[#allocation2 + $0x60] sm:$0xff]
        %v879 = vld [vmem:[#allocation2 + $0x68] sm:$0xff]
        %v880 = vld [vmem:[#allocation2 + $0x70] sm:$0xff]
        %v881 = vld [vmem:[#allocation2 + $0x78] sm:$0xff]
        %v882 = vmul.f32 %v866, 0.9
        %v883 = vmul.f32 %v867, 0.9
        %v884 = vmul.f32 %v868, 0.9
        %v885 = vmul.f32 %v869, 0.9
        %v886 = vmul.f32 %v870, 0.9
        %v887 = vmul.f32 %v871, 0.9
        %v888 = vmul.f32 %v872, 0.9
        %v889 = vmul.f32 %v873, 0.9
        %v890 = vmul.f32 %v874, 0.9
        %v891 = vmul.f32 %v875, 0.9
        %v892 = vmul.f32 %v876, 0.9
        %v893 = vmul.f32 %v877, 0.9
        %v894 = vmul.f32 %v878, 0.9
        %v895 = vmul.f32 %v879, 0.9
        %v896 = vmul.f32 %v880, 0.9
        %v897 = vmul.f32 %v881, 0.9
        %v898 = vadd.f32 %v882, %v850
        %v899 = vadd.f32 %v883, %v851
        %v900 = vadd.f32 %v884, %v852
        %v901 = vadd.f32 %v885, %v853
        %v902 = vadd.f32 %v886, %v854
        %v903 = vadd.f32 %v887, %v855
        %v904 = vadd.f32 %v888, %v856
        %v905 = vadd.f32 %v889, %v857
        %v906 = vadd.f32 %v890, %v858
        %v907 = vadd.f32 %v891, %v859
        %v908 = vadd.f32 %v892, %v860
        %v909 = vadd.f32 %v893, %v861
        %v910 = vadd.f32 %v894, %v862
        %v911 = vadd.f32 %v895, %v863
        %v912 = vadd.f32 %v896, %v864
        %v913 = vadd.f32 %v897, %v865
        %vm914 = vcmp.gt.f32.partialorder %v866, 1.0
        %vm915 = vcmp.gt.f32.partialorder %v867, 1.0
        %vm916 = vcmp.gt.f32.partialorder %v868, 1.0
        %vm917 = vcmp.gt.f32.partialorder %v869, 1.0
        %vm918 = vcmp.gt.f32.partialorder %v870, 1.0
        %vm919 = vcmp.gt.f32.partialorder %v871, 1.0
        %vm920 = vcmp.gt.f32.partialorder %v872, 1.0
        %vm921 = vcmp.gt.f32.partialorder %v873, 1.0
        %vm922 = vcmp.gt.f32.partialorder %v874, 1.0
        %vm923 = vcmp.gt.f32.partialorder %v875, 1.0
        %vm924 = vcmp.gt.f32.partialorder %v876, 1.0
        %vm925 = vcmp.gt.f32.partialorder %v877, 1.0
        %vm926 = vcmp.gt.f32.partialorder %v878, 1.0
        %vm927 = vcmp.gt.f32.partialorder %v879, 1.0
        %vm928 = vcmp.gt.f32.partialorder %v880, 1.0
        %vm929 = vcmp.gt.f32.partialorder %v881, 1.0
        %v930 = vsel %vm914, 1, 0
        %v931 = vsel %vm915, 1, 0
        %v932 = vsel %vm916, 1, 0
        %v933 = vsel %vm917, 1, 0
        %v934 = vsel %vm918, 1, 0
        %v935 = vsel %vm919, 1, 0
        %v936 = vsel %vm920, 1, 0
        %v937 = vsel %vm921, 1, 0
        %v938 = vsel %vm922, 1, 0
        %v939 = vsel %vm923, 1, 0
        %v940 = vsel %vm924, 1, 0
        %v941 = vsel %vm925, 1, 0
        %v942 = vsel %vm926, 1, 0
        %v943 = vsel %vm927, 1, 0
        %v944 = vsel %vm928, 1, 0
        %v945 = vsel %vm929, 1, 0
        %v946 = vcvt.s32.f32 %v930
        %v947 = vcvt.s32.f32 %v931
        %v948 = vcvt.s32.f32 %v932
        %v949 = vcvt.s32.f32 %v933
        %v950 = vcvt.s32.f32 %v934
        %v951 = vcvt.s32.f32 %v935
        %v952 = vcvt.s32.f32 %v936
        %v953 = vcvt.s32.f32 %v937
        %v954 = vcvt.s32.f32 %v938
        %v955 = vcvt.s32.f32 %v939
        %v956 = vcvt.s32.f32 %v940
        %v957 = vcvt.s32.f32 %v941
        %v958 = vcvt.s32.f32 %v942
        %v959 = vcvt.s32.f32 %v943
        %v960 = vcvt.s32.f32 %v944
        %v961 = vcvt.s32.f32 %v945
        %v962 = vsub.f32 %v898, %v946
        %v963 = vsub.f32 %v899, %v947
        %v964 = vsub.f32 %v900, %v948
        %v965 = vsub.f32 %v901, %v949
        %v966 = vsub.f32 %v902, %v950
        %v967 = vsub.f32 %v903, %v951
        %v968 = vsub.f32 %v904, %v952
        %v969 = vsub.f32 %v905, %v953
        %v970 = vsub.f32 %v906, %v954
        %v971 = vsub.f32 %v907, %v955
        %v972 = vsub.f32 %v908, %v956
        %v973 = vsub.f32 %v909, %v957
        %v974 = vsub.f32 %v910, %v958
        %v975 = vsub.f32 %v911, %v959
        %v976 = vsub.f32 %v912, %v960
        %v977 = vsub.f32 %v913, %v961
        %978 = vst [vmem:[#allocation2] sm:$0xff] %v962
        %979 = vst [vmem:[#allocation2 + $0x8] sm:$0xff] %v963
        %980 = vst [vmem:[#allocation2 + $0x10] sm:$0xff] %v964
        %981 = vst [vmem:[#allocation2 + $0x18] sm:$0xff] %v965
        %982 = vst [vmem:[#allocation2 + $0x20] sm:$0xff] %v966
        %983 = vst [vmem:[#allocation2 + $0x28] sm:$0xff] %v967
        %984 = vst [vmem:[#allocation2 + $0x30] sm:$0xff] %v968
        %985 = vst [vmem:[#allocation2 + $0x38] sm:$0xff] %v969
        %986 = vst [vmem:[#allocation2 + $0x40] sm:$0xff] %v970
        %987 = vst [vmem:[#allocation2 + $0x48] sm:$0xff] %v971
        %988 = vst [vmem:[#allocation2 + $0x50] sm:$0xff] %v972
        %989 = vst [vmem:[#allocation2 + $0x58] sm:$0xff] %v973
        %990 = vst [vmem:[#allocation2 + $0x60] sm:$0xff] %v974
        %991 = vst [vmem:[#allocation2 + $0x68] sm:$0xff] %v975
        %992 = vst [vmem:[#allocation2 + $0x70] sm:$0xff] %v976
        %993 = vst [vmem:[#allocation2 + $0x78] sm:$0xff] %v977
        %vm994 = vcmp.gt.f32.partialorder %v962, 1.0
        %vm995 = vcmp.gt.f32.partialorder %v963, 1.0
        %vm996 = vcmp.gt.f32.partialorder %v964, 1.0
        %vm997 = vcmp.gt.f32.partialorder %v965, 1.0
        %vm998 = vcmp.gt.f32.partialorder %v966, 1.0
        %vm999 = vcmp.gt.f32.partialorder %v967, 1.0
        %vm1000 = vcmp.gt.f32.partialorder %v968, 1.0
        %vm1001 = vcmp.gt.f32.partialorder %v969, 1.0
        %vm1002 = vcmp.gt.f32.partialorder %v970, 1.0
        %vm1003 = vcmp.gt.f32.partialorder %v971, 1.0
        %vm1004 = vcmp.gt.f32.partialorder %v972, 1.0
        %vm1005 = vcmp.gt.f32.partialorder %v973, 1.0
        %vm1006 = vcmp.gt.f32.partialorder %v974, 1.0
        %vm1007 = vcmp.gt.f32.partialorder %v975, 1.0
        %vm1008 = vcmp.gt.f32.partialorder %v976, 1.0
        %vm1009 = vcmp.gt.f32.partialorder %v977, 1.0
        %v1010 = vsel %vm994, 1, 0
        %v1011 = vsel %vm995, 1, 0
        %v1012 = vsel %vm996, 1, 0
        %v1013 = vsel %vm997, 1, 0
        %v1014 = vsel %vm998, 1, 0
        %v1015 = vsel %vm999, 1, 0
        %v1016 = vsel %vm1000, 1, 0
        %v1017 = vsel %vm1001, 1, 0
        %v1018 = vsel %vm1002, 1, 0
        %v1019 = vsel %vm1003, 1, 0
        %v1020 = vsel %vm1004, 1, 0
        %v1021 = vsel %vm1005, 1, 0
        %v1022 = vsel %vm1006, 1, 0
        %v1023 = vsel %vm1007, 1, 0
        %v1024 = vsel %vm1008, 1, 0
        %v1025 = vsel %vm1009, 1, 0
        %v1026 = vcvt.s32.f32 %v1010
        %v1027 = vcvt.s32.f32 %v1011
        %v1028 = vcvt.s32.f32 %v1012
        %v1029 = vcvt.s32.f32 %v1013
        %v1030 = vcvt.s32.f32 %v1014
        %v1031 = vcvt.s32.f32 %v1015
        %v1032 = vcvt.s32.f32 %v1016
        %v1033 = vcvt.s32.f32 %v1017
        %v1034 = vcvt.s32.f32 %v1018
        %v1035 = vcvt.s32.f32 %v1019
        %v1036 = vcvt.s32.f32 %v1020
        %v1037 = vcvt.s32.f32 %v1021
        %v1038 = vcvt.s32.f32 %v1022
        %v1039 = vcvt.s32.f32 %v1023
        %v1040 = vcvt.s32.f32 %v1024
        %v1041 = vcvt.s32.f32 %v1025
        %v1042 = vld [vmem:[%s2] sm:$0xff]
        %v1043 = vld [vmem:[%s2 + $0x8] sm:$0xff]
        %v1044 = vld [vmem:[%s2 + $0x10] sm:$0xff]
        %v1045 = vld [vmem:[%s2 + $0x18] sm:$0xff]
        %v1046 = vld [vmem:[%s2 + $0x20] sm:$0xff]
        %v1047 = vld [vmem:[%s2 + $0x28] sm:$0xff]
        %v1048 = vld [vmem:[%s2 + $0x30] sm:$0xff]
        %v1049 = vld [vmem:[%s2 + $0x38] sm:$0xff]
        %v1050 = vmul.f32 %v1026, %v1042
        %v1051 = vmul.f32 %v1027, %v1043
        %v1052 = vmul.f32 %v1030, %v1044
        %v1053 = vmul.f32 %v1031, %v1045
        %v1054 = vmul.f32 %v1034, %v1046
        %v1055 = vmul.f32 %v1035, %v1047
        %v1056 = vmul.f32 %v1038, %v1048
        %v1057 = vmul.f32 %v1039, %v1049
        %v1058 = vadd.f32 %v1050, %v1051
        %1059 = vadd.xlane.f32.xlu0 %v1058
        %v1060 = vpop.xlane.xlu0 %1059
        %v1061 = vadd.f32 %v1052, %v1053
        %1062 = vadd.xlane.f32.xlu0 %v1061
        %v1063 = vpop.xlane.xlu0 %1062
        %v1064 = vadd.f32 %v1054, %v1055
        %1065 = vadd.xlane.f32.xlu0 %v1064
        %v1066 = vpop.xlane.xlu0 %1065
        %v1067 = vadd.f32 %v1056, %v1057
        %1068 = vadd.xlane.f32.xlu0 %v1067
        %v1069 = vpop.xlane.xlu0 %1068
        %v1070 = vadd.f32 %v1060, %v1063
        %v1071 = vadd.f32 %v1070, %v1066
        %v1072 = vadd.f32 %v1071, %v1069
        %v1073 = vrot.slane %v1072, 4
        %v1074 = vadd.f32 %v1072, %v1073
        %v1075 = vrot.slane %v1074, 2
        %v1076 = vadd.f32 %v1074, %v1075
        %v1077 = vrot.slane %v1076, 1
        %v1078 = vadd.f32 %v1076, %v1077
        %v1079 = vmul.f32 %v1028, %v1042
        %v1080 = vmul.f32 %v1029, %v1043
        %v1081 = vmul.f32 %v1032, %v1044
        %v1082 = vmul.f32 %v1033, %v1045
        %v1083 = vmul.f32 %v1036, %v1046
        %v1084 = vmul.f32 %v1037, %v1047
        %v1085 = vmul.f32 %v1040, %v1048
        %v1086 = vmul.f32 %v1041, %v1049
        %v1087 = vadd.f32 %v1079, %v1080
        %1088 = vadd.xlane.f32.xlu0 %v1087
        %v1089 = vpop.xlane.xlu0 %1088
        %v1090 = vadd.f32 %v1081, %v1082
        %1091 = vadd.xlane.f32.xlu0 %v1090
        %v1092 = vpop.xlane.xlu0 %1091
        %v1093 = vadd.f32 %v1083, %v1084
        %1094 = vadd.xlane.f32.xlu0 %v1093
        %v1095 = vpop.xlane.xlu0 %1094
        %v1096 = vadd.f32 %v1085, %v1086
        %1097 = vadd.xlane.f32.xlu0 %v1096
        %v1098 = vpop.xlane.xlu0 %1097
        %v1099 = vadd.f32 %v1089, %v1092
        %v1100 = vadd.f32 %v1099, %v1095
        %v1101 = vadd.f32 %v1100, %v1098
        %v1102 = vrot.slane %v1101, 4
        %v1103 = vadd.f32 %v1101, %v1102
        %v1104 = vrot.slane %v1103, 2
        %v1105 = vadd.f32 %v1103, %v1104
        %v1106 = vrot.slane %v1105, 1
        %v1107 = vadd.f32 %v1105, %v1106
        %s1108 = scalar_lea.vmem %s2, 64
        %v1109 = vld [vmem:[%s1108] sm:$0xff]
        %v1110 = vld [vmem:[%s1108 + $0x8] sm:$0xff]
        %v1111 = vld [vmem:[%s1108 + $0x10] sm:$0xff]
        %v1112 = vld [vmem:[%s1108 + $0x18] sm:$0xff]
        %v1113 = vld [vmem:[%s1108 + $0x20] sm:$0xff]
        %v1114 = vld [vmem:[%s1108 + $0x28] sm:$0xff]
        %v1115 = vld [vmem:[%s1108 + $0x30] sm:$0xff]
        %v1116 = vld [vmem:[%s1108 + $0x38] sm:$0xff]
        %v1117 = vmul.f32 %v1026, %v1109
        %v1118 = vmul.f32 %v1027, %v1110
        %v1119 = vmul.f32 %v1030, %v1111
        %v1120 = vmul.f32 %v1031, %v1112
        %v1121 = vmul.f32 %v1034, %v1113
        %v1122 = vmul.f32 %v1035, %v1114
        %v1123 = vmul.f32 %v1038, %v1115
        %v1124 = vmul.f32 %v1039, %v1116
        %v1125 = vadd.f32 %v1117, %v1118
        %1126 = vadd.xlane.f32.xlu0 %v1125
        %v1127 = vpop.xlane.xlu0 %1126
        %v1128 = vadd.f32 %v1119, %v1120
        %1129 = vadd.xlane.f32.xlu0 %v1128
        %v1130 = vpop.xlane.xlu0 %1129
        %v1131 = vadd.f32 %v1121, %v1122
        %1132 = vadd.xlane.f32.xlu0 %v1131
        %v1133 = vpop.xlane.xlu0 %1132
        %v1134 = vadd.f32 %v1123, %v1124
        %1135 = vadd.xlane.f32.xlu0 %v1134
        %v1136 = vpop.xlane.xlu0 %1135
        %v1137 = vadd.f32 %v1127, %v1130
        %v1138 = vadd.f32 %v1137, %v1133
        %v1139 = vadd.f32 %v1138, %v1136
        %v1140 = vrot.slane %v1139, 4
        %v1141 = vadd.f32 %v1139, %v1140
        %v1142 = vrot.slane %v1141, 2
        %v1143 = vadd.f32 %v1141, %v1142
        %v1144 = vrot.slane %v1143, 1
        %v1145 = vadd.f32 %v1143, %v1144
        %v1146 = vmul.f32 %v1028, %v1109
        %v1147 = vmul.f32 %v1029, %v1110
        %v1148 = vmul.f32 %v1032, %v1111
        %v1149 = vmul.f32 %v1033, %v1112
        %v1150 = vmul.f32 %v1036, %v1113
        %v1151 = vmul.f32 %v1037, %v1114
        %v1152 = vmul.f32 %v1040, %v1115
        %v1153 = vmul.f32 %v1041, %v1116
        %v1154 = vadd.f32 %v1146, %v1147
        %1155 = vadd.xlane.f32.xlu0 %v1154
        %v1156 = vpop.xlane.xlu0 %1155
        %v1157 = vadd.f32 %v1148, %v1149
        %1158 = vadd.xlane.f32.xlu0 %v1157
        %v1159 = vpop.xlane.xlu0 %1158
        %v1160 = vadd.f32 %v1150, %v1151
        %1161 = vadd.xlane.f32.xlu0 %v1160
        %v1162 = vpop.xlane.xlu0 %1161
        %v1163 = vadd.f32 %v1152, %v1153
        %1164 = vadd.xlane.f32.xlu0 %v1163
        %v1165 = vpop.xlane.xlu0 %1164
        %v1166 = vadd.f32 %v1156, %v1159
        %v1167 = vadd.f32 %v1166, %v1162
        %v1168 = vadd.f32 %v1167, %v1165
        %v1169 = vrot.slane %v1168, 4
        %v1170 = vadd.f32 %v1168, %v1169
        %v1171 = vrot.slane %v1170, 2
        %v1172 = vadd.f32 %v1170, %v1171
        %v1173 = vrot.slane %v1172, 1
        %v1174 = vadd.f32 %v1172, %v1173
        %s1175 = scalar_lea.vmem %s2, 128
        %v1176 = vld [vmem:[%s1175] sm:$0xff]
        %v1177 = vld [vmem:[%s1175 + $0x8] sm:$0xff]
        %v1178 = vld [vmem:[%s1175 + $0x10] sm:$0xff]
        %v1179 = vld [vmem:[%s1175 + $0x18] sm:$0xff]
        %v1180 = vld [vmem:[%s1175 + $0x20] sm:$0xff]
        %v1181 = vld [vmem:[%s1175 + $0x28] sm:$0xff]
        %v1182 = vld [vmem:[%s1175 + $0x30] sm:$0xff]
        %v1183 = vld [vmem:[%s1175 + $0x38] sm:$0xff]
        %v1184 = vmul.f32 %v1026, %v1176
        %v1185 = vmul.f32 %v1027, %v1177
        %v1186 = vmul.f32 %v1030, %v1178
        %v1187 = vmul.f32 %v1031, %v1179
        %v1188 = vmul.f32 %v1034, %v1180
        %v1189 = vmul.f32 %v1035, %v1181
        %v1190 = vmul.f32 %v1038, %v1182
        %v1191 = vmul.f32 %v1039, %v1183
        %v1192 = vadd.f32 %v1184, %v1185
        %1193 = vadd.xlane.f32.xlu0 %v1192
        %v1194 = vpop.xlane.xlu0 %1193
        %v1195 = vadd.f32 %v1186, %v1187
        %1196 = vadd.xlane.f32.xlu0 %v1195
        %v1197 = vpop.xlane.xlu0 %1196
        %v1198 = vadd.f32 %v1188, %v1189
        %1199 = vadd.xlane.f32.xlu0 %v1198
        %v1200 = vpop.xlane.xlu0 %1199
        %v1201 = vadd.f32 %v1190, %v1191
        %1202 = vadd.xlane.f32.xlu0 %v1201
        %v1203 = vpop.xlane.xlu0 %1202
        %v1204 = vadd.f32 %v1194, %v1197
        %v1205 = vadd.f32 %v1204, %v1200
        %v1206 = vadd.f32 %v1205, %v1203
        %v1207 = vrot.slane %v1206, 4
        %v1208 = vadd.f32 %v1206, %v1207
        %v1209 = vrot.slane %v1208, 2
        %v1210 = vadd.f32 %v1208, %v1209
        %v1211 = vrot.slane %v1210, 1
        %v1212 = vadd.f32 %v1210, %v1211
        %v1213 = vmul.f32 %v1028, %v1176
        %v1214 = vmul.f32 %v1029, %v1177
        %v1215 = vmul.f32 %v1032, %v1178
        %v1216 = vmul.f32 %v1033, %v1179
        %v1217 = vmul.f32 %v1036, %v1180
        %v1218 = vmul.f32 %v1037, %v1181
        %v1219 = vmul.f32 %v1040, %v1182
        %v1220 = vmul.f32 %v1041, %v1183
        %v1221 = vadd.f32 %v1213, %v1214
        %1222 = vadd.xlane.f32.xlu0 %v1221
        %v1223 = vpop.xlane.xlu0 %1222
        %v1224 = vadd.f32 %v1215, %v1216
        %1225 = vadd.xlane.f32.xlu0 %v1224
        %v1226 = vpop.xlane.xlu0 %1225
        %v1227 = vadd.f32 %v1217, %v1218
        %1228 = vadd.xlane.f32.xlu0 %v1227
        %v1229 = vpop.xlane.xlu0 %1228
        %v1230 = vadd.f32 %v1219, %v1220
        %1231 = vadd.xlane.f32.xlu0 %v1230
        %v1232 = vpop.xlane.xlu0 %1231
        %v1233 = vadd.f32 %v1223, %v1226
        %v1234 = vadd.f32 %v1233, %v1229
        %v1235 = vadd.f32 %v1234, %v1232
        %v1236 = vrot.slane %v1235, 4
        %v1237 = vadd.f32 %v1235, %v1236
        %v1238 = vrot.slane %v1237, 2
        %v1239 = vadd.f32 %v1237, %v1238
        %v1240 = vrot.slane %v1239, 1
        %v1241 = vadd.f32 %v1239, %v1240
        %s1242 = scalar_lea.vmem %s2, 192
        %v1243 = vld [vmem:[%s1242] sm:$0xff]
        %v1244 = vld [vmem:[%s1242 + $0x8] sm:$0xff]
        %v1245 = vld [vmem:[%s1242 + $0x10] sm:$0xff]
        %v1246 = vld [vmem:[%s1242 + $0x18] sm:$0xff]
        %v1247 = vld [vmem:[%s1242 + $0x20] sm:$0xff]
        %v1248 = vld [vmem:[%s1242 + $0x28] sm:$0xff]
        %v1249 = vld [vmem:[%s1242 + $0x30] sm:$0xff]
        %v1250 = vld [vmem:[%s1242 + $0x38] sm:$0xff]
        %v1251 = vmul.f32 %v1026, %v1243
        %v1252 = vmul.f32 %v1027, %v1244
        %v1253 = vmul.f32 %v1030, %v1245
        %v1254 = vmul.f32 %v1031, %v1246
        %v1255 = vmul.f32 %v1034, %v1247
        %v1256 = vmul.f32 %v1035, %v1248
        %v1257 = vmul.f32 %v1038, %v1249
        %v1258 = vmul.f32 %v1039, %v1250
        %v1259 = vadd.f32 %v1251, %v1252
        %1260 = vadd.xlane.f32.xlu0 %v1259
        %v1261 = vpop.xlane.xlu0 %1260
        %v1262 = vadd.f32 %v1253, %v1254
        %1263 = vadd.xlane.f32.xlu0 %v1262
        %v1264 = vpop.xlane.xlu0 %1263
        %v1265 = vadd.f32 %v1255, %v1256
        %1266 = vadd.xlane.f32.xlu0 %v1265
        %v1267 = vpop.xlane.xlu0 %1266
        %v1268 = vadd.f32 %v1257, %v1258
        %1269 = vadd.xlane.f32.xlu0 %v1268
        %v1270 = vpop.xlane.xlu0 %1269
        %v1271 = vadd.f32 %v1261, %v1264
        %v1272 = vadd.f32 %v1271, %v1267
        %v1273 = vadd.f32 %v1272, %v1270
        %v1274 = vrot.slane %v1273, 4
        %v1275 = vadd.f32 %v1273, %v1274
        %v1276 = vrot.slane %v1275, 2
        %v1277 = vadd.f32 %v1275, %v1276
        %v1278 = vrot.slane %v1277, 1
        %v1279 = vadd.f32 %v1277, %v1278
        %v1280 = vmul.f32 %v1028, %v1243
        %v1281 = vmul.f32 %v1029, %v1244
        %v1282 = vmul.f32 %v1032, %v1245
        %v1283 = vmul.f32 %v1033, %v1246
        %v1284 = vmul.f32 %v1036, %v1247
        %v1285 = vmul.f32 %v1037, %v1248
        %v1286 = vmul.f32 %v1040, %v1249
        %v1287 = vmul.f32 %v1041, %v1250
        %v1288 = vadd.f32 %v1280, %v1281
        %1289 = vadd.xlane.f32.xlu0 %v1288
        %v1290 = vpop.xlane.xlu0 %1289
        %v1291 = vadd.f32 %v1282, %v1283
        %1292 = vadd.xlane.f32.xlu0 %v1291
        %v1293 = vpop.xlane.xlu0 %1292
        %v1294 = vadd.f32 %v1284, %v1285
        %1295 = vadd.xlane.f32.xlu0 %v1294
        %v1296 = vpop.xlane.xlu0 %1295
        %v1297 = vadd.f32 %v1286, %v1287
        %1298 = vadd.xlane.f32.xlu0 %v1297
        %v1299 = vpop.xlane.xlu0 %1298
        %v1300 = vadd.f32 %v1290, %v1293
        %v1301 = vadd.f32 %v1300, %v1296
        %v1302 = vadd.f32 %v1301, %v1299
        %v1303 = vrot.slane %v1302, 4
        %v1304 = vadd.f32 %v1302, %v1303
        %v1305 = vrot.slane %v1304, 2
        %v1306 = vadd.f32 %v1304, %v1305
        %v1307 = vrot.slane %v1306, 1
        %v1308 = vadd.f32 %v1306, %v1307
        %s1309 = scalar_lea.vmem %s2, 256
        %v1310 = vld [vmem:[%s1309] sm:$0xff]
        %v1311 = vld [vmem:[%s1309 + $0x8] sm:$0xff]
        %v1312 = vld [vmem:[%s1309 + $0x10] sm:$0xff]
        %v1313 = vld [vmem:[%s1309 + $0x18] sm:$0xff]
        %v1314 = vld [vmem:[%s1309 + $0x20] sm:$0xff]
        %v1315 = vld [vmem:[%s1309 + $0x28] sm:$0xff]
        %v1316 = vld [vmem:[%s1309 + $0x30] sm:$0xff]
        %v1317 = vld [vmem:[%s1309 + $0x38] sm:$0xff]
        %v1318 = vmul.f32 %v1026, %v1310
        %v1319 = vmul.f32 %v1027, %v1311
        %v1320 = vmul.f32 %v1030, %v1312
        %v1321 = vmul.f32 %v1031, %v1313
        %v1322 = vmul.f32 %v1034, %v1314
        %v1323 = vmul.f32 %v1035, %v1315
        %v1324 = vmul.f32 %v1038, %v1316
        %v1325 = vmul.f32 %v1039, %v1317
        %v1326 = vadd.f32 %v1318, %v1319
        %1327 = vadd.xlane.f32.xlu0 %v1326
        %v1328 = vpop.xlane.xlu0 %1327
        %v1329 = vadd.f32 %v1320, %v1321
        %1330 = vadd.xlane.f32.xlu0 %v1329
        %v1331 = vpop.xlane.xlu0 %1330
        %v1332 = vadd.f32 %v1322, %v1323
        %1333 = vadd.xlane.f32.xlu0 %v1332
        %v1334 = vpop.xlane.xlu0 %1333
        %v1335 = vadd.f32 %v1324, %v1325
        %1336 = vadd.xlane.f32.xlu0 %v1335
        %v1337 = vpop.xlane.xlu0 %1336
        %v1338 = vadd.f32 %v1328, %v1331
        %v1339 = vadd.f32 %v1338, %v1334
        %v1340 = vadd.f32 %v1339, %v1337
        %v1341 = vrot.slane %v1340, 4
        %v1342 = vadd.f32 %v1340, %v1341
        %v1343 = vrot.slane %v1342, 2
        %v1344 = vadd.f32 %v1342, %v1343
        %v1345 = vrot.slane %v1344, 1
        %v1346 = vadd.f32 %v1344, %v1345
        %v1347 = vmul.f32 %v1028, %v1310
        %v1348 = vmul.f32 %v1029, %v1311
        %v1349 = vmul.f32 %v1032, %v1312
        %v1350 = vmul.f32 %v1033, %v1313
        %v1351 = vmul.f32 %v1036, %v1314
        %v1352 = vmul.f32 %v1037, %v1315
        %v1353 = vmul.f32 %v1040, %v1316
        %v1354 = vmul.f32 %v1041, %v1317
        %v1355 = vadd.f32 %v1347, %v1348
        %1356 = vadd.xlane.f32.xlu0 %v1355
        %v1357 = vpop.xlane.xlu0 %1356
        %v1358 = vadd.f32 %v1349, %v1350
        %1359 = vadd.xlane.f32.xlu0 %v1358
        %v1360 = vpop.xlane.xlu0 %1359
        %v1361 = vadd.f32 %v1351, %v1352
        %1362 = vadd.xlane.f32.xlu0 %v1361
        %v1363 = vpop.xlane.xlu0 %1362
        %v1364 = vadd.f32 %v1353, %v1354
        %1365 = vadd.xlane.f32.xlu0 %v1364
        %v1366 = vpop.xlane.xlu0 %1365
        %v1367 = vadd.f32 %v1357, %v1360
        %v1368 = vadd.f32 %v1367, %v1363
        %v1369 = vadd.f32 %v1368, %v1366
        %v1370 = vrot.slane %v1369, 4
        %v1371 = vadd.f32 %v1369, %v1370
        %v1372 = vrot.slane %v1371, 2
        %v1373 = vadd.f32 %v1371, %v1372
        %v1374 = vrot.slane %v1373, 1
        %v1375 = vadd.f32 %v1373, %v1374
        %s1376 = scalar_lea.vmem %s2, 320
        %v1377 = vld [vmem:[%s1376] sm:$0xff]
        %v1378 = vld [vmem:[%s1376 + $0x8] sm:$0xff]
        %v1379 = vld [vmem:[%s1376 + $0x10] sm:$0xff]
        %v1380 = vld [vmem:[%s1376 + $0x18] sm:$0xff]
        %v1381 = vld [vmem:[%s1376 + $0x20] sm:$0xff]
        %v1382 = vld [vmem:[%s1376 + $0x28] sm:$0xff]
        %v1383 = vld [vmem:[%s1376 + $0x30] sm:$0xff]
        %v1384 = vld [vmem:[%s1376 + $0x38] sm:$0xff]
        %v1385 = vmul.f32 %v1026, %v1377
        %v1386 = vmul.f32 %v1027, %v1378
        %v1387 = vmul.f32 %v1030, %v1379
        %v1388 = vmul.f32 %v1031, %v1380
        %v1389 = vmul.f32 %v1034, %v1381
        %v1390 = vmul.f32 %v1035, %v1382
        %v1391 = vmul.f32 %v1038, %v1383
        %v1392 = vmul.f32 %v1039, %v1384
        %v1393 = vadd.f32 %v1385, %v1386
        %1394 = vadd.xlane.f32.xlu0 %v1393
        %v1395 = vpop.xlane.xlu0 %1394
        %v1396 = vadd.f32 %v1387, %v1388
        %1397 = vadd.xlane.f32.xlu0 %v1396
        %v1398 = vpop.xlane.xlu0 %1397
        %v1399 = vadd.f32 %v1389, %v1390
        %1400 = vadd.xlane.f32.xlu0 %v1399
        %v1401 = vpop.xlane.xlu0 %1400
        %v1402 = vadd.f32 %v1391, %v1392
        %1403 = vadd.xlane.f32.xlu0 %v1402
        %v1404 = vpop.xlane.xlu0 %1403
        %v1405 = vadd.f32 %v1395, %v1398
        %v1406 = vadd.f32 %v1405, %v1401
        %v1407 = vadd.f32 %v1406, %v1404
        %v1408 = vrot.slane %v1407, 4
        %v1409 = vadd.f32 %v1407, %v1408
        %v1410 = vrot.slane %v1409, 2
        %v1411 = vadd.f32 %v1409, %v1410
        %v1412 = vrot.slane %v1411, 1
        %v1413 = vadd.f32 %v1411, %v1412
        %v1414 = vmul.f32 %v1028, %v1377
        %v1415 = vmul.f32 %v1029, %v1378
        %v1416 = vmul.f32 %v1032, %v1379
        %v1417 = vmul.f32 %v1033, %v1380
        %v1418 = vmul.f32 %v1036, %v1381
        %v1419 = vmul.f32 %v1037, %v1382
        %v1420 = vmul.f32 %v1040, %v1383
        %v1421 = vmul.f32 %v1041, %v1384
        %v1422 = vadd.f32 %v1414, %v1415
        %1423 = vadd.xlane.f32.xlu0 %v1422
        %v1424 = vpop.xlane.xlu0 %1423
        %v1425 = vadd.f32 %v1416, %v1417
        %1426 = vadd.xlane.f32.xlu0 %v1425
        %v1427 = vpop.xlane.xlu0 %1426
        %v1428 = vadd.f32 %v1418, %v1419
        %1429 = vadd.xlane.f32.xlu0 %v1428
        %v1430 = vpop.xlane.xlu0 %1429
        %v1431 = vadd.f32 %v1420, %v1421
        %1432 = vadd.xlane.f32.xlu0 %v1431
        %v1433 = vpop.xlane.xlu0 %1432
        %v1434 = vadd.f32 %v1424, %v1427
        %v1435 = vadd.f32 %v1434, %v1430
        %v1436 = vadd.f32 %v1435, %v1433
        %v1437 = vrot.slane %v1436, 4
        %v1438 = vadd.f32 %v1436, %v1437
        %v1439 = vrot.slane %v1438, 2
        %v1440 = vadd.f32 %v1438, %v1439
        %v1441 = vrot.slane %v1440, 1
        %v1442 = vadd.f32 %v1440, %v1441
        %s1443 = scalar_lea.vmem %s2, 384
        %v1444 = vld [vmem:[%s1443] sm:$0xff]
        %v1445 = vld [vmem:[%s1443 + $0x8] sm:$0xff]
        %v1446 = vld [vmem:[%s1443 + $0x10] sm:$0xff]
        %v1447 = vld [vmem:[%s1443 + $0x18] sm:$0xff]
        %v1448 = vld [vmem:[%s1443 + $0x20] sm:$0xff]
        %v1449 = vld [vmem:[%s1443 + $0x28] sm:$0xff]
        %v1450 = vld [vmem:[%s1443 + $0x30] sm:$0xff]
        %v1451 = vld [vmem:[%s1443 + $0x38] sm:$0xff]
        %v1452 = vmul.f32 %v1026, %v1444
        %v1453 = vmul.f32 %v1027, %v1445
        %v1454 = vmul.f32 %v1030, %v1446
        %v1455 = vmul.f32 %v1031, %v1447
        %v1456 = vmul.f32 %v1034, %v1448
        %v1457 = vmul.f32 %v1035, %v1449
        %v1458 = vmul.f32 %v1038, %v1450
        %v1459 = vmul.f32 %v1039, %v1451
        %v1460 = vadd.f32 %v1452, %v1453
        %1461 = vadd.xlane.f32.xlu0 %v1460
        %v1462 = vpop.xlane.xlu0 %1461
        %v1463 = vadd.f32 %v1454, %v1455
        %1464 = vadd.xlane.f32.xlu0 %v1463
        %v1465 = vpop.xlane.xlu0 %1464
        %v1466 = vadd.f32 %v1456, %v1457
        %1467 = vadd.xlane.f32.xlu0 %v1466
        %v1468 = vpop.xlane.xlu0 %1467
        %v1469 = vadd.f32 %v1458, %v1459
        %1470 = vadd.xlane.f32.xlu0 %v1469
        %v1471 = vpop.xlane.xlu0 %1470
        %v1472 = vadd.f32 %v1462, %v1465
        %v1473 = vadd.f32 %v1472, %v1468
        %v1474 = vadd.f32 %v1473, %v1471
        %v1475 = vrot.slane %v1474, 4
        %v1476 = vadd.f32 %v1474, %v1475
        %v1477 = vrot.slane %v1476, 2
        %v1478 = vadd.f32 %v1476, %v1477
        %v1479 = vrot.slane %v1478, 1
        %v1480 = vadd.f32 %v1478, %v1479
        %v1481 = vmul.f32 %v1028, %v1444
        %v1482 = vmul.f32 %v1029, %v1445
        %v1483 = vmul.f32 %v1032, %v1446
        %v1484 = vmul.f32 %v1033, %v1447
        %v1485 = vmul.f32 %v1036, %v1448
        %v1486 = vmul.f32 %v1037, %v1449
        %v1487 = vmul.f32 %v1040, %v1450
        %v1488 = vmul.f32 %v1041, %v1451
        %v1489 = vadd.f32 %v1481, %v1482
        %1490 = vadd.xlane.f32.xlu0 %v1489
        %v1491 = vpop.xlane.xlu0 %1490
        %v1492 = vadd.f32 %v1483, %v1484
        %1493 = vadd.xlane.f32.xlu0 %v1492
        %v1494 = vpop.xlane.xlu0 %1493
        %v1495 = vadd.f32 %v1485, %v1486
        %1496 = vadd.xlane.f32.xlu0 %v1495
        %v1497 = vpop.xlane.xlu0 %1496
        %v1498 = vadd.f32 %v1487, %v1488
        %1499 = vadd.xlane.f32.xlu0 %v1498
        %v1500 = vpop.xlane.xlu0 %1499
        %v1501 = vadd.f32 %v1491, %v1494
        %v1502 = vadd.f32 %v1501, %v1497
        %v1503 = vadd.f32 %v1502, %v1500
        %v1504 = vrot.slane %v1503, 4
        %v1505 = vadd.f32 %v1503, %v1504
        %v1506 = vrot.slane %v1505, 2
        %v1507 = vadd.f32 %v1505, %v1506
        %v1508 = vrot.slane %v1507, 1
        %v1509 = vadd.f32 %v1507, %v1508
        %s1510 = scalar_lea.vmem %s2, 448
        %v1511 = vld [vmem:[%s1510] sm:$0xff]
        %v1512 = vld [vmem:[%s1510 + $0x8] sm:$0xff]
        %v1513 = vld [vmem:[%s1510 + $0x10] sm:$0xff]
        %v1514 = vld [vmem:[%s1510 + $0x18] sm:$0xff]
        %v1515 = vld [vmem:[%s1510 + $0x20] sm:$0xff]
        %v1516 = vld [vmem:[%s1510 + $0x28] sm:$0xff]
        %v1517 = vld [vmem:[%s1510 + $0x30] sm:$0xff]
        %v1518 = vld [vmem:[%s1510 + $0x38] sm:$0xff]
        %v1519 = vmul.f32 %v1026, %v1511
        %v1520 = vmul.f32 %v1027, %v1512
        %v1521 = vmul.f32 %v1030, %v1513
        %v1522 = vmul.f32 %v1031, %v1514
        %v1523 = vmul.f32 %v1034, %v1515
        %v1524 = vmul.f32 %v1035, %v1516
        %v1525 = vmul.f32 %v1038, %v1517
        %v1526 = vmul.f32 %v1039, %v1518
        %v1527 = vadd.f32 %v1519, %v1520
        %1528 = vadd.xlane.f32.xlu0 %v1527
        %v1529 = vpop.xlane.xlu0 %1528
        %v1530 = vadd.f32 %v1521, %v1522
        %1531 = vadd.xlane.f32.xlu0 %v1530
        %v1532 = vpop.xlane.xlu0 %1531
        %v1533 = vadd.f32 %v1523, %v1524
        %1534 = vadd.xlane.f32.xlu0 %v1533
        %v1535 = vpop.xlane.xlu0 %1534
        %v1536 = vadd.f32 %v1525, %v1526
        %1537 = vadd.xlane.f32.xlu0 %v1536
        %v1538 = vpop.xlane.xlu0 %1537
        %v1539 = vadd.f32 %v1529, %v1532
        %v1540 = vadd.f32 %v1539, %v1535
        %v1541 = vadd.f32 %v1540, %v1538
        %v1542 = vrot.slane %v1541, 4
        %v1543 = vadd.f32 %v1541, %v1542
        %v1544 = vrot.slane %v1543, 2
        %v1545 = vadd.f32 %v1543, %v1544
        %v1546 = vrot.slane %v1545, 1
        %v1547 = vadd.f32 %v1545, %v1546
        %v1548 = vmul.f32 %v1028, %v1511
        %v1549 = vmul.f32 %v1029, %v1512
        %v1550 = vmul.f32 %v1032, %v1513
        %v1551 = vmul.f32 %v1033, %v1514
        %v1552 = vmul.f32 %v1036, %v1515
        %v1553 = vmul.f32 %v1037, %v1516
        %v1554 = vmul.f32 %v1040, %v1517
        %v1555 = vmul.f32 %v1041, %v1518
        %v1556 = vadd.f32 %v1548, %v1549
        %1557 = vadd.xlane.f32.xlu0 %v1556
        %v1558 = vpop.xlane.xlu0 %1557
        %v1559 = vadd.f32 %v1550, %v1551
        %1560 = vadd.xlane.f32.xlu0 %v1559
        %v1561 = vpop.xlane.xlu0 %1560
        %v1562 = vadd.f32 %v1552, %v1553
        %1563 = vadd.xlane.f32.xlu0 %v1562
        %v1564 = vpop.xlane.xlu0 %1563
        %v1565 = vadd.f32 %v1554, %v1555
        %1566 = vadd.xlane.f32.xlu0 %v1565
        %v1567 = vpop.xlane.xlu0 %1566
        %v1568 = vadd.f32 %v1558, %v1561
        %v1569 = vadd.f32 %v1568, %v1564
        %v1570 = vadd.f32 %v1569, %v1567
        %v1571 = vrot.slane %v1570, 4
        %v1572 = vadd.f32 %v1570, %v1571
        %v1573 = vrot.slane %v1572, 2
        %v1574 = vadd.f32 %v1572, %v1573
        %v1575 = vrot.slane %v1574, 1
        %v1576 = vadd.f32 %v1574, %v1575
        %s1577 = scalar_lea.vmem %s2, 512
        %v1578 = vld [vmem:[%s1577] sm:$0xff]
        %v1579 = vld [vmem:[%s1577 + $0x8] sm:$0xff]
        %v1580 = vld [vmem:[%s1577 + $0x10] sm:$0xff]
        %v1581 = vld [vmem:[%s1577 + $0x18] sm:$0xff]
        %v1582 = vld [vmem:[%s1577 + $0x20] sm:$0xff]
        %v1583 = vld [vmem:[%s1577 + $0x28] sm:$0xff]
        %v1584 = vld [vmem:[%s1577 + $0x30] sm:$0xff]
        %v1585 = vld [vmem:[%s1577 + $0x38] sm:$0xff]
        %v1586 = vmul.f32 %v1026, %v1578
        %v1587 = vmul.f32 %v1027, %v1579
        %v1588 = vmul.f32 %v1030, %v1580
        %v1589 = vmul.f32 %v1031, %v1581
        %v1590 = vmul.f32 %v1034, %v1582
        %v1591 = vmul.f32 %v1035, %v1583
        %v1592 = vmul.f32 %v1038, %v1584
        %v1593 = vmul.f32 %v1039, %v1585
        %v1594 = vadd.f32 %v1586, %v1587
        %1595 = vadd.xlane.f32.xlu0 %v1594
        %v1596 = vpop.xlane.xlu0 %1595
        %v1597 = vadd.f32 %v1588, %v1589
        %1598 = vadd.xlane.f32.xlu0 %v1597
        %v1599 = vpop.xlane.xlu0 %1598
        %v1600 = vadd.f32 %v1590, %v1591
        %1601 = vadd.xlane.f32.xlu0 %v1600
        %v1602 = vpop.xlane.xlu0 %1601
        %v1603 = vadd.f32 %v1592, %v1593
        %1604 = vadd.xlane.f32.xlu0 %v1603
        %v1605 = vpop.xlane.xlu0 %1604
        %v1606 = vadd.f32 %v1596, %v1599
        %v1607 = vadd.f32 %v1606, %v1602
        %v1608 = vadd.f32 %v1607, %v1605
        %v1609 = vrot.slane %v1608, 4
        %v1610 = vadd.f32 %v1608, %v1609
        %v1611 = vrot.slane %v1610, 2
        %v1612 = vadd.f32 %v1610, %v1611
        %v1613 = vrot.slane %v1612, 1
        %v1614 = vadd.f32 %v1612, %v1613
        %v1615 = vmul.f32 %v1028, %v1578
        %v1616 = vmul.f32 %v1029, %v1579
        %v1617 = vmul.f32 %v1032, %v1580
        %v1618 = vmul.f32 %v1033, %v1581
        %v1619 = vmul.f32 %v1036, %v1582
        %v1620 = vmul.f32 %v1037, %v1583
        %v1621 = vmul.f32 %v1040, %v1584
        %v1622 = vmul.f32 %v1041, %v1585
        %v1623 = vadd.f32 %v1615, %v1616
        %1624 = vadd.xlane.f32.xlu0 %v1623
        %v1625 = vpop.xlane.xlu0 %1624
        %v1626 = vadd.f32 %v1617, %v1618
        %1627 = vadd.xlane.f32.xlu0 %v1626
        %v1628 = vpop.xlane.xlu0 %1627
        %v1629 = vadd.f32 %v1619, %v1620
        %1630 = vadd.xlane.f32.xlu0 %v1629
        %v1631 = vpop.xlane.xlu0 %1630
        %v1632 = vadd.f32 %v1621, %v1622
        %1633 = vadd.xlane.f32.xlu0 %v1632
        %v1634 = vpop.xlane.xlu0 %1633
        %v1635 = vadd.f32 %v1625, %v1628
        %v1636 = vadd.f32 %v1635, %v1631
        %v1637 = vadd.f32 %v1636, %v1634
        %v1638 = vrot.slane %v1637, 4
        %v1639 = vadd.f32 %v1637, %v1638
        %v1640 = vrot.slane %v1639, 2
        %v1641 = vadd.f32 %v1639, %v1640
        %v1642 = vrot.slane %v1641, 1
        %v1643 = vadd.f32 %v1641, %v1642
        %s1644 = scalar_lea.vmem %s2, 576
        %v1645 = vld [vmem:[%s1644] sm:$0xff]
        %v1646 = vld [vmem:[%s1644 + $0x8] sm:$0xff]
        %v1647 = vld [vmem:[%s1644 + $0x10] sm:$0xff]
        %v1648 = vld [vmem:[%s1644 + $0x18] sm:$0xff]
        %v1649 = vld [vmem:[%s1644 + $0x20] sm:$0xff]
        %v1650 = vld [vmem:[%s1644 + $0x28] sm:$0xff]
        %v1651 = vld [vmem:[%s1644 + $0x30] sm:$0xff]
        %v1652 = vld [vmem:[%s1644 + $0x38] sm:$0xff]
        %v1653 = vmul.f32 %v1026, %v1645
        %v1654 = vmul.f32 %v1027, %v1646
        %v1655 = vmul.f32 %v1030, %v1647
        %v1656 = vmul.f32 %v1031, %v1648
        %v1657 = vmul.f32 %v1034, %v1649
        %v1658 = vmul.f32 %v1035, %v1650
        %v1659 = vmul.f32 %v1038, %v1651
        %v1660 = vmul.f32 %v1039, %v1652
        %v1661 = vadd.f32 %v1653, %v1654
        %1662 = vadd.xlane.f32.xlu0 %v1661
        %v1663 = vpop.xlane.xlu0 %1662
        %v1664 = vadd.f32 %v1655, %v1656
        %1665 = vadd.xlane.f32.xlu0 %v1664
        %v1666 = vpop.xlane.xlu0 %1665
        %v1667 = vadd.f32 %v1657, %v1658
        %1668 = vadd.xlane.f32.xlu0 %v1667
        %v1669 = vpop.xlane.xlu0 %1668
        %v1670 = vadd.f32 %v1659, %v1660
        %1671 = vadd.xlane.f32.xlu0 %v1670
        %v1672 = vpop.xlane.xlu0 %1671
        %v1673 = vadd.f32 %v1663, %v1666
        %v1674 = vadd.f32 %v1673, %v1669
        %v1675 = vadd.f32 %v1674, %v1672
        %v1676 = vrot.slane %v1675, 4
        %v1677 = vadd.f32 %v1675, %v1676
        %v1678 = vrot.slane %v1677, 2
        %v1679 = vadd.f32 %v1677, %v1678
        %v1680 = vrot.slane %v1679, 1
        %v1681 = vadd.f32 %v1679, %v1680
        %v1682 = vmul.f32 %v1028, %v1645
        %v1683 = vmul.f32 %v1029, %v1646
        %v1684 = vmul.f32 %v1032, %v1647
        %v1685 = vmul.f32 %v1033, %v1648
        %v1686 = vmul.f32 %v1036, %v1649
        %v1687 = vmul.f32 %v1037, %v1650
        %v1688 = vmul.f32 %v1040, %v1651
        %v1689 = vmul.f32 %v1041, %v1652
        %v1690 = vadd.f32 %v1682, %v1683
        %1691 = vadd.xlane.f32.xlu0 %v1690
        %v1692 = vpop.xlane.xlu0 %1691
        %v1693 = vadd.f32 %v1684, %v1685
        %1694 = vadd.xlane.f32.xlu0 %v1693
        %v1695 = vpop.xlane.xlu0 %1694
        %v1696 = vadd.f32 %v1686, %v1687
        %1697 = vadd.xlane.f32.xlu0 %v1696
        %v1698 = vpop.xlane.xlu0 %1697
        %v1699 = vadd.f32 %v1688, %v1689
        %1700 = vadd.xlane.f32.xlu0 %v1699
        %v1701 = vpop.xlane.xlu0 %1700
        %v1702 = vadd.f32 %v1692, %v1695
        %v1703 = vadd.f32 %v1702, %v1698
        %v1704 = vadd.f32 %v1703, %v1701
        %v1705 = vrot.slane %v1704, 4
        %v1706 = vadd.f32 %v1704, %v1705
        %v1707 = vrot.slane %v1706, 2
        %v1708 = vadd.f32 %v1706, %v1707
        %v1709 = vrot.slane %v1708, 1
        %v1710 = vadd.f32 %v1708, %v1709
        %vm1711 = vcmask 7168
        %v1712 = vsel %vm1711, %v1078, %v1145
        %vm1713 = vcmask 15360
        %v1714 = vsel %vm1713, %v1712, %v1212
        %vm1715 = vcmask 23552
        %v1716 = vsel %vm1715, %v1714, %v1279
        %vm1717 = vcmask 31744
        %v1718 = vsel %vm1717, %v1716, %v1346
        %vm1719 = vcmask 39936
        %v1720 = vsel %vm1719, %v1718, %v1413
        %vm1721 = vcmask 48128
        %v1722 = vsel %vm1721, %v1720, %v1480
        %vm1723 = vcmask 56320
        %v1724 = vsel %vm1723, %v1722, %v1547
        %vm1725 = vcmask 64512
        %v1726 = vsel %vm1725, %v1724, %v1614
        %vm1727 = vcmask 72704
        %v1728 = vsel %vm1727, %v1726, %v1681
        %v1729 = vsel %vm1711, %v1107, %v1174
        %v1730 = vsel %vm1713, %v1729, %v1241
        %v1731 = vsel %vm1715, %v1730, %v1308
        %v1732 = vsel %vm1717, %v1731, %v1375
        %v1733 = vsel %vm1719, %v1732, %v1442
        %v1734 = vsel %vm1721, %v1733, %v1509
        %v1735 = vsel %vm1723, %v1734, %v1576
        %v1736 = vsel %vm1725, %v1735, %v1643
        %v1737 = vsel %vm1727, %v1736, %v1710
        %v1739 = vrot.slane %v1737, 7
        %vm1741 = vcmask 1040384
        %v1742 = vsel %vm1741, %v1728, %v1739
        %v1744 = vperm.slane %v228, 0
        %v1746 = vadd.f32 %v1742, %v1744
        %v1747 = vld [vmem:[#allocation3] sm:$0x3]
        %v1748 = vmul.f32 %v1747, 0.9
        %v1749 = vadd.f32 %v1748, %v1746
        %vm1750 = vcmp.gt.f32.partialorder %v1747, 1.0
        %v1751 = vsel %vm1750, 1, 0
        %v1752 = vcvt.s32.f32 %v1751
        %v1753 = vsub.f32 %v1749, %v1752
        %vm1754 = vcmask 74752
        %1755 = vst.msk [vmem:[#allocation3] sm:$0x3] %vm1754, %v1753
        %vm1756 = vcmp.gt.f32.partialorder %v1753, 1.0
        %v1757 = vsel %vm1756, 1, 0
        %v1758 = vcvt.s32.f32 %v1757
        %1759 = vst.msk [vmem:[%s193] sm:$0x3] %vm1754, %v1758
        %s1760 = scalar_lea.vmem %s199, 896
        %v1761 = vld [vmem:[%s1760] sm:$0xff]
        %v1762 = vld [vmem:[%s1760 + $0x8] sm:$0xff]
        %v1763 = vld [vmem:[%s1760 + $0x10] sm:$0xff]
        %v1764 = vld [vmem:[%s1760 + $0x18] sm:$0xff]
        %v1765 = vld [vmem:[%s1760 + $0x20] sm:$0xff]
        %v1766 = vld [vmem:[%s1760 + $0x28] sm:$0xff]
        %v1767 = vld [vmem:[%s1760 + $0x30] sm:$0xff]
        %v1768 = vld [vmem:[%s1760 + $0x38] sm:$0xff]
        %v1769 = vld [vmem:[%s1760 + $0x40] sm:$0xff]
        %v1770 = vld [vmem:[%s1760 + $0x48] sm:$0xff]
        %v1771 = vld [vmem:[%s1760 + $0x50] sm:$0xff]
        %v1772 = vld [vmem:[%s1760 + $0x58] sm:$0xff]
        %v1773 = vld [vmem:[%s1760 + $0x60] sm:$0xff]
        %v1774 = vld [vmem:[%s1760 + $0x68] sm:$0xff]
        %v1775 = vld [vmem:[%s1760 + $0x70] sm:$0xff]
        %v1776 = vld [vmem:[%s1760 + $0x78] sm:$0xff]
        %v1777 = vld [vmem:[%s1760 + $0x80] sm:$0xff]
        %v1778 = vld [vmem:[%s1760 + $0x88] sm:$0xff]
        %v1779 = vld [vmem:[%s1760 + $0x90] sm:$0xff]
        %v1780 = vld [vmem:[%s1760 + $0x98] sm:$0xff]
        %v1781 = vld [vmem:[%s1760 + $0xa0] sm:$0xff]
        %v1782 = vld [vmem:[%s1760 + $0xa8] sm:$0xff]
        %v1783 = vld [vmem:[%s1760 + $0xb0] sm:$0xff]
        %v1784 = vld [vmem:[%s1760 + $0xb8] sm:$0xff]
        %v1785 = vld [vmem:[%s1760 + $0xc0] sm:$0xff]
        %v1786 = vld [vmem:[%s1760 + $0xc8] sm:$0xff]
        %v1787 = vld [vmem:[%s1760 + $0xd0] sm:$0xff]
        %v1788 = vld [vmem:[%s1760 + $0xd8] sm:$0xff]
        %v1789 = vld [vmem:[%s1760 + $0xe0] sm:$0xff]
        %v1790 = vld [vmem:[%s1760 + $0xe8] sm:$0xff]
        %v1791 = vld [vmem:[%s1760 + $0xf0] sm:$0xff]
        %v1792 = vld [vmem:[%s1760 + $0xf8] sm:$0xff]
        %v1793 = vld [vmem:[%s1760 + $0x100] sm:$0xff]
        %v1794 = vld [vmem:[%s1760 + $0x108] sm:$0xff]
        %v1795 = vld [vmem:[%s1760 + $0x110] sm:$0xff]
        %v1796 = vld [vmem:[%s1760 + $0x118] sm:$0xff]
        %v1797 = vld [vmem:[%s1760 + $0x120] sm:$0xff]
        %v1798 = vld [vmem:[%s1760 + $0x128] sm:$0xff]
        %v1799 = vld [vmem:[%s1760 + $0x130] sm:$0xff]
        %v1800 = vld [vmem:[%s1760 + $0x138] sm:$0xff]
        %v1801 = vld [vmem:[%s1760 + $0x140] sm:$0xff]
        %v1802 = vld [vmem:[%s1760 + $0x148] sm:$0xff]
        %v1803 = vld [vmem:[%s1760 + $0x150] sm:$0xff]
        %v1804 = vld [vmem:[%s1760 + $0x158] sm:$0xff]
        %v1805 = vld [vmem:[%s1760 + $0x160] sm:$0xff]
        %v1806 = vld [vmem:[%s1760 + $0x168] sm:$0xff]
        %v1807 = vld [vmem:[%s1760 + $0x170] sm:$0xff]
        %v1808 = vld [vmem:[%s1760 + $0x178] sm:$0xff]
        %v1809 = vld [vmem:[%s1760 + $0x180] sm:$0xff]
        %v1810 = vld [vmem:[%s1760 + $0x188] sm:$0xff]
        %v1811 = vld [vmem:[%s1760 + $0x190] sm:$0xff]
        %v1812 = vld [vmem:[%s1760 + $0x198] sm:$0xff]
        %v1813 = vld [vmem:[%s1760 + $0x1a0] sm:$0xff]
        %v1814 = vld [vmem:[%s1760 + $0x1a8] sm:$0xff]
        %v1815 = vld [vmem:[%s1760 + $0x1b0] sm:$0xff]
        %v1816 = vld [vmem:[%s1760 + $0x1b8] sm:$0xff]
        %v1817 = vld [vmem:[%s1760 + $0x1c0] sm:$0xff]
        %v1818 = vld [vmem:[%s1760 + $0x1c8] sm:$0xff]
        %v1819 = vld [vmem:[%s1760 + $0x1d0] sm:$0xff]
        %v1820 = vld [vmem:[%s1760 + $0x1d8] sm:$0xff]
        %v1821 = vld [vmem:[%s1760 + $0x1e0] sm:$0xff]
        %v1822 = vld [vmem:[%s1760 + $0x1e8] sm:$0xff]
        %v1823 = vld [vmem:[%s1760 + $0x1f0] sm:$0xff]
        %v1824 = vld [vmem:[%s1760 + $0x1f8] sm:$0xff]
        %v1825 = vld [vmem:[%s1760 + $0x200] sm:$0xff]
        %v1826 = vld [vmem:[%s1760 + $0x208] sm:$0xff]
        %v1827 = vld [vmem:[%s1760 + $0x210] sm:$0xff]
        %v1828 = vld [vmem:[%s1760 + $0x218] sm:$0xff]
        %v1829 = vld [vmem:[%s1760 + $0x220] sm:$0xff]
        %v1830 = vld [vmem:[%s1760 + $0x228] sm:$0xff]
        %v1831 = vld [vmem:[%s1760 + $0x230] sm:$0xff]
        %v1832 = vld [vmem:[%s1760 + $0x238] sm:$0xff]
        %v1833 = vld [vmem:[%s1760 + $0x240] sm:$0xff]
        %v1834 = vld [vmem:[%s1760 + $0x248] sm:$0xff]
        %v1835 = vld [vmem:[%s1760 + $0x250] sm:$0xff]
        %v1836 = vld [vmem:[%s1760 + $0x258] sm:$0xff]
        %v1837 = vld [vmem:[%s1760 + $0x260] sm:$0xff]
        %v1838 = vld [vmem:[%s1760 + $0x268] sm:$0xff]
        %v1839 = vld [vmem:[%s1760 + $0x270] sm:$0xff]
        %v1840 = vld [vmem:[%s1760 + $0x278] sm:$0xff]
        %v1841 = vld [vmem:[%s1760 + $0x280] sm:$0xff]
        %v1842 = vld [vmem:[%s1760 + $0x288] sm:$0xff]
        %v1843 = vld [vmem:[%s1760 + $0x290] sm:$0xff]
        %v1844 = vld [vmem:[%s1760 + $0x298] sm:$0xff]
        %v1845 = vld [vmem:[%s1760 + $0x2a0] sm:$0xff]
        %v1846 = vld [vmem:[%s1760 + $0x2a8] sm:$0xff]
        %v1847 = vld [vmem:[%s1760 + $0x2b0] sm:$0xff]
        %v1848 = vld [vmem:[%s1760 + $0x2b8] sm:$0xff]
        %v1849 = vld [vmem:[%s1760 + $0x2c0] sm:$0xff]
        %v1850 = vld [vmem:[%s1760 + $0x2c8] sm:$0xff]
        %v1851 = vld [vmem:[%s1760 + $0x2d0] sm:$0xff]
        %v1852 = vld [vmem:[%s1760 + $0x2d8] sm:$0xff]
        %v1853 = vld [vmem:[%s1760 + $0x2e0] sm:$0xff]
        %v1854 = vld [vmem:[%s1760 + $0x2e8] sm:$0xff]
        %v1855 = vld [vmem:[%s1760 + $0x2f0] sm:$0xff]
        %v1856 = vld [vmem:[%s1760 + $0x2f8] sm:$0xff]
        %v1857 = vld [vmem:[%s1760 + $0x300] sm:$0xff]
        %v1858 = vld [vmem:[%s1760 + $0x308] sm:$0xff]
        %v1859 = vld [vmem:[%s1760 + $0x310] sm:$0xff]
        %v1860 = vld [vmem:[%s1760 + $0x318] sm:$0xff]
        %v1861 = vld [vmem:[%s1760 + $0x320] sm:$0xff]
        %v1862 = vld [vmem:[%s1760 + $0x328] sm:$0xff]
        %v1863 = vld [vmem:[%s1760 + $0x330] sm:$0xff]
        %v1864 = vld [vmem:[%s1760 + $0x338] sm:$0xff]
        %v1865 = vld [vmem:[%s1760 + $0x340] sm:$0xff]
        %v1866 = vld [vmem:[%s1760 + $0x348] sm:$0xff]
        %v1867 = vld [vmem:[%s1760 + $0x350] sm:$0xff]
        %v1868 = vld [vmem:[%s1760 + $0x358] sm:$0xff]
        %v1869 = vld [vmem:[%s1760 + $0x360] sm:$0xff]
        %v1870 = vld [vmem:[%s1760 + $0x368] sm:$0xff]
        %v1871 = vld [vmem:[%s1760 + $0x370] sm:$0xff]
        %v1872 = vld [vmem:[%s1760 + $0x378] sm:$0xff]
        %1873 = vmatpush.msra.mxu0 0.0
        %1874 = vmatpush.msra.mxu0 0.0
        %1875 = vmatpush.msra.mxu0 0.0
        %1876 = vmatpush.msra.mxu0 0.0
        %1877 = vmatpush.msra.mxu0 0.0
        %1878 = vmatpush.msra.mxu0 0.0
        %1879 = vmatpush.msra.mxu0 0.0
        %1880 = vmatpush.msra.mxu0 0.0
        %1881 = vmatpush.msra.mxu0 0.0
        %1882 = vmatpush.msra.mxu0 %v1857
        %1883 = vmatpush.msra.mxu0 %v1841
        %1884 = vmatpush.msra.mxu0 %v1825
        %1885 = vmatpush.msra.mxu0 %v1809
        %1886 = vmatpush.msra.mxu0 %v1793
        %1887 = vmatpush.msra.mxu0 %v1777
        %1888 = vmatpush.msra.mxu0 %v1761
        %1889 = vmatmul.f32.gmra.mxu0 %v343
        %v1890 = vpop.f32.mrf.mxu0
        %v1891 = vadd.f32 0.0, %v1890
        %1892 = vmatmul.f32.gmra.mxu0 %v346
        %v1893 = vpop.f32.mrf.mxu0
        %v1894 = vadd.f32 0.0, %v1893
        %1895 = vmatmul.f32.gmra.mxu0 %v349
        %v1896 = vpop.f32.mrf.mxu0
        %v1897 = vadd.f32 0.0, %v1896
        %1898 = vmatmul.f32.gmra.mxu0 %v352
        %v1899 = vpop.f32.mrf.mxu0
        %v1900 = vadd.f32 0.0, %v1899
        %1901 = vdwg.mxu0
        %1902 = vmatpush.msra.mxu0 0.0
        %1903 = vmatpush.msra.mxu0 0.0
        %1904 = vmatpush.msra.mxu0 0.0
        %1905 = vmatpush.msra.mxu0 0.0
        %1906 = vmatpush.msra.mxu0 0.0
        %1907 = vmatpush.msra.mxu0 0.0
        %1908 = vmatpush.msra.mxu0 0.0
        %1909 = vmatpush.msra.mxu0 0.0
        %1910 = vmatpush.msra.mxu0 0.0
        %1911 = vmatpush.msra.mxu0 %v1858
        %1912 = vmatpush.msra.mxu0 %v1842
        %1913 = vmatpush.msra.mxu0 %v1826
        %1914 = vmatpush.msra.mxu0 %v1810
        %1915 = vmatpush.msra.mxu0 %v1794
        %1916 = vmatpush.msra.mxu0 %v1778
        %1917 = vmatpush.msra.mxu0 %v1762
        %1918 = vmatmul.f32.gmra.mxu0 %v343
        %v1919 = vpop.f32.mrf.mxu0
        %v1920 = vadd.f32 0.0, %v1919
        %1921 = vmatmul.f32.gmra.mxu0 %v346
        %v1922 = vpop.f32.mrf.mxu0
        %v1923 = vadd.f32 0.0, %v1922
        %1924 = vmatmul.f32.gmra.mxu0 %v349
        %v1925 = vpop.f32.mrf.mxu0
        %v1926 = vadd.f32 0.0, %v1925
        %1927 = vmatmul.f32.gmra.mxu0 %v352
        %v1928 = vpop.f32.mrf.mxu0
        %v1929 = vadd.f32 0.0, %v1928
        %1930 = vdwg.mxu0
        %1931 = vmatpush.msra.mxu0 0.0
        %1932 = vmatpush.msra.mxu0 0.0
        %1933 = vmatpush.msra.mxu0 0.0
        %1934 = vmatpush.msra.mxu0 0.0
        %1935 = vmatpush.msra.mxu0 0.0
        %1936 = vmatpush.msra.mxu0 0.0
        %1937 = vmatpush.msra.mxu0 0.0
        %1938 = vmatpush.msra.mxu0 0.0
        %1939 = vmatpush.msra.mxu0 0.0
        %1940 = vmatpush.msra.mxu0 %v1859
        %1941 = vmatpush.msra.mxu0 %v1843
        %1942 = vmatpush.msra.mxu0 %v1827
        %1943 = vmatpush.msra.mxu0 %v1811
        %1944 = vmatpush.msra.mxu0 %v1795
        %1945 = vmatpush.msra.mxu0 %v1779
        %1946 = vmatpush.msra.mxu0 %v1763
        %1947 = vmatmul.f32.gmra.mxu0 %v343
        %v1948 = vpop.f32.mrf.mxu0
        %v1949 = vadd.f32 0.0, %v1948
        %1950 = vmatmul.f32.gmra.mxu0 %v346
        %v1951 = vpop.f32.mrf.mxu0
        %v1952 = vadd.f32 0.0, %v1951
        %1953 = vmatmul.f32.gmra.mxu0 %v349
        %v1954 = vpop.f32.mrf.mxu0
        %v1955 = vadd.f32 0.0, %v1954
        %1956 = vmatmul.f32.gmra.mxu0 %v352
        %v1957 = vpop.f32.mrf.mxu0
        %v1958 = vadd.f32 0.0, %v1957
        %1959 = vdwg.mxu0
        %1960 = vmatpush.msra.mxu0 0.0
        %1961 = vmatpush.msra.mxu0 0.0
        %1962 = vmatpush.msra.mxu0 0.0
        %1963 = vmatpush.msra.mxu0 0.0
        %1964 = vmatpush.msra.mxu0 0.0
        %1965 = vmatpush.msra.mxu0 0.0
        %1966 = vmatpush.msra.mxu0 0.0
        %1967 = vmatpush.msra.mxu0 0.0
        %1968 = vmatpush.msra.mxu0 0.0
        %1969 = vmatpush.msra.mxu0 %v1860
        %1970 = vmatpush.msra.mxu0 %v1844
        %1971 = vmatpush.msra.mxu0 %v1828
        %1972 = vmatpush.msra.mxu0 %v1812
        %1973 = vmatpush.msra.mxu0 %v1796
        %1974 = vmatpush.msra.mxu0 %v1780
        %1975 = vmatpush.msra.mxu0 %v1764
        %1976 = vmatmul.f32.gmra.mxu0 %v343
        %v1977 = vpop.f32.mrf.mxu0
        %v1978 = vadd.f32 0.0, %v1977
        %1979 = vmatmul.f32.gmra.mxu0 %v346
        %v1980 = vpop.f32.mrf.mxu0
        %v1981 = vadd.f32 0.0, %v1980
        %1982 = vmatmul.f32.gmra.mxu0 %v349
        %v1983 = vpop.f32.mrf.mxu0
        %v1984 = vadd.f32 0.0, %v1983
        %1985 = vmatmul.f32.gmra.mxu0 %v352
        %v1986 = vpop.f32.mrf.mxu0
        %v1987 = vadd.f32 0.0, %v1986
        %1988 = vdwg.mxu0
        %1989 = vmatpush.msra.mxu0 0.0
        %1990 = vmatpush.msra.mxu0 0.0
        %1991 = vmatpush.msra.mxu0 0.0
        %1992 = vmatpush.msra.mxu0 0.0
        %1993 = vmatpush.msra.mxu0 0.0
        %1994 = vmatpush.msra.mxu0 0.0
        %1995 = vmatpush.msra.mxu0 0.0
        %1996 = vmatpush.msra.mxu0 0.0
        %1997 = vmatpush.msra.mxu0 0.0
        %1998 = vmatpush.msra.mxu0 %v1861
        %1999 = vmatpush.msra.mxu0 %v1845
        %2000 = vmatpush.msra.mxu0 %v1829
        %2001 = vmatpush.msra.mxu0 %v1813
        %2002 = vmatpush.msra.mxu0 %v1797
        %2003 = vmatpush.msra.mxu0 %v1781
        %2004 = vmatpush.msra.mxu0 %v1765
        %2005 = vmatmul.f32.gmra.mxu0 %v343
        %v2006 = vpop.f32.mrf.mxu0
        %v2007 = vadd.f32 0.0, %v2006
        %2008 = vmatmul.f32.gmra.mxu0 %v346
        %v2009 = vpop.f32.mrf.mxu0
        %v2010 = vadd.f32 0.0, %v2009
        %2011 = vmatmul.f32.gmra.mxu0 %v349
        %v2012 = vpop.f32.mrf.mxu0
        %v2013 = vadd.f32 0.0, %v2012
        %2014 = vmatmul.f32.gmra.mxu0 %v352
        %v2015 = vpop.f32.mrf.mxu0
        %v2016 = vadd.f32 0.0, %v2015
        %2017 = vdwg.mxu0
        %2018 = vmatpush.msra.mxu0 0.0
        %2019 = vmatpush.msra.mxu0 0.0
        %2020 = vmatpush.msra.mxu0 0.0
        %2021 = vmatpush.msra.mxu0 0.0
        %2022 = vmatpush.msra.mxu0 0.0
        %2023 = vmatpush.msra.mxu0 0.0
        %2024 = vmatpush.msra.mxu0 0.0
        %2025 = vmatpush.msra.mxu0 0.0
        %2026 = vmatpush.msra.mxu0 0.0
        %2027 = vmatpush.msra.mxu0 %v1862
        %2028 = vmatpush.msra.mxu0 %v1846
        %2029 = vmatpush.msra.mxu0 %v1830
        %2030 = vmatpush.msra.mxu0 %v1814
        %2031 = vmatpush.msra.mxu0 %v1798
        %2032 = vmatpush.msra.mxu0 %v1782
        %2033 = vmatpush.msra.mxu0 %v1766
        %2034 = vmatmul.f32.gmra.mxu0 %v343
        %v2035 = vpop.f32.mrf.mxu0
        %v2036 = vadd.f32 0.0, %v2035
        %2037 = vmatmul.f32.gmra.mxu0 %v346
        %v2038 = vpop.f32.mrf.mxu0
        %v2039 = vadd.f32 0.0, %v2038
        %2040 = vmatmul.f32.gmra.mxu0 %v349
        %v2041 = vpop.f32.mrf.mxu0
        %v2042 = vadd.f32 0.0, %v2041
        %2043 = vmatmul.f32.gmra.mxu0 %v352
        %v2044 = vpop.f32.mrf.mxu0
        %v2045 = vadd.f32 0.0, %v2044
        %2046 = vdwg.mxu0
        %2047 = vmatpush.msra.mxu0 0.0
        %2048 = vmatpush.msra.mxu0 0.0
        %2049 = vmatpush.msra.mxu0 0.0
        %2050 = vmatpush.msra.mxu0 0.0
        %2051 = vmatpush.msra.mxu0 0.0
        %2052 = vmatpush.msra.mxu0 0.0
        %2053 = vmatpush.msra.mxu0 0.0
        %2054 = vmatpush.msra.mxu0 0.0
        %2055 = vmatpush.msra.mxu0 0.0
        %2056 = vmatpush.msra.mxu0 %v1863
        %2057 = vmatpush.msra.mxu0 %v1847
        %2058 = vmatpush.msra.mxu0 %v1831
        %2059 = vmatpush.msra.mxu0 %v1815
        %2060 = vmatpush.msra.mxu0 %v1799
        %2061 = vmatpush.msra.mxu0 %v1783
        %2062 = vmatpush.msra.mxu0 %v1767
        %2063 = vmatmul.f32.gmra.mxu0 %v343
        %v2064 = vpop.f32.mrf.mxu0
        %v2065 = vadd.f32 0.0, %v2064
        %2066 = vmatmul.f32.gmra.mxu0 %v346
        %v2067 = vpop.f32.mrf.mxu0
        %v2068 = vadd.f32 0.0, %v2067
        %2069 = vmatmul.f32.gmra.mxu0 %v349
        %v2070 = vpop.f32.mrf.mxu0
        %v2071 = vadd.f32 0.0, %v2070
        %2072 = vmatmul.f32.gmra.mxu0 %v352
        %v2073 = vpop.f32.mrf.mxu0
        %v2074 = vadd.f32 0.0, %v2073
        %2075 = vdwg.mxu0
        %2076 = vmatpush.msra.mxu0 0.0
        %2077 = vmatpush.msra.mxu0 0.0
        %2078 = vmatpush.msra.mxu0 0.0
        %2079 = vmatpush.msra.mxu0 0.0
        %2080 = vmatpush.msra.mxu0 0.0
        %2081 = vmatpush.msra.mxu0 0.0
        %2082 = vmatpush.msra.mxu0 0.0
        %2083 = vmatpush.msra.mxu0 0.0
        %2084 = vmatpush.msra.mxu0 0.0
        %2085 = vmatpush.msra.mxu0 %v1864
        %2086 = vmatpush.msra.mxu0 %v1848
        %2087 = vmatpush.msra.mxu0 %v1832
        %2088 = vmatpush.msra.mxu0 %v1816
        %2089 = vmatpush.msra.mxu0 %v1800
        %2090 = vmatpush.msra.mxu0 %v1784
        %2091 = vmatpush.msra.mxu0 %v1768
        %2092 = vmatmul.f32.gmra.mxu0 %v343
        %v2093 = vpop.f32.mrf.mxu0
        %v2094 = vadd.f32 0.0, %v2093
        %2095 = vmatmul.f32.gmra.mxu0 %v346
        %v2096 = vpop.f32.mrf.mxu0
        %v2097 = vadd.f32 0.0, %v2096
        %2098 = vmatmul.f32.gmra.mxu0 %v349
        %v2099 = vpop.f32.mrf.mxu0
        %v2100 = vadd.f32 0.0, %v2099
        %2101 = vmatmul.f32.gmra.mxu0 %v352
        %v2102 = vpop.f32.mrf.mxu0
        %v2103 = vadd.f32 0.0, %v2102
        %2104 = vdwg.mxu0
        %2105 = vmatpush.msra.mxu0 0.0
        %2106 = vmatpush.msra.mxu0 0.0
        %2107 = vmatpush.msra.mxu0 0.0
        %2108 = vmatpush.msra.mxu0 0.0
        %2109 = vmatpush.msra.mxu0 0.0
        %2110 = vmatpush.msra.mxu0 0.0
        %2111 = vmatpush.msra.mxu0 0.0
        %2112 = vmatpush.msra.mxu0 0.0
        %2113 = vmatpush.msra.mxu0 0.0
        %2114 = vmatpush.msra.mxu0 %v1865
        %2115 = vmatpush.msra.mxu0 %v1849
        %2116 = vmatpush.msra.mxu0 %v1833
        %2117 = vmatpush.msra.mxu0 %v1817
        %2118 = vmatpush.msra.mxu0 %v1801
        %2119 = vmatpush.msra.mxu0 %v1785
        %2120 = vmatpush.msra.mxu0 %v1769
        %2121 = vmatmul.f32.gmra.mxu0 %v343
        %v2122 = vpop.f32.mrf.mxu0
        %v2123 = vadd.f32 0.0, %v2122
        %2124 = vmatmul.f32.gmra.mxu0 %v346
        %v2125 = vpop.f32.mrf.mxu0
        %v2126 = vadd.f32 0.0, %v2125
        %2127 = vmatmul.f32.gmra.mxu0 %v349
        %v2128 = vpop.f32.mrf.mxu0
        %v2129 = vadd.f32 0.0, %v2128
        %2130 = vmatmul.f32.gmra.mxu0 %v352
        %v2131 = vpop.f32.mrf.mxu0
        %v2132 = vadd.f32 0.0, %v2131
        %2133 = vdwg.mxu0
        %2134 = vmatpush.msra.mxu0 0.0
        %2135 = vmatpush.msra.mxu0 0.0
        %2136 = vmatpush.msra.mxu0 0.0
        %2137 = vmatpush.msra.mxu0 0.0
        %2138 = vmatpush.msra.mxu0 0.0
        %2139 = vmatpush.msra.mxu0 0.0
        %2140 = vmatpush.msra.mxu0 0.0
        %2141 = vmatpush.msra.mxu0 0.0
        %2142 = vmatpush.msra.mxu0 0.0
        %2143 = vmatpush.msra.mxu0 %v1866
        %2144 = vmatpush.msra.mxu0 %v1850
        %2145 = vmatpush.msra.mxu0 %v1834
        %2146 = vmatpush.msra.mxu0 %v1818
        %2147 = vmatpush.msra.mxu0 %v1802
        %2148 = vmatpush.msra.mxu0 %v1786
        %2149 = vmatpush.msra.mxu0 %v1770
        %2150 = vmatmul.f32.gmra.mxu0 %v343
        %v2151 = vpop.f32.mrf.mxu0
        %v2152 = vadd.f32 0.0, %v2151
        %2153 = vmatmul.f32.gmra.mxu0 %v346
        %v2154 = vpop.f32.mrf.mxu0
        %v2155 = vadd.f32 0.0, %v2154
        %2156 = vmatmul.f32.gmra.mxu0 %v349
        %v2157 = vpop.f32.mrf.mxu0
        %v2158 = vadd.f32 0.0, %v2157
        %2159 = vmatmul.f32.gmra.mxu0 %v352
        %v2160 = vpop.f32.mrf.mxu0
        %v2161 = vadd.f32 0.0, %v2160
        %2162 = vdwg.mxu0
        %2163 = vmatpush.msra.mxu0 0.0
        %2164 = vmatpush.msra.mxu0 0.0
        %2165 = vmatpush.msra.mxu0 0.0
        %2166 = vmatpush.msra.mxu0 0.0
        %2167 = vmatpush.msra.mxu0 0.0
        %2168 = vmatpush.msra.mxu0 0.0
        %2169 = vmatpush.msra.mxu0 0.0
        %2170 = vmatpush.msra.mxu0 0.0
        %2171 = vmatpush.msra.mxu0 0.0
        %2172 = vmatpush.msra.mxu0 %v1867
        %2173 = vmatpush.msra.mxu0 %v1851
        %2174 = vmatpush.msra.mxu0 %v1835
        %2175 = vmatpush.msra.mxu0 %v1819
        %2176 = vmatpush.msra.mxu0 %v1803
        %2177 = vmatpush.msra.mxu0 %v1787
        %2178 = vmatpush.msra.mxu0 %v1771
        %2179 = vmatmul.f32.gmra.mxu0 %v343
        %v2180 = vpop.f32.mrf.mxu0
        %v2181 = vadd.f32 0.0, %v2180
        %2182 = vmatmul.f32.gmra.mxu0 %v346
        %v2183 = vpop.f32.mrf.mxu0
        %v2184 = vadd.f32 0.0, %v2183
        %2185 = vmatmul.f32.gmra.mxu0 %v349
        %v2186 = vpop.f32.mrf.mxu0
        %v2187 = vadd.f32 0.0, %v2186
        %2188 = vmatmul.f32.gmra.mxu0 %v352
        %v2189 = vpop.f32.mrf.mxu0
        %v2190 = vadd.f32 0.0, %v2189
        %2191 = vdwg.mxu0
        %2192 = vmatpush.msra.mxu0 0.0
        %2193 = vmatpush.msra.mxu0 0.0
        %2194 = vmatpush.msra.mxu0 0.0
        %2195 = vmatpush.msra.mxu0 0.0
        %2196 = vmatpush.msra.mxu0 0.0
        %2197 = vmatpush.msra.mxu0 0.0
        %2198 = vmatpush.msra.mxu0 0.0
        %2199 = vmatpush.msra.mxu0 0.0
        %2200 = vmatpush.msra.mxu0 0.0
        %2201 = vmatpush.msra.mxu0 %v1868
        %2202 = vmatpush.msra.mxu0 %v1852
        %2203 = vmatpush.msra.mxu0 %v1836
        %2204 = vmatpush.msra.mxu0 %v1820
        %2205 = vmatpush.msra.mxu0 %v1804
        %2206 = vmatpush.msra.mxu0 %v1788
        %2207 = vmatpush.msra.mxu0 %v1772
        %2208 = vmatmul.f32.gmra.mxu0 %v343
        %v2209 = vpop.f32.mrf.mxu0
        %v2210 = vadd.f32 0.0, %v2209
        %2211 = vmatmul.f32.gmra.mxu0 %v346
        %v2212 = vpop.f32.mrf.mxu0
        %v2213 = vadd.f32 0.0, %v2212
        %2214 = vmatmul.f32.gmra.mxu0 %v349
        %v2215 = vpop.f32.mrf.mxu0
        %v2216 = vadd.f32 0.0, %v2215
        %2217 = vmatmul.f32.gmra.mxu0 %v352
        %v2218 = vpop.f32.mrf.mxu0
        %v2219 = vadd.f32 0.0, %v2218
        %2220 = vdwg.mxu0
        %2221 = vmatpush.msra.mxu0 0.0
        %2222 = vmatpush.msra.mxu0 0.0
        %2223 = vmatpush.msra.mxu0 0.0
        %2224 = vmatpush.msra.mxu0 0.0
        %2225 = vmatpush.msra.mxu0 0.0
        %2226 = vmatpush.msra.mxu0 0.0
        %2227 = vmatpush.msra.mxu0 0.0
        %2228 = vmatpush.msra.mxu0 0.0
        %2229 = vmatpush.msra.mxu0 0.0
        %2230 = vmatpush.msra.mxu0 %v1869
        %2231 = vmatpush.msra.mxu0 %v1853
        %2232 = vmatpush.msra.mxu0 %v1837
        %2233 = vmatpush.msra.mxu0 %v1821
        %2234 = vmatpush.msra.mxu0 %v1805
        %2235 = vmatpush.msra.mxu0 %v1789
        %2236 = vmatpush.msra.mxu0 %v1773
        %2237 = vmatmul.f32.gmra.mxu0 %v343
        %v2238 = vpop.f32.mrf.mxu0
        %v2239 = vadd.f32 0.0, %v2238
        %2240 = vmatmul.f32.gmra.mxu0 %v346
        %v2241 = vpop.f32.mrf.mxu0
        %v2242 = vadd.f32 0.0, %v2241
        %2243 = vmatmul.f32.gmra.mxu0 %v349
        %v2244 = vpop.f32.mrf.mxu0
        %v2245 = vadd.f32 0.0, %v2244
        %2246 = vmatmul.f32.gmra.mxu0 %v352
        %v2247 = vpop.f32.mrf.mxu0
        %v2248 = vadd.f32 0.0, %v2247
        %2249 = vdwg.mxu0
        %2250 = vmatpush.msra.mxu0 0.0
        %2251 = vmatpush.msra.mxu0 0.0
        %2252 = vmatpush.msra.mxu0 0.0
        %2253 = vmatpush.msra.mxu0 0.0
        %2254 = vmatpush.msra.mxu0 0.0
        %2255 = vmatpush.msra.mxu0 0.0
        %2256 = vmatpush.msra.mxu0 0.0
        %2257 = vmatpush.msra.mxu0 0.0
        %2258 = vmatpush.msra.mxu0 0.0
        %2259 = vmatpush.msra.mxu0 %v1870
        %2260 = vmatpush.msra.mxu0 %v1854
        %2261 = vmatpush.msra.mxu0 %v1838
        %2262 = vmatpush.msra.mxu0 %v1822
        %2263 = vmatpush.msra.mxu0 %v1806
        %2264 = vmatpush.msra.mxu0 %v1790
        %2265 = vmatpush.msra.mxu0 %v1774
        %2266 = vmatmul.f32.gmra.mxu0 %v343
        %v2267 = vpop.f32.mrf.mxu0
        %v2268 = vadd.f32 0.0, %v2267
        %2269 = vmatmul.f32.gmra.mxu0 %v346
        %v2270 = vpop.f32.mrf.mxu0
        %v2271 = vadd.f32 0.0, %v2270
        %2272 = vmatmul.f32.gmra.mxu0 %v349
        %v2273 = vpop.f32.mrf.mxu0
        %v2274 = vadd.f32 0.0, %v2273
        %2275 = vmatmul.f32.gmra.mxu0 %v352
        %v2276 = vpop.f32.mrf.mxu0
        %v2277 = vadd.f32 0.0, %v2276
        %2278 = vdwg.mxu0
        %2279 = vmatpush.msra.mxu0 0.0
        %2280 = vmatpush.msra.mxu0 0.0
        %2281 = vmatpush.msra.mxu0 0.0
        %2282 = vmatpush.msra.mxu0 0.0
        %2283 = vmatpush.msra.mxu0 0.0
        %2284 = vmatpush.msra.mxu0 0.0
        %2285 = vmatpush.msra.mxu0 0.0
        %2286 = vmatpush.msra.mxu0 0.0
        %2287 = vmatpush.msra.mxu0 0.0
        %2288 = vmatpush.msra.mxu0 %v1871
        %2289 = vmatpush.msra.mxu0 %v1855
        %2290 = vmatpush.msra.mxu0 %v1839
        %2291 = vmatpush.msra.mxu0 %v1823
        %2292 = vmatpush.msra.mxu0 %v1807
        %2293 = vmatpush.msra.mxu0 %v1791
        %2294 = vmatpush.msra.mxu0 %v1775
        %2295 = vmatmul.f32.gmra.mxu0 %v343
        %v2296 = vpop.f32.mrf.mxu0
        %v2297 = vadd.f32 0.0, %v2296
        %2298 = vmatmul.f32.gmra.mxu0 %v346
        %v2299 = vpop.f32.mrf.mxu0
        %v2300 = vadd.f32 0.0, %v2299
        %2301 = vmatmul.f32.gmra.mxu0 %v349
        %v2302 = vpop.f32.mrf.mxu0
        %v2303 = vadd.f32 0.0, %v2302
        %2304 = vmatmul.f32.gmra.mxu0 %v352
        %v2305 = vpop.f32.mrf.mxu0
        %v2306 = vadd.f32 0.0, %v2305
        %2307 = vdwg.mxu0
        %2308 = vmatpush.msra.mxu0 0.0
        %2309 = vmatpush.msra.mxu0 0.0
        %2310 = vmatpush.msra.mxu0 0.0
        %2311 = vmatpush.msra.mxu0 0.0
        %2312 = vmatpush.msra.mxu0 0.0
        %2313 = vmatpush.msra.mxu0 0.0
        %2314 = vmatpush.msra.mxu0 0.0
        %2315 = vmatpush.msra.mxu0 0.0
        %2316 = vmatpush.msra.mxu0 0.0
        %2317 = vmatpush.msra.mxu0 %v1872
        %2318 = vmatpush.msra.mxu0 %v1856
        %2319 = vmatpush.msra.mxu0 %v1840
        %2320 = vmatpush.msra.mxu0 %v1824
        %2321 = vmatpush.msra.mxu0 %v1808
        %2322 = vmatpush.msra.mxu0 %v1792
        %2323 = vmatpush.msra.mxu0 %v1776
        %2324 = vmatmul.f32.gmra.mxu0 %v343
        %v2325 = vpop.f32.mrf.mxu0
        %v2326 = vadd.f32 0.0, %v2325
        %2327 = vmatmul.f32.gmra.mxu0 %v346
        %v2328 = vpop.f32.mrf.mxu0
        %v2329 = vadd.f32 0.0, %v2328
        %2330 = vmatmul.f32.gmra.mxu0 %v349
        %v2331 = vpop.f32.mrf.mxu0
        %v2332 = vadd.f32 0.0, %v2331
        %2333 = vmatmul.f32.gmra.mxu0 %v352
        %v2334 = vpop.f32.mrf.mxu0
        %v2335 = vadd.f32 0.0, %v2334
        %2336 = vdwg.mxu0
        %v2337 = vmax.f32 %v1891, %v2007
        %v2338 = vmax.f32 %v1920, %v2036
        %v2339 = vmax.f32 %v1949, %v2065
        %v2340 = vmax.f32 %v1978, %v2094
        %v2341 = vmax.f32 %v1894, %v2010
        %v2342 = vmax.f32 %v1923, %v2039
        %v2343 = vmax.f32 %v1952, %v2068
        %v2344 = vmax.f32 %v1981, %v2097
        %v2345 = vmax.f32 %v1897, %v2013
        %v2346 = vmax.f32 %v1926, %v2042
        %v2347 = vmax.f32 %v1955, %v2071
        %v2348 = vmax.f32 %v1984, %v2100
        %v2349 = vmax.f32 %v1900, %v2016
        %v2350 = vmax.f32 %v1929, %v2045
        %v2351 = vmax.f32 %v1958, %v2074
        %v2352 = vmax.f32 %v1987, %v2103
        %v2353 = vmax.f32 %v2123, %v2239
        %v2354 = vmax.f32 %v2152, %v2268
        %v2355 = vmax.f32 %v2181, %v2297
        %v2356 = vmax.f32 %v2210, %v2326
        %v2357 = vmax.f32 %v2126, %v2242
        %v2358 = vmax.f32 %v2155, %v2271
        %v2359 = vmax.f32 %v2184, %v2300
        %v2360 = vmax.f32 %v2213, %v2329
        %v2361 = vmax.f32 %v2129, %v2245
        %v2362 = vmax.f32 %v2158, %v2274
        %v2363 = vmax.f32 %v2187, %v2303
        %v2364 = vmax.f32 %v2216, %v2332
        %v2365 = vmax.f32 %v2132, %v2248
        %v2366 = vmax.f32 %v2161, %v2277
        %v2367 = vmax.f32 %v2190, %v2306
        %v2368 = vmax.f32 %v2219, %v2335
        %v2369 = vmax.f32 %v2337, %v2353
        %v2370 = vmax.f32 %v2338, %v2354
        %v2371 = vmax.f32 %v2339, %v2355
        %v2372 = vmax.f32 %v2340, %v2356
        %v2373 = vmax.f32 %v2341, %v2357
        %v2374 = vmax.f32 %v2342, %v2358
        %v2375 = vmax.f32 %v2343, %v2359
        %v2376 = vmax.f32 %v2344, %v2360
        %v2377 = vmax.f32 %v2345, %v2361
        %v2378 = vmax.f32 %v2346, %v2362
        %v2379 = vmax.f32 %v2347, %v2363
        %v2380 = vmax.f32 %v2348, %v2364
        %v2381 = vmax.f32 %v2349, %v2365
        %v2382 = vmax.f32 %v2350, %v2366
        %v2383 = vmax.f32 %v2351, %v2367
        %v2384 = vmax.f32 %v2352, %v2368
        %v2385 = vld [vmem:[#allocation2] sm:$0xff]
        %v2386 = vld [vmem:[#allocation2 + $0x8] sm:$0xff]
        %v2387 = vld [vmem:[#allocation2 + $0x10] sm:$0xff]
        %v2388 = vld [vmem:[#allocation2 + $0x18] sm:$0xff]
        %v2389 = vld [vmem:[#allocation2 + $0x20] sm:$0xff]
        %v2390 = vld [vmem:[#allocation2 + $0x28] sm:$0xff]
        %v2391 = vld [vmem:[#allocation2 + $0x30] sm:$0xff]
        %v2392 = vld [vmem:[#allocation2 + $0x38] sm:$0xff]
        %v2393 = vld [vmem:[#allocation2 + $0x40] sm:$0xff]
        %v2394 = vld [vmem:[#allocation2 + $0x48] sm:$0xff]
        %v2395 = vld [vmem:[#allocation2 + $0x50] sm:$0xff]
        %v2396 = vld [vmem:[#allocation2 + $0x58] sm:$0xff]
        %v2397 = vld [vmem:[#allocation2 + $0x60] sm:$0xff]
        %v2398 = vld [vmem:[#allocation2 + $0x68] sm:$0xff]
        %v2399 = vld [vmem:[#allocation2 + $0x70] sm:$0xff]
        %v2400 = vld [vmem:[#allocation2 + $0x78] sm:$0xff]
        %v2401 = vmul.f32 %v2385, 0.9
        %v2402 = vmul.f32 %v2386, 0.9
        %v2403 = vmul.f32 %v2387, 0.9
        %v2404 = vmul.f32 %v2388, 0.9
        %v2405 = vmul.f32 %v2389, 0.9
        %v2406 = vmul.f32 %v2390, 0.9
        %v2407 = vmul.f32 %v2391, 0.9
        %v2408 = vmul.f32 %v2392, 0.9
        %v2409 = vmul.f32 %v2393, 0.9
        %v2410 = vmul.f32 %v2394, 0.9
        %v2411 = vmul.f32 %v2395, 0.9
        %v2412 = vmul.f32 %v2396, 0.9
        %v2413 = vmul.f32 %v2397, 0.9
        %v2414 = vmul.f32 %v2398, 0.9
        %v2415 = vmul.f32 %v2399, 0.9
        %v2416 = vmul.f32 %v2400, 0.9
        %v2417 = vadd.f32 %v2401, %v2369
        %v2418 = vadd.f32 %v2402, %v2370
        %v2419 = vadd.f32 %v2403, %v2371
        %v2420 = vadd.f32 %v2404, %v2372
        %v2421 = vadd.f32 %v2405, %v2373
        %v2422 = vadd.f32 %v2406, %v2374
        %v2423 = vadd.f32 %v2407, %v2375
        %v2424 = vadd.f32 %v2408, %v2376
        %v2425 = vadd.f32 %v2409, %v2377
        %v2426 = vadd.f32 %v2410, %v2378
        %v2427 = vadd.f32 %v2411, %v2379
        %v2428 = vadd.f32 %v2412, %v2380
        %v2429 = vadd.f32 %v2413, %v2381
        %v2430 = vadd.f32 %v2414, %v2382
        %v2431 = vadd.f32 %v2415, %v2383
        %v2432 = vadd.f32 %v2416, %v2384
        %vm2433 = vcmp.gt.f32.partialorder %v2385, 1.0
        %vm2434 = vcmp.gt.f32.partialorder %v2386, 1.0
        %vm2435 = vcmp.gt.f32.partialorder %v2387, 1.0
        %vm2436 = vcmp.gt.f32.partialorder %v2388, 1.0
        %vm2437 = vcmp.gt.f32.partialorder %v2389, 1.0
        %vm2438 = vcmp.gt.f32.partialorder %v2390, 1.0
        %vm2439 = vcmp.gt.f32.partialorder %v2391, 1.0
        %vm2440 = vcmp.gt.f32.partialorder %v2392, 1.0
        %vm2441 = vcmp.gt.f32.partialorder %v2393, 1.0
        %vm2442 = vcmp.gt.f32.partialorder %v2394, 1.0
        %vm2443 = vcmp.gt.f32.partialorder %v2395, 1.0
        %vm2444 = vcmp.gt.f32.partialorder %v2396, 1.0
        %vm2445 = vcmp.gt.f32.partialorder %v2397, 1.0
        %vm2446 = vcmp.gt.f32.partialorder %v2398, 1.0
        %vm2447 = vcmp.gt.f32.partialorder %v2399, 1.0
        %vm2448 = vcmp.gt.f32.partialorder %v2400, 1.0
        %v2449 = vsel %vm2433, 1, 0
        %v2450 = vsel %vm2434, 1, 0
        %v2451 = vsel %vm2435, 1, 0
        %v2452 = vsel %vm2436, 1, 0
        %v2453 = vsel %vm2437, 1, 0
        %v2454 = vsel %vm2438, 1, 0
        %v2455 = vsel %vm2439, 1, 0
        %v2456 = vsel %vm2440, 1, 0
        %v2457 = vsel %vm2441, 1, 0
        %v2458 = vsel %vm2442, 1, 0
        %v2459 = vsel %vm2443, 1, 0
        %v2460 = vsel %vm2444, 1, 0
        %v2461 = vsel %vm2445, 1, 0
        %v2462 = vsel %vm2446, 1, 0
        %v2463 = vsel %vm2447, 1, 0
        %v2464 = vsel %vm2448, 1, 0
        %v2465 = vcvt.s32.f32 %v2449
        %v2466 = vcvt.s32.f32 %v2450
        %v2467 = vcvt.s32.f32 %v2451
        %v2468 = vcvt.s32.f32 %v2452
        %v2469 = vcvt.s32.f32 %v2453
        %v2470 = vcvt.s32.f32 %v2454
        %v2471 = vcvt.s32.f32 %v2455
        %v2472 = vcvt.s32.f32 %v2456
        %v2473 = vcvt.s32.f32 %v2457
        %v2474 = vcvt.s32.f32 %v2458
        %v2475 = vcvt.s32.f32 %v2459
        %v2476 = vcvt.s32.f32 %v2460
        %v2477 = vcvt.s32.f32 %v2461
        %v2478 = vcvt.s32.f32 %v2462
        %v2479 = vcvt.s32.f32 %v2463
        %v2480 = vcvt.s32.f32 %v2464
        %v2481 = vsub.f32 %v2417, %v2465
        %v2482 = vsub.f32 %v2418, %v2466
        %v2483 = vsub.f32 %v2419, %v2467
        %v2484 = vsub.f32 %v2420, %v2468
        %v2485 = vsub.f32 %v2421, %v2469
        %v2486 = vsub.f32 %v2422, %v2470
        %v2487 = vsub.f32 %v2423, %v2471
        %v2488 = vsub.f32 %v2424, %v2472
        %v2489 = vsub.f32 %v2425, %v2473
        %v2490 = vsub.f32 %v2426, %v2474
        %v2491 = vsub.f32 %v2427, %v2475
        %v2492 = vsub.f32 %v2428, %v2476
        %v2493 = vsub.f32 %v2429, %v2477
        %v2494 = vsub.f32 %v2430, %v2478
        %v2495 = vsub.f32 %v2431, %v2479
        %v2496 = vsub.f32 %v2432, %v2480
        %2497 = vst [vmem:[#allocation2] sm:$0xff] %v2481
        %2498 = vst [vmem:[#allocation2 + $0x8] sm:$0xff] %v2482
        %2499 = vst [vmem:[#allocation2 + $0x10] sm:$0xff] %v2483
        %2500 = vst [vmem:[#allocation2 + $0x18] sm:$0xff] %v2484
        %2501 = vst [vmem:[#allocation2 + $0x20] sm:$0xff] %v2485
        %2502 = vst [vmem:[#allocation2 + $0x28] sm:$0xff] %v2486
        %2503 = vst [vmem:[#allocation2 + $0x30] sm:$0xff] %v2487
        %2504 = vst [vmem:[#allocation2 + $0x38] sm:$0xff] %v2488
        %2505 = vst [vmem:[#allocation2 + $0x40] sm:$0xff] %v2489
        %2506 = vst [vmem:[#allocation2 + $0x48] sm:$0xff] %v2490
        %2507 = vst [vmem:[#allocation2 + $0x50] sm:$0xff] %v2491
        %2508 = vst [vmem:[#allocation2 + $0x58] sm:$0xff] %v2492
        %2509 = vst [vmem:[#allocation2 + $0x60] sm:$0xff] %v2493
        %2510 = vst [vmem:[#allocation2 + $0x68] sm:$0xff] %v2494
        %2511 = vst [vmem:[#allocation2 + $0x70] sm:$0xff] %v2495
        %2512 = vst [vmem:[#allocation2 + $0x78] sm:$0xff] %v2496
        %vm2513 = vcmp.gt.f32.partialorder %v2481, 1.0
        %vm2514 = vcmp.gt.f32.partialorder %v2482, 1.0
        %vm2515 = vcmp.gt.f32.partialorder %v2483, 1.0
        %vm2516 = vcmp.gt.f32.partialorder %v2484, 1.0
        %vm2517 = vcmp.gt.f32.partialorder %v2485, 1.0
        %vm2518 = vcmp.gt.f32.partialorder %v2486, 1.0
        %vm2519 = vcmp.gt.f32.partialorder %v2487, 1.0
        %vm2520 = vcmp.gt.f32.partialorder %v2488, 1.0
        %vm2521 = vcmp.gt.f32.partialorder %v2489, 1.0
        %vm2522 = vcmp.gt.f32.partialorder %v2490, 1.0
        %vm2523 = vcmp.gt.f32.partialorder %v2491, 1.0
        %vm2524 = vcmp.gt.f32.partialorder %v2492, 1.0
        %vm2525 = vcmp.gt.f32.partialorder %v2493, 1.0
        %vm2526 = vcmp.gt.f32.partialorder %v2494, 1.0
        %vm2527 = vcmp.gt.f32.partialorder %v2495, 1.0
        %vm2528 = vcmp.gt.f32.partialorder %v2496, 1.0
        %v2529 = vsel %vm2513, 1, 0
        %v2530 = vsel %vm2514, 1, 0
        %v2531 = vsel %vm2515, 1, 0
        %v2532 = vsel %vm2516, 1, 0
        %v2533 = vsel %vm2517, 1, 0
        %v2534 = vsel %vm2518, 1, 0
        %v2535 = vsel %vm2519, 1, 0
        %v2536 = vsel %vm2520, 1, 0
        %v2537 = vsel %vm2521, 1, 0
        %v2538 = vsel %vm2522, 1, 0
        %v2539 = vsel %vm2523, 1, 0
        %v2540 = vsel %vm2524, 1, 0
        %v2541 = vsel %vm2525, 1, 0
        %v2542 = vsel %vm2526, 1, 0
        %v2543 = vsel %vm2527, 1, 0
        %v2544 = vsel %vm2528, 1, 0
        %v2545 = vcvt.s32.f32 %v2529
        %v2546 = vcvt.s32.f32 %v2530
        %v2547 = vcvt.s32.f32 %v2531
        %v2548 = vcvt.s32.f32 %v2532
        %v2549 = vcvt.s32.f32 %v2533
        %v2550 = vcvt.s32.f32 %v2534
        %v2551 = vcvt.s32.f32 %v2535
        %v2552 = vcvt.s32.f32 %v2536
        %v2553 = vcvt.s32.f32 %v2537
        %v2554 = vcvt.s32.f32 %v2538
        %v2555 = vcvt.s32.f32 %v2539
        %v2556 = vcvt.s32.f32 %v2540
        %v2557 = vcvt.s32.f32 %v2541
        %v2558 = vcvt.s32.f32 %v2542
        %v2559 = vcvt.s32.f32 %v2543
        %v2560 = vcvt.s32.f32 %v2544
        %v2561 = vld [vmem:[%s2] sm:$0xff]
        %v2562 = vld [vmem:[%s2 + $0x8] sm:$0xff]
        %v2563 = vld [vmem:[%s2 + $0x10] sm:$0xff]
        %v2564 = vld [vmem:[%s2 + $0x18] sm:$0xff]
        %v2565 = vld [vmem:[%s2 + $0x20] sm:$0xff]
        %v2566 = vld [vmem:[%s2 + $0x28] sm:$0xff]
        %v2567 = vld [vmem:[%s2 + $0x30] sm:$0xff]
        %v2568 = vld [vmem:[%s2 + $0x38] sm:$0xff]
        %v2569 = vmul.f32 %v2545, %v2561
        %v2570 = vmul.f32 %v2546, %v2562
        %v2571 = vmul.f32 %v2549, %v2563
        %v2572 = vmul.f32 %v2550, %v2564
        %v2573 = vmul.f32 %v2553, %v2565
        %v2574 = vmul.f32 %v2554, %v2566
        %v2575 = vmul.f32 %v2557, %v2567
        %v2576 = vmul.f32 %v2558, %v2568
        %v2577 = vadd.f32 %v2569, %v2570
        %2578 = vadd.xlane.f32.xlu0 %v2577
        %v2579 = vpop.xlane.xlu0 %2578
        %v2580 = vadd.f32 %v2571, %v2572
        %2581 = vadd.xlane.f32.xlu0 %v2580
        %v2582 = vpop.xlane.xlu0 %2581
        %v2583 = vadd.f32 %v2573, %v2574
        %2584 = vadd.xlane.f32.xlu0 %v2583
        %v2585 = vpop.xlane.xlu0 %2584
        %v2586 = vadd.f32 %v2575, %v2576
        %2587 = vadd.xlane.f32.xlu0 %v2586
        %v2588 = vpop.xlane.xlu0 %2587
        %v2589 = vadd.f32 %v2579, %v2582
        %v2590 = vadd.f32 %v2589, %v2585
        %v2591 = vadd.f32 %v2590, %v2588
        %v2592 = vrot.slane %v2591, 4
        %v2593 = vadd.f32 %v2591, %v2592
        %v2594 = vrot.slane %v2593, 2
        %v2595 = vadd.f32 %v2593, %v2594
        %v2596 = vrot.slane %v2595, 1
        %v2597 = vadd.f32 %v2595, %v2596
        %v2598 = vmul.f32 %v2547, %v2561
        %v2599 = vmul.f32 %v2548, %v2562
        %v2600 = vmul.f32 %v2551, %v2563
        %v2601 = vmul.f32 %v2552, %v2564
        %v2602 = vmul.f32 %v2555, %v2565
        %v2603 = vmul.f32 %v2556, %v2566
        %v2604 = vmul.f32 %v2559, %v2567
        %v2605 = vmul.f32 %v2560, %v2568
        %v2606 = vadd.f32 %v2598, %v2599
        %2607 = vadd.xlane.f32.xlu0 %v2606
        %v2608 = vpop.xlane.xlu0 %2607
        %v2609 = vadd.f32 %v2600, %v2601
        %2610 = vadd.xlane.f32.xlu0 %v2609
        %v2611 = vpop.xlane.xlu0 %2610
        %v2612 = vadd.f32 %v2602, %v2603
        %2613 = vadd.xlane.f32.xlu0 %v2612
        %v2614 = vpop.xlane.xlu0 %2613
        %v2615 = vadd.f32 %v2604, %v2605
        %2616 = vadd.xlane.f32.xlu0 %v2615
        %v2617 = vpop.xlane.xlu0 %2616
        %v2618 = vadd.f32 %v2608, %v2611
        %v2619 = vadd.f32 %v2618, %v2614
        %v2620 = vadd.f32 %v2619, %v2617
        %v2621 = vrot.slane %v2620, 4
        %v2622 = vadd.f32 %v2620, %v2621
        %v2623 = vrot.slane %v2622, 2
        %v2624 = vadd.f32 %v2622, %v2623
        %v2625 = vrot.slane %v2624, 1
        %v2626 = vadd.f32 %v2624, %v2625
        %v2627 = vld [vmem:[%s1108] sm:$0xff]
        %v2628 = vld [vmem:[%s1108 + $0x8] sm:$0xff]
        %v2629 = vld [vmem:[%s1108 + $0x10] sm:$0xff]
        %v2630 = vld [vmem:[%s1108 + $0x18] sm:$0xff]
        %v2631 = vld [vmem:[%s1108 + $0x20] sm:$0xff]
        %v2632 = vld [vmem:[%s1108 + $0x28] sm:$0xff]
        %v2633 = vld [vmem:[%s1108 + $0x30] sm:$0xff]
        %v2634 = vld [vmem:[%s1108 + $0x38] sm:$0xff]
        %v2635 = vmul.f32 %v2545, %v2627
        %v2636 = vmul.f32 %v2546, %v2628
        %v2637 = vmul.f32 %v2549, %v2629
        %v2638 = vmul.f32 %v2550, %v2630
        %v2639 = vmul.f32 %v2553, %v2631
        %v2640 = vmul.f32 %v2554, %v2632
        %v2641 = vmul.f32 %v2557, %v2633
        %v2642 = vmul.f32 %v2558, %v2634
        %v2643 = vadd.f32 %v2635, %v2636
        %2644 = vadd.xlane.f32.xlu0 %v2643
        %v2645 = vpop.xlane.xlu0 %2644
        %v2646 = vadd.f32 %v2637, %v2638
        %2647 = vadd.xlane.f32.xlu0 %v2646
        %v2648 = vpop.xlane.xlu0 %2647
        %v2649 = vadd.f32 %v2639, %v2640
        %2650 = vadd.xlane.f32.xlu0 %v2649
        %v2651 = vpop.xlane.xlu0 %2650
        %v2652 = vadd.f32 %v2641, %v2642
        %2653 = vadd.xlane.f32.xlu0 %v2652
        %v2654 = vpop.xlane.xlu0 %2653
        %v2655 = vadd.f32 %v2645, %v2648
        %v2656 = vadd.f32 %v2655, %v2651
        %v2657 = vadd.f32 %v2656, %v2654
        %v2658 = vrot.slane %v2657, 4
        %v2659 = vadd.f32 %v2657, %v2658
        %v2660 = vrot.slane %v2659, 2
        %v2661 = vadd.f32 %v2659, %v2660
        %v2662 = vrot.slane %v2661, 1
        %v2663 = vadd.f32 %v2661, %v2662
        %v2664 = vmul.f32 %v2547, %v2627
        %v2665 = vmul.f32 %v2548, %v2628
        %v2666 = vmul.f32 %v2551, %v2629
        %v2667 = vmul.f32 %v2552, %v2630
        %v2668 = vmul.f32 %v2555, %v2631
        %v2669 = vmul.f32 %v2556, %v2632
        %v2670 = vmul.f32 %v2559, %v2633
        %v2671 = vmul.f32 %v2560, %v2634
        %v2672 = vadd.f32 %v2664, %v2665
        %2673 = vadd.xlane.f32.xlu0 %v2672
        %v2674 = vpop.xlane.xlu0 %2673
        %v2675 = vadd.f32 %v2666, %v2667
        %2676 = vadd.xlane.f32.xlu0 %v2675
        %v2677 = vpop.xlane.xlu0 %2676
        %v2678 = vadd.f32 %v2668, %v2669
        %2679 = vadd.xlane.f32.xlu0 %v2678
        %v2680 = vpop.xlane.xlu0 %2679
        %v2681 = vadd.f32 %v2670, %v2671
        %2682 = vadd.xlane.f32.xlu0 %v2681
        %v2683 = vpop.xlane.xlu0 %2682
        %v2684 = vadd.f32 %v2674, %v2677
        %v2685 = vadd.f32 %v2684, %v2680
        %v2686 = vadd.f32 %v2685, %v2683
        %v2687 = vrot.slane %v2686, 4
        %v2688 = vadd.f32 %v2686, %v2687
        %v2689 = vrot.slane %v2688, 2
        %v2690 = vadd.f32 %v2688, %v2689
        %v2691 = vrot.slane %v2690, 1
        %v2692 = vadd.f32 %v2690, %v2691
        %v2693 = vld [vmem:[%s1175] sm:$0xff]
        %v2694 = vld [vmem:[%s1175 + $0x8] sm:$0xff]
        %v2695 = vld [vmem:[%s1175 + $0x10] sm:$0xff]
        %v2696 = vld [vmem:[%s1175 + $0x18] sm:$0xff]
        %v2697 = vld [vmem:[%s1175 + $0x20] sm:$0xff]
        %v2698 = vld [vmem:[%s1175 + $0x28] sm:$0xff]
        %v2699 = vld [vmem:[%s1175 + $0x30] sm:$0xff]
        %v2700 = vld [vmem:[%s1175 + $0x38] sm:$0xff]
        %v2701 = vmul.f32 %v2545, %v2693
        %v2702 = vmul.f32 %v2546, %v2694
        %v2703 = vmul.f32 %v2549, %v2695
        %v2704 = vmul.f32 %v2550, %v2696
        %v2705 = vmul.f32 %v2553, %v2697
        %v2706 = vmul.f32 %v2554, %v2698
        %v2707 = vmul.f32 %v2557, %v2699
        %v2708 = vmul.f32 %v2558, %v2700
        %v2709 = vadd.f32 %v2701, %v2702
        %2710 = vadd.xlane.f32.xlu0 %v2709
        %v2711 = vpop.xlane.xlu0 %2710
        %v2712 = vadd.f32 %v2703, %v2704
        %2713 = vadd.xlane.f32.xlu0 %v2712
        %v2714 = vpop.xlane.xlu0 %2713
        %v2715 = vadd.f32 %v2705, %v2706
        %2716 = vadd.xlane.f32.xlu0 %v2715
        %v2717 = vpop.xlane.xlu0 %2716
        %v2718 = vadd.f32 %v2707, %v2708
        %2719 = vadd.xlane.f32.xlu0 %v2718
        %v2720 = vpop.xlane.xlu0 %2719
        %v2721 = vadd.f32 %v2711, %v2714
        %v2722 = vadd.f32 %v2721, %v2717
        %v2723 = vadd.f32 %v2722, %v2720
        %v2724 = vrot.slane %v2723, 4
        %v2725 = vadd.f32 %v2723, %v2724
        %v2726 = vrot.slane %v2725, 2
        %v2727 = vadd.f32 %v2725, %v2726
        %v2728 = vrot.slane %v2727, 1
        %v2729 = vadd.f32 %v2727, %v2728
        %v2730 = vmul.f32 %v2547, %v2693
        %v2731 = vmul.f32 %v2548, %v2694
        %v2732 = vmul.f32 %v2551, %v2695
        %v2733 = vmul.f32 %v2552, %v2696
        %v2734 = vmul.f32 %v2555, %v2697
        %v2735 = vmul.f32 %v2556, %v2698
        %v2736 = vmul.f32 %v2559, %v2699
        %v2737 = vmul.f32 %v2560, %v2700
        %v2738 = vadd.f32 %v2730, %v2731
        %2739 = vadd.xlane.f32.xlu0 %v2738
        %v2740 = vpop.xlane.xlu0 %2739
        %v2741 = vadd.f32 %v2732, %v2733
        %2742 = vadd.xlane.f32.xlu0 %v2741
        %v2743 = vpop.xlane.xlu0 %2742
        %v2744 = vadd.f32 %v2734, %v2735
        %2745 = vadd.xlane.f32.xlu0 %v2744
        %v2746 = vpop.xlane.xlu0 %2745
        %v2747 = vadd.f32 %v2736, %v2737
        %2748 = vadd.xlane.f32.xlu0 %v2747
        %v2749 = vpop.xlane.xlu0 %2748
        %v2750 = vadd.f32 %v2740, %v2743
        %v2751 = vadd.f32 %v2750, %v2746
        %v2752 = vadd.f32 %v2751, %v2749
        %v2753 = vrot.slane %v2752, 4
        %v2754 = vadd.f32 %v2752, %v2753
        %v2755 = vrot.slane %v2754, 2
        %v2756 = vadd.f32 %v2754, %v2755
        %v2757 = vrot.slane %v2756, 1
        %v2758 = vadd.f32 %v2756, %v2757
        %v2759 = vld [vmem:[%s1242] sm:$0xff]
        %v2760 = vld [vmem:[%s1242 + $0x8] sm:$0xff]
        %v2761 = vld [vmem:[%s1242 + $0x10] sm:$0xff]
        %v2762 = vld [vmem:[%s1242 + $0x18] sm:$0xff]
        %v2763 = vld [vmem:[%s1242 + $0x20] sm:$0xff]
        %v2764 = vld [vmem:[%s1242 + $0x28] sm:$0xff]
        %v2765 = vld [vmem:[%s1242 + $0x30] sm:$0xff]
        %v2766 = vld [vmem:[%s1242 + $0x38] sm:$0xff]
        %v2767 = vmul.f32 %v2545, %v2759
        %v2768 = vmul.f32 %v2546, %v2760
        %v2769 = vmul.f32 %v2549, %v2761
        %v2770 = vmul.f32 %v2550, %v2762
        %v2771 = vmul.f32 %v2553, %v2763
        %v2772 = vmul.f32 %v2554, %v2764
        %v2773 = vmul.f32 %v2557, %v2765
        %v2774 = vmul.f32 %v2558, %v2766
        %v2775 = vadd.f32 %v2767, %v2768
        %2776 = vadd.xlane.f32.xlu0 %v2775
        %v2777 = vpop.xlane.xlu0 %2776
        %v2778 = vadd.f32 %v2769, %v2770
        %2779 = vadd.xlane.f32.xlu0 %v2778
        %v2780 = vpop.xlane.xlu0 %2779
        %v2781 = vadd.f32 %v2771, %v2772
        %2782 = vadd.xlane.f32.xlu0 %v2781
        %v2783 = vpop.xlane.xlu0 %2782
        %v2784 = vadd.f32 %v2773, %v2774
        %2785 = vadd.xlane.f32.xlu0 %v2784
        %v2786 = vpop.xlane.xlu0 %2785
        %v2787 = vadd.f32 %v2777, %v2780
        %v2788 = vadd.f32 %v2787, %v2783
        %v2789 = vadd.f32 %v2788, %v2786
        %v2790 = vrot.slane %v2789, 4
        %v2791 = vadd.f32 %v2789, %v2790
        %v2792 = vrot.slane %v2791, 2
        %v2793 = vadd.f32 %v2791, %v2792
        %v2794 = vrot.slane %v2793, 1
        %v2795 = vadd.f32 %v2793, %v2794
        %v2796 = vmul.f32 %v2547, %v2759
        %v2797 = vmul.f32 %v2548, %v2760
        %v2798 = vmul.f32 %v2551, %v2761
        %v2799 = vmul.f32 %v2552, %v2762
        %v2800 = vmul.f32 %v2555, %v2763
        %v2801 = vmul.f32 %v2556, %v2764
        %v2802 = vmul.f32 %v2559, %v2765
        %v2803 = vmul.f32 %v2560, %v2766
        %v2804 = vadd.f32 %v2796, %v2797
        %2805 = vadd.xlane.f32.xlu0 %v2804
        %v2806 = vpop.xlane.xlu0 %2805
        %v2807 = vadd.f32 %v2798, %v2799
        %2808 = vadd.xlane.f32.xlu0 %v2807
        %v2809 = vpop.xlane.xlu0 %2808
        %v2810 = vadd.f32 %v2800, %v2801
        %2811 = vadd.xlane.f32.xlu0 %v2810
        %v2812 = vpop.xlane.xlu0 %2811
        %v2813 = vadd.f32 %v2802, %v2803
        %2814 = vadd.xlane.f32.xlu0 %v2813
        %v2815 = vpop.xlane.xlu0 %2814
        %v2816 = vadd.f32 %v2806, %v2809
        %v2817 = vadd.f32 %v2816, %v2812
        %v2818 = vadd.f32 %v2817, %v2815
        %v2819 = vrot.slane %v2818, 4
        %v2820 = vadd.f32 %v2818, %v2819
        %v2821 = vrot.slane %v2820, 2
        %v2822 = vadd.f32 %v2820, %v2821
        %v2823 = vrot.slane %v2822, 1
        %v2824 = vadd.f32 %v2822, %v2823
        %v2825 = vld [vmem:[%s1309] sm:$0xff]
        %v2826 = vld [vmem:[%s1309 + $0x8] sm:$0xff]
        %v2827 = vld [vmem:[%s1309 + $0x10] sm:$0xff]
        %v2828 = vld [vmem:[%s1309 + $0x18] sm:$0xff]
        %v2829 = vld [vmem:[%s1309 + $0x20] sm:$0xff]
        %v2830 = vld [vmem:[%s1309 + $0x28] sm:$0xff]
        %v2831 = vld [vmem:[%s1309 + $0x30] sm:$0xff]
        %v2832 = vld [vmem:[%s1309 + $0x38] sm:$0xff]
        %v2833 = vmul.f32 %v2545, %v2825
        %v2834 = vmul.f32 %v2546, %v2826
        %v2835 = vmul.f32 %v2549, %v2827
        %v2836 = vmul.f32 %v2550, %v2828
        %v2837 = vmul.f32 %v2553, %v2829
        %v2838 = vmul.f32 %v2554, %v2830
        %v2839 = vmul.f32 %v2557, %v2831
        %v2840 = vmul.f32 %v2558, %v2832
        %v2841 = vadd.f32 %v2833, %v2834
        %2842 = vadd.xlane.f32.xlu0 %v2841
        %v2843 = vpop.xlane.xlu0 %2842
        %v2844 = vadd.f32 %v2835, %v2836
        %2845 = vadd.xlane.f32.xlu0 %v2844
        %v2846 = vpop.xlane.xlu0 %2845
        %v2847 = vadd.f32 %v2837, %v2838
        %2848 = vadd.xlane.f32.xlu0 %v2847
        %v2849 = vpop.xlane.xlu0 %2848
        %v2850 = vadd.f32 %v2839, %v2840
        %2851 = vadd.xlane.f32.xlu0 %v2850
        %v2852 = vpop.xlane.xlu0 %2851
        %v2853 = vadd.f32 %v2843, %v2846
        %v2854 = vadd.f32 %v2853, %v2849
        %v2855 = vadd.f32 %v2854, %v2852
        %v2856 = vrot.slane %v2855, 4
        %v2857 = vadd.f32 %v2855, %v2856
        %v2858 = vrot.slane %v2857, 2
        %v2859 = vadd.f32 %v2857, %v2858
        %v2860 = vrot.slane %v2859, 1
        %v2861 = vadd.f32 %v2859, %v2860
        %v2862 = vmul.f32 %v2547, %v2825
        %v2863 = vmul.f32 %v2548, %v2826
        %v2864 = vmul.f32 %v2551, %v2827
        %v2865 = vmul.f32 %v2552, %v2828
        %v2866 = vmul.f32 %v2555, %v2829
        %v2867 = vmul.f32 %v2556, %v2830
        %v2868 = vmul.f32 %v2559, %v2831
        %v2869 = vmul.f32 %v2560, %v2832
        %v2870 = vadd.f32 %v2862, %v2863
        %2871 = vadd.xlane.f32.xlu0 %v2870
        %v2872 = vpop.xlane.xlu0 %2871
        %v2873 = vadd.f32 %v2864, %v2865
        %2874 = vadd.xlane.f32.xlu0 %v2873
        %v2875 = vpop.xlane.xlu0 %2874
        %v2876 = vadd.f32 %v2866, %v2867
        %2877 = vadd.xlane.f32.xlu0 %v2876
        %v2878 = vpop.xlane.xlu0 %2877
        %v2879 = vadd.f32 %v2868, %v2869
        %2880 = vadd.xlane.f32.xlu0 %v2879
        %v2881 = vpop.xlane.xlu0 %2880
        %v2882 = vadd.f32 %v2872, %v2875
        %v2883 = vadd.f32 %v2882, %v2878
        %v2884 = vadd.f32 %v2883, %v2881
        %v2885 = vrot.slane %v2884, 4
        %v2886 = vadd.f32 %v2884, %v2885
        %v2887 = vrot.slane %v2886, 2
        %v2888 = vadd.f32 %v2886, %v2887
        %v2889 = vrot.slane %v2888, 1
        %v2890 = vadd.f32 %v2888, %v2889
        %v2891 = vld [vmem:[%s1376] sm:$0xff]
        %v2892 = vld [vmem:[%s1376 + $0x8] sm:$0xff]
        %v2893 = vld [vmem:[%s1376 + $0x10] sm:$0xff]
        %v2894 = vld [vmem:[%s1376 + $0x18] sm:$0xff]
        %v2895 = vld [vmem:[%s1376 + $0x20] sm:$0xff]
        %v2896 = vld [vmem:[%s1376 + $0x28] sm:$0xff]
        %v2897 = vld [vmem:[%s1376 + $0x30] sm:$0xff]
        %v2898 = vld [vmem:[%s1376 + $0x38] sm:$0xff]
        %v2899 = vmul.f32 %v2545, %v2891
        %v2900 = vmul.f32 %v2546, %v2892
        %v2901 = vmul.f32 %v2549, %v2893
        %v2902 = vmul.f32 %v2550, %v2894
        %v2903 = vmul.f32 %v2553, %v2895
        %v2904 = vmul.f32 %v2554, %v2896
        %v2905 = vmul.f32 %v2557, %v2897
        %v2906 = vmul.f32 %v2558, %v2898
        %v2907 = vadd.f32 %v2899, %v2900
        %2908 = vadd.xlane.f32.xlu0 %v2907
        %v2909 = vpop.xlane.xlu0 %2908
        %v2910 = vadd.f32 %v2901, %v2902
        %2911 = vadd.xlane.f32.xlu0 %v2910
        %v2912 = vpop.xlane.xlu0 %2911
        %v2913 = vadd.f32 %v2903, %v2904
        %2914 = vadd.xlane.f32.xlu0 %v2913
        %v2915 = vpop.xlane.xlu0 %2914
        %v2916 = vadd.f32 %v2905, %v2906
        %2917 = vadd.xlane.f32.xlu0 %v2916
        %v2918 = vpop.xlane.xlu0 %2917
        %v2919 = vadd.f32 %v2909, %v2912
        %v2920 = vadd.f32 %v2919, %v2915
        %v2921 = vadd.f32 %v2920, %v2918
        %v2922 = vrot.slane %v2921, 4
        %v2923 = vadd.f32 %v2921, %v2922
        %v2924 = vrot.slane %v2923, 2
        %v2925 = vadd.f32 %v2923, %v2924
        %v2926 = vrot.slane %v2925, 1
        %v2927 = vadd.f32 %v2925, %v2926
        %v2928 = vmul.f32 %v2547, %v2891
        %v2929 = vmul.f32 %v2548, %v2892
        %v2930 = vmul.f32 %v2551, %v2893
        %v2931 = vmul.f32 %v2552, %v2894
        %v2932 = vmul.f32 %v2555, %v2895
        %v2933 = vmul.f32 %v2556, %v2896
        %v2934 = vmul.f32 %v2559, %v2897
        %v2935 = vmul.f32 %v2560, %v2898
        %v2936 = vadd.f32 %v2928, %v2929
        %2937 = vadd.xlane.f32.xlu0 %v2936
        %v2938 = vpop.xlane.xlu0 %2937
        %v2939 = vadd.f32 %v2930, %v2931
        %2940 = vadd.xlane.f32.xlu0 %v2939
        %v2941 = vpop.xlane.xlu0 %2940
        %v2942 = vadd.f32 %v2932, %v2933
        %2943 = vadd.xlane.f32.xlu0 %v2942
        %v2944 = vpop.xlane.xlu0 %2943
        %v2945 = vadd.f32 %v2934, %v2935
        %2946 = vadd.xlane.f32.xlu0 %v2945
        %v2947 = vpop.xlane.xlu0 %2946
        %v2948 = vadd.f32 %v2938, %v2941
        %v2949 = vadd.f32 %v2948, %v2944
        %v2950 = vadd.f32 %v2949, %v2947
        %v2951 = vrot.slane %v2950, 4
        %v2952 = vadd.f32 %v2950, %v2951
        %v2953 = vrot.slane %v2952, 2
        %v2954 = vadd.f32 %v2952, %v2953
        %v2955 = vrot.slane %v2954, 1
        %v2956 = vadd.f32 %v2954, %v2955
        %v2957 = vld [vmem:[%s1443] sm:$0xff]
        %v2958 = vld [vmem:[%s1443 + $0x8] sm:$0xff]
        %v2959 = vld [vmem:[%s1443 + $0x10] sm:$0xff]
        %v2960 = vld [vmem:[%s1443 + $0x18] sm:$0xff]
        %v2961 = vld [vmem:[%s1443 + $0x20] sm:$0xff]
        %v2962 = vld [vmem:[%s1443 + $0x28] sm:$0xff]
        %v2963 = vld [vmem:[%s1443 + $0x30] sm:$0xff]
        %v2964 = vld [vmem:[%s1443 + $0x38] sm:$0xff]
        %v2965 = vmul.f32 %v2545, %v2957
        %v2966 = vmul.f32 %v2546, %v2958
        %v2967 = vmul.f32 %v2549, %v2959
        %v2968 = vmul.f32 %v2550, %v2960
        %v2969 = vmul.f32 %v2553, %v2961
        %v2970 = vmul.f32 %v2554, %v2962
        %v2971 = vmul.f32 %v2557, %v2963
        %v2972 = vmul.f32 %v2558, %v2964
        %v2973 = vadd.f32 %v2965, %v2966
        %2974 = vadd.xlane.f32.xlu0 %v2973
        %v2975 = vpop.xlane.xlu0 %2974
        %v2976 = vadd.f32 %v2967, %v2968
        %2977 = vadd.xlane.f32.xlu0 %v2976
        %v2978 = vpop.xlane.xlu0 %2977
        %v2979 = vadd.f32 %v2969, %v2970
        %2980 = vadd.xlane.f32.xlu0 %v2979
        %v2981 = vpop.xlane.xlu0 %2980
        %v2982 = vadd.f32 %v2971, %v2972
        %2983 = vadd.xlane.f32.xlu0 %v2982
        %v2984 = vpop.xlane.xlu0 %2983
        %v2985 = vadd.f32 %v2975, %v2978
        %v2986 = vadd.f32 %v2985, %v2981
        %v2987 = vadd.f32 %v2986, %v2984
        %v2988 = vrot.slane %v2987, 4
        %v2989 = vadd.f32 %v2987, %v2988
        %v2990 = vrot.slane %v2989, 2
        %v2991 = vadd.f32 %v2989, %v2990
        %v2992 = vrot.slane %v2991, 1
        %v2993 = vadd.f32 %v2991, %v2992
        %v2994 = vmul.f32 %v2547, %v2957
        %v2995 = vmul.f32 %v2548, %v2958
        %v2996 = vmul.f32 %v2551, %v2959
        %v2997 = vmul.f32 %v2552, %v2960
        %v2998 = vmul.f32 %v2555, %v2961
        %v2999 = vmul.f32 %v2556, %v2962
        %v3000 = vmul.f32 %v2559, %v2963
        %v3001 = vmul.f32 %v2560, %v2964
        %v3002 = vadd.f32 %v2994, %v2995
        %3003 = vadd.xlane.f32.xlu0 %v3002
        %v3004 = vpop.xlane.xlu0 %3003
        %v3005 = vadd.f32 %v2996, %v2997
        %3006 = vadd.xlane.f32.xlu0 %v3005
        %v3007 = vpop.xlane.xlu0 %3006
        %v3008 = vadd.f32 %v2998, %v2999
        %3009 = vadd.xlane.f32.xlu0 %v3008
        %v3010 = vpop.xlane.xlu0 %3009
        %v3011 = vadd.f32 %v3000, %v3001
        %3012 = vadd.xlane.f32.xlu0 %v3011
        %v3013 = vpop.xlane.xlu0 %3012
        %v3014 = vadd.f32 %v3004, %v3007
        %v3015 = vadd.f32 %v3014, %v3010
        %v3016 = vadd.f32 %v3015, %v3013
        %v3017 = vrot.slane %v3016, 4
        %v3018 = vadd.f32 %v3016, %v3017
        %v3019 = vrot.slane %v3018, 2
        %v3020 = vadd.f32 %v3018, %v3019
        %v3021 = vrot.slane %v3020, 1
        %v3022 = vadd.f32 %v3020, %v3021
        %v3023 = vld [vmem:[%s1510] sm:$0xff]
        %v3024 = vld [vmem:[%s1510 + $0x8] sm:$0xff]
        %v3025 = vld [vmem:[%s1510 + $0x10] sm:$0xff]
        %v3026 = vld [vmem:[%s1510 + $0x18] sm:$0xff]
        %v3027 = vld [vmem:[%s1510 + $0x20] sm:$0xff]
        %v3028 = vld [vmem:[%s1510 + $0x28] sm:$0xff]
        %v3029 = vld [vmem:[%s1510 + $0x30] sm:$0xff]
        %v3030 = vld [vmem:[%s1510 + $0x38] sm:$0xff]
        %v3031 = vmul.f32 %v2545, %v3023
        %v3032 = vmul.f32 %v2546, %v3024
        %v3033 = vmul.f32 %v2549, %v3025
        %v3034 = vmul.f32 %v2550, %v3026
        %v3035 = vmul.f32 %v2553, %v3027
        %v3036 = vmul.f32 %v2554, %v3028
        %v3037 = vmul.f32 %v2557, %v3029
        %v3038 = vmul.f32 %v2558, %v3030
        %v3039 = vadd.f32 %v3031, %v3032
        %3040 = vadd.xlane.f32.xlu0 %v3039
        %v3041 = vpop.xlane.xlu0 %3040
        %v3042 = vadd.f32 %v3033, %v3034
        %3043 = vadd.xlane.f32.xlu0 %v3042
        %v3044 = vpop.xlane.xlu0 %3043
        %v3045 = vadd.f32 %v3035, %v3036
        %3046 = vadd.xlane.f32.xlu0 %v3045
        %v3047 = vpop.xlane.xlu0 %3046
        %v3048 = vadd.f32 %v3037, %v3038
        %3049 = vadd.xlane.f32.xlu0 %v3048
        %v3050 = vpop.xlane.xlu0 %3049
        %v3051 = vadd.f32 %v3041, %v3044
        %v3052 = vadd.f32 %v3051, %v3047
        %v3053 = vadd.f32 %v3052, %v3050
        %v3054 = vrot.slane %v3053, 4
        %v3055 = vadd.f32 %v3053, %v3054
        %v3056 = vrot.slane %v3055, 2
        %v3057 = vadd.f32 %v3055, %v3056
        %v3058 = vrot.slane %v3057, 1
        %v3059 = vadd.f32 %v3057, %v3058
        %v3060 = vmul.f32 %v2547, %v3023
        %v3061 = vmul.f32 %v2548, %v3024
        %v3062 = vmul.f32 %v2551, %v3025
        %v3063 = vmul.f32 %v2552, %v3026
        %v3064 = vmul.f32 %v2555, %v3027
        %v3065 = vmul.f32 %v2556, %v3028
        %v3066 = vmul.f32 %v2559, %v3029
        %v3067 = vmul.f32 %v2560, %v3030
        %v3068 = vadd.f32 %v3060, %v3061
        %3069 = vadd.xlane.f32.xlu0 %v3068
        %v3070 = vpop.xlane.xlu0 %3069
        %v3071 = vadd.f32 %v3062, %v3063
        %3072 = vadd.xlane.f32.xlu0 %v3071
        %v3073 = vpop.xlane.xlu0 %3072
        %v3074 = vadd.f32 %v3064, %v3065
        %3075 = vadd.xlane.f32.xlu0 %v3074
        %v3076 = vpop.xlane.xlu0 %3075
        %v3077 = vadd.f32 %v3066, %v3067
        %3078 = vadd.xlane.f32.xlu0 %v3077
        %v3079 = vpop.xlane.xlu0 %3078
        %v3080 = vadd.f32 %v3070, %v3073
        %v3081 = vadd.f32 %v3080, %v3076
        %v3082 = vadd.f32 %v3081, %v3079
        %v3083 = vrot.slane %v3082, 4
        %v3084 = vadd.f32 %v3082, %v3083
        %v3085 = vrot.slane %v3084, 2
        %v3086 = vadd.f32 %v3084, %v3085
        %v3087 = vrot.slane %v3086, 1
        %v3088 = vadd.f32 %v3086, %v3087
        %v3089 = vld [vmem:[%s1577] sm:$0xff]
        %v3090 = vld [vmem:[%s1577 + $0x8] sm:$0xff]
        %v3091 = vld [vmem:[%s1577 + $0x10] sm:$0xff]
        %v3092 = vld [vmem:[%s1577 + $0x18] sm:$0xff]
        %v3093 = vld [vmem:[%s1577 + $0x20] sm:$0xff]
        %v3094 = vld [vmem:[%s1577 + $0x28] sm:$0xff]
        %v3095 = vld [vmem:[%s1577 + $0x30] sm:$0xff]
        %v3096 = vld [vmem:[%s1577 + $0x38] sm:$0xff]
        %v3097 = vmul.f32 %v2545, %v3089
        %v3098 = vmul.f32 %v2546, %v3090
        %v3099 = vmul.f32 %v2549, %v3091
        %v3100 = vmul.f32 %v2550, %v3092
        %v3101 = vmul.f32 %v2553, %v3093
        %v3102 = vmul.f32 %v2554, %v3094
        %v3103 = vmul.f32 %v2557, %v3095
        %v3104 = vmul.f32 %v2558, %v3096
        %v3105 = vadd.f32 %v3097, %v3098
        %3106 = vadd.xlane.f32.xlu0 %v3105
        %v3107 = vpop.xlane.xlu0 %3106
        %v3108 = vadd.f32 %v3099, %v3100
        %3109 = vadd.xlane.f32.xlu0 %v3108
        %v3110 = vpop.xlane.xlu0 %3109
        %v3111 = vadd.f32 %v3101, %v3102
        %3112 = vadd.xlane.f32.xlu0 %v3111
        %v3113 = vpop.xlane.xlu0 %3112
        %v3114 = vadd.f32 %v3103, %v3104
        %3115 = vadd.xlane.f32.xlu0 %v3114
        %v3116 = vpop.xlane.xlu0 %3115
        %v3117 = vadd.f32 %v3107, %v3110
        %v3118 = vadd.f32 %v3117, %v3113
        %v3119 = vadd.f32 %v3118, %v3116
        %v3120 = vrot.slane %v3119, 4
        %v3121 = vadd.f32 %v3119, %v3120
        %v3122 = vrot.slane %v3121, 2
        %v3123 = vadd.f32 %v3121, %v3122
        %v3124 = vrot.slane %v3123, 1
        %v3125 = vadd.f32 %v3123, %v3124
        %v3126 = vmul.f32 %v2547, %v3089
        %v3127 = vmul.f32 %v2548, %v3090
        %v3128 = vmul.f32 %v2551, %v3091
        %v3129 = vmul.f32 %v2552, %v3092
        %v3130 = vmul.f32 %v2555, %v3093
        %v3131 = vmul.f32 %v2556, %v3094
        %v3132 = vmul.f32 %v2559, %v3095
        %v3133 = vmul.f32 %v2560, %v3096
        %v3134 = vadd.f32 %v3126, %v3127
        %3135 = vadd.xlane.f32.xlu0 %v3134
        %v3136 = vpop.xlane.xlu0 %3135
        %v3137 = vadd.f32 %v3128, %v3129
        %3138 = vadd.xlane.f32.xlu0 %v3137
        %v3139 = vpop.xlane.xlu0 %3138
        %v3140 = vadd.f32 %v3130, %v3131
        %3141 = vadd.xlane.f32.xlu0 %v3140
        %v3142 = vpop.xlane.xlu0 %3141
        %v3143 = vadd.f32 %v3132, %v3133
        %3144 = vadd.xlane.f32.xlu0 %v3143
        %v3145 = vpop.xlane.xlu0 %3144
        %v3146 = vadd.f32 %v3136, %v3139
        %v3147 = vadd.f32 %v3146, %v3142
        %v3148 = vadd.f32 %v3147, %v3145
        %v3149 = vrot.slane %v3148, 4
        %v3150 = vadd.f32 %v3148, %v3149
        %v3151 = vrot.slane %v3150, 2
        %v3152 = vadd.f32 %v3150, %v3151
        %v3153 = vrot.slane %v3152, 1
        %v3154 = vadd.f32 %v3152, %v3153
        %v3155 = vld [vmem:[%s1644] sm:$0xff]
        %v3156 = vld [vmem:[%s1644 + $0x8] sm:$0xff]
        %v3157 = vld [vmem:[%s1644 + $0x10] sm:$0xff]
        %v3158 = vld [vmem:[%s1644 + $0x18] sm:$0xff]
        %v3159 = vld [vmem:[%s1644 + $0x20] sm:$0xff]
        %v3160 = vld [vmem:[%s1644 + $0x28] sm:$0xff]
        %v3161 = vld [vmem:[%s1644 + $0x30] sm:$0xff]
        %v3162 = vld [vmem:[%s1644 + $0x38] sm:$0xff]
        %v3163 = vmul.f32 %v2545, %v3155
        %v3164 = vmul.f32 %v2546, %v3156
        %v3165 = vmul.f32 %v2549, %v3157
        %v3166 = vmul.f32 %v2550, %v3158
        %v3167 = vmul.f32 %v2553, %v3159
        %v3168 = vmul.f32 %v2554, %v3160
        %v3169 = vmul.f32 %v2557, %v3161
        %v3170 = vmul.f32 %v2558, %v3162
        %v3171 = vadd.f32 %v3163, %v3164
        %3172 = vadd.xlane.f32.xlu0 %v3171
        %v3173 = vpop.xlane.xlu0 %3172
        %v3174 = vadd.f32 %v3165, %v3166
        %3175 = vadd.xlane.f32.xlu0 %v3174
        %v3176 = vpop.xlane.xlu0 %3175
        %v3177 = vadd.f32 %v3167, %v3168
        %3178 = vadd.xlane.f32.xlu0 %v3177
        %v3179 = vpop.xlane.xlu0 %3178
        %v3180 = vadd.f32 %v3169, %v3170
        %3181 = vadd.xlane.f32.xlu0 %v3180
        %v3182 = vpop.xlane.xlu0 %3181
        %v3183 = vadd.f32 %v3173, %v3176
        %v3184 = vadd.f32 %v3183, %v3179
        %v3185 = vadd.f32 %v3184, %v3182
        %v3186 = vrot.slane %v3185, 4
        %v3187 = vadd.f32 %v3185, %v3186
        %v3188 = vrot.slane %v3187, 2
        %v3189 = vadd.f32 %v3187, %v3188
        %v3190 = vrot.slane %v3189, 1
        %v3191 = vadd.f32 %v3189, %v3190
        %v3192 = vmul.f32 %v2547, %v3155
        %v3193 = vmul.f32 %v2548, %v3156
        %v3194 = vmul.f32 %v2551, %v3157
        %v3195 = vmul.f32 %v2552, %v3158
        %v3196 = vmul.f32 %v2555, %v3159
        %v3197 = vmul.f32 %v2556, %v3160
        %v3198 = vmul.f32 %v2559, %v3161
        %v3199 = vmul.f32 %v2560, %v3162
        %v3200 = vadd.f32 %v3192, %v3193
        %3201 = vadd.xlane.f32.xlu0 %v3200
        %v3202 = vpop.xlane.xlu0 %3201
        %v3203 = vadd.f32 %v3194, %v3195
        %3204 = vadd.xlane.f32.xlu0 %v3203
        %v3205 = vpop.xlane.xlu0 %3204
        %v3206 = vadd.f32 %v3196, %v3197
        %3207 = vadd.xlane.f32.xlu0 %v3206
        %v3208 = vpop.xlane.xlu0 %3207
        %v3209 = vadd.f32 %v3198, %v3199
        %3210 = vadd.xlane.f32.xlu0 %v3209
        %v3211 = vpop.xlane.xlu0 %3210
        %v3212 = vadd.f32 %v3202, %v3205
        %v3213 = vadd.f32 %v3212, %v3208
        %v3214 = vadd.f32 %v3213, %v3211
        %v3215 = vrot.slane %v3214, 4
        %v3216 = vadd.f32 %v3214, %v3215
        %v3217 = vrot.slane %v3216, 2
        %v3218 = vadd.f32 %v3216, %v3217
        %v3219 = vrot.slane %v3218, 1
        %v3220 = vadd.f32 %v3218, %v3219
        %v3221 = vsel %vm1711, %v2597, %v2663
        %v3222 = vsel %vm1713, %v3221, %v2729
        %v3223 = vsel %vm1715, %v3222, %v2795
        %v3224 = vsel %vm1717, %v3223, %v2861
        %v3225 = vsel %vm1719, %v3224, %v2927
        %v3226 = vsel %vm1721, %v3225, %v2993
        %v3227 = vsel %vm1723, %v3226, %v3059
        %v3228 = vsel %vm1725, %v3227, %v3125
        %v3229 = vsel %vm1727, %v3228, %v3191
        %v3230 = vsel %vm1711, %v2626, %v2692
        %v3231 = vsel %vm1713, %v3230, %v2758
        %v3232 = vsel %vm1715, %v3231, %v2824
        %v3233 = vsel %vm1717, %v3232, %v2890
        %v3234 = vsel %vm1719, %v3233, %v2956
        %v3235 = vsel %vm1721, %v3234, %v3022
        %v3236 = vsel %vm1723, %v3235, %v3088
        %v3237 = vsel %vm1725, %v3236, %v3154
        %v3238 = vsel %vm1727, %v3237, %v3220
        %v3240 = vrot.slane %v3238, 7
        %v3242 = vsel %vm1741, %v3229, %v3240
        %v3243 = vadd.f32 %v3242, %v1744
        %v3244 = vld [vmem:[#allocation3] sm:$0x3]
        %v3245 = vmul.f32 %v3244, 0.9
        %v3246 = vadd.f32 %v3245, %v3243
        %vm3247 = vcmp.gt.f32.partialorder %v3244, 1.0
        %v3248 = vsel %vm3247, 1, 0
        %v3249 = vcvt.s32.f32 %v3248
        %v3250 = vsub.f32 %v3246, %v3249
        %3251 = vst.msk [vmem:[#allocation3] sm:$0x3] %vm1754, %v3250
        %vm3252 = vcmp.gt.f32.partialorder %v3250, 1.0
        %v3253 = vsel %vm3252, 1, 0
        %v3254 = vcvt.s32.f32 %v3253
        %s3255 = scalar_lea.vmem %s193, 2 [#allocation4]
        %3256 = vst.msk [vmem:[%s3255] sm:$0x3] %vm1754, %v3254
        %s3257 = scalar_lea.vmem %s199, 1792
        %v3258 = vld [vmem:[%s3257] sm:$0xff]
        %v3259 = vld [vmem:[%s3257 + $0x8] sm:$0xff]
        %v3260 = vld [vmem:[%s3257 + $0x10] sm:$0xff]
        %v3261 = vld [vmem:[%s3257 + $0x18] sm:$0xff]
        %v3262 = vld [vmem:[%s3257 + $0x20] sm:$0xff]
        %v3263 = vld [vmem:[%s3257 + $0x28] sm:$0xff]
        %v3264 = vld [vmem:[%s3257 + $0x30] sm:$0xff]
        %v3265 = vld [vmem:[%s3257 + $0x38] sm:$0xff]
        %v3266 = vld [vmem:[%s3257 + $0x40] sm:$0xff]
        %v3267 = vld [vmem:[%s3257 + $0x48] sm:$0xff]
        %v3268 = vld [vmem:[%s3257 + $0x50] sm:$0xff]
        %v3269 = vld [vmem:[%s3257 + $0x58] sm:$0xff]
        %v3270 = vld [vmem:[%s3257 + $0x60] sm:$0xff]
        %v3271 = vld [vmem:[%s3257 + $0x68] sm:$0xff]
        %v3272 = vld [vmem:[%s3257 + $0x70] sm:$0xff]
        %v3273 = vld [vmem:[%s3257 + $0x78] sm:$0xff]
        %v3274 = vld [vmem:[%s3257 + $0x80] sm:$0xff]
        %v3275 = vld [vmem:[%s3257 + $0x88] sm:$0xff]
        %v3276 = vld [vmem:[%s3257 + $0x90] sm:$0xff]
        %v3277 = vld [vmem:[%s3257 + $0x98] sm:$0xff]
        %v3278 = vld [vmem:[%s3257 + $0xa0] sm:$0xff]
        %v3279 = vld [vmem:[%s3257 + $0xa8] sm:$0xff]
        %v3280 = vld [vmem:[%s3257 + $0xb0] sm:$0xff]
        %v3281 = vld [vmem:[%s3257 + $0xb8] sm:$0xff]
        %v3282 = vld [vmem:[%s3257 + $0xc0] sm:$0xff]
        %v3283 = vld [vmem:[%s3257 + $0xc8] sm:$0xff]
        %v3284 = vld [vmem:[%s3257 + $0xd0] sm:$0xff]
        %v3285 = vld [vmem:[%s3257 + $0xd8] sm:$0xff]
        %v3286 = vld [vmem:[%s3257 + $0xe0] sm:$0xff]
        %v3287 = vld [vmem:[%s3257 + $0xe8] sm:$0xff]
        %v3288 = vld [vmem:[%s3257 + $0xf0] sm:$0xff]
        %v3289 = vld [vmem:[%s3257 + $0xf8] sm:$0xff]
        %v3290 = vld [vmem:[%s3257 + $0x100] sm:$0xff]
        %v3291 = vld [vmem:[%s3257 + $0x108] sm:$0xff]
        %v3292 = vld [vmem:[%s3257 + $0x110] sm:$0xff]
        %v3293 = vld [vmem:[%s3257 + $0x118] sm:$0xff]
        %v3294 = vld [vmem:[%s3257 + $0x120] sm:$0xff]
        %v3295 = vld [vmem:[%s3257 + $0x128] sm:$0xff]
        %v3296 = vld [vmem:[%s3257 + $0x130] sm:$0xff]
        %v3297 = vld [vmem:[%s3257 + $0x138] sm:$0xff]
        %v3298 = vld [vmem:[%s3257 + $0x140] sm:$0xff]
        %v3299 = vld [vmem:[%s3257 + $0x148] sm:$0xff]
        %v3300 = vld [vmem:[%s3257 + $0x150] sm:$0xff]
        %v3301 = vld [vmem:[%s3257 + $0x158] sm:$0xff]
        %v3302 = vld [vmem:[%s3257 + $0x160] sm:$0xff]
        %v3303 = vld [vmem:[%s3257 + $0x168] sm:$0xff]
        %v3304 = vld [vmem:[%s3257 + $0x170] sm:$0xff]
        %v3305 = vld [vmem:[%s3257 + $0x178] sm:$0xff]
        %v3306 = vld [vmem:[%s3257 + $0x180] sm:$0xff]
        %v3307 = vld [vmem:[%s3257 + $0x188] sm:$0xff]
        %v3308 = vld [vmem:[%s3257 + $0x190] sm:$0xff]
        %v3309 = vld [vmem:[%s3257 + $0x198] sm:$0xff]
        %v3310 = vld [vmem:[%s3257 + $0x1a0] sm:$0xff]
        %v3311 = vld [vmem:[%s3257 + $0x1a8] sm:$0xff]
        %v3312 = vld [vmem:[%s3257 + $0x1b0] sm:$0xff]
        %v3313 = vld [vmem:[%s3257 + $0x1b8] sm:$0xff]
        %v3314 = vld [vmem:[%s3257 + $0x1c0] sm:$0xff]
        %v3315 = vld [vmem:[%s3257 + $0x1c8] sm:$0xff]
        %v3316 = vld [vmem:[%s3257 + $0x1d0] sm:$0xff]
        %v3317 = vld [vmem:[%s3257 + $0x1d8] sm:$0xff]
        %v3318 = vld [vmem:[%s3257 + $0x1e0] sm:$0xff]
        %v3319 = vld [vmem:[%s3257 + $0x1e8] sm:$0xff]
        %v3320 = vld [vmem:[%s3257 + $0x1f0] sm:$0xff]
        %v3321 = vld [vmem:[%s3257 + $0x1f8] sm:$0xff]
        %v3322 = vld [vmem:[%s3257 + $0x200] sm:$0xff]
        %v3323 = vld [vmem:[%s3257 + $0x208] sm:$0xff]
        %v3324 = vld [vmem:[%s3257 + $0x210] sm:$0xff]
        %v3325 = vld [vmem:[%s3257 + $0x218] sm:$0xff]
        %v3326 = vld [vmem:[%s3257 + $0x220] sm:$0xff]
        %v3327 = vld [vmem:[%s3257 + $0x228] sm:$0xff]
        %v3328 = vld [vmem:[%s3257 + $0x230] sm:$0xff]
        %v3329 = vld [vmem:[%s3257 + $0x238] sm:$0xff]
        %v3330 = vld [vmem:[%s3257 + $0x240] sm:$0xff]
        %v3331 = vld [vmem:[%s3257 + $0x248] sm:$0xff]
        %v3332 = vld [vmem:[%s3257 + $0x250] sm:$0xff]
        %v3333 = vld [vmem:[%s3257 + $0x258] sm:$0xff]
        %v3334 = vld [vmem:[%s3257 + $0x260] sm:$0xff]
        %v3335 = vld [vmem:[%s3257 + $0x268] sm:$0xff]
        %v3336 = vld [vmem:[%s3257 + $0x270] sm:$0xff]
        %v3337 = vld [vmem:[%s3257 + $0x278] sm:$0xff]
        %v3338 = vld [vmem:[%s3257 + $0x280] sm:$0xff]
        %v3339 = vld [vmem:[%s3257 + $0x288] sm:$0xff]
        %v3340 = vld [vmem:[%s3257 + $0x290] sm:$0xff]
        %v3341 = vld [vmem:[%s3257 + $0x298] sm:$0xff]
        %v3342 = vld [vmem:[%s3257 + $0x2a0] sm:$0xff]
        %v3343 = vld [vmem:[%s3257 + $0x2a8] sm:$0xff]
        %v3344 = vld [vmem:[%s3257 + $0x2b0] sm:$0xff]
        %v3345 = vld [vmem:[%s3257 + $0x2b8] sm:$0xff]
        %v3346 = vld [vmem:[%s3257 + $0x2c0] sm:$0xff]
        %v3347 = vld [vmem:[%s3257 + $0x2c8] sm:$0xff]
        %v3348 = vld [vmem:[%s3257 + $0x2d0] sm:$0xff]
        %v3349 = vld [vmem:[%s3257 + $0x2d8] sm:$0xff]
        %v3350 = vld [vmem:[%s3257 + $0x2e0] sm:$0xff]
        %v3351 = vld [vmem:[%s3257 + $0x2e8] sm:$0xff]
        %v3352 = vld [vmem:[%s3257 + $0x2f0] sm:$0xff]
        %v3353 = vld [vmem:[%s3257 + $0x2f8] sm:$0xff]
        %v3354 = vld [vmem:[%s3257 + $0x300] sm:$0xff]
        %v3355 = vld [vmem:[%s3257 + $0x308] sm:$0xff]
        %v3356 = vld [vmem:[%s3257 + $0x310] sm:$0xff]
        %v3357 = vld [vmem:[%s3257 + $0x318] sm:$0xff]
        %v3358 = vld [vmem:[%s3257 + $0x320] sm:$0xff]
        %v3359 = vld [vmem:[%s3257 + $0x328] sm:$0xff]
        %v3360 = vld [vmem:[%s3257 + $0x330] sm:$0xff]
        %v3361 = vld [vmem:[%s3257 + $0x338] sm:$0xff]
        %v3362 = vld [vmem:[%s3257 + $0x340] sm:$0xff]
        %v3363 = vld [vmem:[%s3257 + $0x348] sm:$0xff]
        %v3364 = vld [vmem:[%s3257 + $0x350] sm:$0xff]
        %v3365 = vld [vmem:[%s3257 + $0x358] sm:$0xff]
        %v3366 = vld [vmem:[%s3257 + $0x360] sm:$0xff]
        %v3367 = vld [vmem:[%s3257 + $0x368] sm:$0xff]
        %v3368 = vld [vmem:[%s3257 + $0x370] sm:$0xff]
        %v3369 = vld [vmem:[%s3257 + $0x378] sm:$0xff]
        %3370 = vmatpush.msra.mxu0 0.0
        %3371 = vmatpush.msra.mxu0 0.0
        %3372 = vmatpush.msra.mxu0 0.0
        %3373 = vmatpush.msra.mxu0 0.0
        %3374 = vmatpush.msra.mxu0 0.0
        %3375 = vmatpush.msra.mxu0 0.0
        %3376 = vmatpush.msra.mxu0 0.0
        %3377 = vmatpush.msra.mxu0 0.0
        %3378 = vmatpush.msra.mxu0 0.0
        %3379 = vmatpush.msra.mxu0 %v3354
        %3380 = vmatpush.msra.mxu0 %v3338
        %3381 = vmatpush.msra.mxu0 %v3322
        %3382 = vmatpush.msra.mxu0 %v3306
        %3383 = vmatpush.msra.mxu0 %v3290
        %3384 = vmatpush.msra.mxu0 %v3274
        %3385 = vmatpush.msra.mxu0 %v3258
        %3386 = vmatmul.f32.gmra.mxu0 %v343
        %v3387 = vpop.f32.mrf.mxu0
        %v3388 = vadd.f32 0.0, %v3387
        %3389 = vmatmul.f32.gmra.mxu0 %v346
        %v3390 = vpop.f32.mrf.mxu0
        %v3391 = vadd.f32 0.0, %v3390
        %3392 = vmatmul.f32.gmra.mxu0 %v349
        %v3393 = vpop.f32.mrf.mxu0
        %v3394 = vadd.f32 0.0, %v3393
        %3395 = vmatmul.f32.gmra.mxu0 %v352
        %v3396 = vpop.f32.mrf.mxu0
        %v3397 = vadd.f32 0.0, %v3396
        %3398 = vdwg.mxu0
        %3399 = vmatpush.msra.mxu0 0.0
        %3400 = vmatpush.msra.mxu0 0.0
        %3401 = vmatpush.msra.mxu0 0.0
        %3402 = vmatpush.msra.mxu0 0.0
        %3403 = vmatpush.msra.mxu0 0.0
        %3404 = vmatpush.msra.mxu0 0.0
        %3405 = vmatpush.msra.mxu0 0.0
        %3406 = vmatpush.msra.mxu0 0.0
        %3407 = vmatpush.msra.mxu0 0.0
        %3408 = vmatpush.msra.mxu0 %v3355
        %3409 = vmatpush.msra.mxu0 %v3339
        %3410 = vmatpush.msra.mxu0 %v3323
        %3411 = vmatpush.msra.mxu0 %v3307
        %3412 = vmatpush.msra.mxu0 %v3291
        %3413 = vmatpush.msra.mxu0 %v3275
        %3414 = vmatpush.msra.mxu0 %v3259
        %3415 = vmatmul.f32.gmra.mxu0 %v343
        %v3416 = vpop.f32.mrf.mxu0
        %v3417 = vadd.f32 0.0, %v3416
        %3418 = vmatmul.f32.gmra.mxu0 %v346
        %v3419 = vpop.f32.mrf.mxu0
        %v3420 = vadd.f32 0.0, %v3419
        %3421 = vmatmul.f32.gmra.mxu0 %v349
        %v3422 = vpop.f32.mrf.mxu0
        %v3423 = vadd.f32 0.0, %v3422
        %3424 = vmatmul.f32.gmra.mxu0 %v352
        %v3425 = vpop.f32.mrf.mxu0
        %v3426 = vadd.f32 0.0, %v3425
        %3427 = vdwg.mxu0
        %3428 = vmatpush.msra.mxu0 0.0
        %3429 = vmatpush.msra.mxu0 0.0
        %3430 = vmatpush.msra.mxu0 0.0
        %3431 = vmatpush.msra.mxu0 0.0
        %3432 = vmatpush.msra.mxu0 0.0
        %3433 = vmatpush.msra.mxu0 0.0
        %3434 = vmatpush.msra.mxu0 0.0
        %3435 = vmatpush.msra.mxu0 0.0
        %3436 = vmatpush.msra.mxu0 0.0
        %3437 = vmatpush.msra.mxu0 %v3356
        %3438 = vmatpush.msra.mxu0 %v3340
        %3439 = vmatpush.msra.mxu0 %v3324
        %3440 = vmatpush.msra.mxu0 %v3308
        %3441 = vmatpush.msra.mxu0 %v3292
        %3442 = vmatpush.msra.mxu0 %v3276
        %3443 = vmatpush.msra.mxu0 %v3260
        %3444 = vmatmul.f32.gmra.mxu0 %v343
        %v3445 = vpop.f32.mrf.mxu0
        %v3446 = vadd.f32 0.0, %v3445
        %3447 = vmatmul.f32.gmra.mxu0 %v346
        %v3448 = vpop.f32.mrf.mxu0
        %v3449 = vadd.f32 0.0, %v3448
        %3450 = vmatmul.f32.gmra.mxu0 %v349
        %v3451 = vpop.f32.mrf.mxu0
        %v3452 = vadd.f32 0.0, %v3451
        %3453 = vmatmul.f32.gmra.mxu0 %v352
        %v3454 = vpop.f32.mrf.mxu0
        %v3455 = vadd.f32 0.0, %v3454
        %3456 = vdwg.mxu0
        %3457 = vmatpush.msra.mxu0 0.0
        %3458 = vmatpush.msra.mxu0 0.0
        %3459 = vmatpush.msra.mxu0 0.0
        %3460 = vmatpush.msra.mxu0 0.0
        %3461 = vmatpush.msra.mxu0 0.0
        %3462 = vmatpush.msra.mxu0 0.0
        %3463 = vmatpush.msra.mxu0 0.0
        %3464 = vmatpush.msra.mxu0 0.0
        %3465 = vmatpush.msra.mxu0 0.0
        %3466 = vmatpush.msra.mxu0 %v3357
        %3467 = vmatpush.msra.mxu0 %v3341
        %3468 = vmatpush.msra.mxu0 %v3325
        %3469 = vmatpush.msra.mxu0 %v3309
        %3470 = vmatpush.msra.mxu0 %v3293
        %3471 = vmatpush.msra.mxu0 %v3277
        %3472 = vmatpush.msra.mxu0 %v3261
        %3473 = vmatmul.f32.gmra.mxu0 %v343
        %v3474 = vpop.f32.mrf.mxu0
        %v3475 = vadd.f32 0.0, %v3474
        %3476 = vmatmul.f32.gmra.mxu0 %v346
        %v3477 = vpop.f32.mrf.mxu0
        %v3478 = vadd.f32 0.0, %v3477
        %3479 = vmatmul.f32.gmra.mxu0 %v349
        %v3480 = vpop.f32.mrf.mxu0
        %v3481 = vadd.f32 0.0, %v3480
        %3482 = vmatmul.f32.gmra.mxu0 %v352
        %v3483 = vpop.f32.mrf.mxu0
        %v3484 = vadd.f32 0.0, %v3483
        %3485 = vdwg.mxu0
        %3486 = vmatpush.msra.mxu0 0.0
        %3487 = vmatpush.msra.mxu0 0.0
        %3488 = vmatpush.msra.mxu0 0.0
        %3489 = vmatpush.msra.mxu0 0.0
        %3490 = vmatpush.msra.mxu0 0.0
        %3491 = vmatpush.msra.mxu0 0.0
        %3492 = vmatpush.msra.mxu0 0.0
        %3493 = vmatpush.msra.mxu0 0.0
        %3494 = vmatpush.msra.mxu0 0.0
        %3495 = vmatpush.msra.mxu0 %v3358
        %3496 = vmatpush.msra.mxu0 %v3342
        %3497 = vmatpush.msra.mxu0 %v3326
        %3498 = vmatpush.msra.mxu0 %v3310
        %3499 = vmatpush.msra.mxu0 %v3294
        %3500 = vmatpush.msra.mxu0 %v3278
        %3501 = vmatpush.msra.mxu0 %v3262
        %3502 = vmatmul.f32.gmra.mxu0 %v343
        %v3503 = vpop.f32.mrf.mxu0
        %v3504 = vadd.f32 0.0, %v3503
        %3505 = vmatmul.f32.gmra.mxu0 %v346
        %v3506 = vpop.f32.mrf.mxu0
        %v3507 = vadd.f32 0.0, %v3506
        %3508 = vmatmul.f32.gmra.mxu0 %v349
        %v3509 = vpop.f32.mrf.mxu0
        %v3510 = vadd.f32 0.0, %v3509
        %3511 = vmatmul.f32.gmra.mxu0 %v352
        %v3512 = vpop.f32.mrf.mxu0
        %v3513 = vadd.f32 0.0, %v3512
        %3514 = vdwg.mxu0
        %3515 = vmatpush.msra.mxu0 0.0
        %3516 = vmatpush.msra.mxu0 0.0
        %3517 = vmatpush.msra.mxu0 0.0
        %3518 = vmatpush.msra.mxu0 0.0
        %3519 = vmatpush.msra.mxu0 0.0
        %3520 = vmatpush.msra.mxu0 0.0
        %3521 = vmatpush.msra.mxu0 0.0
        %3522 = vmatpush.msra.mxu0 0.0
        %3523 = vmatpush.msra.mxu0 0.0
        %3524 = vmatpush.msra.mxu0 %v3359
        %3525 = vmatpush.msra.mxu0 %v3343
        %3526 = vmatpush.msra.mxu0 %v3327
        %3527 = vmatpush.msra.mxu0 %v3311
        %3528 = vmatpush.msra.mxu0 %v3295
        %3529 = vmatpush.msra.mxu0 %v3279
        %3530 = vmatpush.msra.mxu0 %v3263
        %3531 = vmatmul.f32.gmra.mxu0 %v343
        %v3532 = vpop.f32.mrf.mxu0
        %v3533 = vadd.f32 0.0, %v3532
        %3534 = vmatmul.f32.gmra.mxu0 %v346
        %v3535 = vpop.f32.mrf.mxu0
        %v3536 = vadd.f32 0.0, %v3535
        %3537 = vmatmul.f32.gmra.mxu0 %v349
        %v3538 = vpop.f32.mrf.mxu0
        %v3539 = vadd.f32 0.0, %v3538
        %3540 = vmatmul.f32.gmra.mxu0 %v352
        %v3541 = vpop.f32.mrf.mxu0
        %v3542 = vadd.f32 0.0, %v3541
        %3543 = vdwg.mxu0
        %3544 = vmatpush.msra.mxu0 0.0
        %3545 = vmatpush.msra.mxu0 0.0
        %3546 = vmatpush.msra.mxu0 0.0
        %3547 = vmatpush.msra.mxu0 0.0
        %3548 = vmatpush.msra.mxu0 0.0
        %3549 = vmatpush.msra.mxu0 0.0
        %3550 = vmatpush.msra.mxu0 0.0
        %3551 = vmatpush.msra.mxu0 0.0
        %3552 = vmatpush.msra.mxu0 0.0
        %3553 = vmatpush.msra.mxu0 %v3360
        %3554 = vmatpush.msra.mxu0 %v3344
        %3555 = vmatpush.msra.mxu0 %v3328
        %3556 = vmatpush.msra.mxu0 %v3312
        %3557 = vmatpush.msra.mxu0 %v3296
        %3558 = vmatpush.msra.mxu0 %v3280
        %3559 = vmatpush.msra.mxu0 %v3264
        %3560 = vmatmul.f32.gmra.mxu0 %v343
        %v3561 = vpop.f32.mrf.mxu0
        %v3562 = vadd.f32 0.0, %v3561
        %3563 = vmatmul.f32.gmra.mxu0 %v346
        %v3564 = vpop.f32.mrf.mxu0
        %v3565 = vadd.f32 0.0, %v3564
        %3566 = vmatmul.f32.gmra.mxu0 %v349
        %v3567 = vpop.f32.mrf.mxu0
        %v3568 = vadd.f32 0.0, %v3567
        %3569 = vmatmul.f32.gmra.mxu0 %v352
        %v3570 = vpop.f32.mrf.mxu0
        %v3571 = vadd.f32 0.0, %v3570
        %3572 = vdwg.mxu0
        %3573 = vmatpush.msra.mxu0 0.0
        %3574 = vmatpush.msra.mxu0 0.0
        %3575 = vmatpush.msra.mxu0 0.0
        %3576 = vmatpush.msra.mxu0 0.0
        %3577 = vmatpush.msra.mxu0 0.0
        %3578 = vmatpush.msra.mxu0 0.0
        %3579 = vmatpush.msra.mxu0 0.0
        %3580 = vmatpush.msra.mxu0 0.0
        %3581 = vmatpush.msra.mxu0 0.0
        %3582 = vmatpush.msra.mxu0 %v3361
        %3583 = vmatpush.msra.mxu0 %v3345
        %3584 = vmatpush.msra.mxu0 %v3329
        %3585 = vmatpush.msra.mxu0 %v3313
        %3586 = vmatpush.msra.mxu0 %v3297
        %3587 = vmatpush.msra.mxu0 %v3281
        %3588 = vmatpush.msra.mxu0 %v3265
        %3589 = vmatmul.f32.gmra.mxu0 %v343
        %v3590 = vpop.f32.mrf.mxu0
        %v3591 = vadd.f32 0.0, %v3590
        %3592 = vmatmul.f32.gmra.mxu0 %v346
        %v3593 = vpop.f32.mrf.mxu0
        %v3594 = vadd.f32 0.0, %v3593
        %3595 = vmatmul.f32.gmra.mxu0 %v349
        %v3596 = vpop.f32.mrf.mxu0
        %v3597 = vadd.f32 0.0, %v3596
        %3598 = vmatmul.f32.gmra.mxu0 %v352
        %v3599 = vpop.f32.mrf.mxu0
        %v3600 = vadd.f32 0.0, %v3599
        %3601 = vdwg.mxu0
        %3602 = vmatpush.msra.mxu0 0.0
        %3603 = vmatpush.msra.mxu0 0.0
        %3604 = vmatpush.msra.mxu0 0.0
        %3605 = vmatpush.msra.mxu0 0.0
        %3606 = vmatpush.msra.mxu0 0.0
        %3607 = vmatpush.msra.mxu0 0.0
        %3608 = vmatpush.msra.mxu0 0.0
        %3609 = vmatpush.msra.mxu0 0.0
        %3610 = vmatpush.msra.mxu0 0.0
        %3611 = vmatpush.msra.mxu0 %v3362
        %3612 = vmatpush.msra.mxu0 %v3346
        %3613 = vmatpush.msra.mxu0 %v3330
        %3614 = vmatpush.msra.mxu0 %v3314
        %3615 = vmatpush.msra.mxu0 %v3298
        %3616 = vmatpush.msra.mxu0 %v3282
        %3617 = vmatpush.msra.mxu0 %v3266
        %3618 = vmatmul.f32.gmra.mxu0 %v343
        %v3619 = vpop.f32.mrf.mxu0
        %v3620 = vadd.f32 0.0, %v3619
        %3621 = vmatmul.f32.gmra.mxu0 %v346
        %v3622 = vpop.f32.mrf.mxu0
        %v3623 = vadd.f32 0.0, %v3622
        %3624 = vmatmul.f32.gmra.mxu0 %v349
        %v3625 = vpop.f32.mrf.mxu0
        %v3626 = vadd.f32 0.0, %v3625
        %3627 = vmatmul.f32.gmra.mxu0 %v352
        %v3628 = vpop.f32.mrf.mxu0
        %v3629 = vadd.f32 0.0, %v3628
        %3630 = vdwg.mxu0
        %3631 = vmatpush.msra.mxu0 0.0
        %3632 = vmatpush.msra.mxu0 0.0
        %3633 = vmatpush.msra.mxu0 0.0
        %3634 = vmatpush.msra.mxu0 0.0
        %3635 = vmatpush.msra.mxu0 0.0
        %3636 = vmatpush.msra.mxu0 0.0
        %3637 = vmatpush.msra.mxu0 0.0
        %3638 = vmatpush.msra.mxu0 0.0
        %3639 = vmatpush.msra.mxu0 0.0
        %3640 = vmatpush.msra.mxu0 %v3363
        %3641 = vmatpush.msra.mxu0 %v3347
        %3642 = vmatpush.msra.mxu0 %v3331
        %3643 = vmatpush.msra.mxu0 %v3315
        %3644 = vmatpush.msra.mxu0 %v3299
        %3645 = vmatpush.msra.mxu0 %v3283
        %3646 = vmatpush.msra.mxu0 %v3267
        %3647 = vmatmul.f32.gmra.mxu0 %v343
        %v3648 = vpop.f32.mrf.mxu0
        %v3649 = vadd.f32 0.0, %v3648
        %3650 = vmatmul.f32.gmra.mxu0 %v346
        %v3651 = vpop.f32.mrf.mxu0
        %v3652 = vadd.f32 0.0, %v3651
        %3653 = vmatmul.f32.gmra.mxu0 %v349
        %v3654 = vpop.f32.mrf.mxu0
        %v3655 = vadd.f32 0.0, %v3654
        %3656 = vmatmul.f32.gmra.mxu0 %v352
        %v3657 = vpop.f32.mrf.mxu0
        %v3658 = vadd.f32 0.0, %v3657
        %3659 = vdwg.mxu0
        %3660 = vmatpush.msra.mxu0 0.0
        %3661 = vmatpush.msra.mxu0 0.0
        %3662 = vmatpush.msra.mxu0 0.0
        %3663 = vmatpush.msra.mxu0 0.0
        %3664 = vmatpush.msra.mxu0 0.0
        %3665 = vmatpush.msra.mxu0 0.0
        %3666 = vmatpush.msra.mxu0 0.0
        %3667 = vmatpush.msra.mxu0 0.0
        %3668 = vmatpush.msra.mxu0 0.0
        %3669 = vmatpush.msra.mxu0 %v3364
        %3670 = vmatpush.msra.mxu0 %v3348
        %3671 = vmatpush.msra.mxu0 %v3332
        %3672 = vmatpush.msra.mxu0 %v3316
        %3673 = vmatpush.msra.mxu0 %v3300
        %3674 = vmatpush.msra.mxu0 %v3284
        %3675 = vmatpush.msra.mxu0 %v3268
        %3676 = vmatmul.f32.gmra.mxu0 %v343
        %v3677 = vpop.f32.mrf.mxu0
        %v3678 = vadd.f32 0.0, %v3677
        %3679 = vmatmul.f32.gmra.mxu0 %v346
        %v3680 = vpop.f32.mrf.mxu0
        %v3681 = vadd.f32 0.0, %v3680
        %3682 = vmatmul.f32.gmra.mxu0 %v349
        %v3683 = vpop.f32.mrf.mxu0
        %v3684 = vadd.f32 0.0, %v3683
        %3685 = vmatmul.f32.gmra.mxu0 %v352
        %v3686 = vpop.f32.mrf.mxu0
        %v3687 = vadd.f32 0.0, %v3686
        %3688 = vdwg.mxu0
        %3689 = vmatpush.msra.mxu0 0.0
        %3690 = vmatpush.msra.mxu0 0.0
        %3691 = vmatpush.msra.mxu0 0.0
        %3692 = vmatpush.msra.mxu0 0.0
        %3693 = vmatpush.msra.mxu0 0.0
        %3694 = vmatpush.msra.mxu0 0.0
        %3695 = vmatpush.msra.mxu0 0.0
        %3696 = vmatpush.msra.mxu0 0.0
        %3697 = vmatpush.msra.mxu0 0.0
        %3698 = vmatpush.msra.mxu0 %v3365
        %3699 = vmatpush.msra.mxu0 %v3349
        %3700 = vmatpush.msra.mxu0 %v3333
        %3701 = vmatpush.msra.mxu0 %v3317
        %3702 = vmatpush.msra.mxu0 %v3301
        %3703 = vmatpush.msra.mxu0 %v3285
        %3704 = vmatpush.msra.mxu0 %v3269
        %3705 = vmatmul.f32.gmra.mxu0 %v343
        %v3706 = vpop.f32.mrf.mxu0
        %v3707 = vadd.f32 0.0, %v3706
        %3708 = vmatmul.f32.gmra.mxu0 %v346
        %v3709 = vpop.f32.mrf.mxu0
        %v3710 = vadd.f32 0.0, %v3709
        %3711 = vmatmul.f32.gmra.mxu0 %v349
        %v3712 = vpop.f32.mrf.mxu0
        %v3713 = vadd.f32 0.0, %v3712
        %3714 = vmatmul.f32.gmra.mxu0 %v352
        %v3715 = vpop.f32.mrf.mxu0
        %v3716 = vadd.f32 0.0, %v3715
        %3717 = vdwg.mxu0
        %3718 = vmatpush.msra.mxu0 0.0
        %3719 = vmatpush.msra.mxu0 0.0
        %3720 = vmatpush.msra.mxu0 0.0
        %3721 = vmatpush.msra.mxu0 0.0
        %3722 = vmatpush.msra.mxu0 0.0
        %3723 = vmatpush.msra.mxu0 0.0
        %3724 = vmatpush.msra.mxu0 0.0
        %3725 = vmatpush.msra.mxu0 0.0
        %3726 = vmatpush.msra.mxu0 0.0
        %3727 = vmatpush.msra.mxu0 %v3366
        %3728 = vmatpush.msra.mxu0 %v3350
        %3729 = vmatpush.msra.mxu0 %v3334
        %3730 = vmatpush.msra.mxu0 %v3318
        %3731 = vmatpush.msra.mxu0 %v3302
        %3732 = vmatpush.msra.mxu0 %v3286
        %3733 = vmatpush.msra.mxu0 %v3270
        %3734 = vmatmul.f32.gmra.mxu0 %v343
        %v3735 = vpop.f32.mrf.mxu0
        %v3736 = vadd.f32 0.0, %v3735
        %3737 = vmatmul.f32.gmra.mxu0 %v346
        %v3738 = vpop.f32.mrf.mxu0
        %v3739 = vadd.f32 0.0, %v3738
        %3740 = vmatmul.f32.gmra.mxu0 %v349
        %v3741 = vpop.f32.mrf.mxu0
        %v3742 = vadd.f32 0.0, %v3741
        %3743 = vmatmul.f32.gmra.mxu0 %v352
        %v3744 = vpop.f32.mrf.mxu0
        %v3745 = vadd.f32 0.0, %v3744
        %3746 = vdwg.mxu0
        %3747 = vmatpush.msra.mxu0 0.0
        %3748 = vmatpush.msra.mxu0 0.0
        %3749 = vmatpush.msra.mxu0 0.0
        %3750 = vmatpush.msra.mxu0 0.0
        %3751 = vmatpush.msra.mxu0 0.0
        %3752 = vmatpush.msra.mxu0 0.0
        %3753 = vmatpush.msra.mxu0 0.0
        %3754 = vmatpush.msra.mxu0 0.0
        %3755 = vmatpush.msra.mxu0 0.0
        %3756 = vmatpush.msra.mxu0 %v3367
        %3757 = vmatpush.msra.mxu0 %v3351
        %3758 = vmatpush.msra.mxu0 %v3335
        %3759 = vmatpush.msra.mxu0 %v3319
        %3760 = vmatpush.msra.mxu0 %v3303
        %3761 = vmatpush.msra.mxu0 %v3287
        %3762 = vmatpush.msra.mxu0 %v3271
        %3763 = vmatmul.f32.gmra.mxu0 %v343
        %v3764 = vpop.f32.mrf.mxu0
        %v3765 = vadd.f32 0.0, %v3764
        %3766 = vmatmul.f32.gmra.mxu0 %v346
        %v3767 = vpop.f32.mrf.mxu0
        %v3768 = vadd.f32 0.0, %v3767
        %3769 = vmatmul.f32.gmra.mxu0 %v349
        %v3770 = vpop.f32.mrf.mxu0
        %v3771 = vadd.f32 0.0, %v3770
        %3772 = vmatmul.f32.gmra.mxu0 %v352
        %v3773 = vpop.f32.mrf.mxu0
        %v3774 = vadd.f32 0.0, %v3773
        %3775 = vdwg.mxu0
        %3776 = vmatpush.msra.mxu0 0.0
        %3777 = vmatpush.msra.mxu0 0.0
        %3778 = vmatpush.msra.mxu0 0.0
        %3779 = vmatpush.msra.mxu0 0.0
        %3780 = vmatpush.msra.mxu0 0.0
        %3781 = vmatpush.msra.mxu0 0.0
        %3782 = vmatpush.msra.mxu0 0.0
        %3783 = vmatpush.msra.mxu0 0.0
        %3784 = vmatpush.msra.mxu0 0.0
        %3785 = vmatpush.msra.mxu0 %v3368
        %3786 = vmatpush.msra.mxu0 %v3352
        %3787 = vmatpush.msra.mxu0 %v3336
        %3788 = vmatpush.msra.mxu0 %v3320
        %3789 = vmatpush.msra.mxu0 %v3304
        %3790 = vmatpush.msra.mxu0 %v3288
        %3791 = vmatpush.msra.mxu0 %v3272
        %3792 = vmatmul.f32.gmra.mxu0 %v343
        %v3793 = vpop.f32.mrf.mxu0
        %v3794 = vadd.f32 0.0, %v3793
        %3795 = vmatmul.f32.gmra.mxu0 %v346
        %v3796 = vpop.f32.mrf.mxu0
        %v3797 = vadd.f32 0.0, %v3796
        %3798 = vmatmul.f32.gmra.mxu0 %v349
        %v3799 = vpop.f32.mrf.mxu0
        %v3800 = vadd.f32 0.0, %v3799
        %3801 = vmatmul.f32.gmra.mxu0 %v352
        %v3802 = vpop.f32.mrf.mxu0
        %v3803 = vadd.f32 0.0, %v3802
        %3804 = vdwg.mxu0
        %3805 = vmatpush.msra.mxu0 0.0
        %3806 = vmatpush.msra.mxu0 0.0
        %3807 = vmatpush.msra.mxu0 0.0
        %3808 = vmatpush.msra.mxu0 0.0
        %3809 = vmatpush.msra.mxu0 0.0
        %3810 = vmatpush.msra.mxu0 0.0
        %3811 = vmatpush.msra.mxu0 0.0
        %3812 = vmatpush.msra.mxu0 0.0
        %3813 = vmatpush.msra.mxu0 0.0
        %3814 = vmatpush.msra.mxu0 %v3369
        %3815 = vmatpush.msra.mxu0 %v3353
        %3816 = vmatpush.msra.mxu0 %v3337
        %3817 = vmatpush.msra.mxu0 %v3321
        %3818 = vmatpush.msra.mxu0 %v3305
        %3819 = vmatpush.msra.mxu0 %v3289
        %3820 = vmatpush.msra.mxu0 %v3273
        %3821 = vmatmul.f32.gmra.mxu0 %v343
        %v3822 = vpop.f32.mrf.mxu0
        %v3823 = vadd.f32 0.0, %v3822
        %3824 = vmatmul.f32.gmra.mxu0 %v346
        %v3825 = vpop.f32.mrf.mxu0
        %v3826 = vadd.f32 0.0, %v3825
        %3827 = vmatmul.f32.gmra.mxu0 %v349
        %v3828 = vpop.f32.mrf.mxu0
        %v3829 = vadd.f32 0.0, %v3828
        %3830 = vmatmul.f32.gmra.mxu0 %v352
        %v3831 = vpop.f32.mrf.mxu0
        %v3832 = vadd.f32 0.0, %v3831
        %3833 = vdwg.mxu0
        %v3834 = vmax.f32 %v3388, %v3504
        %v3835 = vmax.f32 %v3417, %v3533
        %v3836 = vmax.f32 %v3446, %v3562
        %v3837 = vmax.f32 %v3475, %v3591
        %v3838 = vmax.f32 %v3391, %v3507
        %v3839 = vmax.f32 %v3420, %v3536
        %v3840 = vmax.f32 %v3449, %v3565
        %v3841 = vmax.f32 %v3478, %v3594
        %v3842 = vmax.f32 %v3394, %v3510
        %v3843 = vmax.f32 %v3423, %v3539
        %v3844 = vmax.f32 %v3452, %v3568
        %v3845 = vmax.f32 %v3481, %v3597
        %v3846 = vmax.f32 %v3397, %v3513
        %v3847 = vmax.f32 %v3426, %v3542
        %v3848 = vmax.f32 %v3455, %v3571
        %v3849 = vmax.f32 %v3484, %v3600
        %v3850 = vmax.f32 %v3620, %v3736
        %v3851 = vmax.f32 %v3649, %v3765
        %v3852 = vmax.f32 %v3678, %v3794
        %v3853 = vmax.f32 %v3707, %v3823
        %v3854 = vmax.f32 %v3623, %v3739
        %v3855 = vmax.f32 %v3652, %v3768
        %v3856 = vmax.f32 %v3681, %v3797
        %v3857 = vmax.f32 %v3710, %v3826
        %v3858 = vmax.f32 %v3626, %v3742
        %v3859 = vmax.f32 %v3655, %v3771
        %v3860 = vmax.f32 %v3684, %v3800
        %v3861 = vmax.f32 %v3713, %v3829
        %v3862 = vmax.f32 %v3629, %v3745
        %v3863 = vmax.f32 %v3658, %v3774
        %v3864 = vmax.f32 %v3687, %v3803
        %v3865 = vmax.f32 %v3716, %v3832
        %v3866 = vmax.f32 %v3834, %v3850
        %v3867 = vmax.f32 %v3835, %v3851
        %v3868 = vmax.f32 %v3836, %v3852
        %v3869 = vmax.f32 %v3837, %v3853
        %v3870 = vmax.f32 %v3838, %v3854
        %v3871 = vmax.f32 %v3839, %v3855
        %v3872 = vmax.f32 %v3840, %v3856
        %v3873 = vmax.f32 %v3841, %v3857
        %v3874 = vmax.f32 %v3842, %v3858
        %v3875 = vmax.f32 %v3843, %v3859
        %v3876 = vmax.f32 %v3844, %v3860
        %v3877 = vmax.f32 %v3845, %v3861
        %v3878 = vmax.f32 %v3846, %v3862
        %v3879 = vmax.f32 %v3847, %v3863
        %v3880 = vmax.f32 %v3848, %v3864
        %v3881 = vmax.f32 %v3849, %v3865
        %v3882 = vld [vmem:[#allocation2] sm:$0xff]
        %v3883 = vld [vmem:[#allocation2 + $0x8] sm:$0xff]
        %v3884 = vld [vmem:[#allocation2 + $0x10] sm:$0xff]
        %v3885 = vld [vmem:[#allocation2 + $0x18] sm:$0xff]
        %v3886 = vld [vmem:[#allocation2 + $0x20] sm:$0xff]
        %v3887 = vld [vmem:[#allocation2 + $0x28] sm:$0xff]
        %v3888 = vld [vmem:[#allocation2 + $0x30] sm:$0xff]
        %v3889 = vld [vmem:[#allocation2 + $0x38] sm:$0xff]
        %v3890 = vld [vmem:[#allocation2 + $0x40] sm:$0xff]
        %v3891 = vld [vmem:[#allocation2 + $0x48] sm:$0xff]
        %v3892 = vld [vmem:[#allocation2 + $0x50] sm:$0xff]
        %v3893 = vld [vmem:[#allocation2 + $0x58] sm:$0xff]
        %v3894 = vld [vmem:[#allocation2 + $0x60] sm:$0xff]
        %v3895 = vld [vmem:[#allocation2 + $0x68] sm:$0xff]
        %v3896 = vld [vmem:[#allocation2 + $0x70] sm:$0xff]
        %v3897 = vld [vmem:[#allocation2 + $0x78] sm:$0xff]
        %v3898 = vmul.f32 %v3882, 0.9
        %v3899 = vmul.f32 %v3883, 0.9
        %v3900 = vmul.f32 %v3884, 0.9
        %v3901 = vmul.f32 %v3885, 0.9
        %v3902 = vmul.f32 %v3886, 0.9
        %v3903 = vmul.f32 %v3887, 0.9
        %v3904 = vmul.f32 %v3888, 0.9
        %v3905 = vmul.f32 %v3889, 0.9
        %v3906 = vmul.f32 %v3890, 0.9
        %v3907 = vmul.f32 %v3891, 0.9
        %v3908 = vmul.f32 %v3892, 0.9
        %v3909 = vmul.f32 %v3893, 0.9
        %v3910 = vmul.f32 %v3894, 0.9
        %v3911 = vmul.f32 %v3895, 0.9
        %v3912 = vmul.f32 %v3896, 0.9
        %v3913 = vmul.f32 %v3897, 0.9
        %v3914 = vadd.f32 %v3898, %v3866
        %v3915 = vadd.f32 %v3899, %v3867
        %v3916 = vadd.f32 %v3900, %v3868
        %v3917 = vadd.f32 %v3901, %v3869
        %v3918 = vadd.f32 %v3902, %v3870
        %v3919 = vadd.f32 %v3903, %v3871
        %v3920 = vadd.f32 %v3904, %v3872
        %v3921 = vadd.f32 %v3905, %v3873
        %v3922 = vadd.f32 %v3906, %v3874
        %v3923 = vadd.f32 %v3907, %v3875
        %v3924 = vadd.f32 %v3908, %v3876
        %v3925 = vadd.f32 %v3909, %v3877
        %v3926 = vadd.f32 %v3910, %v3878
        %v3927 = vadd.f32 %v3911, %v3879
        %v3928 = vadd.f32 %v3912, %v3880
        %v3929 = vadd.f32 %v3913, %v3881
        %vm3930 = vcmp.gt.f32.partialorder %v3882, 1.0
        %vm3931 = vcmp.gt.f32.partialorder %v3883, 1.0
        %vm3932 = vcmp.gt.f32.partialorder %v3884, 1.0
        %vm3933 = vcmp.gt.f32.partialorder %v3885, 1.0
        %vm3934 = vcmp.gt.f32.partialorder %v3886, 1.0
        %vm3935 = vcmp.gt.f32.partialorder %v3887, 1.0
        %vm3936 = vcmp.gt.f32.partialorder %v3888, 1.0
        %vm3937 = vcmp.gt.f32.partialorder %v3889, 1.0
        %vm3938 = vcmp.gt.f32.partialorder %v3890, 1.0
        %vm3939 = vcmp.gt.f32.partialorder %v3891, 1.0
        %vm3940 = vcmp.gt.f32.partialorder %v3892, 1.0
        %vm3941 = vcmp.gt.f32.partialorder %v3893, 1.0
        %vm3942 = vcmp.gt.f32.partialorder %v3894, 1.0
        %vm3943 = vcmp.gt.f32.partialorder %v3895, 1.0
        %vm3944 = vcmp.gt.f32.partialorder %v3896, 1.0
        %vm3945 = vcmp.gt.f32.partialorder %v3897, 1.0
        %v3946 = vsel %vm3930, 1, 0
        %v3947 = vsel %vm3931, 1, 0
        %v3948 = vsel %vm3932, 1, 0
        %v3949 = vsel %vm3933, 1, 0
        %v3950 = vsel %vm3934, 1, 0
        %v3951 = vsel %vm3935, 1, 0
        %v3952 = vsel %vm3936, 1, 0
        %v3953 = vsel %vm3937, 1, 0
        %v3954 = vsel %vm3938, 1, 0
        %v3955 = vsel %vm3939, 1, 0
        %v3956 = vsel %vm3940, 1, 0
        %v3957 = vsel %vm3941, 1, 0
        %v3958 = vsel %vm3942, 1, 0
        %v3959 = vsel %vm3943, 1, 0
        %v3960 = vsel %vm3944, 1, 0
        %v3961 = vsel %vm3945, 1, 0
        %v3962 = vcvt.s32.f32 %v3946
        %v3963 = vcvt.s32.f32 %v3947
        %v3964 = vcvt.s32.f32 %v3948
        %v3965 = vcvt.s32.f32 %v3949
        %v3966 = vcvt.s32.f32 %v3950
        %v3967 = vcvt.s32.f32 %v3951
        %v3968 = vcvt.s32.f32 %v3952
        %v3969 = vcvt.s32.f32 %v3953
        %v3970 = vcvt.s32.f32 %v3954
        %v3971 = vcvt.s32.f32 %v3955
        %v3972 = vcvt.s32.f32 %v3956
        %v3973 = vcvt.s32.f32 %v3957
        %v3974 = vcvt.s32.f32 %v3958
        %v3975 = vcvt.s32.f32 %v3959
        %v3976 = vcvt.s32.f32 %v3960
        %v3977 = vcvt.s32.f32 %v3961
        %v3978 = vsub.f32 %v3914, %v3962
        %v3979 = vsub.f32 %v3915, %v3963
        %v3980 = vsub.f32 %v3916, %v3964
        %v3981 = vsub.f32 %v3917, %v3965
        %v3982 = vsub.f32 %v3918, %v3966
        %v3983 = vsub.f32 %v3919, %v3967
        %v3984 = vsub.f32 %v3920, %v3968
        %v3985 = vsub.f32 %v3921, %v3969
        %v3986 = vsub.f32 %v3922, %v3970
        %v3987 = vsub.f32 %v3923, %v3971
        %v3988 = vsub.f32 %v3924, %v3972
        %v3989 = vsub.f32 %v3925, %v3973
        %v3990 = vsub.f32 %v3926, %v3974
        %v3991 = vsub.f32 %v3927, %v3975
        %v3992 = vsub.f32 %v3928, %v3976
        %v3993 = vsub.f32 %v3929, %v3977
        %3994 = vst [vmem:[#allocation2] sm:$0xff] %v3978
        %3995 = vst [vmem:[#allocation2 + $0x8] sm:$0xff] %v3979
        %3996 = vst [vmem:[#allocation2 + $0x10] sm:$0xff] %v3980
        %3997 = vst [vmem:[#allocation2 + $0x18] sm:$0xff] %v3981
        %3998 = vst [vmem:[#allocation2 + $0x20] sm:$0xff] %v3982
        %3999 = vst [vmem:[#allocation2 + $0x28] sm:$0xff] %v3983
        %4000 = vst [vmem:[#allocation2 + $0x30] sm:$0xff] %v3984
        %4001 = vst [vmem:[#allocation2 + $0x38] sm:$0xff] %v3985
        %4002 = vst [vmem:[#allocation2 + $0x40] sm:$0xff] %v3986
        %4003 = vst [vmem:[#allocation2 + $0x48] sm:$0xff] %v3987
        %4004 = vst [vmem:[#allocation2 + $0x50] sm:$0xff] %v3988
        %4005 = vst [vmem:[#allocation2 + $0x58] sm:$0xff] %v3989
        %4006 = vst [vmem:[#allocation2 + $0x60] sm:$0xff] %v3990
        %4007 = vst [vmem:[#allocation2 + $0x68] sm:$0xff] %v3991
        %4008 = vst [vmem:[#allocation2 + $0x70] sm:$0xff] %v3992
        %4009 = vst [vmem:[#allocation2 + $0x78] sm:$0xff] %v3993
        %vm4010 = vcmp.gt.f32.partialorder %v3978, 1.0
        %vm4011 = vcmp.gt.f32.partialorder %v3979, 1.0
        %vm4012 = vcmp.gt.f32.partialorder %v3980, 1.0
        %vm4013 = vcmp.gt.f32.partialorder %v3981, 1.0
        %vm4014 = vcmp.gt.f32.partialorder %v3982, 1.0
        %vm4015 = vcmp.gt.f32.partialorder %v3983, 1.0
        %vm4016 = vcmp.gt.f32.partialorder %v3984, 1.0
        %vm4017 = vcmp.gt.f32.partialorder %v3985, 1.0
        %vm4018 = vcmp.gt.f32.partialorder %v3986, 1.0
        %vm4019 = vcmp.gt.f32.partialorder %v3987, 1.0
        %vm4020 = vcmp.gt.f32.partialorder %v3988, 1.0
        %vm4021 = vcmp.gt.f32.partialorder %v3989, 1.0
        %vm4022 = vcmp.gt.f32.partialorder %v3990, 1.0
        %vm4023 = vcmp.gt.f32.partialorder %v3991, 1.0
        %vm4024 = vcmp.gt.f32.partialorder %v3992, 1.0
        %vm4025 = vcmp.gt.f32.partialorder %v3993, 1.0
        %v4026 = vsel %vm4010, 1, 0
        %v4027 = vsel %vm4011, 1, 0
        %v4028 = vsel %vm4012, 1, 0
        %v4029 = vsel %vm4013, 1, 0
        %v4030 = vsel %vm4014, 1, 0
        %v4031 = vsel %vm4015, 1, 0
        %v4032 = vsel %vm4016, 1, 0
        %v4033 = vsel %vm4017, 1, 0
        %v4034 = vsel %vm4018, 1, 0
        %v4035 = vsel %vm4019, 1, 0
        %v4036 = vsel %vm4020, 1, 0
        %v4037 = vsel %vm4021, 1, 0
        %v4038 = vsel %vm4022, 1, 0
        %v4039 = vsel %vm4023, 1, 0
        %v4040 = vsel %vm4024, 1, 0
        %v4041 = vsel %vm4025, 1, 0
        %v4042 = vcvt.s32.f32 %v4026
        %v4043 = vcvt.s32.f32 %v4027
        %v4044 = vcvt.s32.f32 %v4028
        %v4045 = vcvt.s32.f32 %v4029
        %v4046 = vcvt.s32.f32 %v4030
        %v4047 = vcvt.s32.f32 %v4031
        %v4048 = vcvt.s32.f32 %v4032
        %v4049 = vcvt.s32.f32 %v4033
        %v4050 = vcvt.s32.f32 %v4034
        %v4051 = vcvt.s32.f32 %v4035
        %v4052 = vcvt.s32.f32 %v4036
        %v4053 = vcvt.s32.f32 %v4037
        %v4054 = vcvt.s32.f32 %v4038
        %v4055 = vcvt.s32.f32 %v4039
        %v4056 = vcvt.s32.f32 %v4040
        %v4057 = vcvt.s32.f32 %v4041
        %v4058 = vld [vmem:[%s2] sm:$0xff]
        %v4059 = vld [vmem:[%s2 + $0x8] sm:$0xff]
        %v4060 = vld [vmem:[%s2 + $0x10] sm:$0xff]
        %v4061 = vld [vmem:[%s2 + $0x18] sm:$0xff]
        %v4062 = vld [vmem:[%s2 + $0x20] sm:$0xff]
        %v4063 = vld [vmem:[%s2 + $0x28] sm:$0xff]
        %v4064 = vld [vmem:[%s2 + $0x30] sm:$0xff]
        %v4065 = vld [vmem:[%s2 + $0x38] sm:$0xff]
        %v4066 = vmul.f32 %v4042, %v4058
        %v4067 = vmul.f32 %v4043, %v4059
        %v4068 = vmul.f32 %v4046, %v4060
        %v4069 = vmul.f32 %v4047, %v4061
        %v4070 = vmul.f32 %v4050, %v4062
        %v4071 = vmul.f32 %v4051, %v4063
        %v4072 = vmul.f32 %v4054, %v4064
        %v4073 = vmul.f32 %v4055, %v4065
        %v4074 = vadd.f32 %v4066, %v4067
        %4075 = vadd.xlane.f32.xlu0 %v4074
        %v4076 = vpop.xlane.xlu0 %4075
        %v4077 = vadd.f32 %v4068, %v4069
        %4078 = vadd.xlane.f32.xlu0 %v4077
        %v4079 = vpop.xlane.xlu0 %4078
        %v4080 = vadd.f32 %v4070, %v4071
        %4081 = vadd.xlane.f32.xlu0 %v4080
        %v4082 = vpop.xlane.xlu0 %4081
        %v4083 = vadd.f32 %v4072, %v4073
        %4084 = vadd.xlane.f32.xlu0 %v4083
        %v4085 = vpop.xlane.xlu0 %4084
        %v4086 = vadd.f32 %v4076, %v4079
        %v4087 = vadd.f32 %v4086, %v4082
        %v4088 = vadd.f32 %v4087, %v4085
        %v4089 = vrot.slane %v4088, 4
        %v4090 = vadd.f32 %v4088, %v4089
        %v4091 = vrot.slane %v4090, 2
        %v4092 = vadd.f32 %v4090, %v4091
        %v4093 = vrot.slane %v4092, 1
        %v4094 = vadd.f32 %v4092, %v4093
        %v4095 = vmul.f32 %v4044, %v4058
        %v4096 = vmul.f32 %v4045, %v4059
        %v4097 = vmul.f32 %v4048, %v4060
        %v4098 = vmul.f32 %v4049, %v4061
        %v4099 = vmul.f32 %v4052, %v4062
        %v4100 = vmul.f32 %v4053, %v4063
        %v4101 = vmul.f32 %v4056, %v4064
        %v4102 = vmul.f32 %v4057, %v4065
        %v4103 = vadd.f32 %v4095, %v4096
        %4104 = vadd.xlane.f32.xlu0 %v4103
        %v4105 = vpop.xlane.xlu0 %4104
        %v4106 = vadd.f32 %v4097, %v4098
        %4107 = vadd.xlane.f32.xlu0 %v4106
        %v4108 = vpop.xlane.xlu0 %4107
        %v4109 = vadd.f32 %v4099, %v4100
        %4110 = vadd.xlane.f32.xlu0 %v4109
        %v4111 = vpop.xlane.xlu0 %4110
        %v4112 = vadd.f32 %v4101, %v4102
        %4113 = vadd.xlane.f32.xlu0 %v4112
        %v4114 = vpop.xlane.xlu0 %4113
        %v4115 = vadd.f32 %v4105, %v4108
        %v4116 = vadd.f32 %v4115, %v4111
        %v4117 = vadd.f32 %v4116, %v4114
        %v4118 = vrot.slane %v4117, 4
        %v4119 = vadd.f32 %v4117, %v4118
        %v4120 = vrot.slane %v4119, 2
        %v4121 = vadd.f32 %v4119, %v4120
        %v4122 = vrot.slane %v4121, 1
        %v4123 = vadd.f32 %v4121, %v4122
        %v4124 = vld [vmem:[%s1108] sm:$0xff]
        %v4125 = vld [vmem:[%s1108 + $0x8] sm:$0xff]
        %v4126 = vld [vmem:[%s1108 + $0x10] sm:$0xff]
        %v4127 = vld [vmem:[%s1108 + $0x18] sm:$0xff]
        %v4128 = vld [vmem:[%s1108 + $0x20] sm:$0xff]
        %v4129 = vld [vmem:[%s1108 + $0x28] sm:$0xff]
        %v4130 = vld [vmem:[%s1108 + $0x30] sm:$0xff]
        %v4131 = vld [vmem:[%s1108 + $0x38] sm:$0xff]
        %v4132 = vmul.f32 %v4042, %v4124
        %v4133 = vmul.f32 %v4043, %v4125
        %v4134 = vmul.f32 %v4046, %v4126
        %v4135 = vmul.f32 %v4047, %v4127
        %v4136 = vmul.f32 %v4050, %v4128
        %v4137 = vmul.f32 %v4051, %v4129
        %v4138 = vmul.f32 %v4054, %v4130
        %v4139 = vmul.f32 %v4055, %v4131
        %v4140 = vadd.f32 %v4132, %v4133
        %4141 = vadd.xlane.f32.xlu0 %v4140
        %v4142 = vpop.xlane.xlu0 %4141
        %v4143 = vadd.f32 %v4134, %v4135
        %4144 = vadd.xlane.f32.xlu0 %v4143
        %v4145 = vpop.xlane.xlu0 %4144
        %v4146 = vadd.f32 %v4136, %v4137
        %4147 = vadd.xlane.f32.xlu0 %v4146
        %v4148 = vpop.xlane.xlu0 %4147
        %v4149 = vadd.f32 %v4138, %v4139
        %4150 = vadd.xlane.f32.xlu0 %v4149
        %v4151 = vpop.xlane.xlu0 %4150
        %v4152 = vadd.f32 %v4142, %v4145
        %v4153 = vadd.f32 %v4152, %v4148
        %v4154 = vadd.f32 %v4153, %v4151
        %v4155 = vrot.slane %v4154, 4
        %v4156 = vadd.f32 %v4154, %v4155
        %v4157 = vrot.slane %v4156, 2
        %v4158 = vadd.f32 %v4156, %v4157
        %v4159 = vrot.slane %v4158, 1
        %v4160 = vadd.f32 %v4158, %v4159
        %v4161 = vmul.f32 %v4044, %v4124
        %v4162 = vmul.f32 %v4045, %v4125
        %v4163 = vmul.f32 %v4048, %v4126
        %v4164 = vmul.f32 %v4049, %v4127
        %v4165 = vmul.f32 %v4052, %v4128
        %v4166 = vmul.f32 %v4053, %v4129
        %v4167 = vmul.f32 %v4056, %v4130
        %v4168 = vmul.f32 %v4057, %v4131
        %v4169 = vadd.f32 %v4161, %v4162
        %4170 = vadd.xlane.f32.xlu0 %v4169
        %v4171 = vpop.xlane.xlu0 %4170
        %v4172 = vadd.f32 %v4163, %v4164
        %4173 = vadd.xlane.f32.xlu0 %v4172
        %v4174 = vpop.xlane.xlu0 %4173
        %v4175 = vadd.f32 %v4165, %v4166
        %4176 = vadd.xlane.f32.xlu0 %v4175
        %v4177 = vpop.xlane.xlu0 %4176
        %v4178 = vadd.f32 %v4167, %v4168
        %4179 = vadd.xlane.f32.xlu0 %v4178
        %v4180 = vpop.xlane.xlu0 %4179
        %v4181 = vadd.f32 %v4171, %v4174
        %v4182 = vadd.f32 %v4181, %v4177
        %v4183 = vadd.f32 %v4182, %v4180
        %v4184 = vrot.slane %v4183, 4
        %v4185 = vadd.f32 %v4183, %v4184
        %v4186 = vrot.slane %v4185, 2
        %v4187 = vadd.f32 %v4185, %v4186
        %v4188 = vrot.slane %v4187, 1
        %v4189 = vadd.f32 %v4187, %v4188
        %v4190 = vld [vmem:[%s1175] sm:$0xff]
        %v4191 = vld [vmem:[%s1175 + $0x8] sm:$0xff]
        %v4192 = vld [vmem:[%s1175 + $0x10] sm:$0xff]
        %v4193 = vld [vmem:[%s1175 + $0x18] sm:$0xff]
        %v4194 = vld [vmem:[%s1175 + $0x20] sm:$0xff]
        %v4195 = vld [vmem:[%s1175 + $0x28] sm:$0xff]
        %v4196 = vld [vmem:[%s1175 + $0x30] sm:$0xff]
        %v4197 = vld [vmem:[%s1175 + $0x38] sm:$0xff]
        %v4198 = vmul.f32 %v4042, %v4190
        %v4199 = vmul.f32 %v4043, %v4191
        %v4200 = vmul.f32 %v4046, %v4192
        %v4201 = vmul.f32 %v4047, %v4193
        %v4202 = vmul.f32 %v4050, %v4194
        %v4203 = vmul.f32 %v4051, %v4195
        %v4204 = vmul.f32 %v4054, %v4196
        %v4205 = vmul.f32 %v4055, %v4197
        %v4206 = vadd.f32 %v4198, %v4199
        %4207 = vadd.xlane.f32.xlu0 %v4206
        %v4208 = vpop.xlane.xlu0 %4207
        %v4209 = vadd.f32 %v4200, %v4201
        %4210 = vadd.xlane.f32.xlu0 %v4209
        %v4211 = vpop.xlane.xlu0 %4210
        %v4212 = vadd.f32 %v4202, %v4203
        %4213 = vadd.xlane.f32.xlu0 %v4212
        %v4214 = vpop.xlane.xlu0 %4213
        %v4215 = vadd.f32 %v4204, %v4205
        %4216 = vadd.xlane.f32.xlu0 %v4215
        %v4217 = vpop.xlane.xlu0 %4216
        %v4218 = vadd.f32 %v4208, %v4211
        %v4219 = vadd.f32 %v4218, %v4214
        %v4220 = vadd.f32 %v4219, %v4217
        %v4221 = vrot.slane %v4220, 4
        %v4222 = vadd.f32 %v4220, %v4221
        %v4223 = vrot.slane %v4222, 2
        %v4224 = vadd.f32 %v4222, %v4223
        %v4225 = vrot.slane %v4224, 1
        %v4226 = vadd.f32 %v4224, %v4225
        %v4227 = vmul.f32 %v4044, %v4190
        %v4228 = vmul.f32 %v4045, %v4191
        %v4229 = vmul.f32 %v4048, %v4192
        %v4230 = vmul.f32 %v4049, %v4193
        %v4231 = vmul.f32 %v4052, %v4194
        %v4232 = vmul.f32 %v4053, %v4195
        %v4233 = vmul.f32 %v4056, %v4196
        %v4234 = vmul.f32 %v4057, %v4197
        %v4235 = vadd.f32 %v4227, %v4228
        %4236 = vadd.xlane.f32.xlu0 %v4235
        %v4237 = vpop.xlane.xlu0 %4236
        %v4238 = vadd.f32 %v4229, %v4230
        %4239 = vadd.xlane.f32.xlu0 %v4238
        %v4240 = vpop.xlane.xlu0 %4239
        %v4241 = vadd.f32 %v4231, %v4232
        %4242 = vadd.xlane.f32.xlu0 %v4241
        %v4243 = vpop.xlane.xlu0 %4242
        %v4244 = vadd.f32 %v4233, %v4234
        %4245 = vadd.xlane.f32.xlu0 %v4244
        %v4246 = vpop.xlane.xlu0 %4245
        %v4247 = vadd.f32 %v4237, %v4240
        %v4248 = vadd.f32 %v4247, %v4243
        %v4249 = vadd.f32 %v4248, %v4246
        %v4250 = vrot.slane %v4249, 4
        %v4251 = vadd.f32 %v4249, %v4250
        %v4252 = vrot.slane %v4251, 2
        %v4253 = vadd.f32 %v4251, %v4252
        %v4254 = vrot.slane %v4253, 1
        %v4255 = vadd.f32 %v4253, %v4254
        %v4256 = vld [vmem:[%s1242] sm:$0xff]
        %v4257 = vld [vmem:[%s1242 + $0x8] sm:$0xff]
        %v4258 = vld [vmem:[%s1242 + $0x10] sm:$0xff]
        %v4259 = vld [vmem:[%s1242 + $0x18] sm:$0xff]
        %v4260 = vld [vmem:[%s1242 + $0x20] sm:$0xff]
        %v4261 = vld [vmem:[%s1242 + $0x28] sm:$0xff]
        %v4262 = vld [vmem:[%s1242 + $0x30] sm:$0xff]
        %v4263 = vld [vmem:[%s1242 + $0x38] sm:$0xff]
        %v4264 = vmul.f32 %v4042, %v4256
        %v4265 = vmul.f32 %v4043, %v4257
        %v4266 = vmul.f32 %v4046, %v4258
        %v4267 = vmul.f32 %v4047, %v4259
        %v4268 = vmul.f32 %v4050, %v4260
        %v4269 = vmul.f32 %v4051, %v4261
        %v4270 = vmul.f32 %v4054, %v4262
        %v4271 = vmul.f32 %v4055, %v4263
        %v4272 = vadd.f32 %v4264, %v4265
        %4273 = vadd.xlane.f32.xlu0 %v4272
        %v4274 = vpop.xlane.xlu0 %4273
        %v4275 = vadd.f32 %v4266, %v4267
        %4276 = vadd.xlane.f32.xlu0 %v4275
        %v4277 = vpop.xlane.xlu0 %4276
        %v4278 = vadd.f32 %v4268, %v4269
        %4279 = vadd.xlane.f32.xlu0 %v4278
        %v4280 = vpop.xlane.xlu0 %4279
        %v4281 = vadd.f32 %v4270, %v4271
        %4282 = vadd.xlane.f32.xlu0 %v4281
        %v4283 = vpop.xlane.xlu0 %4282
        %v4284 = vadd.f32 %v4274, %v4277
        %v4285 = vadd.f32 %v4284, %v4280
        %v4286 = vadd.f32 %v4285, %v4283
        %v4287 = vrot.slane %v4286, 4
        %v4288 = vadd.f32 %v4286, %v4287
        %v4289 = vrot.slane %v4288, 2
        %v4290 = vadd.f32 %v4288, %v4289
        %v4291 = vrot.slane %v4290, 1
        %v4292 = vadd.f32 %v4290, %v4291
        %v4293 = vmul.f32 %v4044, %v4256
        %v4294 = vmul.f32 %v4045, %v4257
        %v4295 = vmul.f32 %v4048, %v4258
        %v4296 = vmul.f32 %v4049, %v4259
        %v4297 = vmul.f32 %v4052, %v4260
        %v4298 = vmul.f32 %v4053, %v4261
        %v4299 = vmul.f32 %v4056, %v4262
        %v4300 = vmul.f32 %v4057, %v4263
        %v4301 = vadd.f32 %v4293, %v4294
        %4302 = vadd.xlane.f32.xlu0 %v4301
        %v4303 = vpop.xlane.xlu0 %4302
        %v4304 = vadd.f32 %v4295, %v4296
        %4305 = vadd.xlane.f32.xlu0 %v4304
        %v4306 = vpop.xlane.xlu0 %4305
        %v4307 = vadd.f32 %v4297, %v4298
        %4308 = vadd.xlane.f32.xlu0 %v4307
        %v4309 = vpop.xlane.xlu0 %4308
        %v4310 = vadd.f32 %v4299, %v4300
        %4311 = vadd.xlane.f32.xlu0 %v4310
        %v4312 = vpop.xlane.xlu0 %4311
        %v4313 = vadd.f32 %v4303, %v4306
        %v4314 = vadd.f32 %v4313, %v4309
        %v4315 = vadd.f32 %v4314, %v4312
        %v4316 = vrot.slane %v4315, 4
        %v4317 = vadd.f32 %v4315, %v4316
        %v4318 = vrot.slane %v4317, 2
        %v4319 = vadd.f32 %v4317, %v4318
        %v4320 = vrot.slane %v4319, 1
        %v4321 = vadd.f32 %v4319, %v4320
        %v4322 = vld [vmem:[%s1309] sm:$0xff]
        %v4323 = vld [vmem:[%s1309 + $0x8] sm:$0xff]
        %v4324 = vld [vmem:[%s1309 + $0x10] sm:$0xff]
        %v4325 = vld [vmem:[%s1309 + $0x18] sm:$0xff]
        %v4326 = vld [vmem:[%s1309 + $0x20] sm:$0xff]
        %v4327 = vld [vmem:[%s1309 + $0x28] sm:$0xff]
        %v4328 = vld [vmem:[%s1309 + $0x30] sm:$0xff]
        %v4329 = vld [vmem:[%s1309 + $0x38] sm:$0xff]
        %v4330 = vmul.f32 %v4042, %v4322
        %v4331 = vmul.f32 %v4043, %v4323
        %v4332 = vmul.f32 %v4046, %v4324
        %v4333 = vmul.f32 %v4047, %v4325
        %v4334 = vmul.f32 %v4050, %v4326
        %v4335 = vmul.f32 %v4051, %v4327
        %v4336 = vmul.f32 %v4054, %v4328
        %v4337 = vmul.f32 %v4055, %v4329
        %v4338 = vadd.f32 %v4330, %v4331
        %4339 = vadd.xlane.f32.xlu0 %v4338
        %v4340 = vpop.xlane.xlu0 %4339
        %v4341 = vadd.f32 %v4332, %v4333
        %4342 = vadd.xlane.f32.xlu0 %v4341
        %v4343 = vpop.xlane.xlu0 %4342
        %v4344 = vadd.f32 %v4334, %v4335
        %4345 = vadd.xlane.f32.xlu0 %v4344
        %v4346 = vpop.xlane.xlu0 %4345
        %v4347 = vadd.f32 %v4336, %v4337
        %4348 = vadd.xlane.f32.xlu0 %v4347
        %v4349 = vpop.xlane.xlu0 %4348
        %v4350 = vadd.f32 %v4340, %v4343
        %v4351 = vadd.f32 %v4350, %v4346
        %v4352 = vadd.f32 %v4351, %v4349
        %v4353 = vrot.slane %v4352, 4
        %v4354 = vadd.f32 %v4352, %v4353
        %v4355 = vrot.slane %v4354, 2
        %v4356 = vadd.f32 %v4354, %v4355
        %v4357 = vrot.slane %v4356, 1
        %v4358 = vadd.f32 %v4356, %v4357
        %v4359 = vmul.f32 %v4044, %v4322
        %v4360 = vmul.f32 %v4045, %v4323
        %v4361 = vmul.f32 %v4048, %v4324
        %v4362 = vmul.f32 %v4049, %v4325
        %v4363 = vmul.f32 %v4052, %v4326
        %v4364 = vmul.f32 %v4053, %v4327
        %v4365 = vmul.f32 %v4056, %v4328
        %v4366 = vmul.f32 %v4057, %v4329
        %v4367 = vadd.f32 %v4359, %v4360
        %4368 = vadd.xlane.f32.xlu0 %v4367
        %v4369 = vpop.xlane.xlu0 %4368
        %v4370 = vadd.f32 %v4361, %v4362
        %4371 = vadd.xlane.f32.xlu0 %v4370
        %v4372 = vpop.xlane.xlu0 %4371
        %v4373 = vadd.f32 %v4363, %v4364
        %4374 = vadd.xlane.f32.xlu0 %v4373
        %v4375 = vpop.xlane.xlu0 %4374
        %v4376 = vadd.f32 %v4365, %v4366
        %4377 = vadd.xlane.f32.xlu0 %v4376
        %v4378 = vpop.xlane.xlu0 %4377
        %v4379 = vadd.f32 %v4369, %v4372
        %v4380 = vadd.f32 %v4379, %v4375
        %v4381 = vadd.f32 %v4380, %v4378
        %v4382 = vrot.slane %v4381, 4
        %v4383 = vadd.f32 %v4381, %v4382
        %v4384 = vrot.slane %v4383, 2
        %v4385 = vadd.f32 %v4383, %v4384
        %v4386 = vrot.slane %v4385, 1
        %v4387 = vadd.f32 %v4385, %v4386
        %v4388 = vld [vmem:[%s1376] sm:$0xff]
        %v4389 = vld [vmem:[%s1376 + $0x8] sm:$0xff]
        %v4390 = vld [vmem:[%s1376 + $0x10] sm:$0xff]
        %v4391 = vld [vmem:[%s1376 + $0x18] sm:$0xff]
        %v4392 = vld [vmem:[%s1376 + $0x20] sm:$0xff]
        %v4393 = vld [vmem:[%s1376 + $0x28] sm:$0xff]
        %v4394 = vld [vmem:[%s1376 + $0x30] sm:$0xff]
        %v4395 = vld [vmem:[%s1376 + $0x38] sm:$0xff]
        %v4396 = vmul.f32 %v4042, %v4388
        %v4397 = vmul.f32 %v4043, %v4389
        %v4398 = vmul.f32 %v4046, %v4390
        %v4399 = vmul.f32 %v4047, %v4391
        %v4400 = vmul.f32 %v4050, %v4392
        %v4401 = vmul.f32 %v4051, %v4393
        %v4402 = vmul.f32 %v4054, %v4394
        %v4403 = vmul.f32 %v4055, %v4395
        %v4404 = vadd.f32 %v4396, %v4397
        %4405 = vadd.xlane.f32.xlu0 %v4404
        %v4406 = vpop.xlane.xlu0 %4405
        %v4407 = vadd.f32 %v4398, %v4399
        %4408 = vadd.xlane.f32.xlu0 %v4407
        %v4409 = vpop.xlane.xlu0 %4408
        %v4410 = vadd.f32 %v4400, %v4401
        %4411 = vadd.xlane.f32.xlu0 %v4410
        %v4412 = vpop.xlane.xlu0 %4411
        %v4413 = vadd.f32 %v4402, %v4403
        %4414 = vadd.xlane.f32.xlu0 %v4413
        %v4415 = vpop.xlane.xlu0 %4414
        %v4416 = vadd.f32 %v4406, %v4409
        %v4417 = vadd.f32 %v4416, %v4412
        %v4418 = vadd.f32 %v4417, %v4415
        %v4419 = vrot.slane %v4418, 4
        %v4420 = vadd.f32 %v4418, %v4419
        %v4421 = vrot.slane %v4420, 2
        %v4422 = vadd.f32 %v4420, %v4421
        %v4423 = vrot.slane %v4422, 1
        %v4424 = vadd.f32 %v4422, %v4423
        %v4425 = vmul.f32 %v4044, %v4388
        %v4426 = vmul.f32 %v4045, %v4389
        %v4427 = vmul.f32 %v4048, %v4390
        %v4428 = vmul.f32 %v4049, %v4391
        %v4429 = vmul.f32 %v4052, %v4392
        %v4430 = vmul.f32 %v4053, %v4393
        %v4431 = vmul.f32 %v4056, %v4394
        %v4432 = vmul.f32 %v4057, %v4395
        %v4433 = vadd.f32 %v4425, %v4426
        %4434 = vadd.xlane.f32.xlu0 %v4433
        %v4435 = vpop.xlane.xlu0 %4434
        %v4436 = vadd.f32 %v4427, %v4428
        %4437 = vadd.xlane.f32.xlu0 %v4436
        %v4438 = vpop.xlane.xlu0 %4437
        %v4439 = vadd.f32 %v4429, %v4430
        %4440 = vadd.xlane.f32.xlu0 %v4439
        %v4441 = vpop.xlane.xlu0 %4440
        %v4442 = vadd.f32 %v4431, %v4432
        %4443 = vadd.xlane.f32.xlu0 %v4442
        %v4444 = vpop.xlane.xlu0 %4443
        %v4445 = vadd.f32 %v4435, %v4438
        %v4446 = vadd.f32 %v4445, %v4441
        %v4447 = vadd.f32 %v4446, %v4444
        %v4448 = vrot.slane %v4447, 4
        %v4449 = vadd.f32 %v4447, %v4448
        %v4450 = vrot.slane %v4449, 2
        %v4451 = vadd.f32 %v4449, %v4450
        %v4452 = vrot.slane %v4451, 1
        %v4453 = vadd.f32 %v4451, %v4452
        %v4454 = vld [vmem:[%s1443] sm:$0xff]
        %v4455 = vld [vmem:[%s1443 + $0x8] sm:$0xff]
        %v4456 = vld [vmem:[%s1443 + $0x10] sm:$0xff]
        %v4457 = vld [vmem:[%s1443 + $0x18] sm:$0xff]
        %v4458 = vld [vmem:[%s1443 + $0x20] sm:$0xff]
        %v4459 = vld [vmem:[%s1443 + $0x28] sm:$0xff]
        %v4460 = vld [vmem:[%s1443 + $0x30] sm:$0xff]
        %v4461 = vld [vmem:[%s1443 + $0x38] sm:$0xff]
        %v4462 = vmul.f32 %v4042, %v4454
        %v4463 = vmul.f32 %v4043, %v4455
        %v4464 = vmul.f32 %v4046, %v4456
        %v4465 = vmul.f32 %v4047, %v4457
        %v4466 = vmul.f32 %v4050, %v4458
        %v4467 = vmul.f32 %v4051, %v4459
        %v4468 = vmul.f32 %v4054, %v4460
        %v4469 = vmul.f32 %v4055, %v4461
        %v4470 = vadd.f32 %v4462, %v4463
        %4471 = vadd.xlane.f32.xlu0 %v4470
        %v4472 = vpop.xlane.xlu0 %4471
        %v4473 = vadd.f32 %v4464, %v4465
        %4474 = vadd.xlane.f32.xlu0 %v4473
        %v4475 = vpop.xlane.xlu0 %4474
        %v4476 = vadd.f32 %v4466, %v4467
        %4477 = vadd.xlane.f32.xlu0 %v4476
        %v4478 = vpop.xlane.xlu0 %4477
        %v4479 = vadd.f32 %v4468, %v4469
        %4480 = vadd.xlane.f32.xlu0 %v4479
        %v4481 = vpop.xlane.xlu0 %4480
        %v4482 = vadd.f32 %v4472, %v4475
        %v4483 = vadd.f32 %v4482, %v4478
        %v4484 = vadd.f32 %v4483, %v4481
        %v4485 = vrot.slane %v4484, 4
        %v4486 = vadd.f32 %v4484, %v4485
        %v4487 = vrot.slane %v4486, 2
        %v4488 = vadd.f32 %v4486, %v4487
        %v4489 = vrot.slane %v4488, 1
        %v4490 = vadd.f32 %v4488, %v4489
        %v4491 = vmul.f32 %v4044, %v4454
        %v4492 = vmul.f32 %v4045, %v4455
        %v4493 = vmul.f32 %v4048, %v4456
        %v4494 = vmul.f32 %v4049, %v4457
        %v4495 = vmul.f32 %v4052, %v4458
        %v4496 = vmul.f32 %v4053, %v4459
        %v4497 = vmul.f32 %v4056, %v4460
        %v4498 = vmul.f32 %v4057, %v4461
        %v4499 = vadd.f32 %v4491, %v4492
        %4500 = vadd.xlane.f32.xlu0 %v4499
        %v4501 = vpop.xlane.xlu0 %4500
        %v4502 = vadd.f32 %v4493, %v4494
        %4503 = vadd.xlane.f32.xlu0 %v4502
        %v4504 = vpop.xlane.xlu0 %4503
        %v4505 = vadd.f32 %v4495, %v4496
        %4506 = vadd.xlane.f32.xlu0 %v4505
        %v4507 = vpop.xlane.xlu0 %4506
        %v4508 = vadd.f32 %v4497, %v4498
        %4509 = vadd.xlane.f32.xlu0 %v4508
        %v4510 = vpop.xlane.xlu0 %4509
        %v4511 = vadd.f32 %v4501, %v4504
        %v4512 = vadd.f32 %v4511, %v4507
        %v4513 = vadd.f32 %v4512, %v4510
        %v4514 = vrot.slane %v4513, 4
        %v4515 = vadd.f32 %v4513, %v4514
        %v4516 = vrot.slane %v4515, 2
        %v4517 = vadd.f32 %v4515, %v4516
        %v4518 = vrot.slane %v4517, 1
        %v4519 = vadd.f32 %v4517, %v4518
        %v4520 = vld [vmem:[%s1510] sm:$0xff]
        %v4521 = vld [vmem:[%s1510 + $0x8] sm:$0xff]
        %v4522 = vld [vmem:[%s1510 + $0x10] sm:$0xff]
        %v4523 = vld [vmem:[%s1510 + $0x18] sm:$0xff]
        %v4524 = vld [vmem:[%s1510 + $0x20] sm:$0xff]
        %v4525 = vld [vmem:[%s1510 + $0x28] sm:$0xff]
        %v4526 = vld [vmem:[%s1510 + $0x30] sm:$0xff]
        %v4527 = vld [vmem:[%s1510 + $0x38] sm:$0xff]
        %v4528 = vmul.f32 %v4042, %v4520
        %v4529 = vmul.f32 %v4043, %v4521
        %v4530 = vmul.f32 %v4046, %v4522
        %v4531 = vmul.f32 %v4047, %v4523
        %v4532 = vmul.f32 %v4050, %v4524
        %v4533 = vmul.f32 %v4051, %v4525
        %v4534 = vmul.f32 %v4054, %v4526
        %v4535 = vmul.f32 %v4055, %v4527
        %v4536 = vadd.f32 %v4528, %v4529
        %4537 = vadd.xlane.f32.xlu0 %v4536
        %v4538 = vpop.xlane.xlu0 %4537
        %v4539 = vadd.f32 %v4530, %v4531
        %4540 = vadd.xlane.f32.xlu0 %v4539
        %v4541 = vpop.xlane.xlu0 %4540
        %v4542 = vadd.f32 %v4532, %v4533
        %4543 = vadd.xlane.f32.xlu0 %v4542
        %v4544 = vpop.xlane.xlu0 %4543
        %v4545 = vadd.f32 %v4534, %v4535
        %4546 = vadd.xlane.f32.xlu0 %v4545
        %v4547 = vpop.xlane.xlu0 %4546
        %v4548 = vadd.f32 %v4538, %v4541
        %v4549 = vadd.f32 %v4548, %v4544
        %v4550 = vadd.f32 %v4549, %v4547
        %v4551 = vrot.slane %v4550, 4
        %v4552 = vadd.f32 %v4550, %v4551
        %v4553 = vrot.slane %v4552, 2
        %v4554 = vadd.f32 %v4552, %v4553
        %v4555 = vrot.slane %v4554, 1
        %v4556 = vadd.f32 %v4554, %v4555
        %v4557 = vmul.f32 %v4044, %v4520
        %v4558 = vmul.f32 %v4045, %v4521
        %v4559 = vmul.f32 %v4048, %v4522
        %v4560 = vmul.f32 %v4049, %v4523
        %v4561 = vmul.f32 %v4052, %v4524
        %v4562 = vmul.f32 %v4053, %v4525
        %v4563 = vmul.f32 %v4056, %v4526
        %v4564 = vmul.f32 %v4057, %v4527
        %v4565 = vadd.f32 %v4557, %v4558
        %4566 = vadd.xlane.f32.xlu0 %v4565
        %v4567 = vpop.xlane.xlu0 %4566
        %v4568 = vadd.f32 %v4559, %v4560
        %4569 = vadd.xlane.f32.xlu0 %v4568
        %v4570 = vpop.xlane.xlu0 %4569
        %v4571 = vadd.f32 %v4561, %v4562
        %4572 = vadd.xlane.f32.xlu0 %v4571
        %v4573 = vpop.xlane.xlu0 %4572
        %v4574 = vadd.f32 %v4563, %v4564
        %4575 = vadd.xlane.f32.xlu0 %v4574
        %v4576 = vpop.xlane.xlu0 %4575
        %v4577 = vadd.f32 %v4567, %v4570
        %v4578 = vadd.f32 %v4577, %v4573
        %v4579 = vadd.f32 %v4578, %v4576
        %v4580 = vrot.slane %v4579, 4
        %v4581 = vadd.f32 %v4579, %v4580
        %v4582 = vrot.slane %v4581, 2
        %v4583 = vadd.f32 %v4581, %v4582
        %v4584 = vrot.slane %v4583, 1
        %v4585 = vadd.f32 %v4583, %v4584
        %v4586 = vld [vmem:[%s1577] sm:$0xff]
        %v4587 = vld [vmem:[%s1577 + $0x8] sm:$0xff]
        %v4588 = vld [vmem:[%s1577 + $0x10] sm:$0xff]
        %v4589 = vld [vmem:[%s1577 + $0x18] sm:$0xff]
        %v4590 = vld [vmem:[%s1577 + $0x20] sm:$0xff]
        %v4591 = vld [vmem:[%s1577 + $0x28] sm:$0xff]
        %v4592 = vld [vmem:[%s1577 + $0x30] sm:$0xff]
        %v4593 = vld [vmem:[%s1577 + $0x38] sm:$0xff]
        %v4594 = vmul.f32 %v4042, %v4586
        %v4595 = vmul.f32 %v4043, %v4587
        %v4596 = vmul.f32 %v4046, %v4588
        %v4597 = vmul.f32 %v4047, %v4589
        %v4598 = vmul.f32 %v4050, %v4590
        %v4599 = vmul.f32 %v4051, %v4591
        %v4600 = vmul.f32 %v4054, %v4592
        %v4601 = vmul.f32 %v4055, %v4593
        %v4602 = vadd.f32 %v4594, %v4595
        %4603 = vadd.xlane.f32.xlu0 %v4602
        %v4604 = vpop.xlane.xlu0 %4603
        %v4605 = vadd.f32 %v4596, %v4597
        %4606 = vadd.xlane.f32.xlu0 %v4605
        %v4607 = vpop.xlane.xlu0 %4606
        %v4608 = vadd.f32 %v4598, %v4599
        %4609 = vadd.xlane.f32.xlu0 %v4608
        %v4610 = vpop.xlane.xlu0 %4609
        %v4611 = vadd.f32 %v4600, %v4601
        %4612 = vadd.xlane.f32.xlu0 %v4611
        %v4613 = vpop.xlane.xlu0 %4612
        %v4614 = vadd.f32 %v4604, %v4607
        %v4615 = vadd.f32 %v4614, %v4610
        %v4616 = vadd.f32 %v4615, %v4613
        %v4617 = vrot.slane %v4616, 4
        %v4618 = vadd.f32 %v4616, %v4617
        %v4619 = vrot.slane %v4618, 2
        %v4620 = vadd.f32 %v4618, %v4619
        %v4621 = vrot.slane %v4620, 1
        %v4622 = vadd.f32 %v4620, %v4621
        %v4623 = vmul.f32 %v4044, %v4586
        %v4624 = vmul.f32 %v4045, %v4587
        %v4625 = vmul.f32 %v4048, %v4588
        %v4626 = vmul.f32 %v4049, %v4589
        %v4627 = vmul.f32 %v4052, %v4590
        %v4628 = vmul.f32 %v4053, %v4591
        %v4629 = vmul.f32 %v4056, %v4592
        %v4630 = vmul.f32 %v4057, %v4593
        %v4631 = vadd.f32 %v4623, %v4624
        %4632 = vadd.xlane.f32.xlu0 %v4631
        %v4633 = vpop.xlane.xlu0 %4632
        %v4634 = vadd.f32 %v4625, %v4626
        %4635 = vadd.xlane.f32.xlu0 %v4634
        %v4636 = vpop.xlane.xlu0 %4635
        %v4637 = vadd.f32 %v4627, %v4628
        %4638 = vadd.xlane.f32.xlu0 %v4637
        %v4639 = vpop.xlane.xlu0 %4638
        %v4640 = vadd.f32 %v4629, %v4630
        %4641 = vadd.xlane.f32.xlu0 %v4640
        %v4642 = vpop.xlane.xlu0 %4641
        %v4643 = vadd.f32 %v4633, %v4636
        %v4644 = vadd.f32 %v4643, %v4639
        %v4645 = vadd.f32 %v4644, %v4642
        %v4646 = vrot.slane %v4645, 4
        %v4647 = vadd.f32 %v4645, %v4646
        %v4648 = vrot.slane %v4647, 2
        %v4649 = vadd.f32 %v4647, %v4648
        %v4650 = vrot.slane %v4649, 1
        %v4651 = vadd.f32 %v4649, %v4650
        %v4652 = vld [vmem:[%s1644] sm:$0xff]
        %v4653 = vld [vmem:[%s1644 + $0x8] sm:$0xff]
        %v4654 = vld [vmem:[%s1644 + $0x10] sm:$0xff]
        %v4655 = vld [vmem:[%s1644 + $0x18] sm:$0xff]
        %v4656 = vld [vmem:[%s1644 + $0x20] sm:$0xff]
        %v4657 = vld [vmem:[%s1644 + $0x28] sm:$0xff]
        %v4658 = vld [vmem:[%s1644 + $0x30] sm:$0xff]
        %v4659 = vld [vmem:[%s1644 + $0x38] sm:$0xff]
        %v4660 = vmul.f32 %v4042, %v4652
        %v4661 = vmul.f32 %v4043, %v4653
        %v4662 = vmul.f32 %v4046, %v4654
        %v4663 = vmul.f32 %v4047, %v4655
        %v4664 = vmul.f32 %v4050, %v4656
        %v4665 = vmul.f32 %v4051, %v4657
        %v4666 = vmul.f32 %v4054, %v4658
        %v4667 = vmul.f32 %v4055, %v4659
        %v4668 = vadd.f32 %v4660, %v4661
        %4669 = vadd.xlane.f32.xlu0 %v4668
        %v4670 = vpop.xlane.xlu0 %4669
        %v4671 = vadd.f32 %v4662, %v4663
        %4672 = vadd.xlane.f32.xlu0 %v4671
        %v4673 = vpop.xlane.xlu0 %4672
        %v4674 = vadd.f32 %v4664, %v4665
        %4675 = vadd.xlane.f32.xlu0 %v4674
        %v4676 = vpop.xlane.xlu0 %4675
        %v4677 = vadd.f32 %v4666, %v4667
        %4678 = vadd.xlane.f32.xlu0 %v4677
        %v4679 = vpop.xlane.xlu0 %4678
        %v4680 = vadd.f32 %v4670, %v4673
        %v4681 = vadd.f32 %v4680, %v4676
        %v4682 = vadd.f32 %v4681, %v4679
        %v4683 = vrot.slane %v4682, 4
        %v4684 = vadd.f32 %v4682, %v4683
        %v4685 = vrot.slane %v4684, 2
        %v4686 = vadd.f32 %v4684, %v4685
        %v4687 = vrot.slane %v4686, 1
        %v4688 = vadd.f32 %v4686, %v4687
        %v4689 = vmul.f32 %v4044, %v4652
        %v4690 = vmul.f32 %v4045, %v4653
        %v4691 = vmul.f32 %v4048, %v4654
        %v4692 = vmul.f32 %v4049, %v4655
        %v4693 = vmul.f32 %v4052, %v4656
        %v4694 = vmul.f32 %v4053, %v4657
        %v4695 = vmul.f32 %v4056, %v4658
        %v4696 = vmul.f32 %v4057, %v4659
        %v4697 = vadd.f32 %v4689, %v4690
        %4698 = vadd.xlane.f32.xlu0 %v4697
        %v4699 = vpop.xlane.xlu0 %4698
        %v4700 = vadd.f32 %v4691, %v4692
        %4701 = vadd.xlane.f32.xlu0 %v4700
        %v4702 = vpop.xlane.xlu0 %4701
        %v4703 = vadd.f32 %v4693, %v4694
        %4704 = vadd.xlane.f32.xlu0 %v4703
        %v4705 = vpop.xlane.xlu0 %4704
        %v4706 = vadd.f32 %v4695, %v4696
        %4707 = vadd.xlane.f32.xlu0 %v4706
        %v4708 = vpop.xlane.xlu0 %4707
        %v4709 = vadd.f32 %v4699, %v4702
        %v4710 = vadd.f32 %v4709, %v4705
        %v4711 = vadd.f32 %v4710, %v4708
        %v4712 = vrot.slane %v4711, 4
        %v4713 = vadd.f32 %v4711, %v4712
        %v4714 = vrot.slane %v4713, 2
        %v4715 = vadd.f32 %v4713, %v4714
        %v4716 = vrot.slane %v4715, 1
        %v4717 = vadd.f32 %v4715, %v4716
        %v4718 = vsel %vm1711, %v4094, %v4160
        %v4719 = vsel %vm1713, %v4718, %v4226
        %v4720 = vsel %vm1715, %v4719, %v4292
        %v4721 = vsel %vm1717, %v4720, %v4358
        %v4722 = vsel %vm1719, %v4721, %v4424
        %v4723 = vsel %vm1721, %v4722, %v4490
        %v4724 = vsel %vm1723, %v4723, %v4556
        %v4725 = vsel %vm1725, %v4724, %v4622
        %v4726 = vsel %vm1727, %v4725, %v4688
        %v4727 = vsel %vm1711, %v4123, %v4189
        %v4728 = vsel %vm1713, %v4727, %v4255
        %v4729 = vsel %vm1715, %v4728, %v4321
        %v4730 = vsel %vm1717, %v4729, %v4387
        %v4731 = vsel %vm1719, %v4730, %v4453
        %v4732 = vsel %vm1721, %v4731, %v4519
        %v4733 = vsel %vm1723, %v4732, %v4585
        %v4734 = vsel %vm1725, %v4733, %v4651
        %v4735 = vsel %vm1727, %v4734, %v4717
        %v4737 = vrot.slane %v4735, 7
        %v4739 = vsel %vm1741, %v4726, %v4737
        %v4740 = vadd.f32 %v4739, %v1744
        %v4741 = vld [vmem:[#allocation3] sm:$0x3]
        %v4742 = vmul.f32 %v4741, 0.9
        %v4743 = vadd.f32 %v4742, %v4740
        %vm4744 = vcmp.gt.f32.partialorder %v4741, 1.0
        %v4745 = vsel %vm4744, 1, 0
        %v4746 = vcvt.s32.f32 %v4745
        %v4747 = vsub.f32 %v4743, %v4746
        %4748 = vst.msk [vmem:[#allocation3] sm:$0x3] %vm1754, %v4747
        %vm4749 = vcmp.gt.f32.partialorder %v4747, 1.0
        %v4750 = vsel %vm4749, 1, 0
        %v4751 = vcvt.s32.f32 %v4750
        %s4752 = scalar_lea.vmem %s193, 4 [#allocation4]
        %4753 = vst.msk [vmem:[%s4752] sm:$0x3] %vm1754, %v4751
        %s4754 = scalar_lea.vmem %s199, 2688
        %v4755 = vld [vmem:[%s4754] sm:$0xff]
        %v4756 = vld [vmem:[%s4754 + $0x8] sm:$0xff]
        %v4757 = vld [vmem:[%s4754 + $0x10] sm:$0xff]
        %v4758 = vld [vmem:[%s4754 + $0x18] sm:$0xff]
        %v4759 = vld [vmem:[%s4754 + $0x20] sm:$0xff]
        %v4760 = vld [vmem:[%s4754 + $0x28] sm:$0xff]
        %v4761 = vld [vmem:[%s4754 + $0x30] sm:$0xff]
        %v4762 = vld [vmem:[%s4754 + $0x38] sm:$0xff]
        %v4763 = vld [vmem:[%s4754 + $0x40] sm:$0xff]
        %v4764 = vld [vmem:[%s4754 + $0x48] sm:$0xff]
        %v4765 = vld [vmem:[%s4754 + $0x50] sm:$0xff]
        %v4766 = vld [vmem:[%s4754 + $0x58] sm:$0xff]
        %v4767 = vld [vmem:[%s4754 + $0x60] sm:$0xff]
        %v4768 = vld [vmem:[%s4754 + $0x68] sm:$0xff]
        %v4769 = vld [vmem:[%s4754 + $0x70] sm:$0xff]
        %v4770 = vld [vmem:[%s4754 + $0x78] sm:$0xff]
        %v4771 = vld [vmem:[%s4754 + $0x80] sm:$0xff]
        %v4772 = vld [vmem:[%s4754 + $0x88] sm:$0xff]
        %v4773 = vld [vmem:[%s4754 + $0x90] sm:$0xff]
        %v4774 = vld [vmem:[%s4754 + $0x98] sm:$0xff]
        %v4775 = vld [vmem:[%s4754 + $0xa0] sm:$0xff]
        %v4776 = vld [vmem:[%s4754 + $0xa8] sm:$0xff]
        %v4777 = vld [vmem:[%s4754 + $0xb0] sm:$0xff]
        %v4778 = vld [vmem:[%s4754 + $0xb8] sm:$0xff]
        %v4779 = vld [vmem:[%s4754 + $0xc0] sm:$0xff]
        %v4780 = vld [vmem:[%s4754 + $0xc8] sm:$0xff]
        %v4781 = vld [vmem:[%s4754 + $0xd0] sm:$0xff]
        %v4782 = vld [vmem:[%s4754 + $0xd8] sm:$0xff]
        %v4783 = vld [vmem:[%s4754 + $0xe0] sm:$0xff]
        %v4784 = vld [vmem:[%s4754 + $0xe8] sm:$0xff]
        %v4785 = vld [vmem:[%s4754 + $0xf0] sm:$0xff]
        %v4786 = vld [vmem:[%s4754 + $0xf8] sm:$0xff]
        %v4787 = vld [vmem:[%s4754 + $0x100] sm:$0xff]
        %v4788 = vld [vmem:[%s4754 + $0x108] sm:$0xff]
        %v4789 = vld [vmem:[%s4754 + $0x110] sm:$0xff]
        %v4790 = vld [vmem:[%s4754 + $0x118] sm:$0xff]
        %v4791 = vld [vmem:[%s4754 + $0x120] sm:$0xff]
        %v4792 = vld [vmem:[%s4754 + $0x128] sm:$0xff]
        %v4793 = vld [vmem:[%s4754 + $0x130] sm:$0xff]
        %v4794 = vld [vmem:[%s4754 + $0x138] sm:$0xff]
        %v4795 = vld [vmem:[%s4754 + $0x140] sm:$0xff]
        %v4796 = vld [vmem:[%s4754 + $0x148] sm:$0xff]
        %v4797 = vld [vmem:[%s4754 + $0x150] sm:$0xff]
        %v4798 = vld [vmem:[%s4754 + $0x158] sm:$0xff]
        %v4799 = vld [vmem:[%s4754 + $0x160] sm:$0xff]
        %v4800 = vld [vmem:[%s4754 + $0x168] sm:$0xff]
        %v4801 = vld [vmem:[%s4754 + $0x170] sm:$0xff]
        %v4802 = vld [vmem:[%s4754 + $0x178] sm:$0xff]
        %v4803 = vld [vmem:[%s4754 + $0x180] sm:$0xff]
        %v4804 = vld [vmem:[%s4754 + $0x188] sm:$0xff]
        %v4805 = vld [vmem:[%s4754 + $0x190] sm:$0xff]
        %v4806 = vld [vmem:[%s4754 + $0x198] sm:$0xff]
        %v4807 = vld [vmem:[%s4754 + $0x1a0] sm:$0xff]
        %v4808 = vld [vmem:[%s4754 + $0x1a8] sm:$0xff]
        %v4809 = vld [vmem:[%s4754 + $0x1b0] sm:$0xff]
        %v4810 = vld [vmem:[%s4754 + $0x1b8] sm:$0xff]
        %v4811 = vld [vmem:[%s4754 + $0x1c0] sm:$0xff]
        %v4812 = vld [vmem:[%s4754 + $0x1c8] sm:$0xff]
        %v4813 = vld [vmem:[%s4754 + $0x1d0] sm:$0xff]
        %v4814 = vld [vmem:[%s4754 + $0x1d8] sm:$0xff]
        %v4815 = vld [vmem:[%s4754 + $0x1e0] sm:$0xff]
        %v4816 = vld [vmem:[%s4754 + $0x1e8] sm:$0xff]
        %v4817 = vld [vmem:[%s4754 + $0x1f0] sm:$0xff]
        %v4818 = vld [vmem:[%s4754 + $0x1f8] sm:$0xff]
        %v4819 = vld [vmem:[%s4754 + $0x200] sm:$0xff]
        %v4820 = vld [vmem:[%s4754 + $0x208] sm:$0xff]
        %v4821 = vld [vmem:[%s4754 + $0x210] sm:$0xff]
        %v4822 = vld [vmem:[%s4754 + $0x218] sm:$0xff]
        %v4823 = vld [vmem:[%s4754 + $0x220] sm:$0xff]
        %v4824 = vld [vmem:[%s4754 + $0x228] sm:$0xff]
        %v4825 = vld [vmem:[%s4754 + $0x230] sm:$0xff]
        %v4826 = vld [vmem:[%s4754 + $0x238] sm:$0xff]
        %v4827 = vld [vmem:[%s4754 + $0x240] sm:$0xff]
        %v4828 = vld [vmem:[%s4754 + $0x248] sm:$0xff]
        %v4829 = vld [vmem:[%s4754 + $0x250] sm:$0xff]
        %v4830 = vld [vmem:[%s4754 + $0x258] sm:$0xff]
        %v4831 = vld [vmem:[%s4754 + $0x260] sm:$0xff]
        %v4832 = vld [vmem:[%s4754 + $0x268] sm:$0xff]
        %v4833 = vld [vmem:[%s4754 + $0x270] sm:$0xff]
        %v4834 = vld [vmem:[%s4754 + $0x278] sm:$0xff]
        %v4835 = vld [vmem:[%s4754 + $0x280] sm:$0xff]
        %v4836 = vld [vmem:[%s4754 + $0x288] sm:$0xff]
        %v4837 = vld [vmem:[%s4754 + $0x290] sm:$0xff]
        %v4838 = vld [vmem:[%s4754 + $0x298] sm:$0xff]
        %v4839 = vld [vmem:[%s4754 + $0x2a0] sm:$0xff]
        %v4840 = vld [vmem:[%s4754 + $0x2a8] sm:$0xff]
        %v4841 = vld [vmem:[%s4754 + $0x2b0] sm:$0xff]
        %v4842 = vld [vmem:[%s4754 + $0x2b8] sm:$0xff]
        %v4843 = vld [vmem:[%s4754 + $0x2c0] sm:$0xff]
        %v4844 = vld [vmem:[%s4754 + $0x2c8] sm:$0xff]
        %v4845 = vld [vmem:[%s4754 + $0x2d0] sm:$0xff]
        %v4846 = vld [vmem:[%s4754 + $0x2d8] sm:$0xff]
        %v4847 = vld [vmem:[%s4754 + $0x2e0] sm:$0xff]
        %v4848 = vld [vmem:[%s4754 + $0x2e8] sm:$0xff]
        %v4849 = vld [vmem:[%s4754 + $0x2f0] sm:$0xff]
        %v4850 = vld [vmem:[%s4754 + $0x2f8] sm:$0xff]
        %v4851 = vld [vmem:[%s4754 + $0x300] sm:$0xff]
        %v4852 = vld [vmem:[%s4754 + $0x308] sm:$0xff]
        %v4853 = vld [vmem:[%s4754 + $0x310] sm:$0xff]
        %v4854 = vld [vmem:[%s4754 + $0x318] sm:$0xff]
        %v4855 = vld [vmem:[%s4754 + $0x320] sm:$0xff]
        %v4856 = vld [vmem:[%s4754 + $0x328] sm:$0xff]
        %v4857 = vld [vmem:[%s4754 + $0x330] sm:$0xff]
        %v4858 = vld [vmem:[%s4754 + $0x338] sm:$0xff]
        %v4859 = vld [vmem:[%s4754 + $0x340] sm:$0xff]
        %v4860 = vld [vmem:[%s4754 + $0x348] sm:$0xff]
        %v4861 = vld [vmem:[%s4754 + $0x350] sm:$0xff]
        %v4862 = vld [vmem:[%s4754 + $0x358] sm:$0xff]
        %v4863 = vld [vmem:[%s4754 + $0x360] sm:$0xff]
        %v4864 = vld [vmem:[%s4754 + $0x368] sm:$0xff]
        %v4865 = vld [vmem:[%s4754 + $0x370] sm:$0xff]
        %v4866 = vld [vmem:[%s4754 + $0x378] sm:$0xff]
        %4867 = vmatpush.msra.mxu0 0.0
        %4868 = vmatpush.msra.mxu0 0.0
        %4869 = vmatpush.msra.mxu0 0.0
        %4870 = vmatpush.msra.mxu0 0.0
        %4871 = vmatpush.msra.mxu0 0.0
        %4872 = vmatpush.msra.mxu0 0.0
        %4873 = vmatpush.msra.mxu0 0.0
        %4874 = vmatpush.msra.mxu0 0.0
        %4875 = vmatpush.msra.mxu0 0.0
        %4876 = vmatpush.msra.mxu0 %v4851
        %4877 = vmatpush.msra.mxu0 %v4835
        %4878 = vmatpush.msra.mxu0 %v4819
        %4879 = vmatpush.msra.mxu0 %v4803
        %4880 = vmatpush.msra.mxu0 %v4787
        %4881 = vmatpush.msra.mxu0 %v4771
        %4882 = vmatpush.msra.mxu0 %v4755
        %4883 = vmatmul.f32.gmra.mxu0 %v343
        %v4884 = vpop.f32.mrf.mxu0
        %v4885 = vadd.f32 0.0, %v4884
        %4886 = vmatmul.f32.gmra.mxu0 %v346
        %v4887 = vpop.f32.mrf.mxu0
        %v4888 = vadd.f32 0.0, %v4887
        %4889 = vmatmul.f32.gmra.mxu0 %v349
        %v4890 = vpop.f32.mrf.mxu0
        %v4891 = vadd.f32 0.0, %v4890
        %4892 = vmatmul.f32.gmra.mxu0 %v352
        %v4893 = vpop.f32.mrf.mxu0
        %v4894 = vadd.f32 0.0, %v4893
        %4895 = vdwg.mxu0
        %4896 = vmatpush.msra.mxu0 0.0
        %4897 = vmatpush.msra.mxu0 0.0
        %4898 = vmatpush.msra.mxu0 0.0
        %4899 = vmatpush.msra.mxu0 0.0
        %4900 = vmatpush.msra.mxu0 0.0
        %4901 = vmatpush.msra.mxu0 0.0
        %4902 = vmatpush.msra.mxu0 0.0
        %4903 = vmatpush.msra.mxu0 0.0
        %4904 = vmatpush.msra.mxu0 0.0
        %4905 = vmatpush.msra.mxu0 %v4852
        %4906 = vmatpush.msra.mxu0 %v4836
        %4907 = vmatpush.msra.mxu0 %v4820
        %4908 = vmatpush.msra.mxu0 %v4804
        %4909 = vmatpush.msra.mxu0 %v4788
        %4910 = vmatpush.msra.mxu0 %v4772
        %4911 = vmatpush.msra.mxu0 %v4756
        %4912 = vmatmul.f32.gmra.mxu0 %v343
        %v4913 = vpop.f32.mrf.mxu0
        %v4914 = vadd.f32 0.0, %v4913
        %4915 = vmatmul.f32.gmra.mxu0 %v346
        %v4916 = vpop.f32.mrf.mxu0
        %v4917 = vadd.f32 0.0, %v4916
        %4918 = vmatmul.f32.gmra.mxu0 %v349
        %v4919 = vpop.f32.mrf.mxu0
        %v4920 = vadd.f32 0.0, %v4919
        %4921 = vmatmul.f32.gmra.mxu0 %v352
        %v4922 = vpop.f32.mrf.mxu0
        %v4923 = vadd.f32 0.0, %v4922
        %4924 = vdwg.mxu0
        %4925 = vmatpush.msra.mxu0 0.0
        %4926 = vmatpush.msra.mxu0 0.0
        %4927 = vmatpush.msra.mxu0 0.0
        %4928 = vmatpush.msra.mxu0 0.0
        %4929 = vmatpush.msra.mxu0 0.0
        %4930 = vmatpush.msra.mxu0 0.0
        %4931 = vmatpush.msra.mxu0 0.0
        %4932 = vmatpush.msra.mxu0 0.0
        %4933 = vmatpush.msra.mxu0 0.0
        %4934 = vmatpush.msra.mxu0 %v4853
        %4935 = vmatpush.msra.mxu0 %v4837
        %4936 = vmatpush.msra.mxu0 %v4821
        %4937 = vmatpush.msra.mxu0 %v4805
        %4938 = vmatpush.msra.mxu0 %v4789
        %4939 = vmatpush.msra.mxu0 %v4773
        %4940 = vmatpush.msra.mxu0 %v4757
        %4941 = vmatmul.f32.gmra.mxu0 %v343
        %v4942 = vpop.f32.mrf.mxu0
        %v4943 = vadd.f32 0.0, %v4942
        %4944 = vmatmul.f32.gmra.mxu0 %v346
        %v4945 = vpop.f32.mrf.mxu0
        %v4946 = vadd.f32 0.0, %v4945
        %4947 = vmatmul.f32.gmra.mxu0 %v349
        %v4948 = vpop.f32.mrf.mxu0
        %v4949 = vadd.f32 0.0, %v4948
        %4950 = vmatmul.f32.gmra.mxu0 %v352
        %v4951 = vpop.f32.mrf.mxu0
        %v4952 = vadd.f32 0.0, %v4951
        %4953 = vdwg.mxu0
        %4954 = vmatpush.msra.mxu0 0.0
        %4955 = vmatpush.msra.mxu0 0.0
        %4956 = vmatpush.msra.mxu0 0.0
        %4957 = vmatpush.msra.mxu0 0.0
        %4958 = vmatpush.msra.mxu0 0.0
        %4959 = vmatpush.msra.mxu0 0.0
        %4960 = vmatpush.msra.mxu0 0.0
        %4961 = vmatpush.msra.mxu0 0.0
        %4962 = vmatpush.msra.mxu0 0.0
        %4963 = vmatpush.msra.mxu0 %v4854
        %4964 = vmatpush.msra.mxu0 %v4838
        %4965 = vmatpush.msra.mxu0 %v4822
        %4966 = vmatpush.msra.mxu0 %v4806
        %4967 = vmatpush.msra.mxu0 %v4790
        %4968 = vmatpush.msra.mxu0 %v4774
        %4969 = vmatpush.msra.mxu0 %v4758
        %4970 = vmatmul.f32.gmra.mxu0 %v343
        %v4971 = vpop.f32.mrf.mxu0
        %v4972 = vadd.f32 0.0, %v4971
        %4973 = vmatmul.f32.gmra.mxu0 %v346
        %v4974 = vpop.f32.mrf.mxu0
        %v4975 = vadd.f32 0.0, %v4974
        %4976 = vmatmul.f32.gmra.mxu0 %v349
        %v4977 = vpop.f32.mrf.mxu0
        %v4978 = vadd.f32 0.0, %v4977
        %4979 = vmatmul.f32.gmra.mxu0 %v352
        %v4980 = vpop.f32.mrf.mxu0
        %v4981 = vadd.f32 0.0, %v4980
        %4982 = vdwg.mxu0
        %4983 = vmatpush.msra.mxu0 0.0
        %4984 = vmatpush.msra.mxu0 0.0
        %4985 = vmatpush.msra.mxu0 0.0
        %4986 = vmatpush.msra.mxu0 0.0
        %4987 = vmatpush.msra.mxu0 0.0
        %4988 = vmatpush.msra.mxu0 0.0
        %4989 = vmatpush.msra.mxu0 0.0
        %4990 = vmatpush.msra.mxu0 0.0
        %4991 = vmatpush.msra.mxu0 0.0
        %4992 = vmatpush.msra.mxu0 %v4855
        %4993 = vmatpush.msra.mxu0 %v4839
        %4994 = vmatpush.msra.mxu0 %v4823
        %4995 = vmatpush.msra.mxu0 %v4807
        %4996 = vmatpush.msra.mxu0 %v4791
        %4997 = vmatpush.msra.mxu0 %v4775
        %4998 = vmatpush.msra.mxu0 %v4759
        %4999 = vmatmul.f32.gmra.mxu0 %v343
        %v5000 = vpop.f32.mrf.mxu0
        %v5001 = vadd.f32 0.0, %v5000
        %5002 = vmatmul.f32.gmra.mxu0 %v346
        %v5003 = vpop.f32.mrf.mxu0
        %v5004 = vadd.f32 0.0, %v5003
        %5005 = vmatmul.f32.gmra.mxu0 %v349
        %v5006 = vpop.f32.mrf.mxu0
        %v5007 = vadd.f32 0.0, %v5006
        %5008 = vmatmul.f32.gmra.mxu0 %v352
        %v5009 = vpop.f32.mrf.mxu0
        %v5010 = vadd.f32 0.0, %v5009
        %5011 = vdwg.mxu0
        %5012 = vmatpush.msra.mxu0 0.0
        %5013 = vmatpush.msra.mxu0 0.0
        %5014 = vmatpush.msra.mxu0 0.0
        %5015 = vmatpush.msra.mxu0 0.0
        %5016 = vmatpush.msra.mxu0 0.0
        %5017 = vmatpush.msra.mxu0 0.0
        %5018 = vmatpush.msra.mxu0 0.0
        %5019 = vmatpush.msra.mxu0 0.0
        %5020 = vmatpush.msra.mxu0 0.0
        %5021 = vmatpush.msra.mxu0 %v4856
        %5022 = vmatpush.msra.mxu0 %v4840
        %5023 = vmatpush.msra.mxu0 %v4824
        %5024 = vmatpush.msra.mxu0 %v4808
        %5025 = vmatpush.msra.mxu0 %v4792
        %5026 = vmatpush.msra.mxu0 %v4776
        %5027 = vmatpush.msra.mxu0 %v4760
        %5028 = vmatmul.f32.gmra.mxu0 %v343
        %v5029 = vpop.f32.mrf.mxu0
        %v5030 = vadd.f32 0.0, %v5029
        %5031 = vmatmul.f32.gmra.mxu0 %v346
        %v5032 = vpop.f32.mrf.mxu0
        %v5033 = vadd.f32 0.0, %v5032
        %5034 = vmatmul.f32.gmra.mxu0 %v349
        %v5035 = vpop.f32.mrf.mxu0
        %v5036 = vadd.f32 0.0, %v5035
        %5037 = vmatmul.f32.gmra.mxu0 %v352
        %v5038 = vpop.f32.mrf.mxu0
        %v5039 = vadd.f32 0.0, %v5038
        %5040 = vdwg.mxu0
        %5041 = vmatpush.msra.mxu0 0.0
        %5042 = vmatpush.msra.mxu0 0.0
        %5043 = vmatpush.msra.mxu0 0.0
        %5044 = vmatpush.msra.mxu0 0.0
        %5045 = vmatpush.msra.mxu0 0.0
        %5046 = vmatpush.msra.mxu0 0.0
        %5047 = vmatpush.msra.mxu0 0.0
        %5048 = vmatpush.msra.mxu0 0.0
        %5049 = vmatpush.msra.mxu0 0.0
        %5050 = vmatpush.msra.mxu0 %v4857
        %5051 = vmatpush.msra.mxu0 %v4841
        %5052 = vmatpush.msra.mxu0 %v4825
        %5053 = vmatpush.msra.mxu0 %v4809
        %5054 = vmatpush.msra.mxu0 %v4793
        %5055 = vmatpush.msra.mxu0 %v4777
        %5056 = vmatpush.msra.mxu0 %v4761
        %5057 = vmatmul.f32.gmra.mxu0 %v343
        %v5058 = vpop.f32.mrf.mxu0
        %v5059 = vadd.f32 0.0, %v5058
        %5060 = vmatmul.f32.gmra.mxu0 %v346
        %v5061 = vpop.f32.mrf.mxu0
        %v5062 = vadd.f32 0.0, %v5061
        %5063 = vmatmul.f32.gmra.mxu0 %v349
        %v5064 = vpop.f32.mrf.mxu0
        %v5065 = vadd.f32 0.0, %v5064
        %5066 = vmatmul.f32.gmra.mxu0 %v352
        %v5067 = vpop.f32.mrf.mxu0
        %v5068 = vadd.f32 0.0, %v5067
        %5069 = vdwg.mxu0
        %5070 = vmatpush.msra.mxu0 0.0
        %5071 = vmatpush.msra.mxu0 0.0
        %5072 = vmatpush.msra.mxu0 0.0
        %5073 = vmatpush.msra.mxu0 0.0
        %5074 = vmatpush.msra.mxu0 0.0
        %5075 = vmatpush.msra.mxu0 0.0
        %5076 = vmatpush.msra.mxu0 0.0
        %5077 = vmatpush.msra.mxu0 0.0
        %5078 = vmatpush.msra.mxu0 0.0
        %5079 = vmatpush.msra.mxu0 %v4858
        %5080 = vmatpush.msra.mxu0 %v4842
        %5081 = vmatpush.msra.mxu0 %v4826
        %5082 = vmatpush.msra.mxu0 %v4810
        %5083 = vmatpush.msra.mxu0 %v4794
        %5084 = vmatpush.msra.mxu0 %v4778
        %5085 = vmatpush.msra.mxu0 %v4762
        %5086 = vmatmul.f32.gmra.mxu0 %v343
        %v5087 = vpop.f32.mrf.mxu0
        %v5088 = vadd.f32 0.0, %v5087
        %5089 = vmatmul.f32.gmra.mxu0 %v346
        %v5090 = vpop.f32.mrf.mxu0
        %v5091 = vadd.f32 0.0, %v5090
        %5092 = vmatmul.f32.gmra.mxu0 %v349
        %v5093 = vpop.f32.mrf.mxu0
        %v5094 = vadd.f32 0.0, %v5093
        %5095 = vmatmul.f32.gmra.mxu0 %v352
        %v5096 = vpop.f32.mrf.mxu0
        %v5097 = vadd.f32 0.0, %v5096
        %5098 = vdwg.mxu0
        %5099 = vmatpush.msra.mxu0 0.0
        %5100 = vmatpush.msra.mxu0 0.0
        %5101 = vmatpush.msra.mxu0 0.0
        %5102 = vmatpush.msra.mxu0 0.0
        %5103 = vmatpush.msra.mxu0 0.0
        %5104 = vmatpush.msra.mxu0 0.0
        %5105 = vmatpush.msra.mxu0 0.0
        %5106 = vmatpush.msra.mxu0 0.0
        %5107 = vmatpush.msra.mxu0 0.0
        %5108 = vmatpush.msra.mxu0 %v4859
        %5109 = vmatpush.msra.mxu0 %v4843
        %5110 = vmatpush.msra.mxu0 %v4827
        %5111 = vmatpush.msra.mxu0 %v4811
        %5112 = vmatpush.msra.mxu0 %v4795
        %5113 = vmatpush.msra.mxu0 %v4779
        %5114 = vmatpush.msra.mxu0 %v4763
        %5115 = vmatmul.f32.gmra.mxu0 %v343
        %v5116 = vpop.f32.mrf.mxu0
        %v5117 = vadd.f32 0.0, %v5116
        %5118 = vmatmul.f32.gmra.mxu0 %v346
        %v5119 = vpop.f32.mrf.mxu0
        %v5120 = vadd.f32 0.0, %v5119
        %5121 = vmatmul.f32.gmra.mxu0 %v349
        %v5122 = vpop.f32.mrf.mxu0
        %v5123 = vadd.f32 0.0, %v5122
        %5124 = vmatmul.f32.gmra.mxu0 %v352
        %v5125 = vpop.f32.mrf.mxu0
        %v5126 = vadd.f32 0.0, %v5125
        %5127 = vdwg.mxu0
        %5128 = vmatpush.msra.mxu0 0.0
        %5129 = vmatpush.msra.mxu0 0.0
        %5130 = vmatpush.msra.mxu0 0.0
        %5131 = vmatpush.msra.mxu0 0.0
        %5132 = vmatpush.msra.mxu0 0.0
        %5133 = vmatpush.msra.mxu0 0.0
        %5134 = vmatpush.msra.mxu0 0.0
        %5135 = vmatpush.msra.mxu0 0.0
        %5136 = vmatpush.msra.mxu0 0.0
        %5137 = vmatpush.msra.mxu0 %v4860
        %5138 = vmatpush.msra.mxu0 %v4844
        %5139 = vmatpush.msra.mxu0 %v4828
        %5140 = vmatpush.msra.mxu0 %v4812
        %5141 = vmatpush.msra.mxu0 %v4796
        %5142 = vmatpush.msra.mxu0 %v4780
        %5143 = vmatpush.msra.mxu0 %v4764
        %5144 = vmatmul.f32.gmra.mxu0 %v343
        %v5145 = vpop.f32.mrf.mxu0
        %v5146 = vadd.f32 0.0, %v5145
        %5147 = vmatmul.f32.gmra.mxu0 %v346
        %v5148 = vpop.f32.mrf.mxu0
        %v5149 = vadd.f32 0.0, %v5148
        %5150 = vmatmul.f32.gmra.mxu0 %v349
        %v5151 = vpop.f32.mrf.mxu0
        %v5152 = vadd.f32 0.0, %v5151
        %5153 = vmatmul.f32.gmra.mxu0 %v352
        %v5154 = vpop.f32.mrf.mxu0
        %v5155 = vadd.f32 0.0, %v5154
        %5156 = vdwg.mxu0
        %5157 = vmatpush.msra.mxu0 0.0
        %5158 = vmatpush.msra.mxu0 0.0
        %5159 = vmatpush.msra.mxu0 0.0
        %5160 = vmatpush.msra.mxu0 0.0
        %5161 = vmatpush.msra.mxu0 0.0
        %5162 = vmatpush.msra.mxu0 0.0
        %5163 = vmatpush.msra.mxu0 0.0
        %5164 = vmatpush.msra.mxu0 0.0
        %5165 = vmatpush.msra.mxu0 0.0
        %5166 = vmatpush.msra.mxu0 %v4861
        %5167 = vmatpush.msra.mxu0 %v4845
        %5168 = vmatpush.msra.mxu0 %v4829
        %5169 = vmatpush.msra.mxu0 %v4813
        %5170 = vmatpush.msra.mxu0 %v4797
        %5171 = vmatpush.msra.mxu0 %v4781
        %5172 = vmatpush.msra.mxu0 %v4765
        %5173 = vmatmul.f32.gmra.mxu0 %v343
        %v5174 = vpop.f32.mrf.mxu0
        %v5175 = vadd.f32 0.0, %v5174
        %5176 = vmatmul.f32.gmra.mxu0 %v346
        %v5177 = vpop.f32.mrf.mxu0
        %v5178 = vadd.f32 0.0, %v5177
        %5179 = vmatmul.f32.gmra.mxu0 %v349
        %v5180 = vpop.f32.mrf.mxu0
        %v5181 = vadd.f32 0.0, %v5180
        %5182 = vmatmul.f32.gmra.mxu0 %v352
        %v5183 = vpop.f32.mrf.mxu0
        %v5184 = vadd.f32 0.0, %v5183
        %5185 = vdwg.mxu0
        %5186 = vmatpush.msra.mxu0 0.0
        %5187 = vmatpush.msra.mxu0 0.0
        %5188 = vmatpush.msra.mxu0 0.0
        %5189 = vmatpush.msra.mxu0 0.0
        %5190 = vmatpush.msra.mxu0 0.0
        %5191 = vmatpush.msra.mxu0 0.0
        %5192 = vmatpush.msra.mxu0 0.0
        %5193 = vmatpush.msra.mxu0 0.0
        %5194 = vmatpush.msra.mxu0 0.0
        %5195 = vmatpush.msra.mxu0 %v4862
        %5196 = vmatpush.msra.mxu0 %v4846
        %5197 = vmatpush.msra.mxu0 %v4830
        %5198 = vmatpush.msra.mxu0 %v4814
        %5199 = vmatpush.msra.mxu0 %v4798
        %5200 = vmatpush.msra.mxu0 %v4782
        %5201 = vmatpush.msra.mxu0 %v4766
        %5202 = vmatmul.f32.gmra.mxu0 %v343
        %v5203 = vpop.f32.mrf.mxu0
        %v5204 = vadd.f32 0.0, %v5203
        %5205 = vmatmul.f32.gmra.mxu0 %v346
        %v5206 = vpop.f32.mrf.mxu0
        %v5207 = vadd.f32 0.0, %v5206
        %5208 = vmatmul.f32.gmra.mxu0 %v349
        %v5209 = vpop.f32.mrf.mxu0
        %v5210 = vadd.f32 0.0, %v5209
        %5211 = vmatmul.f32.gmra.mxu0 %v352
        %v5212 = vpop.f32.mrf.mxu0
        %v5213 = vadd.f32 0.0, %v5212
        %5214 = vdwg.mxu0
        %5215 = vmatpush.msra.mxu0 0.0
        %5216 = vmatpush.msra.mxu0 0.0
        %5217 = vmatpush.msra.mxu0 0.0
        %5218 = vmatpush.msra.mxu0 0.0
        %5219 = vmatpush.msra.mxu0 0.0
        %5220 = vmatpush.msra.mxu0 0.0
        %5221 = vmatpush.msra.mxu0 0.0
        %5222 = vmatpush.msra.mxu0 0.0
        %5223 = vmatpush.msra.mxu0 0.0
        %5224 = vmatpush.msra.mxu0 %v4863
        %5225 = vmatpush.msra.mxu0 %v4847
        %5226 = vmatpush.msra.mxu0 %v4831
        %5227 = vmatpush.msra.mxu0 %v4815
        %5228 = vmatpush.msra.mxu0 %v4799
        %5229 = vmatpush.msra.mxu0 %v4783
        %5230 = vmatpush.msra.mxu0 %v4767
        %5231 = vmatmul.f32.gmra.mxu0 %v343
        %v5232 = vpop.f32.mrf.mxu0
        %v5233 = vadd.f32 0.0, %v5232
        %5234 = vmatmul.f32.gmra.mxu0 %v346
        %v5235 = vpop.f32.mrf.mxu0
        %v5236 = vadd.f32 0.0, %v5235
        %5237 = vmatmul.f32.gmra.mxu0 %v349
        %v5238 = vpop.f32.mrf.mxu0
        %v5239 = vadd.f32 0.0, %v5238
        %5240 = vmatmul.f32.gmra.mxu0 %v352
        %v5241 = vpop.f32.mrf.mxu0
        %v5242 = vadd.f32 0.0, %v5241
        %5243 = vdwg.mxu0
        %5244 = vmatpush.msra.mxu0 0.0
        %5245 = vmatpush.msra.mxu0 0.0
        %5246 = vmatpush.msra.mxu0 0.0
        %5247 = vmatpush.msra.mxu0 0.0
        %5248 = vmatpush.msra.mxu0 0.0
        %5249 = vmatpush.msra.mxu0 0.0
        %5250 = vmatpush.msra.mxu0 0.0
        %5251 = vmatpush.msra.mxu0 0.0
        %5252 = vmatpush.msra.mxu0 0.0
        %5253 = vmatpush.msra.mxu0 %v4864
        %5254 = vmatpush.msra.mxu0 %v4848
        %5255 = vmatpush.msra.mxu0 %v4832
        %5256 = vmatpush.msra.mxu0 %v4816
        %5257 = vmatpush.msra.mxu0 %v4800
        %5258 = vmatpush.msra.mxu0 %v4784
        %5259 = vmatpush.msra.mxu0 %v4768
        %5260 = vmatmul.f32.gmra.mxu0 %v343
        %v5261 = vpop.f32.mrf.mxu0
        %v5262 = vadd.f32 0.0, %v5261
        %5263 = vmatmul.f32.gmra.mxu0 %v346
        %v5264 = vpop.f32.mrf.mxu0
        %v5265 = vadd.f32 0.0, %v5264
        %5266 = vmatmul.f32.gmra.mxu0 %v349
        %v5267 = vpop.f32.mrf.mxu0
        %v5268 = vadd.f32 0.0, %v5267
        %5269 = vmatmul.f32.gmra.mxu0 %v352
        %v5270 = vpop.f32.mrf.mxu0
        %v5271 = vadd.f32 0.0, %v5270
        %5272 = vdwg.mxu0
        %5273 = vmatpush.msra.mxu0 0.0
        %5274 = vmatpush.msra.mxu0 0.0
        %5275 = vmatpush.msra.mxu0 0.0
        %5276 = vmatpush.msra.mxu0 0.0
        %5277 = vmatpush.msra.mxu0 0.0
        %5278 = vmatpush.msra.mxu0 0.0
        %5279 = vmatpush.msra.mxu0 0.0
        %5280 = vmatpush.msra.mxu0 0.0
        %5281 = vmatpush.msra.mxu0 0.0
        %5282 = vmatpush.msra.mxu0 %v4865
        %5283 = vmatpush.msra.mxu0 %v4849
        %5284 = vmatpush.msra.mxu0 %v4833
        %5285 = vmatpush.msra.mxu0 %v4817
        %5286 = vmatpush.msra.mxu0 %v4801
        %5287 = vmatpush.msra.mxu0 %v4785
        %5288 = vmatpush.msra.mxu0 %v4769
        %5289 = vmatmul.f32.gmra.mxu0 %v343
        %v5290 = vpop.f32.mrf.mxu0
        %v5291 = vadd.f32 0.0, %v5290
        %5292 = vmatmul.f32.gmra.mxu0 %v346
        %v5293 = vpop.f32.mrf.mxu0
        %v5294 = vadd.f32 0.0, %v5293
        %5295 = vmatmul.f32.gmra.mxu0 %v349
        %v5296 = vpop.f32.mrf.mxu0
        %v5297 = vadd.f32 0.0, %v5296
        %5298 = vmatmul.f32.gmra.mxu0 %v352
        %v5299 = vpop.f32.mrf.mxu0
        %v5300 = vadd.f32 0.0, %v5299
        %5301 = vdwg.mxu0
        %5302 = vmatpush.msra.mxu0 0.0
        %5303 = vmatpush.msra.mxu0 0.0
        %5304 = vmatpush.msra.mxu0 0.0
        %5305 = vmatpush.msra.mxu0 0.0
        %5306 = vmatpush.msra.mxu0 0.0
        %5307 = vmatpush.msra.mxu0 0.0
        %5308 = vmatpush.msra.mxu0 0.0
        %5309 = vmatpush.msra.mxu0 0.0
        %5310 = vmatpush.msra.mxu0 0.0
        %5311 = vmatpush.msra.mxu0 %v4866
        %5312 = vmatpush.msra.mxu0 %v4850
        %5313 = vmatpush.msra.mxu0 %v4834
        %5314 = vmatpush.msra.mxu0 %v4818
        %5315 = vmatpush.msra.mxu0 %v4802
        %5316 = vmatpush.msra.mxu0 %v4786
        %5317 = vmatpush.msra.mxu0 %v4770
        %5318 = vmatmul.f32.gmra.mxu0 %v343
        %v5319 = vpop.f32.mrf.mxu0
        %v5320 = vadd.f32 0.0, %v5319
        %5321 = vmatmul.f32.gmra.mxu0 %v346
        %v5322 = vpop.f32.mrf.mxu0
        %v5323 = vadd.f32 0.0, %v5322
        %5324 = vmatmul.f32.gmra.mxu0 %v349
        %v5325 = vpop.f32.mrf.mxu0
        %v5326 = vadd.f32 0.0, %v5325
        %5327 = vmatmul.f32.gmra.mxu0 %v352
        %v5328 = vpop.f32.mrf.mxu0
        %v5329 = vadd.f32 0.0, %v5328
        %5330 = vdwg.mxu0
        %v5331 = vmax.f32 %v4885, %v5001
        %v5332 = vmax.f32 %v4914, %v5030
        %v5333 = vmax.f32 %v4943, %v5059
        %v5334 = vmax.f32 %v4972, %v5088
        %v5335 = vmax.f32 %v4888, %v5004
        %v5336 = vmax.f32 %v4917, %v5033
        %v5337 = vmax.f32 %v4946, %v5062
        %v5338 = vmax.f32 %v4975, %v5091
        %v5339 = vmax.f32 %v4891, %v5007
        %v5340 = vmax.f32 %v4920, %v5036
        %v5341 = vmax.f32 %v4949, %v5065
        %v5342 = vmax.f32 %v4978, %v5094
        %v5343 = vmax.f32 %v4894, %v5010
        %v5344 = vmax.f32 %v4923, %v5039
        %v5345 = vmax.f32 %v4952, %v5068
        %v5346 = vmax.f32 %v4981, %v5097
        %v5347 = vmax.f32 %v5117, %v5233
        %v5348 = vmax.f32 %v5146, %v5262
        %v5349 = vmax.f32 %v5175, %v5291
        %v5350 = vmax.f32 %v5204, %v5320
        %v5351 = vmax.f32 %v5120, %v5236
        %v5352 = vmax.f32 %v5149, %v5265
        %v5353 = vmax.f32 %v5178, %v5294
        %v5354 = vmax.f32 %v5207, %v5323
        %v5355 = vmax.f32 %v5123, %v5239
        %v5356 = vmax.f32 %v5152, %v5268
        %v5357 = vmax.f32 %v5181, %v5297
        %v5358 = vmax.f32 %v5210, %v5326
        %v5359 = vmax.f32 %v5126, %v5242
        %v5360 = vmax.f32 %v5155, %v5271
        %v5361 = vmax.f32 %v5184, %v5300
        %v5362 = vmax.f32 %v5213, %v5329
        %v5363 = vmax.f32 %v5331, %v5347
        %v5364 = vmax.f32 %v5332, %v5348
        %v5365 = vmax.f32 %v5333, %v5349
        %v5366 = vmax.f32 %v5334, %v5350
        %v5367 = vmax.f32 %v5335, %v5351
        %v5368 = vmax.f32 %v5336, %v5352
        %v5369 = vmax.f32 %v5337, %v5353
        %v5370 = vmax.f32 %v5338, %v5354
        %v5371 = vmax.f32 %v5339, %v5355
        %v5372 = vmax.f32 %v5340, %v5356
        %v5373 = vmax.f32 %v5341, %v5357
        %v5374 = vmax.f32 %v5342, %v5358
        %v5375 = vmax.f32 %v5343, %v5359
        %v5376 = vmax.f32 %v5344, %v5360
        %v5377 = vmax.f32 %v5345, %v5361
        %v5378 = vmax.f32 %v5346, %v5362
        %v5379 = vld [vmem:[#allocation2] sm:$0xff]
        %v5380 = vld [vmem:[#allocation2 + $0x8] sm:$0xff]
        %v5381 = vld [vmem:[#allocation2 + $0x10] sm:$0xff]
        %v5382 = vld [vmem:[#allocation2 + $0x18] sm:$0xff]
        %v5383 = vld [vmem:[#allocation2 + $0x20] sm:$0xff]
        %v5384 = vld [vmem:[#allocation2 + $0x28] sm:$0xff]
        %v5385 = vld [vmem:[#allocation2 + $0x30] sm:$0xff]
        %v5386 = vld [vmem:[#allocation2 + $0x38] sm:$0xff]
        %v5387 = vld [vmem:[#allocation2 + $0x40] sm:$0xff]
        %v5388 = vld [vmem:[#allocation2 + $0x48] sm:$0xff]
        %v5389 = vld [vmem:[#allocation2 + $0x50] sm:$0xff]
        %v5390 = vld [vmem:[#allocation2 + $0x58] sm:$0xff]
        %v5391 = vld [vmem:[#allocation2 + $0x60] sm:$0xff]
        %v5392 = vld [vmem:[#allocation2 + $0x68] sm:$0xff]
        %v5393 = vld [vmem:[#allocation2 + $0x70] sm:$0xff]
        %v5394 = vld [vmem:[#allocation2 + $0x78] sm:$0xff]
        %v5395 = vmul.f32 %v5379, 0.9
        %v5396 = vmul.f32 %v5380, 0.9
        %v5397 = vmul.f32 %v5381, 0.9
        %v5398 = vmul.f32 %v5382, 0.9
        %v5399 = vmul.f32 %v5383, 0.9
        %v5400 = vmul.f32 %v5384, 0.9
        %v5401 = vmul.f32 %v5385, 0.9
        %v5402 = vmul.f32 %v5386, 0.9
        %v5403 = vmul.f32 %v5387, 0.9
        %v5404 = vmul.f32 %v5388, 0.9
        %v5405 = vmul.f32 %v5389, 0.9
        %v5406 = vmul.f32 %v5390, 0.9
        %v5407 = vmul.f32 %v5391, 0.9
        %v5408 = vmul.f32 %v5392, 0.9
        %v5409 = vmul.f32 %v5393, 0.9
        %v5410 = vmul.f32 %v5394, 0.9
        %v5411 = vadd.f32 %v5395, %v5363
        %v5412 = vadd.f32 %v5396, %v5364
        %v5413 = vadd.f32 %v5397, %v5365
        %v5414 = vadd.f32 %v5398, %v5366
        %v5415 = vadd.f32 %v5399, %v5367
        %v5416 = vadd.f32 %v5400, %v5368
        %v5417 = vadd.f32 %v5401, %v5369
        %v5418 = vadd.f32 %v5402, %v5370
        %v5419 = vadd.f32 %v5403, %v5371
        %v5420 = vadd.f32 %v5404, %v5372
        %v5421 = vadd.f32 %v5405, %v5373
        %v5422 = vadd.f32 %v5406, %v5374
        %v5423 = vadd.f32 %v5407, %v5375
        %v5424 = vadd.f32 %v5408, %v5376
        %v5425 = vadd.f32 %v5409, %v5377
        %v5426 = vadd.f32 %v5410, %v5378
        %vm5427 = vcmp.gt.f32.partialorder %v5379, 1.0
        %vm5428 = vcmp.gt.f32.partialorder %v5380, 1.0
        %vm5429 = vcmp.gt.f32.partialorder %v5381, 1.0
        %vm5430 = vcmp.gt.f32.partialorder %v5382, 1.0
        %vm5431 = vcmp.gt.f32.partialorder %v5383, 1.0
        %vm5432 = vcmp.gt.f32.partialorder %v5384, 1.0
        %vm5433 = vcmp.gt.f32.partialorder %v5385, 1.0
        %vm5434 = vcmp.gt.f32.partialorder %v5386, 1.0
        %vm5435 = vcmp.gt.f32.partialorder %v5387, 1.0
        %vm5436 = vcmp.gt.f32.partialorder %v5388, 1.0
        %vm5437 = vcmp.gt.f32.partialorder %v5389, 1.0
        %vm5438 = vcmp.gt.f32.partialorder %v5390, 1.0
        %vm5439 = vcmp.gt.f32.partialorder %v5391, 1.0
        %vm5440 = vcmp.gt.f32.partialorder %v5392, 1.0
        %vm5441 = vcmp.gt.f32.partialorder %v5393, 1.0
        %vm5442 = vcmp.gt.f32.partialorder %v5394, 1.0
        %v5443 = vsel %vm5427, 1, 0
        %v5444 = vsel %vm5428, 1, 0
        %v5445 = vsel %vm5429, 1, 0
        %v5446 = vsel %vm5430, 1, 0
        %v5447 = vsel %vm5431, 1, 0
        %v5448 = vsel %vm5432, 1, 0
        %v5449 = vsel %vm5433, 1, 0
        %v5450 = vsel %vm5434, 1, 0
        %v5451 = vsel %vm5435, 1, 0
        %v5452 = vsel %vm5436, 1, 0
        %v5453 = vsel %vm5437, 1, 0
        %v5454 = vsel %vm5438, 1, 0
        %v5455 = vsel %vm5439, 1, 0
        %v5456 = vsel %vm5440, 1, 0
        %v5457 = vsel %vm5441, 1, 0
        %v5458 = vsel %vm5442, 1, 0
        %v5459 = vcvt.s32.f32 %v5443
        %v5460 = vcvt.s32.f32 %v5444
        %v5461 = vcvt.s32.f32 %v5445
        %v5462 = vcvt.s32.f32 %v5446
        %v5463 = vcvt.s32.f32 %v5447
        %v5464 = vcvt.s32.f32 %v5448
        %v5465 = vcvt.s32.f32 %v5449
        %v5466 = vcvt.s32.f32 %v5450
        %v5467 = vcvt.s32.f32 %v5451
        %v5468 = vcvt.s32.f32 %v5452
        %v5469 = vcvt.s32.f32 %v5453
        %v5470 = vcvt.s32.f32 %v5454
        %v5471 = vcvt.s32.f32 %v5455
        %v5472 = vcvt.s32.f32 %v5456
        %v5473 = vcvt.s32.f32 %v5457
        %v5474 = vcvt.s32.f32 %v5458
        %v5475 = vsub.f32 %v5411, %v5459
        %v5476 = vsub.f32 %v5412, %v5460
        %v5477 = vsub.f32 %v5413, %v5461
        %v5478 = vsub.f32 %v5414, %v5462
        %v5479 = vsub.f32 %v5415, %v5463
        %v5480 = vsub.f32 %v5416, %v5464
        %v5481 = vsub.f32 %v5417, %v5465
        %v5482 = vsub.f32 %v5418, %v5466
        %v5483 = vsub.f32 %v5419, %v5467
        %v5484 = vsub.f32 %v5420, %v5468
        %v5485 = vsub.f32 %v5421, %v5469
        %v5486 = vsub.f32 %v5422, %v5470
        %v5487 = vsub.f32 %v5423, %v5471
        %v5488 = vsub.f32 %v5424, %v5472
        %v5489 = vsub.f32 %v5425, %v5473
        %v5490 = vsub.f32 %v5426, %v5474
        %5491 = vst [vmem:[#allocation2] sm:$0xff] %v5475
        %5492 = vst [vmem:[#allocation2 + $0x8] sm:$0xff] %v5476
        %5493 = vst [vmem:[#allocation2 + $0x10] sm:$0xff] %v5477
        %5494 = vst [vmem:[#allocation2 + $0x18] sm:$0xff] %v5478
        %5495 = vst [vmem:[#allocation2 + $0x20] sm:$0xff] %v5479
        %5496 = vst [vmem:[#allocation2 + $0x28] sm:$0xff] %v5480
        %5497 = vst [vmem:[#allocation2 + $0x30] sm:$0xff] %v5481
        %5498 = vst [vmem:[#allocation2 + $0x38] sm:$0xff] %v5482
        %5499 = vst [vmem:[#allocation2 + $0x40] sm:$0xff] %v5483
        %5500 = vst [vmem:[#allocation2 + $0x48] sm:$0xff] %v5484
        %5501 = vst [vmem:[#allocation2 + $0x50] sm:$0xff] %v5485
        %5502 = vst [vmem:[#allocation2 + $0x58] sm:$0xff] %v5486
        %5503 = vst [vmem:[#allocation2 + $0x60] sm:$0xff] %v5487
        %5504 = vst [vmem:[#allocation2 + $0x68] sm:$0xff] %v5488
        %5505 = vst [vmem:[#allocation2 + $0x70] sm:$0xff] %v5489
        %5506 = vst [vmem:[#allocation2 + $0x78] sm:$0xff] %v5490
        %vm5507 = vcmp.gt.f32.partialorder %v5475, 1.0
        %vm5508 = vcmp.gt.f32.partialorder %v5476, 1.0
        %vm5509 = vcmp.gt.f32.partialorder %v5477, 1.0
        %vm5510 = vcmp.gt.f32.partialorder %v5478, 1.0
        %vm5511 = vcmp.gt.f32.partialorder %v5479, 1.0
        %vm5512 = vcmp.gt.f32.partialorder %v5480, 1.0
        %vm5513 = vcmp.gt.f32.partialorder %v5481, 1.0
        %vm5514 = vcmp.gt.f32.partialorder %v5482, 1.0
        %vm5515 = vcmp.gt.f32.partialorder %v5483, 1.0
        %vm5516 = vcmp.gt.f32.partialorder %v5484, 1.0
        %vm5517 = vcmp.gt.f32.partialorder %v5485, 1.0
        %vm5518 = vcmp.gt.f32.partialorder %v5486, 1.0
        %vm5519 = vcmp.gt.f32.partialorder %v5487, 1.0
        %vm5520 = vcmp.gt.f32.partialorder %v5488, 1.0
        %vm5521 = vcmp.gt.f32.partialorder %v5489, 1.0
        %vm5522 = vcmp.gt.f32.partialorder %v5490, 1.0
        %v5523 = vsel %vm5507, 1, 0
        %v5524 = vsel %vm5508, 1, 0
        %v5525 = vsel %vm5509, 1, 0
        %v5526 = vsel %vm5510, 1, 0
        %v5527 = vsel %vm5511, 1, 0
        %v5528 = vsel %vm5512, 1, 0
        %v5529 = vsel %vm5513, 1, 0
        %v5530 = vsel %vm5514, 1, 0
        %v5531 = vsel %vm5515, 1, 0
        %v5532 = vsel %vm5516, 1, 0
        %v5533 = vsel %vm5517, 1, 0
        %v5534 = vsel %vm5518, 1, 0
        %v5535 = vsel %vm5519, 1, 0
        %v5536 = vsel %vm5520, 1, 0
        %v5537 = vsel %vm5521, 1, 0
        %v5538 = vsel %vm5522, 1, 0
        %v5539 = vcvt.s32.f32 %v5523
        %v5540 = vcvt.s32.f32 %v5524
        %v5541 = vcvt.s32.f32 %v5525
        %v5542 = vcvt.s32.f32 %v5526
        %v5543 = vcvt.s32.f32 %v5527
        %v5544 = vcvt.s32.f32 %v5528
        %v5545 = vcvt.s32.f32 %v5529
        %v5546 = vcvt.s32.f32 %v5530
        %v5547 = vcvt.s32.f32 %v5531
        %v5548 = vcvt.s32.f32 %v5532
        %v5549 = vcvt.s32.f32 %v5533
        %v5550 = vcvt.s32.f32 %v5534
        %v5551 = vcvt.s32.f32 %v5535
        %v5552 = vcvt.s32.f32 %v5536
        %v5553 = vcvt.s32.f32 %v5537
        %v5554 = vcvt.s32.f32 %v5538
        %v5555 = vld [vmem:[%s2] sm:$0xff]
        %v5556 = vld [vmem:[%s2 + $0x8] sm:$0xff]
        %v5557 = vld [vmem:[%s2 + $0x10] sm:$0xff]
        %v5558 = vld [vmem:[%s2 + $0x18] sm:$0xff]
        %v5559 = vld [vmem:[%s2 + $0x20] sm:$0xff]
        %v5560 = vld [vmem:[%s2 + $0x28] sm:$0xff]
        %v5561 = vld [vmem:[%s2 + $0x30] sm:$0xff]
        %v5562 = vld [vmem:[%s2 + $0x38] sm:$0xff]
        %v5563 = vmul.f32 %v5539, %v5555
        %v5564 = vmul.f32 %v5540, %v5556
        %v5565 = vmul.f32 %v5543, %v5557
        %v5566 = vmul.f32 %v5544, %v5558
        %v5567 = vmul.f32 %v5547, %v5559
        %v5568 = vmul.f32 %v5548, %v5560
        %v5569 = vmul.f32 %v5551, %v5561
        %v5570 = vmul.f32 %v5552, %v5562
        %v5571 = vadd.f32 %v5563, %v5564
        %5572 = vadd.xlane.f32.xlu0 %v5571
        %v5573 = vpop.xlane.xlu0 %5572
        %v5574 = vadd.f32 %v5565, %v5566
        %5575 = vadd.xlane.f32.xlu0 %v5574
        %v5576 = vpop.xlane.xlu0 %5575
        %v5577 = vadd.f32 %v5567, %v5568
        %5578 = vadd.xlane.f32.xlu0 %v5577
        %v5579 = vpop.xlane.xlu0 %5578
        %v5580 = vadd.f32 %v5569, %v5570
        %5581 = vadd.xlane.f32.xlu0 %v5580
        %v5582 = vpop.xlane.xlu0 %5581
        %v5583 = vadd.f32 %v5573, %v5576
        %v5584 = vadd.f32 %v5583, %v5579
        %v5585 = vadd.f32 %v5584, %v5582
        %v5586 = vrot.slane %v5585, 4
        %v5587 = vadd.f32 %v5585, %v5586
        %v5588 = vrot.slane %v5587, 2
        %v5589 = vadd.f32 %v5587, %v5588
        %v5590 = vrot.slane %v5589, 1
        %v5591 = vadd.f32 %v5589, %v5590
        %v5592 = vmul.f32 %v5541, %v5555
        %v5593 = vmul.f32 %v5542, %v5556
        %v5594 = vmul.f32 %v5545, %v5557
        %v5595 = vmul.f32 %v5546, %v5558
        %v5596 = vmul.f32 %v5549, %v5559
        %v5597 = vmul.f32 %v5550, %v5560
        %v5598 = vmul.f32 %v5553, %v5561
        %v5599 = vmul.f32 %v5554, %v5562
        %v5600 = vadd.f32 %v5592, %v5593
        %5601 = vadd.xlane.f32.xlu0 %v5600
        %v5602 = vpop.xlane.xlu0 %5601
        %v5603 = vadd.f32 %v5594, %v5595
        %5604 = vadd.xlane.f32.xlu0 %v5603
        %v5605 = vpop.xlane.xlu0 %5604
        %v5606 = vadd.f32 %v5596, %v5597
        %5607 = vadd.xlane.f32.xlu0 %v5606
        %v5608 = vpop.xlane.xlu0 %5607
        %v5609 = vadd.f32 %v5598, %v5599
        %5610 = vadd.xlane.f32.xlu0 %v5609
        %v5611 = vpop.xlane.xlu0 %5610
        %v5612 = vadd.f32 %v5602, %v5605
        %v5613 = vadd.f32 %v5612, %v5608
        %v5614 = vadd.f32 %v5613, %v5611
        %v5615 = vrot.slane %v5614, 4
        %v5616 = vadd.f32 %v5614, %v5615
        %v5617 = vrot.slane %v5616, 2
        %v5618 = vadd.f32 %v5616, %v5617
        %v5619 = vrot.slane %v5618, 1
        %v5620 = vadd.f32 %v5618, %v5619
        %v5621 = vld [vmem:[%s1108] sm:$0xff]
        %v5622 = vld [vmem:[%s1108 + $0x8] sm:$0xff]
        %v5623 = vld [vmem:[%s1108 + $0x10] sm:$0xff]
        %v5624 = vld [vmem:[%s1108 + $0x18] sm:$0xff]
        %v5625 = vld [vmem:[%s1108 + $0x20] sm:$0xff]
        %v5626 = vld [vmem:[%s1108 + $0x28] sm:$0xff]
        %v5627 = vld [vmem:[%s1108 + $0x30] sm:$0xff]
        %v5628 = vld [vmem:[%s1108 + $0x38] sm:$0xff]
        %v5629 = vmul.f32 %v5539, %v5621
        %v5630 = vmul.f32 %v5540, %v5622
        %v5631 = vmul.f32 %v5543, %v5623
        %v5632 = vmul.f32 %v5544, %v5624
        %v5633 = vmul.f32 %v5547, %v5625
        %v5634 = vmul.f32 %v5548, %v5626
        %v5635 = vmul.f32 %v5551, %v5627
        %v5636 = vmul.f32 %v5552, %v5628
        %v5637 = vadd.f32 %v5629, %v5630
        %5638 = vadd.xlane.f32.xlu0 %v5637
        %v5639 = vpop.xlane.xlu0 %5638
        %v5640 = vadd.f32 %v5631, %v5632
        %5641 = vadd.xlane.f32.xlu0 %v5640
        %v5642 = vpop.xlane.xlu0 %5641
        %v5643 = vadd.f32 %v5633, %v5634
        %5644 = vadd.xlane.f32.xlu0 %v5643
        %v5645 = vpop.xlane.xlu0 %5644
        %v5646 = vadd.f32 %v5635, %v5636
        %5647 = vadd.xlane.f32.xlu0 %v5646
        %v5648 = vpop.xlane.xlu0 %5647
        %v5649 = vadd.f32 %v5639, %v5642
        %v5650 = vadd.f32 %v5649, %v5645
        %v5651 = vadd.f32 %v5650, %v5648
        %v5652 = vrot.slane %v5651, 4
        %v5653 = vadd.f32 %v5651, %v5652
        %v5654 = vrot.slane %v5653, 2
        %v5655 = vadd.f32 %v5653, %v5654
        %v5656 = vrot.slane %v5655, 1
        %v5657 = vadd.f32 %v5655, %v5656
        %v5658 = vmul.f32 %v5541, %v5621
        %v5659 = vmul.f32 %v5542, %v5622
        %v5660 = vmul.f32 %v5545, %v5623
        %v5661 = vmul.f32 %v5546, %v5624
        %v5662 = vmul.f32 %v5549, %v5625
        %v5663 = vmul.f32 %v5550, %v5626
        %v5664 = vmul.f32 %v5553, %v5627
        %v5665 = vmul.f32 %v5554, %v5628
        %v5666 = vadd.f32 %v5658, %v5659
        %5667 = vadd.xlane.f32.xlu0 %v5666
        %v5668 = vpop.xlane.xlu0 %5667
        %v5669 = vadd.f32 %v5660, %v5661
        %5670 = vadd.xlane.f32.xlu0 %v5669
        %v5671 = vpop.xlane.xlu0 %5670
        %v5672 = vadd.f32 %v5662, %v5663
        %5673 = vadd.xlane.f32.xlu0 %v5672
        %v5674 = vpop.xlane.xlu0 %5673
        %v5675 = vadd.f32 %v5664, %v5665
        %5676 = vadd.xlane.f32.xlu0 %v5675
        %v5677 = vpop.xlane.xlu0 %5676
        %v5678 = vadd.f32 %v5668, %v5671
        %v5679 = vadd.f32 %v5678, %v5674
        %v5680 = vadd.f32 %v5679, %v5677
        %v5681 = vrot.slane %v5680, 4
        %v5682 = vadd.f32 %v5680, %v5681
        %v5683 = vrot.slane %v5682, 2
        %v5684 = vadd.f32 %v5682, %v5683
        %v5685 = vrot.slane %v5684, 1
        %v5686 = vadd.f32 %v5684, %v5685
        %v5687 = vld [vmem:[%s1175] sm:$0xff]
        %v5688 = vld [vmem:[%s1175 + $0x8] sm:$0xff]
        %v5689 = vld [vmem:[%s1175 + $0x10] sm:$0xff]
        %v5690 = vld [vmem:[%s1175 + $0x18] sm:$0xff]
        %v5691 = vld [vmem:[%s1175 + $0x20] sm:$0xff]
        %v5692 = vld [vmem:[%s1175 + $0x28] sm:$0xff]
        %v5693 = vld [vmem:[%s1175 + $0x30] sm:$0xff]
        %v5694 = vld [vmem:[%s1175 + $0x38] sm:$0xff]
        %v5695 = vmul.f32 %v5539, %v5687
        %v5696 = vmul.f32 %v5540, %v5688
        %v5697 = vmul.f32 %v5543, %v5689
        %v5698 = vmul.f32 %v5544, %v5690
        %v5699 = vmul.f32 %v5547, %v5691
        %v5700 = vmul.f32 %v5548, %v5692
        %v5701 = vmul.f32 %v5551, %v5693
        %v5702 = vmul.f32 %v5552, %v5694
        %v5703 = vadd.f32 %v5695, %v5696
        %5704 = vadd.xlane.f32.xlu0 %v5703
        %v5705 = vpop.xlane.xlu0 %5704
        %v5706 = vadd.f32 %v5697, %v5698
        %5707 = vadd.xlane.f32.xlu0 %v5706
        %v5708 = vpop.xlane.xlu0 %5707
        %v5709 = vadd.f32 %v5699, %v5700
        %5710 = vadd.xlane.f32.xlu0 %v5709
        %v5711 = vpop.xlane.xlu0 %5710
        %v5712 = vadd.f32 %v5701, %v5702
        %5713 = vadd.xlane.f32.xlu0 %v5712
        %v5714 = vpop.xlane.xlu0 %5713
        %v5715 = vadd.f32 %v5705, %v5708
        %v5716 = vadd.f32 %v5715, %v5711
        %v5717 = vadd.f32 %v5716, %v5714
        %v5718 = vrot.slane %v5717, 4
        %v5719 = vadd.f32 %v5717, %v5718
        %v5720 = vrot.slane %v5719, 2
        %v5721 = vadd.f32 %v5719, %v5720
        %v5722 = vrot.slane %v5721, 1
        %v5723 = vadd.f32 %v5721, %v5722
        %v5724 = vmul.f32 %v5541, %v5687
        %v5725 = vmul.f32 %v5542, %v5688
        %v5726 = vmul.f32 %v5545, %v5689
        %v5727 = vmul.f32 %v5546, %v5690
        %v5728 = vmul.f32 %v5549, %v5691
        %v5729 = vmul.f32 %v5550, %v5692
        %v5730 = vmul.f32 %v5553, %v5693
        %v5731 = vmul.f32 %v5554, %v5694
        %v5732 = vadd.f32 %v5724, %v5725
        %5733 = vadd.xlane.f32.xlu0 %v5732
        %v5734 = vpop.xlane.xlu0 %5733
        %v5735 = vadd.f32 %v5726, %v5727
        %5736 = vadd.xlane.f32.xlu0 %v5735
        %v5737 = vpop.xlane.xlu0 %5736
        %v5738 = vadd.f32 %v5728, %v5729
        %5739 = vadd.xlane.f32.xlu0 %v5738
        %v5740 = vpop.xlane.xlu0 %5739
        %v5741 = vadd.f32 %v5730, %v5731
        %5742 = vadd.xlane.f32.xlu0 %v5741
        %v5743 = vpop.xlane.xlu0 %5742
        %v5744 = vadd.f32 %v5734, %v5737
        %v5745 = vadd.f32 %v5744, %v5740
        %v5746 = vadd.f32 %v5745, %v5743
        %v5747 = vrot.slane %v5746, 4
        %v5748 = vadd.f32 %v5746, %v5747
        %v5749 = vrot.slane %v5748, 2
        %v5750 = vadd.f32 %v5748, %v5749
        %v5751 = vrot.slane %v5750, 1
        %v5752 = vadd.f32 %v5750, %v5751
        %v5753 = vld [vmem:[%s1242] sm:$0xff]
        %v5754 = vld [vmem:[%s1242 + $0x8] sm:$0xff]
        %v5755 = vld [vmem:[%s1242 + $0x10] sm:$0xff]
        %v5756 = vld [vmem:[%s1242 + $0x18] sm:$0xff]
        %v5757 = vld [vmem:[%s1242 + $0x20] sm:$0xff]
        %v5758 = vld [vmem:[%s1242 + $0x28] sm:$0xff]
        %v5759 = vld [vmem:[%s1242 + $0x30] sm:$0xff]
        %v5760 = vld [vmem:[%s1242 + $0x38] sm:$0xff]
        %v5761 = vmul.f32 %v5539, %v5753
        %v5762 = vmul.f32 %v5540, %v5754
        %v5763 = vmul.f32 %v5543, %v5755
        %v5764 = vmul.f32 %v5544, %v5756
        %v5765 = vmul.f32 %v5547, %v5757
        %v5766 = vmul.f32 %v5548, %v5758
        %v5767 = vmul.f32 %v5551, %v5759
        %v5768 = vmul.f32 %v5552, %v5760
        %v5769 = vadd.f32 %v5761, %v5762
        %5770 = vadd.xlane.f32.xlu0 %v5769
        %v5771 = vpop.xlane.xlu0 %5770
        %v5772 = vadd.f32 %v5763, %v5764
        %5773 = vadd.xlane.f32.xlu0 %v5772
        %v5774 = vpop.xlane.xlu0 %5773
        %v5775 = vadd.f32 %v5765, %v5766
        %5776 = vadd.xlane.f32.xlu0 %v5775
        %v5777 = vpop.xlane.xlu0 %5776
        %v5778 = vadd.f32 %v5767, %v5768
        %5779 = vadd.xlane.f32.xlu0 %v5778
        %v5780 = vpop.xlane.xlu0 %5779
        %v5781 = vadd.f32 %v5771, %v5774
        %v5782 = vadd.f32 %v5781, %v5777
        %v5783 = vadd.f32 %v5782, %v5780
        %v5784 = vrot.slane %v5783, 4
        %v5785 = vadd.f32 %v5783, %v5784
        %v5786 = vrot.slane %v5785, 2
        %v5787 = vadd.f32 %v5785, %v5786
        %v5788 = vrot.slane %v5787, 1
        %v5789 = vadd.f32 %v5787, %v5788
        %v5790 = vmul.f32 %v5541, %v5753
        %v5791 = vmul.f32 %v5542, %v5754
        %v5792 = vmul.f32 %v5545, %v5755
        %v5793 = vmul.f32 %v5546, %v5756
        %v5794 = vmul.f32 %v5549, %v5757
        %v5795 = vmul.f32 %v5550, %v5758
        %v5796 = vmul.f32 %v5553, %v5759
        %v5797 = vmul.f32 %v5554, %v5760
        %v5798 = vadd.f32 %v5790, %v5791
        %5799 = vadd.xlane.f32.xlu0 %v5798
        %v5800 = vpop.xlane.xlu0 %5799
        %v5801 = vadd.f32 %v5792, %v5793
        %5802 = vadd.xlane.f32.xlu0 %v5801
        %v5803 = vpop.xlane.xlu0 %5802
        %v5804 = vadd.f32 %v5794, %v5795
        %5805 = vadd.xlane.f32.xlu0 %v5804
        %v5806 = vpop.xlane.xlu0 %5805
        %v5807 = vadd.f32 %v5796, %v5797
        %5808 = vadd.xlane.f32.xlu0 %v5807
        %v5809 = vpop.xlane.xlu0 %5808
        %v5810 = vadd.f32 %v5800, %v5803
        %v5811 = vadd.f32 %v5810, %v5806
        %v5812 = vadd.f32 %v5811, %v5809
        %v5813 = vrot.slane %v5812, 4
        %v5814 = vadd.f32 %v5812, %v5813
        %v5815 = vrot.slane %v5814, 2
        %v5816 = vadd.f32 %v5814, %v5815
        %v5817 = vrot.slane %v5816, 1
        %v5818 = vadd.f32 %v5816, %v5817
        %v5819 = vld [vmem:[%s1309] sm:$0xff]
        %v5820 = vld [vmem:[%s1309 + $0x8] sm:$0xff]
        %v5821 = vld [vmem:[%s1309 + $0x10] sm:$0xff]
        %v5822 = vld [vmem:[%s1309 + $0x18] sm:$0xff]
        %v5823 = vld [vmem:[%s1309 + $0x20] sm:$0xff]
        %v5824 = vld [vmem:[%s1309 + $0x28] sm:$0xff]
        %v5825 = vld [vmem:[%s1309 + $0x30] sm:$0xff]
        %v5826 = vld [vmem:[%s1309 + $0x38] sm:$0xff]
        %v5827 = vmul.f32 %v5539, %v5819
        %v5828 = vmul.f32 %v5540, %v5820
        %v5829 = vmul.f32 %v5543, %v5821
        %v5830 = vmul.f32 %v5544, %v5822
        %v5831 = vmul.f32 %v5547, %v5823
        %v5832 = vmul.f32 %v5548, %v5824
        %v5833 = vmul.f32 %v5551, %v5825
        %v5834 = vmul.f32 %v5552, %v5826
        %v5835 = vadd.f32 %v5827, %v5828
        %5836 = vadd.xlane.f32.xlu0 %v5835
        %v5837 = vpop.xlane.xlu0 %5836
        %v5838 = vadd.f32 %v5829, %v5830
        %5839 = vadd.xlane.f32.xlu0 %v5838
        %v5840 = vpop.xlane.xlu0 %5839
        %v5841 = vadd.f32 %v5831, %v5832
        %5842 = vadd.xlane.f32.xlu0 %v5841
        %v5843 = vpop.xlane.xlu0 %5842
        %v5844 = vadd.f32 %v5833, %v5834
        %5845 = vadd.xlane.f32.xlu0 %v5844
        %v5846 = vpop.xlane.xlu0 %5845
        %v5847 = vadd.f32 %v5837, %v5840
        %v5848 = vadd.f32 %v5847, %v5843
        %v5849 = vadd.f32 %v5848, %v5846
        %v5850 = vrot.slane %v5849, 4
        %v5851 = vadd.f32 %v5849, %v5850
        %v5852 = vrot.slane %v5851, 2
        %v5853 = vadd.f32 %v5851, %v5852
        %v5854 = vrot.slane %v5853, 1
        %v5855 = vadd.f32 %v5853, %v5854
        %v5856 = vmul.f32 %v5541, %v5819
        %v5857 = vmul.f32 %v5542, %v5820
        %v5858 = vmul.f32 %v5545, %v5821
        %v5859 = vmul.f32 %v5546, %v5822
        %v5860 = vmul.f32 %v5549, %v5823
        %v5861 = vmul.f32 %v5550, %v5824
        %v5862 = vmul.f32 %v5553, %v5825
        %v5863 = vmul.f32 %v5554, %v5826
        %v5864 = vadd.f32 %v5856, %v5857
        %5865 = vadd.xlane.f32.xlu0 %v5864
        %v5866 = vpop.xlane.xlu0 %5865
        %v5867 = vadd.f32 %v5858, %v5859
        %5868 = vadd.xlane.f32.xlu0 %v5867
        %v5869 = vpop.xlane.xlu0 %5868
        %v5870 = vadd.f32 %v5860, %v5861
        %5871 = vadd.xlane.f32.xlu0 %v5870
        %v5872 = vpop.xlane.xlu0 %5871
        %v5873 = vadd.f32 %v5862, %v5863
        %5874 = vadd.xlane.f32.xlu0 %v5873
        %v5875 = vpop.xlane.xlu0 %5874
        %v5876 = vadd.f32 %v5866, %v5869
        %v5877 = vadd.f32 %v5876, %v5872
        %v5878 = vadd.f32 %v5877, %v5875
        %v5879 = vrot.slane %v5878, 4
        %v5880 = vadd.f32 %v5878, %v5879
        %v5881 = vrot.slane %v5880, 2
        %v5882 = vadd.f32 %v5880, %v5881
        %v5883 = vrot.slane %v5882, 1
        %v5884 = vadd.f32 %v5882, %v5883
        %v5885 = vld [vmem:[%s1376] sm:$0xff]
        %v5886 = vld [vmem:[%s1376 + $0x8] sm:$0xff]
        %v5887 = vld [vmem:[%s1376 + $0x10] sm:$0xff]
        %v5888 = vld [vmem:[%s1376 + $0x18] sm:$0xff]
        %v5889 = vld [vmem:[%s1376 + $0x20] sm:$0xff]
        %v5890 = vld [vmem:[%s1376 + $0x28] sm:$0xff]
        %v5891 = vld [vmem:[%s1376 + $0x30] sm:$0xff]
        %v5892 = vld [vmem:[%s1376 + $0x38] sm:$0xff]
        %v5893 = vmul.f32 %v5539, %v5885
        %v5894 = vmul.f32 %v5540, %v5886
        %v5895 = vmul.f32 %v5543, %v5887
        %v5896 = vmul.f32 %v5544, %v5888
        %v5897 = vmul.f32 %v5547, %v5889
        %v5898 = vmul.f32 %v5548, %v5890
        %v5899 = vmul.f32 %v5551, %v5891
        %v5900 = vmul.f32 %v5552, %v5892
        %v5901 = vadd.f32 %v5893, %v5894
        %5902 = vadd.xlane.f32.xlu0 %v5901
        %v5903 = vpop.xlane.xlu0 %5902
        %v5904 = vadd.f32 %v5895, %v5896
        %5905 = vadd.xlane.f32.xlu0 %v5904
        %v5906 = vpop.xlane.xlu0 %5905
        %v5907 = vadd.f32 %v5897, %v5898
        %5908 = vadd.xlane.f32.xlu0 %v5907
        %v5909 = vpop.xlane.xlu0 %5908
        %v5910 = vadd.f32 %v5899, %v5900
        %5911 = vadd.xlane.f32.xlu0 %v5910
        %v5912 = vpop.xlane.xlu0 %5911
        %v5913 = vadd.f32 %v5903, %v5906
        %v5914 = vadd.f32 %v5913, %v5909
        %v5915 = vadd.f32 %v5914, %v5912
        %v5916 = vrot.slane %v5915, 4
        %v5917 = vadd.f32 %v5915, %v5916
        %v5918 = vrot.slane %v5917, 2
        %v5919 = vadd.f32 %v5917, %v5918
        %v5920 = vrot.slane %v5919, 1
        %v5921 = vadd.f32 %v5919, %v5920
        %v5922 = vmul.f32 %v5541, %v5885
        %v5923 = vmul.f32 %v5542, %v5886
        %v5924 = vmul.f32 %v5545, %v5887
        %v5925 = vmul.f32 %v5546, %v5888
        %v5926 = vmul.f32 %v5549, %v5889
        %v5927 = vmul.f32 %v5550, %v5890
        %v5928 = vmul.f32 %v5553, %v5891
        %v5929 = vmul.f32 %v5554, %v5892
        %v5930 = vadd.f32 %v5922, %v5923
        %5931 = vadd.xlane.f32.xlu0 %v5930
        %v5932 = vpop.xlane.xlu0 %5931
        %v5933 = vadd.f32 %v5924, %v5925
        %5934 = vadd.xlane.f32.xlu0 %v5933
        %v5935 = vpop.xlane.xlu0 %5934
        %v5936 = vadd.f32 %v5926, %v5927
        %5937 = vadd.xlane.f32.xlu0 %v5936
        %v5938 = vpop.xlane.xlu0 %5937
        %v5939 = vadd.f32 %v5928, %v5929
        %5940 = vadd.xlane.f32.xlu0 %v5939
        %v5941 = vpop.xlane.xlu0 %5940
        %v5942 = vadd.f32 %v5932, %v5935
        %v5943 = vadd.f32 %v5942, %v5938
        %v5944 = vadd.f32 %v5943, %v5941
        %v5945 = vrot.slane %v5944, 4
        %v5946 = vadd.f32 %v5944, %v5945
        %v5947 = vrot.slane %v5946, 2
        %v5948 = vadd.f32 %v5946, %v5947
        %v5949 = vrot.slane %v5948, 1
        %v5950 = vadd.f32 %v5948, %v5949
        %v5951 = vld [vmem:[%s1443] sm:$0xff]
        %v5952 = vld [vmem:[%s1443 + $0x8] sm:$0xff]
        %v5953 = vld [vmem:[%s1443 + $0x10] sm:$0xff]
        %v5954 = vld [vmem:[%s1443 + $0x18] sm:$0xff]
        %v5955 = vld [vmem:[%s1443 + $0x20] sm:$0xff]
        %v5956 = vld [vmem:[%s1443 + $0x28] sm:$0xff]
        %v5957 = vld [vmem:[%s1443 + $0x30] sm:$0xff]
        %v5958 = vld [vmem:[%s1443 + $0x38] sm:$0xff]
        %v5959 = vmul.f32 %v5539, %v5951
        %v5960 = vmul.f32 %v5540, %v5952
        %v5961 = vmul.f32 %v5543, %v5953
        %v5962 = vmul.f32 %v5544, %v5954
        %v5963 = vmul.f32 %v5547, %v5955
        %v5964 = vmul.f32 %v5548, %v5956
        %v5965 = vmul.f32 %v5551, %v5957
        %v5966 = vmul.f32 %v5552, %v5958
        %v5967 = vadd.f32 %v5959, %v5960
        %5968 = vadd.xlane.f32.xlu0 %v5967
        %v5969 = vpop.xlane.xlu0 %5968
        %v5970 = vadd.f32 %v5961, %v5962
        %5971 = vadd.xlane.f32.xlu0 %v5970
        %v5972 = vpop.xlane.xlu0 %5971
        %v5973 = vadd.f32 %v5963, %v5964
        %5974 = vadd.xlane.f32.xlu0 %v5973
        %v5975 = vpop.xlane.xlu0 %5974
        %v5976 = vadd.f32 %v5965, %v5966
        %5977 = vadd.xlane.f32.xlu0 %v5976
        %v5978 = vpop.xlane.xlu0 %5977
        %v5979 = vadd.f32 %v5969, %v5972
        %v5980 = vadd.f32 %v5979, %v5975
        %v5981 = vadd.f32 %v5980, %v5978
        %v5982 = vrot.slane %v5981, 4
        %v5983 = vadd.f32 %v5981, %v5982
        %v5984 = vrot.slane %v5983, 2
        %v5985 = vadd.f32 %v5983, %v5984
        %v5986 = vrot.slane %v5985, 1
        %v5987 = vadd.f32 %v5985, %v5986
        %v5988 = vmul.f32 %v5541, %v5951
        %v5989 = vmul.f32 %v5542, %v5952
        %v5990 = vmul.f32 %v5545, %v5953
        %v5991 = vmul.f32 %v5546, %v5954
        %v5992 = vmul.f32 %v5549, %v5955
        %v5993 = vmul.f32 %v5550, %v5956
        %v5994 = vmul.f32 %v5553, %v5957
        %v5995 = vmul.f32 %v5554, %v5958
        %v5996 = vadd.f32 %v5988, %v5989
        %5997 = vadd.xlane.f32.xlu0 %v5996
        %v5998 = vpop.xlane.xlu0 %5997
        %v5999 = vadd.f32 %v5990, %v5991
        %6000 = vadd.xlane.f32.xlu0 %v5999
        %v6001 = vpop.xlane.xlu0 %6000
        %v6002 = vadd.f32 %v5992, %v5993
        %6003 = vadd.xlane.f32.xlu0 %v6002
        %v6004 = vpop.xlane.xlu0 %6003
        %v6005 = vadd.f32 %v5994, %v5995
        %6006 = vadd.xlane.f32.xlu0 %v6005
        %v6007 = vpop.xlane.xlu0 %6006
        %v6008 = vadd.f32 %v5998, %v6001
        %v6009 = vadd.f32 %v6008, %v6004
        %v6010 = vadd.f32 %v6009, %v6007
        %v6011 = vrot.slane %v6010, 4
        %v6012 = vadd.f32 %v6010, %v6011
        %v6013 = vrot.slane %v6012, 2
        %v6014 = vadd.f32 %v6012, %v6013
        %v6015 = vrot.slane %v6014, 1
        %v6016 = vadd.f32 %v6014, %v6015
        %v6017 = vld [vmem:[%s1510] sm:$0xff]
        %v6018 = vld [vmem:[%s1510 + $0x8] sm:$0xff]
        %v6019 = vld [vmem:[%s1510 + $0x10] sm:$0xff]
        %v6020 = vld [vmem:[%s1510 + $0x18] sm:$0xff]
        %v6021 = vld [vmem:[%s1510 + $0x20] sm:$0xff]
        %v6022 = vld [vmem:[%s1510 + $0x28] sm:$0xff]
        %v6023 = vld [vmem:[%s1510 + $0x30] sm:$0xff]
        %v6024 = vld [vmem:[%s1510 + $0x38] sm:$0xff]
        %v6025 = vmul.f32 %v5539, %v6017
        %v6026 = vmul.f32 %v5540, %v6018
        %v6027 = vmul.f32 %v5543, %v6019
        %v6028 = vmul.f32 %v5544, %v6020
        %v6029 = vmul.f32 %v5547, %v6021
        %v6030 = vmul.f32 %v5548, %v6022
        %v6031 = vmul.f32 %v5551, %v6023
        %v6032 = vmul.f32 %v5552, %v6024
        %v6033 = vadd.f32 %v6025, %v6026
        %6034 = vadd.xlane.f32.xlu0 %v6033
        %v6035 = vpop.xlane.xlu0 %6034
        %v6036 = vadd.f32 %v6027, %v6028
        %6037 = vadd.xlane.f32.xlu0 %v6036
        %v6038 = vpop.xlane.xlu0 %6037
        %v6039 = vadd.f32 %v6029, %v6030
        %6040 = vadd.xlane.f32.xlu0 %v6039
        %v6041 = vpop.xlane.xlu0 %6040
        %v6042 = vadd.f32 %v6031, %v6032
        %6043 = vadd.xlane.f32.xlu0 %v6042
        %v6044 = vpop.xlane.xlu0 %6043
        %v6045 = vadd.f32 %v6035, %v6038
        %v6046 = vadd.f32 %v6045, %v6041
        %v6047 = vadd.f32 %v6046, %v6044
        %v6048 = vrot.slane %v6047, 4
        %v6049 = vadd.f32 %v6047, %v6048
        %v6050 = vrot.slane %v6049, 2
        %v6051 = vadd.f32 %v6049, %v6050
        %v6052 = vrot.slane %v6051, 1
        %v6053 = vadd.f32 %v6051, %v6052
        %v6054 = vmul.f32 %v5541, %v6017
        %v6055 = vmul.f32 %v5542, %v6018
        %v6056 = vmul.f32 %v5545, %v6019
        %v6057 = vmul.f32 %v5546, %v6020
        %v6058 = vmul.f32 %v5549, %v6021
        %v6059 = vmul.f32 %v5550, %v6022
        %v6060 = vmul.f32 %v5553, %v6023
        %v6061 = vmul.f32 %v5554, %v6024
        %v6062 = vadd.f32 %v6054, %v6055
        %6063 = vadd.xlane.f32.xlu0 %v6062
        %v6064 = vpop.xlane.xlu0 %6063
        %v6065 = vadd.f32 %v6056, %v6057
        %6066 = vadd.xlane.f32.xlu0 %v6065
        %v6067 = vpop.xlane.xlu0 %6066
        %v6068 = vadd.f32 %v6058, %v6059
        %6069 = vadd.xlane.f32.xlu0 %v6068
        %v6070 = vpop.xlane.xlu0 %6069
        %v6071 = vadd.f32 %v6060, %v6061
        %6072 = vadd.xlane.f32.xlu0 %v6071
        %v6073 = vpop.xlane.xlu0 %6072
        %v6074 = vadd.f32 %v6064, %v6067
        %v6075 = vadd.f32 %v6074, %v6070
        %v6076 = vadd.f32 %v6075, %v6073
        %v6077 = vrot.slane %v6076, 4
        %v6078 = vadd.f32 %v6076, %v6077
        %v6079 = vrot.slane %v6078, 2
        %v6080 = vadd.f32 %v6078, %v6079
        %v6081 = vrot.slane %v6080, 1
        %v6082 = vadd.f32 %v6080, %v6081
        %v6083 = vld [vmem:[%s1577] sm:$0xff]
        %v6084 = vld [vmem:[%s1577 + $0x8] sm:$0xff]
        %v6085 = vld [vmem:[%s1577 + $0x10] sm:$0xff]
        %v6086 = vld [vmem:[%s1577 + $0x18] sm:$0xff]
        %v6087 = vld [vmem:[%s1577 + $0x20] sm:$0xff]
        %v6088 = vld [vmem:[%s1577 + $0x28] sm:$0xff]
        %v6089 = vld [vmem:[%s1577 + $0x30] sm:$0xff]
        %v6090 = vld [vmem:[%s1577 + $0x38] sm:$0xff]
        %v6091 = vmul.f32 %v5539, %v6083
        %v6092 = vmul.f32 %v5540, %v6084
        %v6093 = vmul.f32 %v5543, %v6085
        %v6094 = vmul.f32 %v5544, %v6086
        %v6095 = vmul.f32 %v5547, %v6087
        %v6096 = vmul.f32 %v5548, %v6088
        %v6097 = vmul.f32 %v5551, %v6089
        %v6098 = vmul.f32 %v5552, %v6090
        %v6099 = vadd.f32 %v6091, %v6092
        %6100 = vadd.xlane.f32.xlu0 %v6099
        %v6101 = vpop.xlane.xlu0 %6100
        %v6102 = vadd.f32 %v6093, %v6094
        %6103 = vadd.xlane.f32.xlu0 %v6102
        %v6104 = vpop.xlane.xlu0 %6103
        %v6105 = vadd.f32 %v6095, %v6096
        %6106 = vadd.xlane.f32.xlu0 %v6105
        %v6107 = vpop.xlane.xlu0 %6106
        %v6108 = vadd.f32 %v6097, %v6098
        %6109 = vadd.xlane.f32.xlu0 %v6108
        %v6110 = vpop.xlane.xlu0 %6109
        %v6111 = vadd.f32 %v6101, %v6104
        %v6112 = vadd.f32 %v6111, %v6107
        %v6113 = vadd.f32 %v6112, %v6110
        %v6114 = vrot.slane %v6113, 4
        %v6115 = vadd.f32 %v6113, %v6114
        %v6116 = vrot.slane %v6115, 2
        %v6117 = vadd.f32 %v6115, %v6116
        %v6118 = vrot.slane %v6117, 1
        %v6119 = vadd.f32 %v6117, %v6118
        %v6120 = vmul.f32 %v5541, %v6083
        %v6121 = vmul.f32 %v5542, %v6084
        %v6122 = vmul.f32 %v5545, %v6085
        %v6123 = vmul.f32 %v5546, %v6086
        %v6124 = vmul.f32 %v5549, %v6087
        %v6125 = vmul.f32 %v5550, %v6088
        %v6126 = vmul.f32 %v5553, %v6089
        %v6127 = vmul.f32 %v5554, %v6090
        %v6128 = vadd.f32 %v6120, %v6121
        %6129 = vadd.xlane.f32.xlu0 %v6128
        %v6130 = vpop.xlane.xlu0 %6129
        %v6131 = vadd.f32 %v6122, %v6123
        %6132 = vadd.xlane.f32.xlu0 %v6131
        %v6133 = vpop.xlane.xlu0 %6132
        %v6134 = vadd.f32 %v6124, %v6125
        %6135 = vadd.xlane.f32.xlu0 %v6134
        %v6136 = vpop.xlane.xlu0 %6135
        %v6137 = vadd.f32 %v6126, %v6127
        %6138 = vadd.xlane.f32.xlu0 %v6137
        %v6139 = vpop.xlane.xlu0 %6138
        %v6140 = vadd.f32 %v6130, %v6133
        %v6141 = vadd.f32 %v6140, %v6136
        %v6142 = vadd.f32 %v6141, %v6139
        %v6143 = vrot.slane %v6142, 4
        %v6144 = vadd.f32 %v6142, %v6143
        %v6145 = vrot.slane %v6144, 2
        %v6146 = vadd.f32 %v6144, %v6145
        %v6147 = vrot.slane %v6146, 1
        %v6148 = vadd.f32 %v6146, %v6147
        %v6149 = vld [vmem:[%s1644] sm:$0xff]
        %v6150 = vld [vmem:[%s1644 + $0x8] sm:$0xff]
        %v6151 = vld [vmem:[%s1644 + $0x10] sm:$0xff]
        %v6152 = vld [vmem:[%s1644 + $0x18] sm:$0xff]
        %v6153 = vld [vmem:[%s1644 + $0x20] sm:$0xff]
        %v6154 = vld [vmem:[%s1644 + $0x28] sm:$0xff]
        %v6155 = vld [vmem:[%s1644 + $0x30] sm:$0xff]
        %v6156 = vld [vmem:[%s1644 + $0x38] sm:$0xff]
        %v6157 = vmul.f32 %v5539, %v6149
        %v6158 = vmul.f32 %v5540, %v6150
        %v6159 = vmul.f32 %v5543, %v6151
        %v6160 = vmul.f32 %v5544, %v6152
        %v6161 = vmul.f32 %v5547, %v6153
        %v6162 = vmul.f32 %v5548, %v6154
        %v6163 = vmul.f32 %v5551, %v6155
        %v6164 = vmul.f32 %v5552, %v6156
        %v6165 = vadd.f32 %v6157, %v6158
        %6166 = vadd.xlane.f32.xlu0 %v6165
        %v6167 = vpop.xlane.xlu0 %6166
        %v6168 = vadd.f32 %v6159, %v6160
        %6169 = vadd.xlane.f32.xlu0 %v6168
        %v6170 = vpop.xlane.xlu0 %6169
        %v6171 = vadd.f32 %v6161, %v6162
        %6172 = vadd.xlane.f32.xlu0 %v6171
        %v6173 = vpop.xlane.xlu0 %6172
        %v6174 = vadd.f32 %v6163, %v6164
        %6175 = vadd.xlane.f32.xlu0 %v6174
        %v6176 = vpop.xlane.xlu0 %6175
        %v6177 = vadd.f32 %v6167, %v6170
        %v6178 = vadd.f32 %v6177, %v6173
        %v6179 = vadd.f32 %v6178, %v6176
        %v6180 = vrot.slane %v6179, 4
        %v6181 = vadd.f32 %v6179, %v6180
        %v6182 = vrot.slane %v6181, 2
        %v6183 = vadd.f32 %v6181, %v6182
        %v6184 = vrot.slane %v6183, 1
        %v6185 = vadd.f32 %v6183, %v6184
        %v6186 = vmul.f32 %v5541, %v6149
        %v6187 = vmul.f32 %v5542, %v6150
        %v6188 = vmul.f32 %v5545, %v6151
        %v6189 = vmul.f32 %v5546, %v6152
        %v6190 = vmul.f32 %v5549, %v6153
        %v6191 = vmul.f32 %v5550, %v6154
        %v6192 = vmul.f32 %v5553, %v6155
        %v6193 = vmul.f32 %v5554, %v6156
        %v6194 = vadd.f32 %v6186, %v6187
        %6195 = vadd.xlane.f32.xlu0 %v6194
        %v6196 = vpop.xlane.xlu0 %6195
        %v6197 = vadd.f32 %v6188, %v6189
        %6198 = vadd.xlane.f32.xlu0 %v6197
        %v6199 = vpop.xlane.xlu0 %6198
        %v6200 = vadd.f32 %v6190, %v6191
        %6201 = vadd.xlane.f32.xlu0 %v6200
        %v6202 = vpop.xlane.xlu0 %6201
        %v6203 = vadd.f32 %v6192, %v6193
        %6204 = vadd.xlane.f32.xlu0 %v6203
        %v6205 = vpop.xlane.xlu0 %6204
        %v6206 = vadd.f32 %v6196, %v6199
        %v6207 = vadd.f32 %v6206, %v6202
        %v6208 = vadd.f32 %v6207, %v6205
        %v6209 = vrot.slane %v6208, 4
        %v6210 = vadd.f32 %v6208, %v6209
        %v6211 = vrot.slane %v6210, 2
        %v6212 = vadd.f32 %v6210, %v6211
        %v6213 = vrot.slane %v6212, 1
        %v6214 = vadd.f32 %v6212, %v6213
        %v6215 = vsel %vm1711, %v5591, %v5657
        %v6216 = vsel %vm1713, %v6215, %v5723
        %v6217 = vsel %vm1715, %v6216, %v5789
        %v6218 = vsel %vm1717, %v6217, %v5855
        %v6219 = vsel %vm1719, %v6218, %v5921
        %v6220 = vsel %vm1721, %v6219, %v5987
        %v6221 = vsel %vm1723, %v6220, %v6053
        %v6222 = vsel %vm1725, %v6221, %v6119
        %v6223 = vsel %vm1727, %v6222, %v6185
        %v6224 = vsel %vm1711, %v5620, %v5686
        %v6225 = vsel %vm1713, %v6224, %v5752
        %v6226 = vsel %vm1715, %v6225, %v5818
        %v6227 = vsel %vm1717, %v6226, %v5884
        %v6228 = vsel %vm1719, %v6227, %v5950
        %v6229 = vsel %vm1721, %v6228, %v6016
        %v6230 = vsel %vm1723, %v6229, %v6082
        %v6231 = vsel %vm1725, %v6230, %v6148
        %v6232 = vsel %vm1727, %v6231, %v6214
        %v6234 = vrot.slane %v6232, 7
        %v6236 = vsel %vm1741, %v6223, %v6234
        %v6237 = vadd.f32 %v6236, %v1744
        %v6238 = vld [vmem:[#allocation3] sm:$0x3]
        %v6239 = vmul.f32 %v6238, 0.9
        %v6240 = vadd.f32 %v6239, %v6237
        %vm6241 = vcmp.gt.f32.partialorder %v6238, 1.0
        %v6242 = vsel %vm6241, 1, 0
        %v6243 = vcvt.s32.f32 %v6242
        %v6244 = vsub.f32 %v6240, %v6243
        %6245 = vst.msk [vmem:[#allocation3] sm:$0x3] %vm1754, %v6244
        %vm6246 = vcmp.gt.f32.partialorder %v6244, 1.0
        %v6247 = vsel %vm6246, 1, 0
        %v6248 = vcvt.s32.f32 %v6247
        %s6249 = scalar_lea.vmem %s193, 6 [#allocation4]
        %6250 = vst.msk [vmem:[%s6249] sm:$0x3] %vm1754, %v6248
        %s6251 = sand.u32 %s115, 1
        %s6252 = scalar_lea.sflag [#allocation5], %s6251
        %s6253 = sand.u32 %s115, 1
        %s6254 = smul.addr %s6253, 8
        %s6255 = scalar_lea.vmem [#allocation4], %s6254
        // Predicated region
        $region41: #{snn_forward.1} parent=35 // pred_check
          %p6256 = pneg %p125
        $region42: #{snn_forward.1} parent=35 // pred_check_branch
          %6258 = sbr.rel (%p6256) target = $region44
        $region43: #{snn_forward.1} parent=35 // pred_region
          %s6259 = smul.u32 4, %s18
          %6261 = vsyncadd %s6252, 0
          %s6262 = smul.addr %s6259, 2
          %s6263 = scalar_lea.hbm %s4, %s6262
          %s6264 = sshll.u32 %s6255, 4
          %s6265 = int_to_ptr.vmem [resolvable:$true] %s6264
          %s6266 = sshll.u32 %s6263, 4
          %s6267 = int_to_ptr.hbm [resolvable:$true] %s6266
          %6272 = dma.vmem_to_hbm [thread:$0]  %s6265, 128, %s6267, %s6252, 32, 32, 2
        $region44: #{snn_forward.1} parent=35 // pred_fallthru
          _
      $region36: #{snn_forward.1} parent=5 // pred_fallthru
        _
      %p6273 = scmp.le.s32.totalorder 2, %s13
      // Predicated region
      $region45: #{snn_forward.1} parent=5 // pred_check
        %p6274 = pneg %p6273
      $region46: #{snn_forward.1} parent=5 // pred_check_branch
        %6276 = sbr.rel (%p6274) target = $region48
      $region47: #{snn_forward.1} parent=5 // pred_region
        %s6277 = ssub.s32 %s13, 2
        // Predicated region
        $region49: #{snn_forward.1} parent=47 // pred_check
          %p6278 = pneg %p131
        $region50: #{snn_forward.1} parent=47 // pred_check_branch
          %6280 = sbr.rel (%p6278) target = $region52
        $region51: #{snn_forward.1} parent=47 // pred_region
          %s6281 = sand.u32 %s116, 1
          %s6282 = scalar_lea.sflag [#allocation5], %s6281
          %s6283 = sand.u32 %s116, 1
          %s6284 = smul.addr %s6283, 8
          %s6285 = scalar_lea.vmem [#allocation4], %s6284
          %6287 = dma.done %s6282, 128
        $region52: #{snn_forward.1} parent=47 // pred_fallthru
          _
      $region48: #{snn_forward.1} parent=5 // pred_fallthru
        _
    $region6: #{snn_forward.1} parent=1 // loop_footer
      %s17 = sadd.s32 1, %s13
    $region7: #{snn_forward.1} parent=1 // loop_footer_branch
      %12 = sbr.rel target = $region3
    $region8: #{snn_forward.1} parent=1 // loop_exit
      _
    %6288 = vsyncpa [#allocation5], 1
    %s6289 = scalar_lea.sflag [#allocation5], 1
    %6290 = vsyncpa %s6289, 1

</llo_original>
